<compile_context>
chip_gen: v7x
topology: tpu7x:2x2x1
jax: 0.10.0
libtpu: 0.0.40
codegen_flags: <defaults>
</compile_context>

<pallas_src>
import jax
import jax.numpy as jnp
from jax.experimental import pallas as pl
from jax.experimental.pallas import tpu as pltpu

NUM_LAYERS = 4
HEADS = 3
NEG_SLOPE = 0.2          # GATConv default negative_slope
LN_EPS = 1e-5            # nn.LayerNorm default eps
MASK_VALUE = -1e30       # additive mask for non-edges (f32-representable)


# ----------------------------------------------------------------------------
# Fused kernel: [GATConv(heads=H, concat=False) + Dropout(eval) + LayerNorm] x L
#               + global_mean_pool of the input and of every layer's output.
# One grid point == one full stack (molecule or protein).
# ----------------------------------------------------------------------------
def gat_stack_kernel(x_ref, mask_ref, pool_ref, w_ref, asrc_ref, adst_ref,
                     bias_ref, gamma_ref, beta_ref, feats_ref,
                     s_stack_ref, p_ref):
    x = x_ref[...]               # (N, C)  f32
    mask_add = mask_ref[...]     # (N, N)  f32, 0 / -1e30 (hoisted out of the head loop)
    pool = pool_ref[...]         # (B, N)  f32 normalized segment-indicator matrix

    n, c = x.shape
    num_layers = w_ref.shape[0]
    n_heads = adst_ref.shape[1]
    inv_heads = 1.0 / float(n_heads)

    # pooled input features (fused global_mean_pool)
    pooled = [jnp.dot(pool, x, preferred_element_type=jnp.float32)]   # (B, C)

    for l in range(num_layers):                                  # static unroll, L = 4
        # ---- GATConv: single fused head projection (bf16 MXU, f32 acc) ----
        x_bf = x.astype(jnp.bfloat16)
        s_all = jnp.dot(x_bf, w_ref[l],
                        preferred_element_type=jnp.float32)      # (N, H*C)

        # Stash per-head bf16 slices in VMEM (bounds live ranges, feeds the fused
        # K = H*N aggregation matmul) and compute destination terms while s_all
        # is live (VPU mul + one lane reduce per head).
        a_dst = []
        for h in range(n_heads):                                 # static unroll, H = 3
            s_h = s_all[:, h * c:(h + 1) * c]                    # lane-aligned static slice
            s_stack_ref[h * n:(h + 1) * n, :] = s_h.astype(jnp.bfloat16)
            a_dst.append(jnp.sum(s_h * adst_ref[l, h], axis=-1,
                                 keepdims=True))                 # (N, 1)

        # source attention terms for ALL heads: one (8, H*C) x (N, H*C)^T matmul
        # (asrc padded to 8 sublanes host-side, block-diagonal per head) -> (8, N)
        a_src_all = jax.lax.dot_general(
            asrc_ref[l], s_all, (((1,), (1,)), ((), ())),
            preferred_element_type=jnp.float32)

        # ---- per-head masked softmax; fold 1/denom and 1/heads into p ----
        for h in range(n_heads):
            e = a_dst[h] + a_src_all[h:h + 1, :]                 # e[i,j] = dst_i + src_j
            e = jnp.maximum(e, NEG_SLOPE * e)                    # LeakyReLU(0.2)
            e = e + mask_add                                     # additive neighbour mask
            e = e - jnp.max(e, axis=-1, keepdims=True)           # stable softmax over j (f32)
            p = jnp.exp(e)
            denom = jnp.sum(p, axis=-1, keepdims=True)           # >= 1 (self-loops guaranteed)
            scale = pl.reciprocal(denom, approx=False) * inv_heads   # EUP, off the VPU path
            p_ref[:, h * n:(h + 1) * n] = (p * scale).astype(jnp.bfloat16)

        # ---- single K = H*N aggregation matmul, no VPU ops between MXU pushes ----
        out = jnp.dot(p_ref[...], s_stack_ref[...],
                      preferred_element_type=jnp.float32)        # (N, C)
        out = out + bias_ref[l]                                  # concat=False: head-mean folded into p
        # TODO(synk): nn.Dropout(p=0.5) is identity in eval mode; no RNG dropout applied here.

        # ---- LayerNorm over channels (f32) ----
        mu = jnp.mean(out, axis=-1, keepdims=True)
        var = jnp.mean((out - mu) ** 2, axis=-1, keepdims=True)
        out = (out - mu) * jax.lax.rsqrt(var + LN_EPS)
        x = out * gamma_ref[l] + beta_ref[l]

        # fused global_mean_pool of this layer's output
        pooled.append(jnp.dot(pool, x, preferred_element_type=jnp.float32))

    # single lane-dense store of all pooled rows: (B, (L+1)*C)
    feats_ref[...] = jnp.concatenate(pooled, axis=-1)


def gat_stacks(x2, mask2, pool2, p2):
    """Run BOTH GAT stacks (molecule, protein) in one pallas_call on a 2-point
    parallel grid. Returns pooled features (2, B, L + 1, C)."""
    g, n, c = x2.shape
    b = pool2.shape[1]
    num_layers = int(p2["w"].shape[1])
    heads = int(p2["adst"].shape[2])

    flops = g * (num_layers * (
        2 * n * c * (heads * c)            # fused head projection
        + 2 * 8 * (heads * c) * n          # source attention coefficients
        + heads * 2 * n * c                # destination coefficients (VPU + reduce)
        + 2 * n * (heads * n) * c          # fused K = H*N aggregation matmul
        + 2 * b * n * c                    # per-layer pooling
    ) + 2 * b * n * c)                     # input pooling
    bytes_accessed = int(
        x2.size * 4 + mask2.size * 4 + pool2.size * 4
        + p2["w"].size * 2 + p2["asrc_bd"].size * 4 + p2["adst"].size * 4
        + (p2["bias"].size + p2["gamma"].size + p2["beta"].size) * 4
        + g * b * (num_layers + 1) * c * 4)
    cost = pl.CostEstimate(flops=flops,
                           transcendentals=g * num_layers * heads * n * n,
                           bytes_accessed=bytes_accessed)

    grid_spec = pltpu.PrefetchScalarGridSpec(
        num_scalar_prefetch=0,
        grid=(g,),
        in_specs=[
            pl.BlockSpec((None, n, c), lambda i: (i, 0, 0)),                         # x
            pl.BlockSpec((None, n, n), lambda i: (i, 0, 0)),                         # mask
            pl.BlockSpec((None, b, n), lambda i: (i, 0, 0)),                         # pool
            pl.BlockSpec((None, num_layers, c, heads * c), lambda i: (i, 0, 0, 0)),  # w
            pl.BlockSpec((None, num_layers, 8, heads * c), lambda i: (i, 0, 0, 0)),  # asrc_bd
            pl.BlockSpec((None, num_layers, heads, 1, c), lambda i: (i, 0, 0, 0, 0)),# adst
            pl.BlockSpec((None, num_layers, 1, c), lambda i: (i, 0, 0, 0)),          # bias
            pl.BlockSpec((None, num_layers, 1, c), lambda i: (i, 0, 0, 0)),          # gamma
            pl.BlockSpec((None, num_layers, 1, c), lambda i: (i, 0, 0, 0)),          # beta
        ],
        out_specs=pl.BlockSpec((None, b, (num_layers + 1) * c), lambda i: (i, 0, 0)),
        scratch_shapes=[
            pltpu.VMEM((heads * n, c), jnp.bfloat16),     # stacked per-head projections
            pltpu.VMEM((n, heads * n), jnp.bfloat16),     # pre-scaled attention matrices
        ],
    )

    feats = pl.pallas_call(
        gat_stack_kernel,
        out_shape=jax.ShapeDtypeStruct((g, b, (num_layers + 1) * c), jnp.float32),
        grid_spec=grid_spec,
        compiler_params=pltpu.CompilerParams(
            dimension_semantics=("parallel",),
            vmem_limit_bytes=32 * 1024 * 1024),
        cost_estimate=cost,
    )(x2, mask2, pool2, p2["w"], p2["asrc_bd"], p2["adst"],
      p2["bias"], p2["gamma"], p2["beta"])

    # (G, B, (L+1)*C) -> (G, B, L+1, C)   (torch output convention per stack)
    return feats.reshape(g, b, num_layers + 1, c)


# ----------------------------------------------------------------------------
# Parameter / graph construction (deterministic, in-script)
# ----------------------------------------------------------------------------
def init_gat_stack_params(key, c, heads, num_layers):
    """Stacked per-layer GATConv + LayerNorm params (Fin == Fout == c)."""
    keys = jax.random.split(key, 3 * num_layers)
    w_l, asrc_bd_l, adst_l = [], [], []
    for i in range(num_layers):
        k1, k2, k3 = keys[3 * i], keys[3 * i + 1], keys[3 * i + 2]
        w_l.append(0.1 * jax.random.normal(k1, (c, heads * c), jnp.float32))
        a_src = 0.1 * jax.random.normal(k2, (heads, c), jnp.float32)
        a_dst = 0.1 * jax.random.normal(k3, (heads, c), jnp.float32)
        # block-diagonal source-coefficient matrix, padded to 8 sublanes: (8, H*C)
        bd = jnp.zeros((8, heads * c), jnp.float32)
        for h in range(heads):
            bd = bd.at[h, h * c:(h + 1) * c].set(a_src[h])
        asrc_bd_l.append(bd)
        adst_l.append(a_dst[:, None, :])                         # (H, 1, C)
    return dict(
        w=jnp.stack(w_l).astype(jnp.bfloat16),                   # (L, C, H*C) bf16 MXU operand
        asrc_bd=jnp.stack(asrc_bd_l),                            # (L, 8, H*C) f32
        adst=jnp.stack(adst_l),                                  # (L, H, 1, C) f32
        bias=jnp.zeros((num_layers, 1, c), jnp.float32),         # GATConv bias (concat=False)
        gamma=jnp.ones((num_layers, 1, c), jnp.float32),         # LayerNorm weight
        beta=jnp.zeros((num_layers, 1, c), jnp.float32),         # LayerNorm bias
    )


def ring_adjacency_mask(num_nodes, graph_sizes):
    """Additive attention mask: 0 where edge j->i exists (undirected ring inside each
    graph + self loops, matching add_self_loops=True), -1e30 elsewhere."""
    adj = jnp.zeros((num_nodes, num_nodes), jnp.float32)
    tgt, src = [], []
    off = 0
    for gs in graph_sizes:
        for k in range(gs):
            j = off + k
            i = off + (k + 1) % gs
            tgt += [i, j]
            src += [j, i]
        off += gs
    adj = adj.at[jnp.array(tgt), jnp.array(src)].set(1.0)
    diag = jnp.arange(num_nodes)
    adj = adj.at[diag, diag].set(1.0)
    return jnp.where(adj > 0, 0.0, MASK_VALUE).astype(jnp.float32)


def mean_pool_matrix(graph_sizes, num_nodes):
    rows = []
    off = 0
    for gs in graph_sizes:
        r = jnp.zeros((num_nodes,), jnp.float32).at[off:off + gs].set(1.0 / gs)
        rows.append(r)
        off += gs
    return jnp.stack(rows)


# ----------------------------------------------------------------------------
# Forward pass (mirrors GAT.forward) — ONE pallas_call launch total
# ----------------------------------------------------------------------------
def gat_forward(params, mol_tokens, mol_mask, mol_pool, prot_x, prot_mask, prot_pool):
    # molecule_atomencoder (Embedding, padding_idx=0), then mean over the 9 atom features
    mol_x = jnp.take(params["atom_emb"], mol_tokens, axis=0)     # (Nm, 9, C) gather glue
    mol_x = jnp.mean(mol_x, axis=-2)                             # (Nm, C)

    # stack both graph stacks on a leading axis and run them on a 2-point parallel grid
    x2 = jnp.stack([mol_x, prot_x])
    mask2 = jnp.stack([mol_mask, prot_mask])
    pool2 = jnp.stack([mol_pool, prot_pool])
    p2 = jax.tree_util.tree_map(lambda a, b: jnp.stack([a, b]),
                                params["mol"], params["prot"])

    feats = gat_stacks(x2, mask2, pool2, p2)                     # (2, B, L+1, C)
    return feats[0], feats[1]


if __name__ == "__main__":
    key = jax.random.PRNGKey(0)
    # Small but lane-dense shapes consistent with the module. NOTE: torch's forward
    # concatenates pooled input features with pooled layer outputs along dim=1, which
    # requires in_channels == out_channels; we pick 128 for both stacks (this also lets
    # the two stacks share one parallel grid axis).
    C = 128
    VOCAB = 64                   # stands in for the 512*9+1 atom vocab
    GRAPH_SIZES = (64, 64)       # batch of 2 graphs, 128 nodes total (lane-dense)
    N = sum(GRAPH_SIZES)

    keys = jax.random.split(key, 6)
    atom_emb = 0.1 * jax.random.normal(keys[0], (VOCAB, C), jnp.float32)
    atom_emb = atom_emb.at[0].set(0.0)                           # padding_idx=0

    params = dict(
        atom_emb=atom_emb,
        layer_weights=jax.random.normal(keys[1], (20,), jnp.float32),  # unused in forward (matches torch)
        mol=init_gat_stack_params(keys[2], C, HEADS, NUM_LAYERS),
        prot=init_gat_stack_params(keys[3], C, HEADS, NUM_LAYERS),
    )

    mol_tokens = jax.random.randint(keys[4], (N, 9), 0, VOCAB)
    prot_x = jax.random.normal(keys[5], (N, C), jnp.float32)

    mol_mask = ring_adjacency_mask(N, GRAPH_SIZES)
    prot_mask = ring_adjacency_mask(N, GRAPH_SIZES)
    mol_pool = mean_pool_matrix(GRAPH_SIZES, N)
    prot_pool = mean_pool_matrix(GRAPH_SIZES, N)

    fwd = jax.jit(gat_forward)
    mol_feats, prot_feats = fwd(params, mol_tokens, mol_mask, mol_pool,
                                prot_x, prot_mask, prot_pool)
    jax.block_until_ready((mol_feats, prot_feats))

    assert mol_feats.shape == (len(GRAPH_SIZES), NUM_LAYERS + 1, C)
    assert prot_feats.shape == (len(GRAPH_SIZES), NUM_LAYERS + 1, C)
    assert bool(jnp.all(jnp.isfinite(mol_feats))) and bool(jnp.all(jnp.isfinite(prot_feats)))
    print("KERNEL_OK")
</pallas_src>

<mosaic_0001>
module attributes {stable_mosaic.version = 11 : i64} {
  func.func @gat_stack_kernel(%arg0: i32, %arg1: memref<1x128x128xf32, #tpu.memory_space<vmem>>, %arg2: memref<1x128x128xf32, #tpu.memory_space<vmem>>, %arg3: memref<1x2x128xf32, #tpu.memory_space<vmem>>, %arg4: memref<1x4x128x384xbf16, #tpu.memory_space<vmem>>, %arg5: memref<1x4x8x384xf32, #tpu.memory_space<vmem>>, %arg6: memref<1x4x3x1x128xf32, #tpu.memory_space<vmem>>, %arg7: memref<1x4x1x128xf32, #tpu.memory_space<vmem>>, %arg8: memref<1x4x1x128xf32, #tpu.memory_space<vmem>>, %arg9: memref<1x4x1x128xf32, #tpu.memory_space<vmem>>, %arg10: memref<1x2x640xf32, #tpu.memory_space<vmem>>, %arg11: memref<384x128xbf16, #tpu.memory_space<vmem>>, %arg12: memref<128x384xbf16, #tpu.memory_space<vmem>>) attributes {dimension_semantics = [#tpu.dimension_semantics<parallel>], iteration_bounds = array<i64: 2>, scalar_prefetch = 0 : i64, scratch_operands = 2 : i64, tpu.core_type = #tpu.core_type<tc>, window_params = [{transform_indices = @transform_0, window_bounds = array<i64: 1, 128, 128>}, {transform_indices = @transform_1, window_bounds = array<i64: 1, 128, 128>}, {transform_indices = @transform_2, window_bounds = array<i64: 1, 2, 128>}, {transform_indices = @transform_3, window_bounds = array<i64: 1, 4, 128, 384>}, {transform_indices = @transform_4, window_bounds = array<i64: 1, 4, 8, 384>}, {transform_indices = @transform_5, window_bounds = array<i64: 1, 4, 3, 1, 128>}, {transform_indices = @transform_6, window_bounds = array<i64: 1, 4, 1, 128>}, {transform_indices = @transform_7, window_bounds = array<i64: 1, 4, 1, 128>}, {transform_indices = @transform_8, window_bounds = array<i64: 1, 4, 1, 128>}, {transform_indices = @transform_9, window_bounds = array<i64: 1, 2, 640>}]} {
    %c0 = arith.constant 0 : index
    %c0_0 = arith.constant 0 : index
    %c0_1 = arith.constant 0 : index
    %0 = vector.load %arg1[%c0, %c0_0, %c0_1] : memref<1x128x128xf32, #tpu.memory_space<vmem>>, vector<1x128x128xf32>
    %1 = vector.shape_cast %0 : vector<1x128x128xf32> to vector<128x128xf32>
    %c0_2 = arith.constant 0 : index
    %c0_3 = arith.constant 0 : index
    %c0_4 = arith.constant 0 : index
    %2 = vector.load %arg2[%c0_2, %c0_3, %c0_4] : memref<1x128x128xf32, #tpu.memory_space<vmem>>, vector<1x128x128xf32>
    %3 = vector.shape_cast %2 : vector<1x128x128xf32> to vector<128x128xf32>
    %c0_5 = arith.constant 0 : index
    %c0_6 = arith.constant 0 : index
    %c0_7 = arith.constant 0 : index
    %4 = vector.load %arg3[%c0_5, %c0_6, %c0_7] : memref<1x2x128xf32, #tpu.memory_space<vmem>>, vector<1x2x128xf32>
    %5 = vector.shape_cast %4 : vector<1x2x128xf32> to vector<2x128xf32>
    %cst = arith.constant dense<0.000000e+00> : vector<2x128xf32>
    %6 = tpu.matmul %5, %1, %cst {dimension_numbers = #tpu.dot_dimension_numbers<[1], [0], [0], [1], [0, 0, 1, 1], [], []>} : vector<2x128xf32>, vector<128x128xf32>, vector<2x128xf32> -> vector<2x128xf32>
    %7 = arith.truncf %1 : vector<128x128xf32> to vector<128x128xbf16>
    %c0_8 = arith.constant 0 : index
    %c0_9 = arith.constant 0 : index
    %c0_10 = arith.constant 0 : index
    %c0_11 = arith.constant 0 : index
    %8 = vector.load %arg4[%c0_8, %c0_9, %c0_10, %c0_11] : memref<1x4x128x384xbf16, #tpu.memory_space<vmem>>, vector<1x1x128x384xbf16>
    %9 = vector.shape_cast %8 : vector<1x1x128x384xbf16> to vector<128x384xbf16>
    %cst_12 = arith.constant dense<0.000000e+00> : vector<128x384xf32>
    %10 = tpu.matmul %7, %9, %cst_12 {dimension_numbers = #tpu.dot_dimension_numbers<[1], [0], [0], [1], [0, 0, 1, 1], [], []>} : vector<128x128xbf16>, vector<128x384xbf16>, vector<128x384xf32> -> vector<128x384xf32>
    %11 = vector.extract_strided_slice %10 {offsets = [0, 0], sizes = [128, 128], strides = [1, 1]} : vector<128x384xf32> to vector<128x128xf32>
    %12 = arith.truncf %11 : vector<128x128xf32> to vector<128x128xbf16>
    %c0_13 = arith.constant 0 : index
    %c0_14 = arith.constant 0 : index
    %13 = vector.load %arg11[%c0_13, %c0_14] : memref<384x128xbf16, #tpu.memory_space<vmem>>, vector<128x128xbf16>
    tpu.vector_store %arg11[%c0_13, %c0_14], %12 {strides = array<i32>} : memref<384x128xbf16, #tpu.memory_space<vmem>>, vector<128x128xbf16>,
    %c0_15 = arith.constant 0 : index
    %c0_16 = arith.constant 0 : index
    %c0_17 = arith.constant 0 : index
    %c0_18 = arith.constant 0 : index
    %c0_19 = arith.constant 0 : index
    %14 = vector.load %arg6[%c0_15, %c0_16, %c0_17, %c0_18, %c0_19] : memref<1x4x3x1x128xf32, #tpu.memory_space<vmem>>, vector<1x1x1x1x128xf32>
    %15 = vector.shape_cast %14 : vector<1x1x1x1x128xf32> to vector<1x128xf32>
    %16 = vector.broadcast %15 : vector<1x128xf32> to vector<128x128xf32>
    %17 = arith.mulf %11, %16 : vector<128x128xf32>
    %cst_20 = arith.constant dense<0.000000e+00> : vector<128xf32>
    %18 = vector.multi_reduction <add>, %17, %cst_20 [1] : vector<128x128xf32> to vector<128xf32>
    %19 = vector.shape_cast %18 : vector<128xf32> to vector<128x1xf32>
    %20 = vector.extract_strided_slice %10 {offsets = [0, 128], sizes = [128, 128], strides = [1, 1]} : vector<128x384xf32> to vector<128x128xf32>
    %21 = arith.truncf %20 : vector<128x128xf32> to vector<128x128xbf16>
    %c128 = arith.constant 128 : index
    %c0_21 = arith.constant 0 : index
    %22 = vector.load %arg11[%c128, %c0_21] : memref<384x128xbf16, #tpu.memory_space<vmem>>, vector<128x128xbf16>
    tpu.vector_store %arg11[%c128, %c0_21], %21 {strides = array<i32>} : memref<384x128xbf16, #tpu.memory_space<vmem>>, vector<128x128xbf16>,
    %c0_22 = arith.constant 0 : index
    %c0_23 = arith.constant 0 : index
    %c1 = arith.constant 1 : index
    %c0_24 = arith.constant 0 : index
    %c0_25 = arith.constant 0 : index
    %23 = vector.load %arg6[%c0_22, %c0_23, %c1, %c0_24, %c0_25] : memref<1x4x3x1x128xf32, #tpu.memory_space<vmem>>, vector<1x1x1x1x128xf32>
    %24 = vector.shape_cast %23 : vector<1x1x1x1x128xf32> to vector<1x128xf32>
    %25 = vector.broadcast %24 : vector<1x128xf32> to vector<128x128xf32>
    %26 = arith.mulf %20, %25 : vector<128x128xf32>
    %cst_26 = arith.constant dense<0.000000e+00> : vector<128xf32>
    %27 = vector.multi_reduction <add>, %26, %cst_26 [1] : vector<128x128xf32> to vector<128xf32>
    %28 = vector.shape_cast %27 : vector<128xf32> to vector<128x1xf32>
    %29 = vector.extract_strided_slice %10 {offsets = [0, 256], sizes = [128, 128], strides = [1, 1]} : vector<128x384xf32> to vector<128x128xf32>
    %30 = arith.truncf %29 : vector<128x128xf32> to vector<128x128xbf16>
    %c256 = arith.constant 256 : index
    %c0_27 = arith.constant 0 : index
    %31 = vector.load %arg11[%c256, %c0_27] : memref<384x128xbf16, #tpu.memory_space<vmem>>, vector<128x128xbf16>
    tpu.vector_store %arg11[%c256, %c0_27], %30 {strides = array<i32>} : memref<384x128xbf16, #tpu.memory_space<vmem>>, vector<128x128xbf16>,
    %c0_28 = arith.constant 0 : index
    %c0_29 = arith.constant 0 : index
    %c2 = arith.constant 2 : index
    %c0_30 = arith.constant 0 : index
    %c0_31 = arith.constant 0 : index
    %32 = vector.load %arg6[%c0_28, %c0_29, %c2, %c0_30, %c0_31] : memref<1x4x3x1x128xf32, #tpu.memory_space<vmem>>, vector<1x1x1x1x128xf32>
    %33 = vector.shape_cast %32 : vector<1x1x1x1x128xf32> to vector<1x128xf32>
    %34 = vector.broadcast %33 : vector<1x128xf32> to vector<128x128xf32>
    %35 = arith.mulf %29, %34 : vector<128x128xf32>
    %cst_32 = arith.constant dense<0.000000e+00> : vector<128xf32>
    %36 = vector.multi_reduction <add>, %35, %cst_32 [1] : vector<128x128xf32> to vector<128xf32>
    %37 = vector.shape_cast %36 : vector<128xf32> to vector<128x1xf32>
    %c0_33 = arith.constant 0 : index
    %c0_34 = arith.constant 0 : index
    %c0_35 = arith.constant 0 : index
    %c0_36 = arith.constant 0 : index
    %38 = vector.load %arg5[%c0_33, %c0_34, %c0_35, %c0_36] : memref<1x4x8x384xf32, #tpu.memory_space<vmem>>, vector<1x1x8x384xf32>
    %39 = vector.shape_cast %38 : vector<1x1x8x384xf32> to vector<8x384xf32>
    %cst_37 = arith.constant dense<0.000000e+00> : vector<8x128xf32>
    %40 = tpu.matmul %39, %10, %cst_37 {dimension_numbers = #tpu.dot_dimension_numbers<[1], [1], [0], [0], [0, 0, 1, 0], [], []>} : vector<8x384xf32>, vector<128x384xf32>, vector<8x128xf32> -> vector<8x128xf32>
    %41 = vector.extract_strided_slice %40 {offsets = [0, 0], sizes = [1, 128], strides = [1, 1]} : vector<8x128xf32> to vector<1x128xf32>
    %42 = vector.broadcast %19 : vector<128x1xf32> to vector<128x128xf32>
    %43 = vector.broadcast %41 : vector<1x128xf32> to vector<128x128xf32>
    %44 = arith.addf %42, %43 : vector<128x128xf32>
    %cst_38 = arith.constant 2.000000e-01 : f32
    %45 = vector.broadcast %cst_38 : f32 to vector<128x128xf32>
    %46 = arith.mulf %45, %44 : vector<128x128xf32>
    %47 = arith.maximumf %44, %46 : vector<128x128xf32>
    %48 = arith.addf %47, %3 : vector<128x128xf32>
    %cst_39 = arith.constant dense<0xFF800000> : vector<128xf32>
    %49 = vector.multi_reduction <maximumf>, %48, %cst_39 [1] : vector<128x128xf32> to vector<128xf32>
    %50 = vector.shape_cast %49 : vector<128xf32> to vector<128x1xf32>
    %51 = vector.broadcast %50 : vector<128x1xf32> to vector<128x128xf32>
    %52 = arith.subf %48, %51 : vector<128x128xf32>
    %53 = math.exp %52 : vector<128x128xf32>
    %cst_40 = arith.constant dense<0.000000e+00> : vector<128xf32>
    %54 = vector.multi_reduction <add>, %53, %cst_40 [1] : vector<128x128xf32> to vector<128xf32>
    %55 = vector.shape_cast %54 : vector<128xf32> to vector<128x1xf32>
    %56 = tpu.reciprocal %55 : vector<128x1xf32> -> vector<128x1xf32>
    %cst_41 = arith.constant 0.333333343 : f32
    %57 = vector.broadcast %cst_41 : f32 to vector<128x1xf32>
    %58 = arith.mulf %56, %57 : vector<128x1xf32>
    %59 = vector.broadcast %58 : vector<128x1xf32> to vector<128x128xf32>
    %60 = arith.mulf %53, %59 : vector<128x128xf32>
    %61 = arith.truncf %60 : vector<128x128xf32> to vector<128x128xbf16>
    %c0_42 = arith.constant 0 : index
    %c0_43 = arith.constant 0 : index
    %62 = vector.load %arg12[%c0_42, %c0_43] : memref<128x384xbf16, #tpu.memory_space<vmem>>, vector<128x128xbf16>
    tpu.vector_store %arg12[%c0_42, %c0_43], %61 {strides = array<i32>} : memref<128x384xbf16, #tpu.memory_space<vmem>>, vector<128x128xbf16>,
    %63 = vector.extract_strided_slice %40 {offsets = [1, 0], sizes = [1, 128], strides = [1, 1]} : vector<8x128xf32> to vector<1x128xf32>
    %64 = vector.broadcast %28 : vector<128x1xf32> to vector<128x128xf32>
    %65 = vector.broadcast %63 : vector<1x128xf32> to vector<128x128xf32>
    %66 = arith.addf %64, %65 : vector<128x128xf32>
    %cst_44 = arith.constant 2.000000e-01 : f32
    %67 = vector.broadcast %cst_44 : f32 to vector<128x128xf32>
    %68 = arith.mulf %67, %66 : vector<128x128xf32>
    %69 = arith.maximumf %66, %68 : vector<128x128xf32>
    %70 = arith.addf %69, %3 : vector<128x128xf32>
    %cst_45 = arith.constant dense<0xFF800000> : vector<128xf32>
    %71 = vector.multi_reduction <maximumf>, %70, %cst_45 [1] : vector<128x128xf32> to vector<128xf32>
    %72 = vector.shape_cast %71 : vector<128xf32> to vector<128x1xf32>
    %73 = vector.broadcast %72 : vector<128x1xf32> to vector<128x128xf32>
    %74 = arith.subf %70, %73 : vector<128x128xf32>
    %75 = math.exp %74 : vector<128x128xf32>
    %cst_46 = arith.constant dense<0.000000e+00> : vector<128xf32>
    %76 = vector.multi_reduction <add>, %75, %cst_46 [1] : vector<128x128xf32> to vector<128xf32>
    %77 = vector.shape_cast %76 : vector<128xf32> to vector<128x1xf32>
    %78 = tpu.reciprocal %77 : vector<128x1xf32> -> vector<128x1xf32>
    %cst_47 = arith.constant 0.333333343 : f32
    %79 = vector.broadcast %cst_47 : f32 to vector<128x1xf32>
    %80 = arith.mulf %78, %79 : vector<128x1xf32>
    %81 = vector.broadcast %80 : vector<128x1xf32> to vector<128x128xf32>
    %82 = arith.mulf %75, %81 : vector<128x128xf32>
    %83 = arith.truncf %82 : vector<128x128xf32> to vector<128x128xbf16>
    %c0_48 = arith.constant 0 : index
    %c128_49 = arith.constant 128 : index
    %84 = vector.load %arg12[%c0_48, %c128_49] : memref<128x384xbf16, #tpu.memory_space<vmem>>, vector<128x128xbf16>
    tpu.vector_store %arg12[%c0_48, %c128_49], %83 {strides = array<i32>} : memref<128x384xbf16, #tpu.memory_space<vmem>>, vector<128x128xbf16>,
    %85 = vector.extract_strided_slice %40 {offsets = [2, 0], sizes = [1, 128], strides = [1, 1]} : vector<8x128xf32> to vector<1x128xf32>
    %86 = vector.broadcast %37 : vector<128x1xf32> to vector<128x128xf32>
    %87 = vector.broadcast %85 : vector<1x128xf32> to vector<128x128xf32>
    %88 = arith.addf %86, %87 : vector<128x128xf32>
    %cst_50 = arith.constant 2.000000e-01 : f32
    %89 = vector.broadcast %cst_50 : f32 to vector<128x128xf32>
    %90 = arith.mulf %89, %88 : vector<128x128xf32>
    %91 = arith.maximumf %88, %90 : vector<128x128xf32>
    %92 = arith.addf %91, %3 : vector<128x128xf32>
    %cst_51 = arith.constant dense<0xFF800000> : vector<128xf32>
    %93 = vector.multi_reduction <maximumf>, %92, %cst_51 [1] : vector<128x128xf32> to vector<128xf32>
    %94 = vector.shape_cast %93 : vector<128xf32> to vector<128x1xf32>
    %95 = vector.broadcast %94 : vector<128x1xf32> to vector<128x128xf32>
    %96 = arith.subf %92, %95 : vector<128x128xf32>
    %97 = math.exp %96 : vector<128x128xf32>
    %cst_52 = arith.constant dense<0.000000e+00> : vector<128xf32>
    %98 = vector.multi_reduction <add>, %97, %cst_52 [1] : vector<128x128xf32> to vector<128xf32>
    %99 = vector.shape_cast %98 : vector<128xf32> to vector<128x1xf32>
    %100 = tpu.reciprocal %99 : vector<128x1xf32> -> vector<128x1xf32>
    %cst_53 = arith.constant 0.333333343 : f32
    %101 = vector.broadcast %cst_53 : f32 to vector<128x1xf32>
    %102 = arith.mulf %100, %101 : vector<128x1xf32>
    %103 = vector.broadcast %102 : vector<128x1xf32> to vector<128x128xf32>
    %104 = arith.mulf %97, %103 : vector<128x128xf32>
    %105 = arith.truncf %104 : vector<128x128xf32> to vector<128x128xbf16>
    %c0_54 = arith.constant 0 : index
    %c256_55 = arith.constant 256 : index
    %106 = vector.load %arg12[%c0_54, %c256_55] : memref<128x384xbf16, #tpu.memory_space<vmem>>, vector<128x128xbf16>
    tpu.vector_store %arg12[%c0_54, %c256_55], %105 {strides = array<i32>} : memref<128x384xbf16, #tpu.memory_space<vmem>>, vector<128x128xbf16>,
    %c0_56 = arith.constant 0 : index
    %c0_57 = arith.constant 0 : index
    %107 = vector.load %arg12[%c0_56, %c0_57] : memref<128x384xbf16, #tpu.memory_space<vmem>>, vector<128x384xbf16>
    %c0_58 = arith.constant 0 : index
    %c0_59 = arith.constant 0 : index
    %108 = vector.load %arg11[%c0_58, %c0_59] : memref<384x128xbf16, #tpu.memory_space<vmem>>, vector<384x128xbf16>
    %cst_60 = arith.constant dense<0.000000e+00> : vector<128x128xf32>
    %109 = tpu.matmul %107, %108, %cst_60 {dimension_numbers = #tpu.dot_dimension_numbers<[1], [0], [0], [1], [0, 0, 1, 1], [], []>} : vector<128x384xbf16>, vector<384x128xbf16>, vector<128x128xf32> -> vector<128x128xf32>
    %c0_61 = arith.constant 0 : index
    %c0_62 = arith.constant 0 : index
    %c0_63 = arith.constant 0 : index
    %c0_64 = arith.constant 0 : index
    %110 = vector.load %arg7[%c0_61, %c0_62, %c0_63, %c0_64] : memref<1x4x1x128xf32, #tpu.memory_space<vmem>>, vector<1x1x1x128xf32>
    %111 = vector.shape_cast %110 : vector<1x1x1x128xf32> to vector<1x128xf32>
    %112 = vector.broadcast %111 : vector<1x128xf32> to vector<128x128xf32>
    %113 = arith.addf %109, %112 : vector<128x128xf32>
    %cst_65 = arith.constant dense<0.000000e+00> : vector<128xf32>
    %114 = vector.multi_reduction <add>, %113, %cst_65 [1] : vector<128x128xf32> to vector<128xf32>
    %115 = vector.shape_cast %114 : vector<128xf32> to vector<128x1xf32>
    %cst_66 = arith.constant 1.280000e+02 : f32
    %116 = vector.broadcast %cst_66 : f32 to vector<128x1xf32>
    %117 = arith.divf %115, %116 : vector<128x1xf32>
    %118 = vector.broadcast %117 : vector<128x1xf32> to vector<128x128xf32>
    %119 = arith.subf %113, %118 : vector<128x128xf32>
    %120 = arith.mulf %119, %119 : vector<128x128xf32>
    %cst_67 = arith.constant dense<0.000000e+00> : vector<128xf32>
    %121 = vector.multi_reduction <add>, %120, %cst_67 [1] : vector<128x128xf32> to vector<128xf32>
    %122 = vector.shape_cast %121 : vector<128xf32> to vector<128x1xf32>
    %cst_68 = arith.constant 1.280000e+02 : f32
    %123 = vector.broadcast %cst_68 : f32 to vector<128x1xf32>
    %124 = arith.divf %122, %123 : vector<128x1xf32>
    %125 = vector.broadcast %117 : vector<128x1xf32> to vector<128x128xf32>
    %126 = arith.subf %113, %125 : vector<128x128xf32>
    %cst_69 = arith.constant 9.99999974E-6 : f32
    %127 = vector.broadcast %cst_69 : f32 to vector<128x1xf32>
    %128 = arith.addf %124, %127 : vector<128x1xf32>
    %129 = math.rsqrt %128 : vector<128x1xf32>
    %130 = vector.broadcast %129 : vector<128x1xf32> to vector<128x128xf32>
    %131 = arith.mulf %126, %130 : vector<128x128xf32>
    %c0_70 = arith.constant 0 : index
    %c0_71 = arith.constant 0 : index
    %c0_72 = arith.constant 0 : index
    %c0_73 = arith.constant 0 : index
    %132 = vector.load %arg8[%c0_70, %c0_71, %c0_72, %c0_73] : memref<1x4x1x128xf32, #tpu.memory_space<vmem>>, vector<1x1x1x128xf32>
    %133 = vector.shape_cast %132 : vector<1x1x1x128xf32> to vector<1x128xf32>
    %134 = vector.broadcast %133 : vector<1x128xf32> to vector<128x128xf32>
    %135 = arith.mulf %131, %134 : vector<128x128xf32>
    %c0_74 = arith.constant 0 : index
    %c0_75 = arith.constant 0 : index
    %c0_76 = arith.constant 0 : index
    %c0_77 = arith.constant 0 : index
    %136 = vector.load %arg9[%c0_74, %c0_75, %c0_76, %c0_77] : memref<1x4x1x128xf32, #tpu.memory_space<vmem>>, vector<1x1x1x128xf32>
    %137 = vector.shape_cast %136 : vector<1x1x1x128xf32> to vector<1x128xf32>
    %138 = vector.broadcast %137 : vector<1x128xf32> to vector<128x128xf32>
    %139 = arith.addf %135, %138 : vector<128x128xf32>
    %cst_78 = arith.constant dense<0.000000e+00> : vector<2x128xf32>
    %140 = tpu.matmul %5, %139, %cst_78 {dimension_numbers = #tpu.dot_dimension_numbers<[1], [0], [0], [1], [0, 0, 1, 1], [], []>} : vector<2x128xf32>, vector<128x128xf32>, vector<2x128xf32> -> vector<2x128xf32>
    %141 = arith.truncf %139 : vector<128x128xf32> to vector<128x128xbf16>
    %c0_79 = arith.constant 0 : index
    %c1_80 = arith.constant 1 : index
    %c0_81 = arith.constant 0 : index
    %c0_82 = arith.constant 0 : index
    %142 = vector.load %arg4[%c0_79, %c1_80, %c0_81, %c0_82] : memref<1x4x128x384xbf16, #tpu.memory_space<vmem>>, vector<1x1x128x384xbf16>
    %143 = vector.shape_cast %142 : vector<1x1x128x384xbf16> to vector<128x384xbf16>
    %cst_83 = arith.constant dense<0.000000e+00> : vector<128x384xf32>
    %144 = tpu.matmul %141, %143, %cst_83 {dimension_numbers = #tpu.dot_dimension_numbers<[1], [0], [0], [1], [0, 0, 1, 1], [], []>} : vector<128x128xbf16>, vector<128x384xbf16>, vector<128x384xf32> -> vector<128x384xf32>
    %145 = vector.extract_strided_slice %144 {offsets = [0, 0], sizes = [128, 128], strides = [1, 1]} : vector<128x384xf32> to vector<128x128xf32>
    %146 = arith.truncf %145 : vector<128x128xf32> to vector<128x128xbf16>
    %c0_84 = arith.constant 0 : index
    %c0_85 = arith.constant 0 : index
    %147 = vector.load %arg11[%c0_84, %c0_85] : memref<384x128xbf16, #tpu.memory_space<vmem>>, vector<128x128xbf16>
    tpu.vector_store %arg11[%c0_84, %c0_85], %146 {strides = array<i32>} : memref<384x128xbf16, #tpu.memory_space<vmem>>, vector<128x128xbf16>,
    %c0_86 = arith.constant 0 : index
    %c1_87 = arith.constant 1 : index
    %c0_88 = arith.constant 0 : index
    %c0_89 = arith.constant 0 : index
    %c0_90 = arith.constant 0 : index
    %148 = vector.load %arg6[%c0_86, %c1_87, %c0_88, %c0_89, %c0_90] : memref<1x4x3x1x128xf32, #tpu.memory_space<vmem>>, vector<1x1x1x1x128xf32>
    %149 = vector.shape_cast %148 : vector<1x1x1x1x128xf32> to vector<1x128xf32>
    %150 = vector.broadcast %149 : vector<1x128xf32> to vector<128x128xf32>
    %151 = arith.mulf %145, %150 : vector<128x128xf32>
    %cst_91 = arith.constant dense<0.000000e+00> : vector<128xf32>
    %152 = vector.multi_reduction <add>, %151, %cst_91 [1] : vector<128x128xf32> to vector<128xf32>
    %153 = vector.shape_cast %152 : vector<128xf32> to vector<128x1xf32>
    %154 = vector.extract_strided_slice %144 {offsets = [0, 128], sizes = [128, 128], strides = [1, 1]} : vector<128x384xf32> to vector<128x128xf32>
    %155 = arith.truncf %154 : vector<128x128xf32> to vector<128x128xbf16>
    %c128_92 = arith.constant 128 : index
    %c0_93 = arith.constant 0 : index
    %156 = vector.load %arg11[%c128_92, %c0_93] : memref<384x128xbf16, #tpu.memory_space<vmem>>, vector<128x128xbf16>
    tpu.vector_store %arg11[%c128_92, %c0_93], %155 {strides = array<i32>} : memref<384x128xbf16, #tpu.memory_space<vmem>>, vector<128x128xbf16>,
    %c0_94 = arith.constant 0 : index
    %c1_95 = arith.constant 1 : index
    %c1_96 = arith.constant 1 : index
    %c0_97 = arith.constant 0 : index
    %c0_98 = arith.constant 0 : index
    %157 = vector.load %arg6[%c0_94, %c1_95, %c1_96, %c0_97, %c0_98] : memref<1x4x3x1x128xf32, #tpu.memory_space<vmem>>, vector<1x1x1x1x128xf32>
    %158 = vector.shape_cast %157 : vector<1x1x1x1x128xf32> to vector<1x128xf32>
    %159 = vector.broadcast %158 : vector<1x128xf32> to vector<128x128xf32>
    %160 = arith.mulf %154, %159 : vector<128x128xf32>
    %cst_99 = arith.constant dense<0.000000e+00> : vector<128xf32>
    %161 = vector.multi_reduction <add>, %160, %cst_99 [1] : vector<128x128xf32> to vector<128xf32>
    %162 = vector.shape_cast %161 : vector<128xf32> to vector<128x1xf32>
    %163 = vector.extract_strided_slice %144 {offsets = [0, 256], sizes = [128, 128], strides = [1, 1]} : vector<128x384xf32> to vector<128x128xf32>
    %164 = arith.truncf %163 : vector<128x128xf32> to vector<128x128xbf16>
    %c256_100 = arith.constant 256 : index
    %c0_101 = arith.constant 0 : index
    %165 = vector.load %arg11[%c256_100, %c0_101] : memref<384x128xbf16, #tpu.memory_space<vmem>>, vector<128x128xbf16>
    tpu.vector_store %arg11[%c256_100, %c0_101], %164 {strides = array<i32>} : memref<384x128xbf16, #tpu.memory_space<vmem>>, vector<128x128xbf16>,
    %c0_102 = arith.constant 0 : index
    %c1_103 = arith.constant 1 : index
    %c2_104 = arith.constant 2 : index
    %c0_105 = arith.constant 0 : index
    %c0_106 = arith.constant 0 : index
    %166 = vector.load %arg6[%c0_102, %c1_103, %c2_104, %c0_105, %c0_106] : memref<1x4x3x1x128xf32, #tpu.memory_space<vmem>>, vector<1x1x1x1x128xf32>
    %167 = vector.shape_cast %166 : vector<1x1x1x1x128xf32> to vector<1x128xf32>
    %168 = vector.broadcast %167 : vector<1x128xf32> to vector<128x128xf32>
    %169 = arith.mulf %163, %168 : vector<128x128xf32>
    %cst_107 = arith.constant dense<0.000000e+00> : vector<128xf32>
    %170 = vector.multi_reduction <add>, %169, %cst_107 [1] : vector<128x128xf32> to vector<128xf32>
    %171 = vector.shape_cast %170 : vector<128xf32> to vector<128x1xf32>
    %c0_108 = arith.constant 0 : index
    %c1_109 = arith.constant 1 : index
    %c0_110 = arith.constant 0 : index
    %c0_111 = arith.constant 0 : index
    %172 = vector.load %arg5[%c0_108, %c1_109, %c0_110, %c0_111] : memref<1x4x8x384xf32, #tpu.memory_space<vmem>>, vector<1x1x8x384xf32>
    %173 = vector.shape_cast %172 : vector<1x1x8x384xf32> to vector<8x384xf32>
    %cst_112 = arith.constant dense<0.000000e+00> : vector<8x128xf32>
    %174 = tpu.matmul %173, %144, %cst_112 {dimension_numbers = #tpu.dot_dimension_numbers<[1], [1], [0], [0], [0, 0, 1, 0], [], []>} : vector<8x384xf32>, vector<128x384xf32>, vector<8x128xf32> -> vector<8x128xf32>
    %175 = vector.extract_strided_slice %174 {offsets = [0, 0], sizes = [1, 128], strides = [1, 1]} : vector<8x128xf32> to vector<1x128xf32>
    %176 = vector.broadcast %153 : vector<128x1xf32> to vector<128x128xf32>
    %177 = vector.broadcast %175 : vector<1x128xf32> to vector<128x128xf32>
    %178 = arith.addf %176, %177 : vector<128x128xf32>
    %cst_113 = arith.constant 2.000000e-01 : f32
    %179 = vector.broadcast %cst_113 : f32 to vector<128x128xf32>
    %180 = arith.mulf %179, %178 : vector<128x128xf32>
    %181 = arith.maximumf %178, %180 : vector<128x128xf32>
    %182 = arith.addf %181, %3 : vector<128x128xf32>
    %cst_114 = arith.constant dense<0xFF800000> : vector<128xf32>
    %183 = vector.multi_reduction <maximumf>, %182, %cst_114 [1] : vector<128x128xf32> to vector<128xf32>
    %184 = vector.shape_cast %183 : vector<128xf32> to vector<128x1xf32>
    %185 = vector.broadcast %184 : vector<128x1xf32> to vector<128x128xf32>
    %186 = arith.subf %182, %185 : vector<128x128xf32>
    %187 = math.exp %186 : vector<128x128xf32>
    %cst_115 = arith.constant dense<0.000000e+00> : vector<128xf32>
    %188 = vector.multi_reduction <add>, %187, %cst_115 [1] : vector<128x128xf32> to vector<128xf32>
    %189 = vector.shape_cast %188 : vector<128xf32> to vector<128x1xf32>
    %190 = tpu.reciprocal %189 : vector<128x1xf32> -> vector<128x1xf32>
    %cst_116 = arith.constant 0.333333343 : f32
    %191 = vector.broadcast %cst_116 : f32 to vector<128x1xf32>
    %192 = arith.mulf %190, %191 : vector<128x1xf32>
    %193 = vector.broadcast %192 : vector<128x1xf32> to vector<128x128xf32>
    %194 = arith.mulf %187, %193 : vector<128x128xf32>
    %195 = arith.truncf %194 : vector<128x128xf32> to vector<128x128xbf16>
    %c0_117 = arith.constant 0 : index
    %c0_118 = arith.constant 0 : index
    %196 = vector.load %arg12[%c0_117, %c0_118] : memref<128x384xbf16, #tpu.memory_space<vmem>>, vector<128x128xbf16>
    tpu.vector_store %arg12[%c0_117, %c0_118], %195 {strides = array<i32>} : memref<128x384xbf16, #tpu.memory_space<vmem>>, vector<128x128xbf16>,
    %197 = vector.extract_strided_slice %174 {offsets = [1, 0], sizes = [1, 128], strides = [1, 1]} : vector<8x128xf32> to vector<1x128xf32>
    %198 = vector.broadcast %162 : vector<128x1xf32> to vector<128x128xf32>
    %199 = vector.broadcast %197 : vector<1x128xf32> to vector<128x128xf32>
    %200 = arith.addf %198, %199 : vector<128x128xf32>
    %cst_119 = arith.constant 2.000000e-01 : f32
    %201 = vector.broadcast %cst_119 : f32 to vector<128x128xf32>
    %202 = arith.mulf %201, %200 : vector<128x128xf32>
    %203 = arith.maximumf %200, %202 : vector<128x128xf32>
    %204 = arith.addf %203, %3 : vector<128x128xf32>
    %cst_120 = arith.constant dense<0xFF800000> : vector<128xf32>
    %205 = vector.multi_reduction <maximumf>, %204, %cst_120 [1] : vector<128x128xf32> to vector<128xf32>
    %206 = vector.shape_cast %205 : vector<128xf32> to vector<128x1xf32>
    %207 = vector.broadcast %206 : vector<128x1xf32> to vector<128x128xf32>
    %208 = arith.subf %204, %207 : vector<128x128xf32>
    %209 = math.exp %208 : vector<128x128xf32>
    %cst_121 = arith.constant dense<0.000000e+00> : vector<128xf32>
    %210 = vector.multi_reduction <add>, %209, %cst_121 [1] : vector<128x128xf32> to vector<128xf32>
    %211 = vector.shape_cast %210 : vector<128xf32> to vector<128x1xf32>
    %212 = tpu.reciprocal %211 : vector<128x1xf32> -> vector<128x1xf32>
    %cst_122 = arith.constant 0.333333343 : f32
    %213 = vector.broadcast %cst_122 : f32 to vector<128x1xf32>
    %214 = arith.mulf %212, %213 : vector<128x1xf32>
    %215 = vector.broadcast %214 : vector<128x1xf32> to vector<128x128xf32>
    %216 = arith.mulf %209, %215 : vector<128x128xf32>
    %217 = arith.truncf %216 : vector<128x128xf32> to vector<128x128xbf16>
    %c0_123 = arith.constant 0 : index
    %c128_124 = arith.constant 128 : index
    %218 = vector.load %arg12[%c0_123, %c128_124] : memref<128x384xbf16, #tpu.memory_space<vmem>>, vector<128x128xbf16>
    tpu.vector_store %arg12[%c0_123, %c128_124], %217 {strides = array<i32>} : memref<128x384xbf16, #tpu.memory_space<vmem>>, vector<128x128xbf16>,
    %219 = vector.extract_strided_slice %174 {offsets = [2, 0], sizes = [1, 128], strides = [1, 1]} : vector<8x128xf32> to vector<1x128xf32>
    %220 = vector.broadcast %171 : vector<128x1xf32> to vector<128x128xf32>
    %221 = vector.broadcast %219 : vector<1x128xf32> to vector<128x128xf32>
    %222 = arith.addf %220, %221 : vector<128x128xf32>
    %cst_125 = arith.constant 2.000000e-01 : f32
    %223 = vector.broadcast %cst_125 : f32 to vector<128x128xf32>
    %224 = arith.mulf %223, %222 : vector<128x128xf32>
    %225 = arith.maximumf %222, %224 : vector<128x128xf32>
    %226 = arith.addf %225, %3 : vector<128x128xf32>
    %cst_126 = arith.constant dense<0xFF800000> : vector<128xf32>
    %227 = vector.multi_reduction <maximumf>, %226, %cst_126 [1] : vector<128x128xf32> to vector<128xf32>
    %228 = vector.shape_cast %227 : vector<128xf32> to vector<128x1xf32>
    %229 = vector.broadcast %228 : vector<128x1xf32> to vector<128x128xf32>
    %230 = arith.subf %226, %229 : vector<128x128xf32>
    %231 = math.exp %230 : vector<128x128xf32>
    %cst_127 = arith.constant dense<0.000000e+00> : vector<128xf32>
    %232 = vector.multi_reduction <add>, %231, %cst_127 [1] : vector<128x128xf32> to vector<128xf32>
    %233 = vector.shape_cast %232 : vector<128xf32> to vector<128x1xf32>
    %234 = tpu.reciprocal %233 : vector<128x1xf32> -> vector<128x1xf32>
    %cst_128 = arith.constant 0.333333343 : f32
    %235 = vector.broadcast %cst_128 : f32 to vector<128x1xf32>
    %236 = arith.mulf %234, %235 : vector<128x1xf32>
    %237 = vector.broadcast %236 : vector<128x1xf32> to vector<128x128xf32>
    %238 = arith.mulf %231, %237 : vector<128x128xf32>
    %239 = arith.truncf %238 : vector<128x128xf32> to vector<128x128xbf16>
    %c0_129 = arith.constant 0 : index
    %c256_130 = arith.constant 256 : index
    %240 = vector.load %arg12[%c0_129, %c256_130] : memref<128x384xbf16, #tpu.memory_space<vmem>>, vector<128x128xbf16>
    tpu.vector_store %arg12[%c0_129, %c256_130], %239 {strides = array<i32>} : memref<128x384xbf16, #tpu.memory_space<vmem>>, vector<128x128xbf16>,
    %c0_131 = arith.constant 0 : index
    %c0_132 = arith.constant 0 : index
    %241 = vector.load %arg12[%c0_131, %c0_132] : memref<128x384xbf16, #tpu.memory_space<vmem>>, vector<128x384xbf16>
    %c0_133 = arith.constant 0 : index
    %c0_134 = arith.constant 0 : index
    %242 = vector.load %arg11[%c0_133, %c0_134] : memref<384x128xbf16, #tpu.memory_space<vmem>>, vector<384x128xbf16>
    %cst_135 = arith.constant dense<0.000000e+00> : vector<128x128xf32>
    %243 = tpu.matmul %241, %242, %cst_135 {dimension_numbers = #tpu.dot_dimension_numbers<[1], [0], [0], [1], [0, 0, 1, 1], [], []>} : vector<128x384xbf16>, vector<384x128xbf16>, vector<128x128xf32> -> vector<128x128xf32>
    %c0_136 = arith.constant 0 : index
    %c1_137 = arith.constant 1 : index
    %c0_138 = arith.constant 0 : index
    %c0_139 = arith.constant 0 : index
    %244 = vector.load %arg7[%c0_136, %c1_137, %c0_138, %c0_139] : memref<1x4x1x128xf32, #tpu.memory_space<vmem>>, vector<1x1x1x128xf32>
    %245 = vector.shape_cast %244 : vector<1x1x1x128xf32> to vector<1x128xf32>
    %246 = vector.broadcast %245 : vector<1x128xf32> to vector<128x128xf32>
    %247 = arith.addf %243, %246 : vector<128x128xf32>
    %cst_140 = arith.constant dense<0.000000e+00> : vector<128xf32>
    %248 = vector.multi_reduction <add>, %247, %cst_140 [1] : vector<128x128xf32> to vector<128xf32>
    %249 = vector.shape_cast %248 : vector<128xf32> to vector<128x1xf32>
    %cst_141 = arith.constant 1.280000e+02 : f32
    %250 = vector.broadcast %cst_141 : f32 to vector<128x1xf32>
    %251 = arith.divf %249, %250 : vector<128x1xf32>
    %252 = vector.broadcast %251 : vector<128x1xf32> to vector<128x128xf32>
    %253 = arith.subf %247, %252 : vector<128x128xf32>
    %254 = arith.mulf %253, %253 : vector<128x128xf32>
    %cst_142 = arith.constant dense<0.000000e+00> : vector<128xf32>
    %255 = vector.multi_reduction <add>, %254, %cst_142 [1] : vector<128x128xf32> to vector<128xf32>
    %256 = vector.shape_cast %255 : vector<128xf32> to vector<128x1xf32>
    %cst_143 = arith.constant 1.280000e+02 : f32
    %257 = vector.broadcast %cst_143 : f32 to vector<128x1xf32>
    %258 = arith.divf %256, %257 : vector<128x1xf32>
    %259 = vector.broadcast %251 : vector<128x1xf32> to vector<128x128xf32>
    %260 = arith.subf %247, %259 : vector<128x128xf32>
    %cst_144 = arith.constant 9.99999974E-6 : f32
    %261 = vector.broadcast %cst_144 : f32 to vector<128x1xf32>
    %262 = arith.addf %258, %261 : vector<128x1xf32>
    %263 = math.rsqrt %262 : vector<128x1xf32>
    %264 = vector.broadcast %263 : vector<128x1xf32> to vector<128x128xf32>
    %265 = arith.mulf %260, %264 : vector<128x128xf32>
    %c0_145 = arith.constant 0 : index
    %c1_146 = arith.constant 1 : index
    %c0_147 = arith.constant 0 : index
    %c0_148 = arith.constant 0 : index
    %266 = vector.load %arg8[%c0_145, %c1_146, %c0_147, %c0_148] : memref<1x4x1x128xf32, #tpu.memory_space<vmem>>, vector<1x1x1x128xf32>
    %267 = vector.shape_cast %266 : vector<1x1x1x128xf32> to vector<1x128xf32>
    %268 = vector.broadcast %267 : vector<1x128xf32> to vector<128x128xf32>
    %269 = arith.mulf %265, %268 : vector<128x128xf32>
    %c0_149 = arith.constant 0 : index
    %c1_150 = arith.constant 1 : index
    %c0_151 = arith.constant 0 : index
    %c0_152 = arith.constant 0 : index
    %270 = vector.load %arg9[%c0_149, %c1_150, %c0_151, %c0_152] : memref<1x4x1x128xf32, #tpu.memory_space<vmem>>, vector<1x1x1x128xf32>
    %271 = vector.shape_cast %270 : vector<1x1x1x128xf32> to vector<1x128xf32>
    %272 = vector.broadcast %271 : vector<1x128xf32> to vector<128x128xf32>
    %273 = arith.addf %269, %272 : vector<128x128xf32>
    %cst_153 = arith.constant dense<0.000000e+00> : vector<2x128xf32>
    %274 = tpu.matmul %5, %273, %cst_153 {dimension_numbers = #tpu.dot_dimension_numbers<[1], [0], [0], [1], [0, 0, 1, 1], [], []>} : vector<2x128xf32>, vector<128x128xf32>, vector<2x128xf32> -> vector<2x128xf32>
    %275 = arith.truncf %273 : vector<128x128xf32> to vector<128x128xbf16>
    %c0_154 = arith.constant 0 : index
    %c2_155 = arith.constant 2 : index
    %c0_156 = arith.constant 0 : index
    %c0_157 = arith.constant 0 : index
    %276 = vector.load %arg4[%c0_154, %c2_155, %c0_156, %c0_157] : memref<1x4x128x384xbf16, #tpu.memory_space<vmem>>, vector<1x1x128x384xbf16>
    %277 = vector.shape_cast %276 : vector<1x1x128x384xbf16> to vector<128x384xbf16>
    %cst_158 = arith.constant dense<0.000000e+00> : vector<128x384xf32>
    %278 = tpu.matmul %275, %277, %cst_158 {dimension_numbers = #tpu.dot_dimension_numbers<[1], [0], [0], [1], [0, 0, 1, 1], [], []>} : vector<128x128xbf16>, vector<128x384xbf16>, vector<128x384xf32> -> vector<128x384xf32>
    %279 = vector.extract_strided_slice %278 {offsets = [0, 0], sizes = [128, 128], strides = [1, 1]} : vector<128x384xf32> to vector<128x128xf32>
    %280 = arith.truncf %279 : vector<128x128xf32> to vector<128x128xbf16>
    %c0_159 = arith.constant 0 : index
    %c0_160 = arith.constant 0 : index
    %281 = vector.load %arg11[%c0_159, %c0_160] : memref<384x128xbf16, #tpu.memory_space<vmem>>, vector<128x128xbf16>
    tpu.vector_store %arg11[%c0_159, %c0_160], %280 {strides = array<i32>} : memref<384x128xbf16, #tpu.memory_space<vmem>>, vector<128x128xbf16>,
    %c0_161 = arith.constant 0 : index
    %c2_162 = arith.constant 2 : index
    %c0_163 = arith.constant 0 : index
    %c0_164 = arith.constant 0 : index
    %c0_165 = arith.constant 0 : index
    %282 = vector.load %arg6[%c0_161, %c2_162, %c0_163, %c0_164, %c0_165] : memref<1x4x3x1x128xf32, #tpu.memory_space<vmem>>, vector<1x1x1x1x128xf32>
    %283 = vector.shape_cast %282 : vector<1x1x1x1x128xf32> to vector<1x128xf32>
    %284 = vector.broadcast %283 : vector<1x128xf32> to vector<128x128xf32>
    %285 = arith.mulf %279, %284 : vector<128x128xf32>
    %cst_166 = arith.constant dense<0.000000e+00> : vector<128xf32>
    %286 = vector.multi_reduction <add>, %285, %cst_166 [1] : vector<128x128xf32> to vector<128xf32>
    %287 = vector.shape_cast %286 : vector<128xf32> to vector<128x1xf32>
    %288 = vector.extract_strided_slice %278 {offsets = [0, 128], sizes = [128, 128], strides = [1, 1]} : vector<128x384xf32> to vector<128x128xf32>
    %289 = arith.truncf %288 : vector<128x128xf32> to vector<128x128xbf16>
    %c128_167 = arith.constant 128 : index
    %c0_168 = arith.constant 0 : index
    %290 = vector.load %arg11[%c128_167, %c0_168] : memref<384x128xbf16, #tpu.memory_space<vmem>>, vector<128x128xbf16>
    tpu.vector_store %arg11[%c128_167, %c0_168], %289 {strides = array<i32>} : memref<384x128xbf16, #tpu.memory_space<vmem>>, vector<128x128xbf16>,
    %c0_169 = arith.constant 0 : index
    %c2_170 = arith.constant 2 : index
    %c1_171 = arith.constant 1 : index
    %c0_172 = arith.constant 0 : index
    %c0_173 = arith.constant 0 : index
    %291 = vector.load %arg6[%c0_169, %c2_170, %c1_171, %c0_172, %c0_173] : memref<1x4x3x1x128xf32, #tpu.memory_space<vmem>>, vector<1x1x1x1x128xf32>
    %292 = vector.shape_cast %291 : vector<1x1x1x1x128xf32> to vector<1x128xf32>
    %293 = vector.broadcast %292 : vector<1x128xf32> to vector<128x128xf32>
    %294 = arith.mulf %288, %293 : vector<128x128xf32>
    %cst_174 = arith.constant dense<0.000000e+00> : vector<128xf32>
    %295 = vector.multi_reduction <add>, %294, %cst_174 [1] : vector<128x128xf32> to vector<128xf32>
    %296 = vector.shape_cast %295 : vector<128xf32> to vector<128x1xf32>
    %297 = vector.extract_strided_slice %278 {offsets = [0, 256], sizes = [128, 128], strides = [1, 1]} : vector<128x384xf32> to vector<128x128xf32>
    %298 = arith.truncf %297 : vector<128x128xf32> to vector<128x128xbf16>
    %c256_175 = arith.constant 256 : index
    %c0_176 = arith.constant 0 : index
    %299 = vector.load %arg11[%c256_175, %c0_176] : memref<384x128xbf16, #tpu.memory_space<vmem>>, vector<128x128xbf16>
    tpu.vector_store %arg11[%c256_175, %c0_176], %298 {strides = array<i32>} : memref<384x128xbf16, #tpu.memory_space<vmem>>, vector<128x128xbf16>,
    %c0_177 = arith.constant 0 : index
    %c2_178 = arith.constant 2 : index
    %c2_179 = arith.constant 2 : index
    %c0_180 = arith.constant 0 : index
    %c0_181 = arith.constant 0 : index
    %300 = vector.load %arg6[%c0_177, %c2_178, %c2_179, %c0_180, %c0_181] : memref<1x4x3x1x128xf32, #tpu.memory_space<vmem>>, vector<1x1x1x1x128xf32>
    %301 = vector.shape_cast %300 : vector<1x1x1x1x128xf32> to vector<1x128xf32>
    %302 = vector.broadcast %301 : vector<1x128xf32> to vector<128x128xf32>
    %303 = arith.mulf %297, %302 : vector<128x128xf32>
    %cst_182 = arith.constant dense<0.000000e+00> : vector<128xf32>
    %304 = vector.multi_reduction <add>, %303, %cst_182 [1] : vector<128x128xf32> to vector<128xf32>
    %305 = vector.shape_cast %304 : vector<128xf32> to vector<128x1xf32>
    %c0_183 = arith.constant 0 : index
    %c2_184 = arith.constant 2 : index
    %c0_185 = arith.constant 0 : index
    %c0_186 = arith.constant 0 : index
    %306 = vector.load %arg5[%c0_183, %c2_184, %c0_185, %c0_186] : memref<1x4x8x384xf32, #tpu.memory_space<vmem>>, vector<1x1x8x384xf32>
    %307 = vector.shape_cast %306 : vector<1x1x8x384xf32> to vector<8x384xf32>
    %cst_187 = arith.constant dense<0.000000e+00> : vector<8x128xf32>
    %308 = tpu.matmul %307, %278, %cst_187 {dimension_numbers = #tpu.dot_dimension_numbers<[1], [1], [0], [0], [0, 0, 1, 0], [], []>} : vector<8x384xf32>, vector<128x384xf32>, vector<8x128xf32> -> vector<8x128xf32>
    %309 = vector.extract_strided_slice %308 {offsets = [0, 0], sizes = [1, 128], strides = [1, 1]} : vector<8x128xf32> to vector<1x128xf32>
    %310 = vector.broadcast %287 : vector<128x1xf32> to vector<128x128xf32>
    %311 = vector.broadcast %309 : vector<1x128xf32> to vector<128x128xf32>
    %312 = arith.addf %310, %311 : vector<128x128xf32>
    %cst_188 = arith.constant 2.000000e-01 : f32
    %313 = vector.broadcast %cst_188 : f32 to vector<128x128xf32>
    %314 = arith.mulf %313, %312 : vector<128x128xf32>
    %315 = arith.maximumf %312, %314 : vector<128x128xf32>
    %316 = arith.addf %315, %3 : vector<128x128xf32>
    %cst_189 = arith.constant dense<0xFF800000> : vector<128xf32>
    %317 = vector.multi_reduction <maximumf>, %316, %cst_189 [1] : vector<128x128xf32> to vector<128xf32>
    %318 = vector.shape_cast %317 : vector<128xf32> to vector<128x1xf32>
    %319 = vector.broadcast %318 : vector<128x1xf32> to vector<128x128xf32>
    %320 = arith.subf %316, %319 : vector<128x128xf32>
    %321 = math.exp %320 : vector<128x128xf32>
    %cst_190 = arith.constant dense<0.000000e+00> : vector<128xf32>
    %322 = vector.multi_reduction <add>, %321, %cst_190 [1] : vector<128x128xf32> to vector<128xf32>
    %323 = vector.shape_cast %322 : vector<128xf32> to vector<128x1xf32>
    %324 = tpu.reciprocal %323 : vector<128x1xf32> -> vector<128x1xf32>
    %cst_191 = arith.constant 0.333333343 : f32
    %325 = vector.broadcast %cst_191 : f32 to vector<128x1xf32>
    %326 = arith.mulf %324, %325 : vector<128x1xf32>
    %327 = vector.broadcast %326 : vector<128x1xf32> to vector<128x128xf32>
    %328 = arith.mulf %321, %327 : vector<128x128xf32>
    %329 = arith.truncf %328 : vector<128x128xf32> to vector<128x128xbf16>
    %c0_192 = arith.constant 0 : index
    %c0_193 = arith.constant 0 : index
    %330 = vector.load %arg12[%c0_192, %c0_193] : memref<128x384xbf16, #tpu.memory_space<vmem>>, vector<128x128xbf16>
    tpu.vector_store %arg12[%c0_192, %c0_193], %329 {strides = array<i32>} : memref<128x384xbf16, #tpu.memory_space<vmem>>, vector<128x128xbf16>,
    %331 = vector.extract_strided_slice %308 {offsets = [1, 0], sizes = [1, 128], strides = [1, 1]} : vector<8x128xf32> to vector<1x128xf32>
    %332 = vector.broadcast %296 : vector<128x1xf32> to vector<128x128xf32>
    %333 = vector.broadcast %331 : vector<1x128xf32> to vector<128x128xf32>
    %334 = arith.addf %332, %333 : vector<128x128xf32>
    %cst_194 = arith.constant 2.000000e-01 : f32
    %335 = vector.broadcast %cst_194 : f32 to vector<128x128xf32>
    %336 = arith.mulf %335, %334 : vector<128x128xf32>
    %337 = arith.maximumf %334, %336 : vector<128x128xf32>
    %338 = arith.addf %337, %3 : vector<128x128xf32>
    %cst_195 = arith.constant dense<0xFF800000> : vector<128xf32>
    %339 = vector.multi_reduction <maximumf>, %338, %cst_195 [1] : vector<128x128xf32> to vector<128xf32>
    %340 = vector.shape_cast %339 : vector<128xf32> to vector<128x1xf32>
    %341 = vector.broadcast %340 : vector<128x1xf32> to vector<128x128xf32>
    %342 = arith.subf %338, %341 : vector<128x128xf32>
    %343 = math.exp %342 : vector<128x128xf32>
    %cst_196 = arith.constant dense<0.000000e+00> : vector<128xf32>
    %344 = vector.multi_reduction <add>, %343, %cst_196 [1] : vector<128x128xf32> to vector<128xf32>
    %345 = vector.shape_cast %344 : vector<128xf32> to vector<128x1xf32>
    %346 = tpu.reciprocal %345 : vector<128x1xf32> -> vector<128x1xf32>
    %cst_197 = arith.constant 0.333333343 : f32
    %347 = vector.broadcast %cst_197 : f32 to vector<128x1xf32>
    %348 = arith.mulf %346, %347 : vector<128x1xf32>
    %349 = vector.broadcast %348 : vector<128x1xf32> to vector<128x128xf32>
    %350 = arith.mulf %343, %349 : vector<128x128xf32>
    %351 = arith.truncf %350 : vector<128x128xf32> to vector<128x128xbf16>
    %c0_198 = arith.constant 0 : index
    %c128_199 = arith.constant 128 : index
    %352 = vector.load %arg12[%c0_198, %c128_199] : memref<128x384xbf16, #tpu.memory_space<vmem>>, vector<128x128xbf16>
    tpu.vector_store %arg12[%c0_198, %c128_199], %351 {strides = array<i32>} : memref<128x384xbf16, #tpu.memory_space<vmem>>, vector<128x128xbf16>,
    %353 = vector.extract_strided_slice %308 {offsets = [2, 0], sizes = [1, 128], strides = [1, 1]} : vector<8x128xf32> to vector<1x128xf32>
    %354 = vector.broadcast %305 : vector<128x1xf32> to vector<128x128xf32>
    %355 = vector.broadcast %353 : vector<1x128xf32> to vector<128x128xf32>
    %356 = arith.addf %354, %355 : vector<128x128xf32>
    %cst_200 = arith.constant 2.000000e-01 : f32
    %357 = vector.broadcast %cst_200 : f32 to vector<128x128xf32>
    %358 = arith.mulf %357, %356 : vector<128x128xf32>
    %359 = arith.maximumf %356, %358 : vector<128x128xf32>
    %360 = arith.addf %359, %3 : vector<128x128xf32>
    %cst_201 = arith.constant dense<0xFF800000> : vector<128xf32>
    %361 = vector.multi_reduction <maximumf>, %360, %cst_201 [1] : vector<128x128xf32> to vector<128xf32>
    %362 = vector.shape_cast %361 : vector<128xf32> to vector<128x1xf32>
    %363 = vector.broadcast %362 : vector<128x1xf32> to vector<128x128xf32>
    %364 = arith.subf %360, %363 : vector<128x128xf32>
    %365 = math.exp %364 : vector<128x128xf32>
    %cst_202 = arith.constant dense<0.000000e+00> : vector<128xf32>
    %366 = vector.multi_reduction <add>, %365, %cst_202 [1] : vector<128x128xf32> to vector<128xf32>
    %367 = vector.shape_cast %366 : vector<128xf32> to vector<128x1xf32>
    %368 = tpu.reciprocal %367 : vector<128x1xf32> -> vector<128x1xf32>
    %cst_203 = arith.constant 0.333333343 : f32
    %369 = vector.broadcast %cst_203 : f32 to vector<128x1xf32>
    %370 = arith.mulf %368, %369 : vector<128x1xf32>
    %371 = vector.broadcast %370 : vector<128x1xf32> to vector<128x128xf32>
    %372 = arith.mulf %365, %371 : vector<128x128xf32>
    %373 = arith.truncf %372 : vector<128x128xf32> to vector<128x128xbf16>
    %c0_204 = arith.constant 0 : index
    %c256_205 = arith.constant 256 : index
    %374 = vector.load %arg12[%c0_204, %c256_205] : memref<128x384xbf16, #tpu.memory_space<vmem>>, vector<128x128xbf16>
    tpu.vector_store %arg12[%c0_204, %c256_205], %373 {strides = array<i32>} : memref<128x384xbf16, #tpu.memory_space<vmem>>, vector<128x128xbf16>,
    %c0_206 = arith.constant 0 : index
    %c0_207 = arith.constant 0 : index
    %375 = vector.load %arg12[%c0_206, %c0_207] : memref<128x384xbf16, #tpu.memory_space<vmem>>, vector<128x384xbf16>
    %c0_208 = arith.constant 0 : index
    %c0_209 = arith.constant 0 : index
    %376 = vector.load %arg11[%c0_208, %c0_209] : memref<384x128xbf16, #tpu.memory_space<vmem>>, vector<384x128xbf16>
    %cst_210 = arith.constant dense<0.000000e+00> : vector<128x128xf32>
    %377 = tpu.matmul %375, %376, %cst_210 {dimension_numbers = #tpu.dot_dimension_numbers<[1], [0], [0], [1], [0, 0, 1, 1], [], []>} : vector<128x384xbf16>, vector<384x128xbf16>, vector<128x128xf32> -> vector<128x128xf32>
    %c0_211 = arith.constant 0 : index
    %c2_212 = arith.constant 2 : index
    %c0_213 = arith.constant 0 : index
    %c0_214 = arith.constant 0 : index
    %378 = vector.load %arg7[%c0_211, %c2_212, %c0_213, %c0_214] : memref<1x4x1x128xf32, #tpu.memory_space<vmem>>, vector<1x1x1x128xf32>
    %379 = vector.shape_cast %378 : vector<1x1x1x128xf32> to vector<1x128xf32>
    %380 = vector.broadcast %379 : vector<1x128xf32> to vector<128x128xf32>
    %381 = arith.addf %377, %380 : vector<128x128xf32>
    %cst_215 = arith.constant dense<0.000000e+00> : vector<128xf32>
    %382 = vector.multi_reduction <add>, %381, %cst_215 [1] : vector<128x128xf32> to vector<128xf32>
    %383 = vector.shape_cast %382 : vector<128xf32> to vector<128x1xf32>
    %cst_216 = arith.constant 1.280000e+02 : f32
    %384 = vector.broadcast %cst_216 : f32 to vector<128x1xf32>
    %385 = arith.divf %383, %384 : vector<128x1xf32>
    %386 = vector.broadcast %385 : vector<128x1xf32> to vector<128x128xf32>
    %387 = arith.subf %381, %386 : vector<128x128xf32>
    %388 = arith.mulf %387, %387 : vector<128x128xf32>
    %cst_217 = arith.constant dense<0.000000e+00> : vector<128xf32>
    %389 = vector.multi_reduction <add>, %388, %cst_217 [1] : vector<128x128xf32> to vector<128xf32>
    %390 = vector.shape_cast %389 : vector<128xf32> to vector<128x1xf32>
    %cst_218 = arith.constant 1.280000e+02 : f32
    %391 = vector.broadcast %cst_218 : f32 to vector<128x1xf32>
    %392 = arith.divf %390, %391 : vector<128x1xf32>
    %393 = vector.broadcast %385 : vector<128x1xf32> to vector<128x128xf32>
    %394 = arith.subf %381, %393 : vector<128x128xf32>
    %cst_219 = arith.constant 9.99999974E-6 : f32
    %395 = vector.broadcast %cst_219 : f32 to vector<128x1xf32>
    %396 = arith.addf %392, %395 : vector<128x1xf32>
    %397 = math.rsqrt %396 : vector<128x1xf32>
    %398 = vector.broadcast %397 : vector<128x1xf32> to vector<128x128xf32>
    %399 = arith.mulf %394, %398 : vector<128x128xf32>
    %c0_220 = arith.constant 0 : index
    %c2_221 = arith.constant 2 : index
    %c0_222 = arith.constant 0 : index
    %c0_223 = arith.constant 0 : index
    %400 = vector.load %arg8[%c0_220, %c2_221, %c0_222, %c0_223] : memref<1x4x1x128xf32, #tpu.memory_space<vmem>>, vector<1x1x1x128xf32>
    %401 = vector.shape_cast %400 : vector<1x1x1x128xf32> to vector<1x128xf32>
    %402 = vector.broadcast %401 : vector<1x128xf32> to vector<128x128xf32>
    %403 = arith.mulf %399, %402 : vector<128x128xf32>
    %c0_224 = arith.constant 0 : index
    %c2_225 = arith.constant 2 : index
    %c0_226 = arith.constant 0 : index
    %c0_227 = arith.constant 0 : index
    %404 = vector.load %arg9[%c0_224, %c2_225, %c0_226, %c0_227] : memref<1x4x1x128xf32, #tpu.memory_space<vmem>>, vector<1x1x1x128xf32>
    %405 = vector.shape_cast %404 : vector<1x1x1x128xf32> to vector<1x128xf32>
    %406 = vector.broadcast %405 : vector<1x128xf32> to vector<128x128xf32>
    %407 = arith.addf %403, %406 : vector<128x128xf32>
    %cst_228 = arith.constant dense<0.000000e+00> : vector<2x128xf32>
    %408 = tpu.matmul %5, %407, %cst_228 {dimension_numbers = #tpu.dot_dimension_numbers<[1], [0], [0], [1], [0, 0, 1, 1], [], []>} : vector<2x128xf32>, vector<128x128xf32>, vector<2x128xf32> -> vector<2x128xf32>
    %409 = arith.truncf %407 : vector<128x128xf32> to vector<128x128xbf16>
    %c0_229 = arith.constant 0 : index
    %c3 = arith.constant 3 : index
    %c0_230 = arith.constant 0 : index
    %c0_231 = arith.constant 0 : index
    %410 = vector.load %arg4[%c0_229, %c3, %c0_230, %c0_231] : memref<1x4x128x384xbf16, #tpu.memory_space<vmem>>, vector<1x1x128x384xbf16>
    %411 = vector.shape_cast %410 : vector<1x1x128x384xbf16> to vector<128x384xbf16>
    %cst_232 = arith.constant dense<0.000000e+00> : vector<128x384xf32>
    %412 = tpu.matmul %409, %411, %cst_232 {dimension_numbers = #tpu.dot_dimension_numbers<[1], [0], [0], [1], [0, 0, 1, 1], [], []>} : vector<128x128xbf16>, vector<128x384xbf16>, vector<128x384xf32> -> vector<128x384xf32>
    %413 = vector.extract_strided_slice %412 {offsets = [0, 0], sizes = [128, 128], strides = [1, 1]} : vector<128x384xf32> to vector<128x128xf32>
    %414 = arith.truncf %413 : vector<128x128xf32> to vector<128x128xbf16>
    %c0_233 = arith.constant 0 : index
    %c0_234 = arith.constant 0 : index
    %415 = vector.load %arg11[%c0_233, %c0_234] : memref<384x128xbf16, #tpu.memory_space<vmem>>, vector<128x128xbf16>
    tpu.vector_store %arg11[%c0_233, %c0_234], %414 {strides = array<i32>} : memref<384x128xbf16, #tpu.memory_space<vmem>>, vector<128x128xbf16>,
    %c0_235 = arith.constant 0 : index
    %c3_236 = arith.constant 3 : index
    %c0_237 = arith.constant 0 : index
    %c0_238 = arith.constant 0 : index
    %c0_239 = arith.constant 0 : index
    %416 = vector.load %arg6[%c0_235, %c3_236, %c0_237, %c0_238, %c0_239] : memref<1x4x3x1x128xf32, #tpu.memory_space<vmem>>, vector<1x1x1x1x128xf32>
    %417 = vector.shape_cast %416 : vector<1x1x1x1x128xf32> to vector<1x128xf32>
    %418 = vector.broadcast %417 : vector<1x128xf32> to vector<128x128xf32>
    %419 = arith.mulf %413, %418 : vector<128x128xf32>
    %cst_240 = arith.constant dense<0.000000e+00> : vector<128xf32>
    %420 = vector.multi_reduction <add>, %419, %cst_240 [1] : vector<128x128xf32> to vector<128xf32>
    %421 = vector.shape_cast %420 : vector<128xf32> to vector<128x1xf32>
    %422 = vector.extract_strided_slice %412 {offsets = [0, 128], sizes = [128, 128], strides = [1, 1]} : vector<128x384xf32> to vector<128x128xf32>
    %423 = arith.truncf %422 : vector<128x128xf32> to vector<128x128xbf16>
    %c128_241 = arith.constant 128 : index
    %c0_242 = arith.constant 0 : index
    %424 = vector.load %arg11[%c128_241, %c0_242] : memref<384x128xbf16, #tpu.memory_space<vmem>>, vector<128x128xbf16>
    tpu.vector_store %arg11[%c128_241, %c0_242], %423 {strides = array<i32>} : memref<384x128xbf16, #tpu.memory_space<vmem>>, vector<128x128xbf16>,
    %c0_243 = arith.constant 0 : index
    %c3_244 = arith.constant 3 : index
    %c1_245 = arith.constant 1 : index
    %c0_246 = arith.constant 0 : index
    %c0_247 = arith.constant 0 : index
    %425 = vector.load %arg6[%c0_243, %c3_244, %c1_245, %c0_246, %c0_247] : memref<1x4x3x1x128xf32, #tpu.memory_space<vmem>>, vector<1x1x1x1x128xf32>
    %426 = vector.shape_cast %425 : vector<1x1x1x1x128xf32> to vector<1x128xf32>
    %427 = vector.broadcast %426 : vector<1x128xf32> to vector<128x128xf32>
    %428 = arith.mulf %422, %427 : vector<128x128xf32>
    %cst_248 = arith.constant dense<0.000000e+00> : vector<128xf32>
    %429 = vector.multi_reduction <add>, %428, %cst_248 [1] : vector<128x128xf32> to vector<128xf32>
    %430 = vector.shape_cast %429 : vector<128xf32> to vector<128x1xf32>
    %431 = vector.extract_strided_slice %412 {offsets = [0, 256], sizes = [128, 128], strides = [1, 1]} : vector<128x384xf32> to vector<128x128xf32>
    %432 = arith.truncf %431 : vector<128x128xf32> to vector<128x128xbf16>
    %c256_249 = arith.constant 256 : index
    %c0_250 = arith.constant 0 : index
    %433 = vector.load %arg11[%c256_249, %c0_250] : memref<384x128xbf16, #tpu.memory_space<vmem>>, vector<128x128xbf16>
    tpu.vector_store %arg11[%c256_249, %c0_250], %432 {strides = array<i32>} : memref<384x128xbf16, #tpu.memory_space<vmem>>, vector<128x128xbf16>,
    %c0_251 = arith.constant 0 : index
    %c3_252 = arith.constant 3 : index
    %c2_253 = arith.constant 2 : index
    %c0_254 = arith.constant 0 : index
    %c0_255 = arith.constant 0 : index
    %434 = vector.load %arg6[%c0_251, %c3_252, %c2_253, %c0_254, %c0_255] : memref<1x4x3x1x128xf32, #tpu.memory_space<vmem>>, vector<1x1x1x1x128xf32>
    %435 = vector.shape_cast %434 : vector<1x1x1x1x128xf32> to vector<1x128xf32>
    %436 = vector.broadcast %435 : vector<1x128xf32> to vector<128x128xf32>
    %437 = arith.mulf %431, %436 : vector<128x128xf32>
    %cst_256 = arith.constant dense<0.000000e+00> : vector<128xf32>
    %438 = vector.multi_reduction <add>, %437, %cst_256 [1] : vector<128x128xf32> to vector<128xf32>
    %439 = vector.shape_cast %438 : vector<128xf32> to vector<128x1xf32>
    %c0_257 = arith.constant 0 : index
    %c3_258 = arith.constant 3 : index
    %c0_259 = arith.constant 0 : index
    %c0_260 = arith.constant 0 : index
    %440 = vector.load %arg5[%c0_257, %c3_258, %c0_259, %c0_260] : memref<1x4x8x384xf32, #tpu.memory_space<vmem>>, vector<1x1x8x384xf32>
    %441 = vector.shape_cast %440 : vector<1x1x8x384xf32> to vector<8x384xf32>
    %cst_261 = arith.constant dense<0.000000e+00> : vector<8x128xf32>
    %442 = tpu.matmul %441, %412, %cst_261 {dimension_numbers = #tpu.dot_dimension_numbers<[1], [1], [0], [0], [0, 0, 1, 0], [], []>} : vector<8x384xf32>, vector<128x384xf32>, vector<8x128xf32> -> vector<8x128xf32>
    %443 = vector.extract_strided_slice %442 {offsets = [0, 0], sizes = [1, 128], strides = [1, 1]} : vector<8x128xf32> to vector<1x128xf32>
    %444 = vector.broadcast %421 : vector<128x1xf32> to vector<128x128xf32>
    %445 = vector.broadcast %443 : vector<1x128xf32> to vector<128x128xf32>
    %446 = arith.addf %444, %445 : vector<128x128xf32>
    %cst_262 = arith.constant 2.000000e-01 : f32
    %447 = vector.broadcast %cst_262 : f32 to vector<128x128xf32>
    %448 = arith.mulf %447, %446 : vector<128x128xf32>
    %449 = arith.maximumf %446, %448 : vector<128x128xf32>
    %450 = arith.addf %449, %3 : vector<128x128xf32>
    %cst_263 = arith.constant dense<0xFF800000> : vector<128xf32>
    %451 = vector.multi_reduction <maximumf>, %450, %cst_263 [1] : vector<128x128xf32> to vector<128xf32>
    %452 = vector.shape_cast %451 : vector<128xf32> to vector<128x1xf32>
    %453 = vector.broadcast %452 : vector<128x1xf32> to vector<128x128xf32>
    %454 = arith.subf %450, %453 : vector<128x128xf32>
    %455 = math.exp %454 : vector<128x128xf32>
    %cst_264 = arith.constant dense<0.000000e+00> : vector<128xf32>
    %456 = vector.multi_reduction <add>, %455, %cst_264 [1] : vector<128x128xf32> to vector<128xf32>
    %457 = vector.shape_cast %456 : vector<128xf32> to vector<128x1xf32>
    %458 = tpu.reciprocal %457 : vector<128x1xf32> -> vector<128x1xf32>
    %cst_265 = arith.constant 0.333333343 : f32
    %459 = vector.broadcast %cst_265 : f32 to vector<128x1xf32>
    %460 = arith.mulf %458, %459 : vector<128x1xf32>
    %461 = vector.broadcast %460 : vector<128x1xf32> to vector<128x128xf32>
    %462 = arith.mulf %455, %461 : vector<128x128xf32>
    %463 = arith.truncf %462 : vector<128x128xf32> to vector<128x128xbf16>
    %c0_266 = arith.constant 0 : index
    %c0_267 = arith.constant 0 : index
    %464 = vector.load %arg12[%c0_266, %c0_267] : memref<128x384xbf16, #tpu.memory_space<vmem>>, vector<128x128xbf16>
    tpu.vector_store %arg12[%c0_266, %c0_267], %463 {strides = array<i32>} : memref<128x384xbf16, #tpu.memory_space<vmem>>, vector<128x128xbf16>,
    %465 = vector.extract_strided_slice %442 {offsets = [1, 0], sizes = [1, 128], strides = [1, 1]} : vector<8x128xf32> to vector<1x128xf32>
    %466 = vector.broadcast %430 : vector<128x1xf32> to vector<128x128xf32>
    %467 = vector.broadcast %465 : vector<1x128xf32> to vector<128x128xf32>
    %468 = arith.addf %466, %467 : vector<128x128xf32>
    %cst_268 = arith.constant 2.000000e-01 : f32
    %469 = vector.broadcast %cst_268 : f32 to vector<128x128xf32>
    %470 = arith.mulf %469, %468 : vector<128x128xf32>
    %471 = arith.maximumf %468, %470 : vector<128x128xf32>
    %472 = arith.addf %471, %3 : vector<128x128xf32>
    %cst_269 = arith.constant dense<0xFF800000> : vector<128xf32>
    %473 = vector.multi_reduction <maximumf>, %472, %cst_269 [1] : vector<128x128xf32> to vector<128xf32>
    %474 = vector.shape_cast %473 : vector<128xf32> to vector<128x1xf32>
    %475 = vector.broadcast %474 : vector<128x1xf32> to vector<128x128xf32>
    %476 = arith.subf %472, %475 : vector<128x128xf32>
    %477 = math.exp %476 : vector<128x128xf32>
    %cst_270 = arith.constant dense<0.000000e+00> : vector<128xf32>
    %478 = vector.multi_reduction <add>, %477, %cst_270 [1] : vector<128x128xf32> to vector<128xf32>
    %479 = vector.shape_cast %478 : vector<128xf32> to vector<128x1xf32>
    %480 = tpu.reciprocal %479 : vector<128x1xf32> -> vector<128x1xf32>
    %cst_271 = arith.constant 0.333333343 : f32
    %481 = vector.broadcast %cst_271 : f32 to vector<128x1xf32>
    %482 = arith.mulf %480, %481 : vector<128x1xf32>
    %483 = vector.broadcast %482 : vector<128x1xf32> to vector<128x128xf32>
    %484 = arith.mulf %477, %483 : vector<128x128xf32>
    %485 = arith.truncf %484 : vector<128x128xf32> to vector<128x128xbf16>
    %c0_272 = arith.constant 0 : index
    %c128_273 = arith.constant 128 : index
    %486 = vector.load %arg12[%c0_272, %c128_273] : memref<128x384xbf16, #tpu.memory_space<vmem>>, vector<128x128xbf16>
    tpu.vector_store %arg12[%c0_272, %c128_273], %485 {strides = array<i32>} : memref<128x384xbf16, #tpu.memory_space<vmem>>, vector<128x128xbf16>,
    %487 = vector.extract_strided_slice %442 {offsets = [2, 0], sizes = [1, 128], strides = [1, 1]} : vector<8x128xf32> to vector<1x128xf32>
    %488 = vector.broadcast %439 : vector<128x1xf32> to vector<128x128xf32>
    %489 = vector.broadcast %487 : vector<1x128xf32> to vector<128x128xf32>
    %490 = arith.addf %488, %489 : vector<128x128xf32>
    %cst_274 = arith.constant 2.000000e-01 : f32
    %491 = vector.broadcast %cst_274 : f32 to vector<128x128xf32>
    %492 = arith.mulf %491, %490 : vector<128x128xf32>
    %493 = arith.maximumf %490, %492 : vector<128x128xf32>
    %494 = arith.addf %493, %3 : vector<128x128xf32>
    %cst_275 = arith.constant dense<0xFF800000> : vector<128xf32>
    %495 = vector.multi_reduction <maximumf>, %494, %cst_275 [1] : vector<128x128xf32> to vector<128xf32>
    %496 = vector.shape_cast %495 : vector<128xf32> to vector<128x1xf32>
    %497 = vector.broadcast %496 : vector<128x1xf32> to vector<128x128xf32>
    %498 = arith.subf %494, %497 : vector<128x128xf32>
    %499 = math.exp %498 : vector<128x128xf32>
    %cst_276 = arith.constant dense<0.000000e+00> : vector<128xf32>
    %500 = vector.multi_reduction <add>, %499, %cst_276 [1] : vector<128x128xf32> to vector<128xf32>
    %501 = vector.shape_cast %500 : vector<128xf32> to vector<128x1xf32>
    %502 = tpu.reciprocal %501 : vector<128x1xf32> -> vector<128x1xf32>
    %cst_277 = arith.constant 0.333333343 : f32
    %503 = vector.broadcast %cst_277 : f32 to vector<128x1xf32>
    %504 = arith.mulf %502, %503 : vector<128x1xf32>
    %505 = vector.broadcast %504 : vector<128x1xf32> to vector<128x128xf32>
    %506 = arith.mulf %499, %505 : vector<128x128xf32>
    %507 = arith.truncf %506 : vector<128x128xf32> to vector<128x128xbf16>
    %c0_278 = arith.constant 0 : index
    %c256_279 = arith.constant 256 : index
    %508 = vector.load %arg12[%c0_278, %c256_279] : memref<128x384xbf16, #tpu.memory_space<vmem>>, vector<128x128xbf16>
    tpu.vector_store %arg12[%c0_278, %c256_279], %507 {strides = array<i32>} : memref<128x384xbf16, #tpu.memory_space<vmem>>, vector<128x128xbf16>,
    %c0_280 = arith.constant 0 : index
    %c0_281 = arith.constant 0 : index
    %509 = vector.load %arg12[%c0_280, %c0_281] : memref<128x384xbf16, #tpu.memory_space<vmem>>, vector<128x384xbf16>
    %c0_282 = arith.constant 0 : index
    %c0_283 = arith.constant 0 : index
    %510 = vector.load %arg11[%c0_282, %c0_283] : memref<384x128xbf16, #tpu.memory_space<vmem>>, vector<384x128xbf16>
    %cst_284 = arith.constant dense<0.000000e+00> : vector<128x128xf32>
    %511 = tpu.matmul %509, %510, %cst_284 {dimension_numbers = #tpu.dot_dimension_numbers<[1], [0], [0], [1], [0, 0, 1, 1], [], []>} : vector<128x384xbf16>, vector<384x128xbf16>, vector<128x128xf32> -> vector<128x128xf32>
    %c0_285 = arith.constant 0 : index
    %c3_286 = arith.constant 3 : index
    %c0_287 = arith.constant 0 : index
    %c0_288 = arith.constant 0 : index
    %512 = vector.load %arg7[%c0_285, %c3_286, %c0_287, %c0_288] : memref<1x4x1x128xf32, #tpu.memory_space<vmem>>, vector<1x1x1x128xf32>
    %513 = vector.shape_cast %512 : vector<1x1x1x128xf32> to vector<1x128xf32>
    %514 = vector.broadcast %513 : vector<1x128xf32> to vector<128x128xf32>
    %515 = arith.addf %511, %514 : vector<128x128xf32>
    %cst_289 = arith.constant dense<0.000000e+00> : vector<128xf32>
    %516 = vector.multi_reduction <add>, %515, %cst_289 [1] : vector<128x128xf32> to vector<128xf32>
    %517 = vector.shape_cast %516 : vector<128xf32> to vector<128x1xf32>
    %cst_290 = arith.constant 1.280000e+02 : f32
    %518 = vector.broadcast %cst_290 : f32 to vector<128x1xf32>
    %519 = arith.divf %517, %518 : vector<128x1xf32>
    %520 = vector.broadcast %519 : vector<128x1xf32> to vector<128x128xf32>
    %521 = arith.subf %515, %520 : vector<128x128xf32>
    %522 = arith.mulf %521, %521 : vector<128x128xf32>
    %cst_291 = arith.constant dense<0.000000e+00> : vector<128xf32>
    %523 = vector.multi_reduction <add>, %522, %cst_291 [1] : vector<128x128xf32> to vector<128xf32>
    %524 = vector.shape_cast %523 : vector<128xf32> to vector<128x1xf32>
    %cst_292 = arith.constant 1.280000e+02 : f32
    %525 = vector.broadcast %cst_292 : f32 to vector<128x1xf32>
    %526 = arith.divf %524, %525 : vector<128x1xf32>
    %527 = vector.broadcast %519 : vector<128x1xf32> to vector<128x128xf32>
    %528 = arith.subf %515, %527 : vector<128x128xf32>
    %cst_293 = arith.constant 9.99999974E-6 : f32
    %529 = vector.broadcast %cst_293 : f32 to vector<128x1xf32>
    %530 = arith.addf %526, %529 : vector<128x1xf32>
    %531 = math.rsqrt %530 : vector<128x1xf32>
    %532 = vector.broadcast %531 : vector<128x1xf32> to vector<128x128xf32>
    %533 = arith.mulf %528, %532 : vector<128x128xf32>
    %c0_294 = arith.constant 0 : index
    %c3_295 = arith.constant 3 : index
    %c0_296 = arith.constant 0 : index
    %c0_297 = arith.constant 0 : index
    %534 = vector.load %arg8[%c0_294, %c3_295, %c0_296, %c0_297] : memref<1x4x1x128xf32, #tpu.memory_space<vmem>>, vector<1x1x1x128xf32>
    %535 = vector.shape_cast %534 : vector<1x1x1x128xf32> to vector<1x128xf32>
    %536 = vector.broadcast %535 : vector<1x128xf32> to vector<128x128xf32>
    %537 = arith.mulf %533, %536 : vector<128x128xf32>
    %c0_298 = arith.constant 0 : index
    %c3_299 = arith.constant 3 : index
    %c0_300 = arith.constant 0 : index
    %c0_301 = arith.constant 0 : index
    %538 = vector.load %arg9[%c0_298, %c3_299, %c0_300, %c0_301] : memref<1x4x1x128xf32, #tpu.memory_space<vmem>>, vector<1x1x1x128xf32>
    %539 = vector.shape_cast %538 : vector<1x1x1x128xf32> to vector<1x128xf32>
    %540 = vector.broadcast %539 : vector<1x128xf32> to vector<128x128xf32>
    %541 = arith.addf %537, %540 : vector<128x128xf32>
    %cst_302 = arith.constant dense<0.000000e+00> : vector<2x128xf32>
    %542 = tpu.matmul %5, %541, %cst_302 {dimension_numbers = #tpu.dot_dimension_numbers<[1], [0], [0], [1], [0, 0, 1, 1], [], []>} : vector<2x128xf32>, vector<128x128xf32>, vector<2x128xf32> -> vector<2x128xf32>
    %543 = tpu.concatenate %6, %140, %274, %408, %542 in 1 : vector<2x128xf32>, vector<2x128xf32>, vector<2x128xf32>, vector<2x128xf32>, vector<2x128xf32> -> vector<2x640xf32>
    %c0_303 = arith.constant 0 : index
    %c0_304 = arith.constant 0 : index
    %c0_305 = arith.constant 0 : index
    %544 = vector.load %arg10[%c0_303, %c0_304, %c0_305] : memref<1x2x640xf32, #tpu.memory_space<vmem>>, vector<1x2x640xf32>
    %545 = vector.shape_cast %544 : vector<1x2x640xf32> to vector<2x640xf32>
    %546 = vector.shape_cast %543 : vector<2x640xf32> to vector<1x2x640xf32>
    tpu.vector_store %arg10[%c0_303, %c0_304, %c0_305], %546 {strides = array<i32>} : memref<1x2x640xf32, #tpu.memory_space<vmem>>, vector<1x2x640xf32>,
    return
  }
  func.func @transform_0(%arg0: i32) -> (i32, i32, i32) {
    %c0_i32 = arith.constant 0 : i32
    %c0_i32_0 = arith.constant 0 : i32
    %c0_i32_1 = arith.constant 0 : i32
    return %arg0, %c0_i32, %c0_i32_0 : i32, i32, i32
  }
  func.func @transform_1(%arg0: i32) -> (i32, i32, i32) {
    %c0_i32 = arith.constant 0 : i32
    %c0_i32_0 = arith.constant 0 : i32
    %c0_i32_1 = arith.constant 0 : i32
    return %arg0, %c0_i32, %c0_i32_0 : i32, i32, i32
  }
  func.func @transform_2(%arg0: i32) -> (i32, i32, i32) {
    %c0_i32 = arith.constant 0 : i32
    %c0_i32_0 = arith.constant 0 : i32
    %c0_i32_1 = arith.constant 0 : i32
    return %arg0, %c0_i32, %c0_i32_0 : i32, i32, i32
  }
  func.func @transform_3(%arg0: i32) -> (i32, i32, i32, i32) {
    %c0_i32 = arith.constant 0 : i32
    %c0_i32_0 = arith.constant 0 : i32
    %c0_i32_1 = arith.constant 0 : i32
    %c0_i32_2 = arith.constant 0 : i32
    return %arg0, %c0_i32, %c0_i32_0, %c0_i32_1 : i32, i32, i32, i32
  }
  func.func @transform_4(%arg0: i32) -> (i32, i32, i32, i32) {
    %c0_i32 = arith.constant 0 : i32
    %c0_i32_0 = arith.constant 0 : i32
    %c0_i32_1 = arith.constant 0 : i32
    %c0_i32_2 = arith.constant 0 : i32
    return %arg0, %c0_i32, %c0_i32_0, %c0_i32_1 : i32, i32, i32, i32
  }
  func.func @transform_5(%arg0: i32) -> (i32, i32, i32, i32, i32) {
    %c0_i32 = arith.constant 0 : i32
    %c0_i32_0 = arith.constant 0 : i32
    %c0_i32_1 = arith.constant 0 : i32
    %c0_i32_2 = arith.constant 0 : i32
    %c0_i32_3 = arith.constant 0 : i32
    return %arg0, %c0_i32, %c0_i32_0, %c0_i32_1, %c0_i32_2 : i32, i32, i32, i32, i32
  }
  func.func @transform_6(%arg0: i32) -> (i32, i32, i32, i32) {
    %c0_i32 = arith.constant 0 : i32
    %c0_i32_0 = arith.constant 0 : i32
    %c0_i32_1 = arith.constant 0 : i32
    %c0_i32_2 = arith.constant 0 : i32
    return %arg0, %c0_i32, %c0_i32_0, %c0_i32_1 : i32, i32, i32, i32
  }
  func.func @transform_7(%arg0: i32) -> (i32, i32, i32, i32) {
    %c0_i32 = arith.constant 0 : i32
    %c0_i32_0 = arith.constant 0 : i32
    %c0_i32_1 = arith.constant 0 : i32
    %c0_i32_2 = arith.constant 0 : i32
    return %arg0, %c0_i32, %c0_i32_0, %c0_i32_1 : i32, i32, i32, i32
  }
  func.func @transform_8(%arg0: i32) -> (i32, i32, i32, i32) {
    %c0_i32 = arith.constant 0 : i32
    %c0_i32_0 = arith.constant 0 : i32
    %c0_i32_1 = arith.constant 0 : i32
    %c0_i32_2 = arith.constant 0 : i32
    return %arg0, %c0_i32, %c0_i32_0, %c0_i32_1 : i32, i32, i32, i32
  }
  func.func @transform_9(%arg0: i32) -> (i32, i32, i32) {
    %c0_i32 = arith.constant 0 : i32
    %c0_i32_0 = arith.constant 0 : i32
    %c0_i32_1 = arith.constant 0 : i32
    return %arg0, %c0_i32, %c0_i32_0 : i32, i32, i32
  }
}

</mosaic_0001>

<llo_original>
// kernel: gat_forward.1
$region0: #{gat_forward.1}
  #allocation0 [shape = 'u32[]', space=smem, size = 0x4, offset = 0x4, fixed_abs, tag = 'smem constant byte address 0x4 - core index']
  #allocation1 [shape = 'u32[144,128]{1,0:T(1,128)}', space=vmem, size = 0x12000, scoped, tag = 'internal scratch']
  #allocation2 [shape = 'bf16[384,128]{1,0:T(16,128)(2,1)}', space=vmem, size = 0x18000, scoped, tag = 'scratch operand']
  #allocation3 [shape = 'bf16[128,384]{1,0:T(16,128)(2,1)}', space=vmem, size = 0x18000, scoped, tag = 'scratch operand']
  %s0 = inlined_call_operand.vmem [shape: f32[2,128,128], index: 0, kind: input, shape index: {}]
  %s1 = inlined_call_operand.vmem [shape: f32[2,128,128], index: 1, kind: input, shape index: {}]
  %s2 = inlined_call_operand.vmem [shape: f32[2,2,128], index: 2, kind: input, shape index: {}]
  %s3 = inlined_call_operand.vmem [shape: bf16[2,4,128,384], index: 3, kind: input, shape index: {}]
  %s4 = inlined_call_operand.vmem [shape: f32[2,4,8,384], index: 4, kind: input, shape index: {}]
  %s5 = inlined_call_operand.vmem [shape: f32[2,4,3,1,128], index: 5, kind: input, shape index: {}]
  %s6 = inlined_call_operand.vmem [shape: f32[2,4,1,128], index: 6, kind: input, shape index: {}]
  %s7 = inlined_call_operand.vmem [shape: f32[2,4,1,128], index: 7, kind: input, shape index: {}]
  %s8 = inlined_call_operand.vmem [shape: f32[2,4,1,128], index: 8, kind: input, shape index: {}]
  %s9 = inlined_call_operand.vmem [shape: f32[2,2,640], index: 9, kind: output, shape index: {}]
  %s10 = sld [smem:[#allocation0]]
  $region69: #{gat_forward.1} parent=0
    _
  %s12 = ssub.s32 1, %s10
  %s13 = scalar_select 0, %s12, %s10
  loop: start=0, step=1, limit=4
  $region2: #{gat_forward.1} parent=0 // loop_pre_header
    _
  $region3: #{gat_forward.1} parent=0 // loop_header
    %s15 = sphi 0, %s19
    %p16 = scmp.ge.s32.totalorder %s15, 4
    %s25 = sphi 0, %s27
    %s28 = sphi 0, %s25
    %s29 = sphi 0, %s28
    %s45 = sphi 0, %s29
    %s51 = sphi 0, %s53
    %s54 = sphi 0, %s51
    %s55 = sphi 0, %s54
    %s71 = sphi 0, %s55
    %s77 = sphi 0, %s79
    %s80 = sphi 0, %s77
    %s81 = sphi 0, %s80
    %s97 = sphi 0, %s81
    %s103 = sphi 0, %s105
    %s106 = sphi 0, %s103
    %s107 = sphi 0, %s106
    %s123 = sphi 0, %s107
    %s129 = sphi 0, %s131
    %s132 = sphi 0, %s129
    %s133 = sphi 0, %s132
    %s149 = sphi 0, %s133
    %s155 = sphi 0, %s157
    %s158 = sphi 0, %s155
    %s159 = sphi 0, %s158
    %s175 = sphi 0, %s159
    %s181 = sphi 0, %s183
    %s184 = sphi 0, %s181
    %s185 = sphi 0, %s184
    %s201 = sphi 0, %s185
    %s207 = sphi 0, %s209
    %s210 = sphi 0, %s207
    %s211 = sphi 0, %s210
    %s227 = sphi 0, %s211
    %s233 = sphi 0, %s235
    %s236 = sphi 0, %s233
    %s237 = sphi 0, %s236
    %s253 = sphi 0, %s237
    %s259 = sphi 0, %s261
    %s262 = sphi 0, %s259
    %s263 = sphi 0, %s262
    %s279 = sphi 0, %s263
  $region4: #{gat_forward.1} parent=0 // loop_header_branch
    %18 = sbr.rel (%p16) target = $region8
  $region5: #{gat_forward.1} parent=0 // loop_body
    %s20 = ssub.s32 %s15, 1
    %s21 = ssub.s32 %s15, 2
    %s22 = sadd.s32 %s15, 1
    %s23 = ssub.s32 %s15, %s22
    %p24 = scmp.eq.s32.totalorder %s23, 0
    %s26 = sadd.s32 %s25, 1
    %s27 = scalar_select %p24, %s25, %s26
    %p30 = pneg %p24
    %p31 = scmp.eq.s32.totalorder %s15, 1
    %p32 = por %p30, %p31
    %p33 = scmp.ne.s32.totalorder %s25, %s28
    %p34 = scmp.eq.s32.totalorder %s15, 0
    %p35 = por %p33, %p34
    %p36 = scmp.ne.s32.totalorder %s25, %s28
    %p37 = scmp.eq.s32.totalorder %s20, 1
    %p38 = por %p36, %p37
    %p39 = scmp.ne.s32.totalorder %s28, %s29
    %p40 = scmp.eq.s32.totalorder %s20, 0
    %p41 = por %p39, %p40
    %p42 = scmp.ne.s32.totalorder %s28, %s29
    %p43 = scmp.eq.s32.totalorder %s21, 1
    %p44 = por %p42, %p43
    %p46 = scmp.ne.s32.totalorder %s29, %s45
    %p47 = scmp.eq.s32.totalorder %s21, 0
    %p48 = por %p46, %p47
    %s49 = ssub.s32 %s15, %s22
    %p50 = scmp.eq.s32.totalorder %s49, 0
    %s52 = sadd.s32 %s51, 1
    %s53 = scalar_select %p50, %s51, %s52
    %p56 = pneg %p50
    %p57 = scmp.eq.s32.totalorder %s15, 1
    %p58 = por %p56, %p57
    %p59 = scmp.ne.s32.totalorder %s51, %s54
    %p60 = scmp.eq.s32.totalorder %s15, 0
    %p61 = por %p59, %p60
    %p62 = scmp.ne.s32.totalorder %s51, %s54
    %p63 = scmp.eq.s32.totalorder %s20, 1
    %p64 = por %p62, %p63
    %p65 = scmp.ne.s32.totalorder %s54, %s55
    %p66 = scmp.eq.s32.totalorder %s20, 0
    %p67 = por %p65, %p66
    %p68 = scmp.ne.s32.totalorder %s54, %s55
    %p69 = scmp.eq.s32.totalorder %s21, 1
    %p70 = por %p68, %p69
    %p72 = scmp.ne.s32.totalorder %s55, %s71
    %p73 = scmp.eq.s32.totalorder %s21, 0
    %p74 = por %p72, %p73
    %s75 = ssub.s32 %s15, %s22
    %p76 = scmp.eq.s32.totalorder %s75, 0
    %s78 = sadd.s32 %s77, 1
    %s79 = scalar_select %p76, %s77, %s78
    %p82 = pneg %p76
    %p83 = scmp.eq.s32.totalorder %s15, 1
    %p84 = por %p82, %p83
    %p85 = scmp.ne.s32.totalorder %s77, %s80
    %p86 = scmp.eq.s32.totalorder %s15, 0
    %p87 = por %p85, %p86
    %p88 = scmp.ne.s32.totalorder %s77, %s80
    %p89 = scmp.eq.s32.totalorder %s20, 1
    %p90 = por %p88, %p89
    %p91 = scmp.ne.s32.totalorder %s80, %s81
    %p92 = scmp.eq.s32.totalorder %s20, 0
    %p93 = por %p91, %p92
    %p94 = scmp.ne.s32.totalorder %s80, %s81
    %p95 = scmp.eq.s32.totalorder %s21, 1
    %p96 = por %p94, %p95
    %p98 = scmp.ne.s32.totalorder %s81, %s97
    %p99 = scmp.eq.s32.totalorder %s21, 0
    %p100 = por %p98, %p99
    %s101 = ssub.s32 %s15, %s22
    %p102 = scmp.eq.s32.totalorder %s101, 0
    %s104 = sadd.s32 %s103, 1
    %s105 = scalar_select %p102, %s103, %s104
    %p108 = pneg %p102
    %p109 = scmp.eq.s32.totalorder %s15, 1
    %p110 = por %p108, %p109
    %p111 = scmp.ne.s32.totalorder %s103, %s106
    %p112 = scmp.eq.s32.totalorder %s15, 0
    %p113 = por %p111, %p112
    %p114 = scmp.ne.s32.totalorder %s103, %s106
    %p115 = scmp.eq.s32.totalorder %s20, 1
    %p116 = por %p114, %p115
    %p117 = scmp.ne.s32.totalorder %s106, %s107
    %p118 = scmp.eq.s32.totalorder %s20, 0
    %p119 = por %p117, %p118
    %p120 = scmp.ne.s32.totalorder %s106, %s107
    %p121 = scmp.eq.s32.totalorder %s21, 1
    %p122 = por %p120, %p121
    %p124 = scmp.ne.s32.totalorder %s107, %s123
    %p125 = scmp.eq.s32.totalorder %s21, 0
    %p126 = por %p124, %p125
    %s127 = ssub.s32 %s15, %s22
    %p128 = scmp.eq.s32.totalorder %s127, 0
    %s130 = sadd.s32 %s129, 1
    %s131 = scalar_select %p128, %s129, %s130
    %p134 = pneg %p128
    %p135 = scmp.eq.s32.totalorder %s15, 1
    %p136 = por %p134, %p135
    %p137 = scmp.ne.s32.totalorder %s129, %s132
    %p138 = scmp.eq.s32.totalorder %s15, 0
    %p139 = por %p137, %p138
    %p140 = scmp.ne.s32.totalorder %s129, %s132
    %p141 = scmp.eq.s32.totalorder %s20, 1
    %p142 = por %p140, %p141
    %p143 = scmp.ne.s32.totalorder %s132, %s133
    %p144 = scmp.eq.s32.totalorder %s20, 0
    %p145 = por %p143, %p144
    %p146 = scmp.ne.s32.totalorder %s132, %s133
    %p147 = scmp.eq.s32.totalorder %s21, 1
    %p148 = por %p146, %p147
    %p150 = scmp.ne.s32.totalorder %s133, %s149
    %p151 = scmp.eq.s32.totalorder %s21, 0
    %p152 = por %p150, %p151
    %s153 = ssub.s32 %s15, %s22
    %p154 = scmp.eq.s32.totalorder %s153, 0
    %s156 = sadd.s32 %s155, 1
    %s157 = scalar_select %p154, %s155, %s156
    %p160 = pneg %p154
    %p161 = scmp.eq.s32.totalorder %s15, 1
    %p162 = por %p160, %p161
    %p163 = scmp.ne.s32.totalorder %s155, %s158
    %p164 = scmp.eq.s32.totalorder %s15, 0
    %p165 = por %p163, %p164
    %p166 = scmp.ne.s32.totalorder %s155, %s158
    %p167 = scmp.eq.s32.totalorder %s20, 1
    %p168 = por %p166, %p167
    %p169 = scmp.ne.s32.totalorder %s158, %s159
    %p170 = scmp.eq.s32.totalorder %s20, 0
    %p171 = por %p169, %p170
    %p172 = scmp.ne.s32.totalorder %s158, %s159
    %p173 = scmp.eq.s32.totalorder %s21, 1
    %p174 = por %p172, %p173
    %p176 = scmp.ne.s32.totalorder %s159, %s175
    %p177 = scmp.eq.s32.totalorder %s21, 0
    %p178 = por %p176, %p177
    %s179 = ssub.s32 %s15, %s22
    %p180 = scmp.eq.s32.totalorder %s179, 0
    %s182 = sadd.s32 %s181, 1
    %s183 = scalar_select %p180, %s181, %s182
    %p186 = pneg %p180
    %p187 = scmp.eq.s32.totalorder %s15, 1
    %p188 = por %p186, %p187
    %p189 = scmp.ne.s32.totalorder %s181, %s184
    %p190 = scmp.eq.s32.totalorder %s15, 0
    %p191 = por %p189, %p190
    %p192 = scmp.ne.s32.totalorder %s181, %s184
    %p193 = scmp.eq.s32.totalorder %s20, 1
    %p194 = por %p192, %p193
    %p195 = scmp.ne.s32.totalorder %s184, %s185
    %p196 = scmp.eq.s32.totalorder %s20, 0
    %p197 = por %p195, %p196
    %p198 = scmp.ne.s32.totalorder %s184, %s185
    %p199 = scmp.eq.s32.totalorder %s21, 1
    %p200 = por %p198, %p199
    %p202 = scmp.ne.s32.totalorder %s185, %s201
    %p203 = scmp.eq.s32.totalorder %s21, 0
    %p204 = por %p202, %p203
    %s205 = ssub.s32 %s15, %s22
    %p206 = scmp.eq.s32.totalorder %s205, 0
    %s208 = sadd.s32 %s207, 1
    %s209 = scalar_select %p206, %s207, %s208
    %p212 = pneg %p206
    %p213 = scmp.eq.s32.totalorder %s15, 1
    %p214 = por %p212, %p213
    %p215 = scmp.ne.s32.totalorder %s207, %s210
    %p216 = scmp.eq.s32.totalorder %s15, 0
    %p217 = por %p215, %p216
    %p218 = scmp.ne.s32.totalorder %s207, %s210
    %p219 = scmp.eq.s32.totalorder %s20, 1
    %p220 = por %p218, %p219
    %p221 = scmp.ne.s32.totalorder %s210, %s211
    %p222 = scmp.eq.s32.totalorder %s20, 0
    %p223 = por %p221, %p222
    %p224 = scmp.ne.s32.totalorder %s210, %s211
    %p225 = scmp.eq.s32.totalorder %s21, 1
    %p226 = por %p224, %p225
    %p228 = scmp.ne.s32.totalorder %s211, %s227
    %p229 = scmp.eq.s32.totalorder %s21, 0
    %p230 = por %p228, %p229
    %s231 = ssub.s32 %s15, %s22
    %p232 = scmp.eq.s32.totalorder %s231, 0
    %s234 = sadd.s32 %s233, 1
    %s235 = scalar_select %p232, %s233, %s234
    %p238 = pneg %p232
    %p239 = scmp.eq.s32.totalorder %s15, 1
    %p240 = por %p238, %p239
    %p241 = scmp.ne.s32.totalorder %s233, %s236
    %p242 = scmp.eq.s32.totalorder %s15, 0
    %p243 = por %p241, %p242
    %p244 = scmp.ne.s32.totalorder %s233, %s236
    %p245 = scmp.eq.s32.totalorder %s20, 1
    %p246 = por %p244, %p245
    %p247 = scmp.ne.s32.totalorder %s236, %s237
    %p248 = scmp.eq.s32.totalorder %s20, 0
    %p249 = por %p247, %p248
    %p250 = scmp.ne.s32.totalorder %s236, %s237
    %p251 = scmp.eq.s32.totalorder %s21, 1
    %p252 = por %p250, %p251
    %p254 = scmp.ne.s32.totalorder %s237, %s253
    %p255 = scmp.eq.s32.totalorder %s21, 0
    %p256 = por %p254, %p255
    %s257 = ssub.s32 %s15, %s22
    %p258 = scmp.eq.s32.totalorder %s257, 0
    %s260 = sadd.s32 %s259, 1
    %s261 = scalar_select %p258, %s259, %s260
    %p264 = pneg %p258
    %p265 = scmp.eq.s32.totalorder %s15, 1
    %p266 = por %p264, %p265
    %p267 = scmp.ne.s32.totalorder %s259, %s262
    %p268 = scmp.eq.s32.totalorder %s15, 0
    %p269 = por %p267, %p268
    %p270 = scmp.ne.s32.totalorder %s259, %s262
    %p271 = scmp.eq.s32.totalorder %s20, 1
    %p272 = por %p270, %p271
    %p273 = scmp.ne.s32.totalorder %s262, %s263
    %p274 = scmp.eq.s32.totalorder %s20, 0
    %p275 = por %p273, %p274
    %p276 = scmp.ne.s32.totalorder %s262, %s263
    %p277 = scmp.eq.s32.totalorder %s21, 1
    %p278 = por %p276, %p277
    %p280 = scmp.ne.s32.totalorder %s263, %s279
    %p281 = scmp.eq.s32.totalorder %s21, 0
    %p282 = por %p280, %p281
    %p283 = scmp.le.s32.totalorder 1, %s15
    %p284 = scmp.lt.s32.totalorder %s15, 3
    %p285 = pnand %p283, %p284
    %p286 = pneg %p285
    // Predicated region
    $region9: #{gat_forward.1} parent=5 // pred_check
      _
    $region10: #{gat_forward.1} parent=5 // pred_check_branch
      %288 = sbr.rel (%p285) target = $region12
    $region11: #{gat_forward.1} parent=5 // pred_region
      %s289 = ssub.s32 %s15, 1
    $region12: #{gat_forward.1} parent=5 // pred_fallthru
      _
    %p290 = scmp.lt.s32.totalorder %s15, 2
    // Predicated region
    $region13: #{gat_forward.1} parent=5 // pred_check
      %p291 = pneg %p290
    $region14: #{gat_forward.1} parent=5 // pred_check_branch
      %293 = sbr.rel (%p291) target = $region16
    $region15: #{gat_forward.1} parent=5 // pred_region
      // Predicated region
      $region17: #{gat_forward.1} parent=15 // pred_check
        %p294 = pneg %p35
      $region18: #{gat_forward.1} parent=15 // pred_check_branch
        %296 = sbr.rel (%p294) target = $region20
      $region19: #{gat_forward.1} parent=15 // pred_region
        %p297 = scmp.lt.s32.totalorder %s15, 1
        %s298 = scalar_select %p297, %s15, 1
        %s299 = smul.addr %s298, 16
        %s300 = smul.addr %s299, 8
        %s301 = scalar_lea.vmem %s0, %s300
      $region20: #{gat_forward.1} parent=15 // pred_fallthru
        _
      // Predicated region
      $region21: #{gat_forward.1} parent=15 // pred_check
        %p302 = pneg %p61
      $region22: #{gat_forward.1} parent=15 // pred_check_branch
        %304 = sbr.rel (%p302) target = $region24
      $region23: #{gat_forward.1} parent=15 // pred_region
        %p305 = scmp.lt.s32.totalorder %s15, 1
        %s306 = scalar_select %p305, %s15, 1
        %s307 = smul.addr %s306, 16
        %s308 = smul.addr %s307, 8
        %s309 = scalar_lea.vmem %s1, %s308
      $region24: #{gat_forward.1} parent=15 // pred_fallthru
        _
      // Predicated region
      $region25: #{gat_forward.1} parent=15 // pred_check
        %p310 = pneg %p87
      $region26: #{gat_forward.1} parent=15 // pred_check_branch
        %312 = sbr.rel (%p310) target = $region28
      $region27: #{gat_forward.1} parent=15 // pred_region
        %p313 = scmp.lt.s32.totalorder %s15, 1
        %s314 = scalar_select %p313, %s15, 1
        %s315 = smul.addr %s314, 2
        %s316 = scalar_lea.vmem %s2, %s315
      $region28: #{gat_forward.1} parent=15 // pred_fallthru
        _
      // Predicated region
      $region29: #{gat_forward.1} parent=15 // pred_check
        %p317 = pneg %p113
      $region30: #{gat_forward.1} parent=15 // pred_check_branch
        %319 = sbr.rel (%p317) target = $region32
      $region31: #{gat_forward.1} parent=15 // pred_region
        %p320 = scmp.lt.s32.totalorder %s15, 1
        %s321 = scalar_select %p320, %s15, 1
        %s322 = smul.addr %s321, 192
        %s323 = smul.addr %s322, 4
        %s324 = scalar_lea.vmem %s3, %s323
      $region32: #{gat_forward.1} parent=15 // pred_fallthru
        _
      // Predicated region
      $region33: #{gat_forward.1} parent=15 // pred_check
        %p325 = pneg %p139
      $region34: #{gat_forward.1} parent=15 // pred_check_branch
        %327 = sbr.rel (%p325) target = $region36
      $region35: #{gat_forward.1} parent=15 // pred_region
        %p328 = scmp.lt.s32.totalorder %s15, 1
        %s329 = scalar_select %p328, %s15, 1
        %s330 = smul.addr %s329, 12
        %s331 = smul.addr %s330, 8
        %s332 = scalar_lea.vmem %s4, %s331
      $region36: #{gat_forward.1} parent=15 // pred_fallthru
        _
      // Predicated region
      $region37: #{gat_forward.1} parent=15 // pred_check
        %p333 = pneg %p165
      $region38: #{gat_forward.1} parent=15 // pred_check_branch
        %335 = sbr.rel (%p333) target = $region40
      $region39: #{gat_forward.1} parent=15 // pred_region
        %p336 = scmp.lt.s32.totalorder %s15, 1
        %s337 = scalar_select %p336, %s15, 1
        %s338 = smul.addr %s337, 12
        %s339 = scalar_lea.vmem %s5, %s338
      $region40: #{gat_forward.1} parent=15 // pred_fallthru
        _
      // Predicated region
      $region41: #{gat_forward.1} parent=15 // pred_check
        %p340 = pneg %p191
      $region42: #{gat_forward.1} parent=15 // pred_check_branch
        %342 = sbr.rel (%p340) target = $region44
      $region43: #{gat_forward.1} parent=15 // pred_region
        %p343 = scmp.lt.s32.totalorder %s15, 1
        %s344 = scalar_select %p343, %s15, 1
        %s345 = smul.addr %s344, 4
        %s346 = scalar_lea.vmem %s6, %s345
      $region44: #{gat_forward.1} parent=15 // pred_fallthru
        _
      // Predicated region
      $region45: #{gat_forward.1} parent=15 // pred_check
        %p347 = pneg %p217
      $region46: #{gat_forward.1} parent=15 // pred_check_branch
        %349 = sbr.rel (%p347) target = $region48
      $region47: #{gat_forward.1} parent=15 // pred_region
        %p350 = scmp.lt.s32.totalorder %s15, 1
        %s351 = scalar_select %p350, %s15, 1
        %s352 = smul.addr %s351, 4
        %s353 = scalar_lea.vmem %s7, %s352
      $region48: #{gat_forward.1} parent=15 // pred_fallthru
        _
      // Predicated region
      $region49: #{gat_forward.1} parent=15 // pred_check
        %p354 = pneg %p243
      $region50: #{gat_forward.1} parent=15 // pred_check_branch
        %356 = sbr.rel (%p354) target = $region52
      $region51: #{gat_forward.1} parent=15 // pred_region
        %p357 = scmp.lt.s32.totalorder %s15, 1
        %s358 = scalar_select %p357, %s15, 1
        %s359 = smul.addr %s358, 4
        %s360 = scalar_lea.vmem %s8, %s359
      $region52: #{gat_forward.1} parent=15 // pred_fallthru
        _
    $region16: #{gat_forward.1} parent=5 // pred_fallthru
      _
    %p361 = scmp.le.s32.totalorder 1, %s15
    %p362 = scmp.lt.s32.totalorder %s15, 3
    %p363 = pnand %p361, %p362
    %p364 = pneg %p363
    // Predicated region
    $region53: #{gat_forward.1} parent=5 // pred_check
      _
    $region54: #{gat_forward.1} parent=5 // pred_check_branch
      %366 = sbr.rel (%p363) target = $region56
    $region55: #{gat_forward.1} parent=5 // pred_region
      %s367 = ssub.s32 %s15, 1
      %p368 = scmp.lt.s32.totalorder %s20, 1
      %s369 = scalar_select %p368, %s20, 1
      %s370 = smul.addr %s369, 16
      %s371 = smul.addr %s370, 8
      %s372 = scalar_lea.vmem %s0, %s371
      %p373 = pneg %p41
      %p374 = pneg %p38
      %p375 = scmp.lt.s32.totalorder %s20, 1
      %s376 = scalar_select %p375, %s20, 1
      %s377 = smul.addr %s376, 16
      %s378 = smul.addr %s377, 8
      %s379 = scalar_lea.vmem %s1, %s378
      %p380 = pneg %p67
      %p381 = pneg %p64
      %p382 = scmp.lt.s32.totalorder %s20, 1
      %s383 = scalar_select %p382, %s20, 1
      %s384 = smul.addr %s383, 2
      %s385 = scalar_lea.vmem %s2, %s384
      %p386 = pneg %p93
      %p387 = pneg %p90
      %p388 = scmp.lt.s32.totalorder %s20, 1
      %s389 = scalar_select %p388, %s20, 1
      %s390 = smul.addr %s389, 192
      %s391 = smul.addr %s390, 4
      %s392 = scalar_lea.vmem %s3, %s391
      %p393 = pneg %p119
      %p394 = pneg %p116
      %p395 = scmp.lt.s32.totalorder %s20, 1
      %s396 = scalar_select %p395, %s20, 1
      %s397 = smul.addr %s396, 12
      %s398 = smul.addr %s397, 8
      %s399 = scalar_lea.vmem %s4, %s398
      %p400 = pneg %p145
      %p401 = pneg %p142
      %p402 = scmp.lt.s32.totalorder %s20, 1
      %s403 = scalar_select %p402, %s20, 1
      %s404 = smul.addr %s403, 12
      %s405 = scalar_lea.vmem %s5, %s404
      %p406 = pneg %p171
      %p407 = pneg %p168
      %p408 = scmp.lt.s32.totalorder %s20, 1
      %s409 = scalar_select %p408, %s20, 1
      %s410 = smul.addr %s409, 4
      %s411 = scalar_lea.vmem %s6, %s410
      %p412 = pneg %p197
      %p413 = pneg %p194
      %p414 = scmp.lt.s32.totalorder %s20, 1
      %s415 = scalar_select %p414, %s20, 1
      %s416 = smul.addr %s415, 4
      %s417 = scalar_lea.vmem %s7, %s416
      %p418 = pneg %p223
      %p419 = pneg %p220
      %p420 = scmp.lt.s32.totalorder %s20, 1
      %s421 = scalar_select %p420, %s20, 1
      %s422 = smul.addr %s421, 4
      %s423 = scalar_lea.vmem %s8, %s422
      %p424 = pneg %p249
      %p425 = pneg %p246
      %p426 = pneg %p275
      %p427 = pneg %p272
      %p428 = scmp.lt.s32.totalorder %s20, 1
      %s429 = scalar_select %p428, %s20, 1
      %s430 = smul.addr %s429, 5
      %s431 = smul.addr %s430, 2
      %s432 = scalar_lea.vmem %s9, %s431
      %p433 = scmp.lt.s32.totalorder %s20, 1
      %s434 = scalar_select %p433, %s20, 1
      %s435 = smul.addr %s434, 16
      %s436 = smul.addr %s435, 8
      %s437 = scalar_lea.vmem %s0, %s436
      %p438 = scmp.lt.s32.totalorder %s20, 1
      %s439 = scalar_select %p438, %s20, 1
      %s440 = smul.addr %s439, 16
      %s441 = smul.addr %s440, 8
      %s442 = scalar_lea.vmem %s1, %s441
      %p443 = scmp.lt.s32.totalorder %s20, 1
      %s444 = scalar_select %p443, %s20, 1
      %s445 = smul.addr %s444, 2
      %s446 = scalar_lea.vmem %s2, %s445
      %p447 = scmp.lt.s32.totalorder %s20, 1
      %s448 = scalar_select %p447, %s20, 1
      %s449 = smul.addr %s448, 192
      %s450 = smul.addr %s449, 4
      %s451 = scalar_lea.vmem %s3, %s450
      %p452 = scmp.lt.s32.totalorder %s20, 1
      %s453 = scalar_select %p452, %s20, 1
      %s454 = smul.addr %s453, 12
      %s455 = smul.addr %s454, 8
      %s456 = scalar_lea.vmem %s4, %s455
      %p457 = scmp.lt.s32.totalorder %s20, 1
      %s458 = scalar_select %p457, %s20, 1
      %s459 = smul.addr %s458, 12
      %s460 = scalar_lea.vmem %s5, %s459
      %p461 = scmp.lt.s32.totalorder %s20, 1
      %s462 = scalar_select %p461, %s20, 1
      %s463 = smul.addr %s462, 4
      %s464 = scalar_lea.vmem %s6, %s463
      %p465 = scmp.lt.s32.totalorder %s20, 1
      %s466 = scalar_select %p465, %s20, 1
      %s467 = smul.addr %s466, 4
      %s468 = scalar_lea.vmem %s7, %s467
      %p469 = scmp.lt.s32.totalorder %s20, 1
      %s470 = scalar_select %p469, %s20, 1
      %s471 = smul.addr %s470, 4
      %s472 = scalar_lea.vmem %s8, %s471
      %p473 = scmp.lt.s32.totalorder %s20, 1
      %s474 = scalar_select %p473, %s20, 1
      %s475 = smul.addr %s474, 5
      %s476 = smul.addr %s475, 2
      %s477 = scalar_lea.vmem %s9, %s476
      %v479 = vld [vmem:[%s437] sm:$0xff]
      %v480 = vld [vmem:[%s437 + $0x8] sm:$0xff]
      %v481 = vld [vmem:[%s437 + $0x10] sm:$0xff]
      %v482 = vld [vmem:[%s437 + $0x18] sm:$0xff]
      %v483 = vld [vmem:[%s437 + $0x20] sm:$0xff]
      %v484 = vld [vmem:[%s437 + $0x28] sm:$0xff]
      %v485 = vld [vmem:[%s437 + $0x30] sm:$0xff]
      %v486 = vld [vmem:[%s437 + $0x38] sm:$0xff]
      %v487 = vld [vmem:[%s437 + $0x40] sm:$0xff]
      %v488 = vld [vmem:[%s437 + $0x48] sm:$0xff]
      %v489 = vld [vmem:[%s437 + $0x50] sm:$0xff]
      %v490 = vld [vmem:[%s437 + $0x58] sm:$0xff]
      %v491 = vld [vmem:[%s437 + $0x60] sm:$0xff]
      %v492 = vld [vmem:[%s437 + $0x68] sm:$0xff]
      %v493 = vld [vmem:[%s437 + $0x70] sm:$0xff]
      %v494 = vld [vmem:[%s437 + $0x78] sm:$0xff]
      %v495 = vld [vmem:[%s442] sm:$0xff]
      %v496 = vld [vmem:[%s442 + $0x8] sm:$0xff]
      %v497 = vld [vmem:[%s442 + $0x10] sm:$0xff]
      %v498 = vld [vmem:[%s442 + $0x18] sm:$0xff]
      %v499 = vld [vmem:[%s442 + $0x20] sm:$0xff]
      %v500 = vld [vmem:[%s442 + $0x28] sm:$0xff]
      %v501 = vld [vmem:[%s442 + $0x30] sm:$0xff]
      %v502 = vld [vmem:[%s442 + $0x38] sm:$0xff]
      %v503 = vld [vmem:[%s442 + $0x40] sm:$0xff]
      %v504 = vld [vmem:[%s442 + $0x48] sm:$0xff]
      %v505 = vld [vmem:[%s442 + $0x50] sm:$0xff]
      %v506 = vld [vmem:[%s442 + $0x58] sm:$0xff]
      %v507 = vld [vmem:[%s442 + $0x60] sm:$0xff]
      %v508 = vld [vmem:[%s442 + $0x68] sm:$0xff]
      %v509 = vld [vmem:[%s442 + $0x70] sm:$0xff]
      %v510 = vld [vmem:[%s442 + $0x78] sm:$0xff]
      %v511 = vld [vmem:[%s446] sm:$0x3]
      %512 = vmatprep.subr.mxu0 0.0
      %513 = vmatpush1.msra.mxu0 %v479
      %514 = vmatprep.subr.mxu0 0.0
      %515 = vmatpush1.msra.mxu0 %v480
      %516 = vmatprep.subr.mxu0 0.0
      %517 = vmatpush1.msra.mxu0 %v481
      %518 = vmatprep.subr.mxu0 0.0
      %519 = vmatpush1.msra.mxu0 %v482
      %520 = vmatprep.subr.mxu0 0.0
      %521 = vmatpush1.msra.mxu0 %v483
      %522 = vmatprep.subr.mxu0 0.0
      %523 = vmatpush1.msra.mxu0 %v484
      %524 = vmatprep.subr.mxu0 0.0
      %525 = vmatpush1.msra.mxu0 %v485
      %526 = vmatprep.subr.mxu0 0.0
      %527 = vmatpush1.msra.mxu0 %v486
      %528 = vmatprep.subr.mxu0 0.0
      %529 = vmatpush1.msra.mxu0 %v487
      %530 = vmatprep.subr.mxu0 0.0
      %531 = vmatpush1.msra.mxu0 %v488
      %532 = vmatprep.subr.mxu0 0.0
      %533 = vmatpush1.msra.mxu0 %v489
      %534 = vmatprep.subr.mxu0 0.0
      %535 = vmatpush1.msra.mxu0 %v490
      %536 = vmatprep.subr.mxu0 0.0
      %537 = vmatpush1.msra.mxu0 %v491
      %538 = vmatprep.subr.mxu0 0.0
      %539 = vmatpush1.msra.mxu0 %v492
      %540 = vmatprep.subr.mxu0 0.0
      %541 = vmatpush1.msra.mxu0 %v493
      %542 = vmatprep.subr.mxu0 0.0
      %543 = vmatpush1.msra.mxu0 %v494
      %544 = vmatprep.subr.mxu0 0.0
      %545 = vmatpush1.msra.mxu0 0.0
      %546 = vmatprep.subr.mxu0 0.0
      %547 = vmatpush1.msra.mxu0 0.0
      %548 = vmatprep.subr.mxu0 0.0
      %549 = vmatpush1.msra.mxu0 0.0
      %550 = vmatprep.subr.mxu0 0.0
      %551 = vmatpush1.msra.mxu0 0.0
      %552 = vmatprep.subr.mxu0 0.0
      %553 = vmatpush1.msra.mxu0 0.0
      %554 = vmatprep.subr.mxu0 0.0
      %555 = vmatpush1.msra.mxu0 0.0
      %556 = vmatprep.subr.mxu0 0.0
      %557 = vmatpush1.msra.mxu0 0.0
      %558 = vmatprep.subr.mxu0 0.0
      %559 = vmatpush1.msra.mxu0 0.0
      %560 = vmatprep.subr.mxu0 0.0
      %561 = vmatpush1.msra.mxu0 0.0
      %562 = vmatprep.subr.mxu0 0.0
      %563 = vmatpush1.msra.mxu0 0.0
      %564 = vmatprep.subr.mxu0 0.0
      %565 = vmatpush1.msra.mxu0 0.0
      %566 = vmatprep.subr.mxu0 0.0
      %567 = vmatpush1.msra.mxu0 0.0
      %568 = vmatprep.subr.mxu0 0.0
      %569 = vmatpush1.msra.mxu0 0.0
      %570 = vmatprep.subr.mxu0 0.0
      %571 = vmatpush1.msra.mxu0 0.0
      %572 = vmatprep.subr.mxu0 0.0
      %573 = vmatpush1.msra.mxu0 0.0
      %574 = vmatprep.subr.mxu0 0.0
      %575 = vmatpush1.msra.mxu0 0.0
      %576 = vmatprep.mubr.f32.mxu0 0.0
      %577 = vmatmul.mubr.f32.gmra.mrb[0].mxu0 %v511
      %v578 = vpop.f32.mrb[0].mxu0
      %v579 = vadd.f32 0.0, %v578
      %v580 = vpop.f32.mrb[0].mxu0
      %581 = vdwg.mxu0
      %v582 = vpack.c.bf16 %v480, %v479
      %v583 = vpack.c.bf16 %v482, %v481
      %v584 = vpack.c.bf16 %v484, %v483
      %v585 = vpack.c.bf16 %v486, %v485
      %v586 = vpack.c.bf16 %v488, %v487
      %v587 = vpack.c.bf16 %v490, %v489
      %v588 = vpack.c.bf16 %v492, %v491
      %v589 = vpack.c.bf16 %v494, %v493
      %v590 = vld [vmem:[%s451] sm:$0xff]
      %v591 = vld [vmem:[%s451 + $0x8] sm:$0xf]
      %v592 = vld [vmem:[%s451 + $0xc] sm:$0xff]
      %v593 = vld [vmem:[%s451 + $0x14] sm:$0xf]
      %v594 = vld [vmem:[%s451 + $0x18] sm:$0xff]
      %v595 = vld [vmem:[%s451 + $0x20] sm:$0xf]
      %v596 = vld [vmem:[%s451 + $0x24] sm:$0xff]
      %v597 = vld [vmem:[%s451 + $0x2c] sm:$0xf]
      %v598 = vld [vmem:[%s451 + $0x30] sm:$0xff]
      %v599 = vld [vmem:[%s451 + $0x38] sm:$0xf]
      %v600 = vld [vmem:[%s451 + $0x3c] sm:$0xff]
      %v601 = vld [vmem:[%s451 + $0x44] sm:$0xf]
      %v602 = vld [vmem:[%s451 + $0x48] sm:$0xff]
      %v603 = vld [vmem:[%s451 + $0x50] sm:$0xf]
      %v604 = vld [vmem:[%s451 + $0x54] sm:$0xff]
      %v605 = vld [vmem:[%s451 + $0x5c] sm:$0xf]
      %v606 = vld [vmem:[%s451 + $0x60] sm:$0xff]
      %v607 = vld [vmem:[%s451 + $0x68] sm:$0xf]
      %v608 = vld [vmem:[%s451 + $0x6c] sm:$0xff]
      %v609 = vld [vmem:[%s451 + $0x74] sm:$0xf]
      %v610 = vld [vmem:[%s451 + $0x78] sm:$0xff]
      %v611 = vld [vmem:[%s451 + $0x80] sm:$0xf]
      %v612 = vld [vmem:[%s451 + $0x84] sm:$0xff]
      %v613 = vld [vmem:[%s451 + $0x8c] sm:$0xf]
      %v614 = vld [vmem:[%s451 + $0x90] sm:$0xff]
      %v615 = vld [vmem:[%s451 + $0x98] sm:$0xf]
      %v616 = vld [vmem:[%s451 + $0x9c] sm:$0xff]
      %v617 = vld [vmem:[%s451 + $0xa4] sm:$0xf]
      %v618 = vld [vmem:[%s451 + $0xa8] sm:$0xff]
      %v619 = vld [vmem:[%s451 + $0xb0] sm:$0xf]
      %v620 = vld [vmem:[%s451 + $0xb4] sm:$0xff]
      %v621 = vld [vmem:[%s451 + $0xbc] sm:$0xf]
      %v654 = vunpack.c.l.b16 %v590
      %v655 = vunpack.c.h.b16 %v590
      %v656 = vunpack.c.l.b16 %v591
      %v657 = vunpack.c.l.b16 %v592
      %v658 = vunpack.c.h.b16 %v592
      %v659 = vunpack.c.l.b16 %v593
      %v660 = vunpack.c.l.b16 %v594
      %v661 = vunpack.c.h.b16 %v594
      %v662 = vunpack.c.l.b16 %v595
      %v663 = vunpack.c.l.b16 %v596
      %v664 = vunpack.c.h.b16 %v596
      %v665 = vunpack.c.l.b16 %v597
      %v666 = vunpack.c.l.b16 %v598
      %v667 = vunpack.c.h.b16 %v598
      %v668 = vunpack.c.l.b16 %v599
      %v669 = vunpack.c.l.b16 %v600
      %v670 = vunpack.c.h.b16 %v600
      %v671 = vunpack.c.l.b16 %v601
      %v672 = vunpack.c.l.b16 %v602
      %v673 = vunpack.c.h.b16 %v602
      %v674 = vunpack.c.l.b16 %v603
      %v675 = vunpack.c.l.b16 %v604
      %v676 = vunpack.c.h.b16 %v604
      %v677 = vunpack.c.l.b16 %v605
      %v678 = vunpack.c.l.b16 %v606
      %v679 = vunpack.c.h.b16 %v606
      %v680 = vunpack.c.l.b16 %v607
      %v681 = vunpack.c.l.b16 %v608
      %v682 = vunpack.c.h.b16 %v608
      %v683 = vunpack.c.l.b16 %v609
      %v684 = vunpack.c.l.b16 %v610
      %v685 = vunpack.c.h.b16 %v610
      %v686 = vunpack.c.l.b16 %v611
      %v687 = vunpack.c.l.b16 %v612
      %v688 = vunpack.c.h.b16 %v612
      %v689 = vunpack.c.l.b16 %v613
      %v690 = vunpack.c.l.b16 %v614
      %v691 = vunpack.c.h.b16 %v614
      %v692 = vunpack.c.l.b16 %v615
      %v693 = vunpack.c.l.b16 %v616
      %v694 = vunpack.c.h.b16 %v616
      %v695 = vunpack.c.l.b16 %v617
      %v696 = vunpack.c.l.b16 %v618
      %v697 = vunpack.c.h.b16 %v618
      %v698 = vunpack.c.l.b16 %v619
      %v699 = vunpack.c.l.b16 %v620
      %v700 = vunpack.c.h.b16 %v620
      %v701 = vunpack.c.l.b16 %v621
      %v702 = vpack.c.b16 %v657, %v654
      %v703 = vpack.c.b16 %v658, %v655
      %v704 = vpack.c.b16 %v659, %v656
      %v705 = vpack.c.b16 %v663, %v660
      %v706 = vpack.c.b16 %v664, %v661
      %v707 = vpack.c.b16 %v665, %v662
      %v708 = vpack.c.b16 %v669, %v666
      %v709 = vpack.c.b16 %v670, %v667
      %v710 = vpack.c.b16 %v671, %v668
      %v711 = vpack.c.b16 %v675, %v672
      %v712 = vpack.c.b16 %v676, %v673
      %v713 = vpack.c.b16 %v677, %v674
      %v714 = vpack.c.b16 %v681, %v678
      %v715 = vpack.c.b16 %v682, %v679
      %v716 = vpack.c.b16 %v683, %v680
      %v717 = vpack.c.b16 %v687, %v684
      %v718 = vpack.c.b16 %v688, %v685
      %v719 = vpack.c.b16 %v689, %v686
      %v720 = vpack.c.b16 %v693, %v690
      %v721 = vpack.c.b16 %v694, %v691
      %v722 = vpack.c.b16 %v695, %v692
      %v723 = vpack.c.b16 %v699, %v696
      %v724 = vpack.c.b16 %v700, %v697
      %v725 = vpack.c.b16 %v701, %v698
      %750 = vmatprep.subr.bf16.mxu0 %v703
      %751 = vmatpush1.bf16.msra.mxu0 %v702
      %752 = vmatprep.subr.bf16.mxu0 %v706
      %753 = vmatpush1.bf16.msra.mxu0 %v705
      %754 = vmatprep.subr.bf16.mxu0 %v709
      %755 = vmatpush1.bf16.msra.mxu0 %v708
      %756 = vmatprep.subr.bf16.mxu0 %v712
      %757 = vmatpush1.bf16.msra.mxu0 %v711
      %758 = vmatprep.subr.bf16.mxu0 %v715
      %759 = vmatpush1.bf16.msra.mxu0 %v714
      %760 = vmatprep.subr.bf16.mxu0 %v718
      %761 = vmatpush1.bf16.msra.mxu0 %v717
      %762 = vmatprep.subr.bf16.mxu0 %v721
      %763 = vmatpush1.bf16.msra.mxu0 %v720
      %764 = vmatprep.subr.bf16.mxu0 %v724
      %765 = vmatpush1.bf16.msra.mxu0 %v723
      %766 = vmatprep.subr.bf16.mxu0 0
      %767 = vmatpush1.bf16.msra.mxu0 0
      %768 = vmatprep.subr.bf16.mxu0 0
      %769 = vmatpush1.bf16.msra.mxu0 0
      %770 = vmatprep.subr.bf16.mxu0 0
      %771 = vmatpush1.bf16.msra.mxu0 0
      %772 = vmatprep.subr.bf16.mxu0 0
      %773 = vmatpush1.bf16.msra.mxu0 0
      %774 = vmatprep.subr.bf16.mxu0 0
      %775 = vmatpush1.bf16.msra.mxu0 0
      %776 = vmatprep.subr.bf16.mxu0 0
      %777 = vmatpush1.bf16.msra.mxu0 0
      %778 = vmatprep.subr.bf16.mxu0 0
      %779 = vmatpush1.bf16.msra.mxu0 0
      %780 = vmatprep.subr.bf16.mxu0 0
      %781 = vmatpush1.bf16.msra.mxu0 0
      %782 = vmatprep.mubr.bf16.mxu0 0
      %783 = vmatmul.mubr.bf16.gmra.mrb[0].mxu0 %v582
      %v784 = vpop.f32.mrb[0].mxu0
      %v785 = vadd.f32 0.0, %v784
      %v786 = vpop.f32.mrb[0].mxu0
      %v787 = vadd.f32 0.0, %v786
      %v788 = vpop.f32.mrb[0].mxu0
      %v789 = vadd.f32 0.0, %v788
      %v790 = vpop.f32.mrb[0].mxu0
      %v791 = vadd.f32 0.0, %v790
      %792 = vmatprep.mubr.bf16.mxu0 0
      %793 = vmatmul.mubr.bf16.gmra.mrb[0].mxu0 %v583
      %v794 = vpop.f32.mrb[0].mxu0
      %v795 = vadd.f32 0.0, %v794
      %v796 = vpop.f32.mrb[0].mxu0
      %v797 = vadd.f32 0.0, %v796
      %v798 = vpop.f32.mrb[0].mxu0
      %v799 = vadd.f32 0.0, %v798
      %v800 = vpop.f32.mrb[0].mxu0
      %v801 = vadd.f32 0.0, %v800
      %802 = vmatprep.mubr.bf16.mxu0 0
      %803 = vmatmul.mubr.bf16.gmra.mrb[0].mxu0 %v584
      %v804 = vpop.f32.mrb[0].mxu0
      %v805 = vadd.f32 0.0, %v804
      %v806 = vpop.f32.mrb[0].mxu0
      %v807 = vadd.f32 0.0, %v806
      %v808 = vpop.f32.mrb[0].mxu0
      %v809 = vadd.f32 0.0, %v808
      %v810 = vpop.f32.mrb[0].mxu0
      %v811 = vadd.f32 0.0, %v810
      %812 = vmatprep.mubr.bf16.mxu0 0
      %813 = vmatmul.mubr.bf16.gmra.mrb[0].mxu0 %v585
      %v814 = vpop.f32.mrb[0].mxu0
      %v815 = vadd.f32 0.0, %v814
      %v816 = vpop.f32.mrb[0].mxu0
      %v817 = vadd.f32 0.0, %v816
      %v818 = vpop.f32.mrb[0].mxu0
      %v819 = vadd.f32 0.0, %v818
      %v820 = vpop.f32.mrb[0].mxu0
      %v821 = vadd.f32 0.0, %v820
      %822 = vmatprep.mubr.bf16.mxu0 0
      %823 = vmatmul.mubr.bf16.gmra.mrb[0].mxu0 %v586
      %v824 = vpop.f32.mrb[0].mxu0
      %v825 = vadd.f32 0.0, %v824
      %v826 = vpop.f32.mrb[0].mxu0
      %v827 = vadd.f32 0.0, %v826
      %v828 = vpop.f32.mrb[0].mxu0
      %v829 = vadd.f32 0.0, %v828
      %v830 = vpop.f32.mrb[0].mxu0
      %v831 = vadd.f32 0.0, %v830
      %832 = vmatprep.mubr.bf16.mxu0 0
      %833 = vmatmul.mubr.bf16.gmra.mrb[0].mxu0 %v587
      %v834 = vpop.f32.mrb[0].mxu0
      %v835 = vadd.f32 0.0, %v834
      %v836 = vpop.f32.mrb[0].mxu0
      %v837 = vadd.f32 0.0, %v836
      %v838 = vpop.f32.mrb[0].mxu0
      %v839 = vadd.f32 0.0, %v838
      %v840 = vpop.f32.mrb[0].mxu0
      %v841 = vadd.f32 0.0, %v840
      %842 = vmatprep.mubr.bf16.mxu0 0
      %843 = vmatmul.mubr.bf16.gmra.mrb[0].mxu0 %v588
      %v844 = vpop.f32.mrb[0].mxu0
      %v845 = vadd.f32 0.0, %v844
      %v846 = vpop.f32.mrb[0].mxu0
      %v847 = vadd.f32 0.0, %v846
      %v848 = vpop.f32.mrb[0].mxu0
      %v849 = vadd.f32 0.0, %v848
      %v850 = vpop.f32.mrb[0].mxu0
      %v851 = vadd.f32 0.0, %v850
      %852 = vmatprep.mubr.bf16.mxu0 0
      %853 = vmatmul.mubr.bf16.gmra.mrb[0].mxu0 %v589
      %v854 = vpop.f32.mrb[0].mxu0
      %v855 = vadd.f32 0.0, %v854
      %v856 = vpop.f32.mrb[0].mxu0
      %v857 = vadd.f32 0.0, %v856
      %v858 = vpop.f32.mrb[0].mxu0
      %v859 = vadd.f32 0.0, %v858
      %v860 = vpop.f32.mrb[0].mxu0
      %v861 = vadd.f32 0.0, %v860
      %862 = vdwg.mxu0
      %863 = vmatprep.subr.bf16.mxu0 0
      %864 = vmatpush1.bf16.msra.mxu0 %v704
      %865 = vmatprep.subr.bf16.mxu0 0
      %866 = vmatpush1.bf16.msra.mxu0 %v707
      %867 = vmatprep.subr.bf16.mxu0 0
      %868 = vmatpush1.bf16.msra.mxu0 %v710
      %869 = vmatprep.subr.bf16.mxu0 0
      %870 = vmatpush1.bf16.msra.mxu0 %v713
      %871 = vmatprep.subr.bf16.mxu0 0
      %872 = vmatpush1.bf16.msra.mxu0 %v716
      %873 = vmatprep.subr.bf16.mxu0 0
      %874 = vmatpush1.bf16.msra.mxu0 %v719
      %875 = vmatprep.subr.bf16.mxu0 0
      %876 = vmatpush1.bf16.msra.mxu0 %v722
      %877 = vmatprep.subr.bf16.mxu0 0
      %878 = vmatpush1.bf16.msra.mxu0 %v725
      %879 = vmatprep.subr.bf16.mxu0 0
      %880 = vmatpush1.bf16.msra.mxu0 0
      %881 = vmatprep.subr.bf16.mxu0 0
      %882 = vmatpush1.bf16.msra.mxu0 0
      %883 = vmatprep.subr.bf16.mxu0 0
      %884 = vmatpush1.bf16.msra.mxu0 0
      %885 = vmatprep.subr.bf16.mxu0 0
      %886 = vmatpush1.bf16.msra.mxu0 0
      %887 = vmatprep.subr.bf16.mxu0 0
      %888 = vmatpush1.bf16.msra.mxu0 0
      %889 = vmatprep.subr.bf16.mxu0 0
      %890 = vmatpush1.bf16.msra.mxu0 0
      %891 = vmatprep.subr.bf16.mxu0 0
      %892 = vmatpush1.bf16.msra.mxu0 0
      %893 = vmatprep.subr.bf16.mxu0 0
      %894 = vmatpush1.bf16.msra.mxu0 0
      %895 = vmatprep.mubr.bf16.mxu0 0
      %896 = vmatmul.mubr.bf16.gmra.mrb[0].mxu0 %v582
      %v897 = vpop.f32.mrb[0].mxu0
      %v898 = vadd.f32 0.0, %v897
      %v899 = vpop.f32.mrb[0].mxu0
      %v900 = vpop.f32.mrb[0].mxu0
      %v901 = vadd.f32 0.0, %v900
      %v902 = vpop.f32.mrb[0].mxu0
      %903 = vmatprep.mubr.bf16.mxu0 0
      %904 = vmatmul.mubr.bf16.gmra.mrb[0].mxu0 %v583
      %v905 = vpop.f32.mrb[0].mxu0
      %v906 = vadd.f32 0.0, %v905
      %v907 = vpop.f32.mrb[0].mxu0
      %v908 = vpop.f32.mrb[0].mxu0
      %v909 = vadd.f32 0.0, %v908
      %v910 = vpop.f32.mrb[0].mxu0
      %911 = vmatprep.mubr.bf16.mxu0 0
      %912 = vmatmul.mubr.bf16.gmra.mrb[0].mxu0 %v584
      %v913 = vpop.f32.mrb[0].mxu0
      %v914 = vadd.f32 0.0, %v913
      %v915 = vpop.f32.mrb[0].mxu0
      %v916 = vpop.f32.mrb[0].mxu0
      %v917 = vadd.f32 0.0, %v916
      %v918 = vpop.f32.mrb[0].mxu0
      %919 = vmatprep.mubr.bf16.mxu0 0
      %920 = vmatmul.mubr.bf16.gmra.mrb[0].mxu0 %v585
      %v921 = vpop.f32.mrb[0].mxu0
      %v922 = vadd.f32 0.0, %v921
      %v923 = vpop.f32.mrb[0].mxu0
      %v924 = vpop.f32.mrb[0].mxu0
      %v925 = vadd.f32 0.0, %v924
      %v926 = vpop.f32.mrb[0].mxu0
      %927 = vmatprep.mubr.bf16.mxu0 0
      %928 = vmatmul.mubr.bf16.gmra.mrb[0].mxu0 %v586
      %v929 = vpop.f32.mrb[0].mxu0
      %v930 = vadd.f32 0.0, %v929
      %v931 = vpop.f32.mrb[0].mxu0
      %v932 = vpop.f32.mrb[0].mxu0
      %v933 = vadd.f32 0.0, %v932
      %v934 = vpop.f32.mrb[0].mxu0
      %935 = vmatprep.mubr.bf16.mxu0 0
      %936 = vmatmul.mubr.bf16.gmra.mrb[0].mxu0 %v587
      %v937 = vpop.f32.mrb[0].mxu0
      %v938 = vadd.f32 0.0, %v937
      %v939 = vpop.f32.mrb[0].mxu0
      %v940 = vpop.f32.mrb[0].mxu0
      %v941 = vadd.f32 0.0, %v940
      %v942 = vpop.f32.mrb[0].mxu0
      %943 = vmatprep.mubr.bf16.mxu0 0
      %944 = vmatmul.mubr.bf16.gmra.mrb[0].mxu0 %v588
      %v945 = vpop.f32.mrb[0].mxu0
      %v946 = vadd.f32 0.0, %v945
      %v947 = vpop.f32.mrb[0].mxu0
      %v948 = vpop.f32.mrb[0].mxu0
      %v949 = vadd.f32 0.0, %v948
      %v950 = vpop.f32.mrb[0].mxu0
      %951 = vmatprep.mubr.bf16.mxu0 0
      %952 = vmatmul.mubr.bf16.gmra.mrb[0].mxu0 %v589
      %v953 = vpop.f32.mrb[0].mxu0
      %v954 = vadd.f32 0.0, %v953
      %v955 = vpop.f32.mrb[0].mxu0
      %v956 = vpop.f32.mrb[0].mxu0
      %v957 = vadd.f32 0.0, %v956
      %v958 = vpop.f32.mrb[0].mxu0
      %959 = vdwg.mxu0
      %v960 = vpack.c.bf16 %v789, %v785
      %v961 = vpack.c.bf16 %v799, %v795
      %v962 = vpack.c.bf16 %v809, %v805
      %v963 = vpack.c.bf16 %v819, %v815
      %v964 = vpack.c.bf16 %v829, %v825
      %v965 = vpack.c.bf16 %v839, %v835
      %v966 = vpack.c.bf16 %v849, %v845
      %v967 = vpack.c.bf16 %v859, %v855
      %968 = vst [vmem:[#allocation2] sm:$0xff] %v960
      %969 = vst [vmem:[#allocation2 + $0x8] sm:$0xff] %v961
      %970 = vst [vmem:[#allocation2 + $0x10] sm:$0xff] %v962
      %971 = vst [vmem:[#allocation2 + $0x18] sm:$0xff] %v963
      %972 = vst [vmem:[#allocation2 + $0x20] sm:$0xff] %v964
      %973 = vst [vmem:[#allocation2 + $0x28] sm:$0xff] %v965
      %974 = vst [vmem:[#allocation2 + $0x30] sm:$0xff] %v966
      %975 = vst [vmem:[#allocation2 + $0x38] sm:$0xff] %v967
      %v976 = vld [vmem:[%s460] sm:$0x1]
      %v978 = vlaneseq
      %v979 = vshrl.u32 %v978, 7
      %v980 = vsub.s32 0, %v979
      %v981 = vrot.slane %v976, %v980
      %v983 = vmul.f32 %v785, %v981
      %v984 = vmul.f32 %v789, %v981
      %v985 = vmul.f32 %v795, %v981
      %v986 = vmul.f32 %v799, %v981
      %v987 = vmul.f32 %v805, %v981
      %v988 = vmul.f32 %v809, %v981
      %v989 = vmul.f32 %v815, %v981
      %v990 = vmul.f32 %v819, %v981
      %v991 = vmul.f32 %v825, %v981
      %v992 = vmul.f32 %v829, %v981
      %v993 = vmul.f32 %v835, %v981
      %v994 = vmul.f32 %v839, %v981
      %v995 = vmul.f32 %v845, %v981
      %v996 = vmul.f32 %v849, %v981
      %v997 = vmul.f32 %v855, %v981
      %v998 = vmul.f32 %v859, %v981
      %999 = vadd.xlane.f32.xlu0 %v983
      %v1000 = vpop.xlane.xlu0 %999
      %1001 = vadd.xlane.f32.xlu0 %v984
      %v1002 = vpop.xlane.xlu0 %1001
      %1003 = vadd.xlane.f32.xlu0 %v985
      %v1004 = vpop.xlane.xlu0 %1003
      %1005 = vadd.xlane.f32.xlu0 %v986
      %v1006 = vpop.xlane.xlu0 %1005
      %1007 = vadd.xlane.f32.xlu0 %v987
      %v1008 = vpop.xlane.xlu0 %1007
      %1009 = vadd.xlane.f32.xlu0 %v988
      %v1010 = vpop.xlane.xlu0 %1009
      %1011 = vadd.xlane.f32.xlu0 %v989
      %v1012 = vpop.xlane.xlu0 %1011
      %1013 = vadd.xlane.f32.xlu0 %v990
      %v1014 = vpop.xlane.xlu0 %1013
      %1015 = vadd.xlane.f32.xlu0 %v991
      %v1016 = vpop.xlane.xlu0 %1015
      %1017 = vadd.xlane.f32.xlu0 %v992
      %v1018 = vpop.xlane.xlu0 %1017
      %1019 = vadd.xlane.f32.xlu0 %v993
      %v1020 = vpop.xlane.xlu0 %1019
      %1021 = vadd.xlane.f32.xlu0 %v994
      %v1022 = vpop.xlane.xlu0 %1021
      %1023 = vadd.xlane.f32.xlu0 %v995
      %v1024 = vpop.xlane.xlu0 %1023
      %1025 = vadd.xlane.f32.xlu0 %v996
      %v1026 = vpop.xlane.xlu0 %1025
      %1027 = vadd.xlane.f32.xlu0 %v997
      %v1028 = vpop.xlane.xlu0 %1027
      %1029 = vadd.xlane.f32.xlu0 %v998
      %v1030 = vpop.xlane.xlu0 %1029
      %v1031 = vpack.c.bf16 %v791, %v787
      %v1032 = vpack.c.bf16 %v801, %v797
      %v1033 = vpack.c.bf16 %v811, %v807
      %v1034 = vpack.c.bf16 %v821, %v817
      %v1035 = vpack.c.bf16 %v831, %v827
      %v1036 = vpack.c.bf16 %v841, %v837
      %v1037 = vpack.c.bf16 %v851, %v847
      %v1038 = vpack.c.bf16 %v861, %v857
      %1039 = vst [vmem:[#allocation2 + $0x40] sm:$0xff] %v1031
      %1040 = vst [vmem:[#allocation2 + $0x48] sm:$0xff] %v1032
      %1041 = vst [vmem:[#allocation2 + $0x50] sm:$0xff] %v1033
      %1042 = vst [vmem:[#allocation2 + $0x58] sm:$0xff] %v1034
      %1043 = vst [vmem:[#allocation2 + $0x60] sm:$0xff] %v1035
      %1044 = vst [vmem:[#allocation2 + $0x68] sm:$0xff] %v1036
      %1045 = vst [vmem:[#allocation2 + $0x70] sm:$0xff] %v1037
      %1046 = vst [vmem:[#allocation2 + $0x78] sm:$0xff] %v1038
      %s1047 = scalar_lea.vmem %s460, 1
      %v1048 = vld [vmem:[%s1047] sm:$0x1]
      %v1050 = vlaneseq
      %v1051 = vshrl.u32 %v1050, 7
      %v1052 = vsub.s32 0, %v1051
      %v1053 = vrot.slane %v1048, %v1052
      %v1055 = vmul.f32 %v787, %v1053
      %v1056 = vmul.f32 %v791, %v1053
      %v1057 = vmul.f32 %v797, %v1053
      %v1058 = vmul.f32 %v801, %v1053
      %v1059 = vmul.f32 %v807, %v1053
      %v1060 = vmul.f32 %v811, %v1053
      %v1061 = vmul.f32 %v817, %v1053
      %v1062 = vmul.f32 %v821, %v1053
      %v1063 = vmul.f32 %v827, %v1053
      %v1064 = vmul.f32 %v831, %v1053
      %v1065 = vmul.f32 %v837, %v1053
      %v1066 = vmul.f32 %v841, %v1053
      %v1067 = vmul.f32 %v847, %v1053
      %v1068 = vmul.f32 %v851, %v1053
      %v1069 = vmul.f32 %v857, %v1053
      %v1070 = vmul.f32 %v861, %v1053
      %1071 = vadd.xlane.f32.xlu0 %v1055
      %v1072 = vpop.xlane.xlu0 %1071
      %1073 = vadd.xlane.f32.xlu0 %v1056
      %v1074 = vpop.xlane.xlu0 %1073
      %1075 = vadd.xlane.f32.xlu0 %v1057
      %v1076 = vpop.xlane.xlu0 %1075
      %1077 = vadd.xlane.f32.xlu0 %v1058
      %v1078 = vpop.xlane.xlu0 %1077
      %1079 = vadd.xlane.f32.xlu0 %v1059
      %v1080 = vpop.xlane.xlu0 %1079
      %1081 = vadd.xlane.f32.xlu0 %v1060
      %v1082 = vpop.xlane.xlu0 %1081
      %1083 = vadd.xlane.f32.xlu0 %v1061
      %v1084 = vpop.xlane.xlu0 %1083
      %1085 = vadd.xlane.f32.xlu0 %v1062
      %v1086 = vpop.xlane.xlu0 %1085
      %1087 = vadd.xlane.f32.xlu0 %v1063
      %v1088 = vpop.xlane.xlu0 %1087
      %1089 = vadd.xlane.f32.xlu0 %v1064
      %v1090 = vpop.xlane.xlu0 %1089
      %1091 = vadd.xlane.f32.xlu0 %v1065
      %v1092 = vpop.xlane.xlu0 %1091
      %1093 = vadd.xlane.f32.xlu0 %v1066
      %v1094 = vpop.xlane.xlu0 %1093
      %1095 = vadd.xlane.f32.xlu0 %v1067
      %v1096 = vpop.xlane.xlu0 %1095
      %1097 = vadd.xlane.f32.xlu0 %v1068
      %v1098 = vpop.xlane.xlu0 %1097
      %1099 = vadd.xlane.f32.xlu0 %v1069
      %v1100 = vpop.xlane.xlu0 %1099
      %1101 = vadd.xlane.f32.xlu0 %v1070
      %v1102 = vpop.xlane.xlu0 %1101
      %v1103 = vpack.c.bf16 %v901, %v898
      %v1104 = vpack.c.bf16 %v909, %v906
      %v1105 = vpack.c.bf16 %v917, %v914
      %v1106 = vpack.c.bf16 %v925, %v922
      %v1107 = vpack.c.bf16 %v933, %v930
      %v1108 = vpack.c.bf16 %v941, %v938
      %v1109 = vpack.c.bf16 %v949, %v946
      %v1110 = vpack.c.bf16 %v957, %v954
      %1111 = vst [vmem:[#allocation2 + $0x80] sm:$0xff] %v1103
      %1112 = vst [vmem:[#allocation2 + $0x88] sm:$0xff] %v1104
      %1113 = vst [vmem:[#allocation2 + $0x90] sm:$0xff] %v1105
      %1114 = vst [vmem:[#allocation2 + $0x98] sm:$0xff] %v1106
      %1115 = vst [vmem:[#allocation2 + $0xa0] sm:$0xff] %v1107
      %1116 = vst [vmem:[#allocation2 + $0xa8] sm:$0xff] %v1108
      %1117 = vst [vmem:[#allocation2 + $0xb0] sm:$0xff] %v1109
      %1118 = vst [vmem:[#allocation2 + $0xb8] sm:$0xff] %v1110
      %s1119 = scalar_lea.vmem %s460, 2
      %v1120 = vld [vmem:[%s1119] sm:$0x1]
      %v1122 = vlaneseq
      %v1123 = vshrl.u32 %v1122, 7
      %v1124 = vsub.s32 0, %v1123
      %v1125 = vrot.slane %v1120, %v1124
      %v1127 = vmul.f32 %v898, %v1125
      %v1128 = vmul.f32 %v901, %v1125
      %v1129 = vmul.f32 %v906, %v1125
      %v1130 = vmul.f32 %v909, %v1125
      %v1131 = vmul.f32 %v914, %v1125
      %v1132 = vmul.f32 %v917, %v1125
      %v1133 = vmul.f32 %v922, %v1125
      %v1134 = vmul.f32 %v925, %v1125
      %v1135 = vmul.f32 %v930, %v1125
      %v1136 = vmul.f32 %v933, %v1125
      %v1137 = vmul.f32 %v938, %v1125
      %v1138 = vmul.f32 %v941, %v1125
      %v1139 = vmul.f32 %v946, %v1125
      %v1140 = vmul.f32 %v949, %v1125
      %v1141 = vmul.f32 %v954, %v1125
      %v1142 = vmul.f32 %v957, %v1125
      %1143 = vadd.xlane.f32.xlu0 %v1127
      %v1144 = vpop.xlane.xlu0 %1143
      %1145 = vadd.xlane.f32.xlu0 %v1128
      %v1146 = vpop.xlane.xlu0 %1145
      %1147 = vadd.xlane.f32.xlu0 %v1129
      %v1148 = vpop.xlane.xlu0 %1147
      %1149 = vadd.xlane.f32.xlu0 %v1130
      %v1150 = vpop.xlane.xlu0 %1149
      %1151 = vadd.xlane.f32.xlu0 %v1131
      %v1152 = vpop.xlane.xlu0 %1151
      %1153 = vadd.xlane.f32.xlu0 %v1132
      %v1154 = vpop.xlane.xlu0 %1153
      %1155 = vadd.xlane.f32.xlu0 %v1133
      %v1156 = vpop.xlane.xlu0 %1155
      %1157 = vadd.xlane.f32.xlu0 %v1134
      %v1158 = vpop.xlane.xlu0 %1157
      %1159 = vadd.xlane.f32.xlu0 %v1135
      %v1160 = vpop.xlane.xlu0 %1159
      %1161 = vadd.xlane.f32.xlu0 %v1136
      %v1162 = vpop.xlane.xlu0 %1161
      %1163 = vadd.xlane.f32.xlu0 %v1137
      %v1164 = vpop.xlane.xlu0 %1163
      %1165 = vadd.xlane.f32.xlu0 %v1138
      %v1166 = vpop.xlane.xlu0 %1165
      %1167 = vadd.xlane.f32.xlu0 %v1139
      %v1168 = vpop.xlane.xlu0 %1167
      %1169 = vadd.xlane.f32.xlu0 %v1140
      %v1170 = vpop.xlane.xlu0 %1169
      %1171 = vadd.xlane.f32.xlu0 %v1141
      %v1172 = vpop.xlane.xlu0 %1171
      %1173 = vadd.xlane.f32.xlu0 %v1142
      %v1174 = vpop.xlane.xlu0 %1173
      %v1175 = vld [vmem:[%s456] sm:$0xff]
      %v1176 = vld [vmem:[%s456 + $0x8] sm:$0xff]
      %v1177 = vld [vmem:[%s456 + $0x10] sm:$0xff]
      %1178 = vmatprep.subr.mxu0 %v787
      %1179 = vmatpush1.xpose.msra.mxu0 %v785
      %1180 = vmatprep.subr.mxu0 %v791
      %1181 = vmatpush1.xpose.msra.mxu0 %v789
      %1182 = vmatprep.subr.mxu0 %v797
      %1183 = vmatpush1.xpose.msra.mxu0 %v795
      %1184 = vmatprep.subr.mxu0 %v801
      %1185 = vmatpush1.xpose.msra.mxu0 %v799
      %1186 = vmatprep.subr.mxu0 %v807
      %1187 = vmatpush1.xpose.msra.mxu0 %v805
      %1188 = vmatprep.subr.mxu0 %v811
      %1189 = vmatpush1.xpose.msra.mxu0 %v809
      %1190 = vmatprep.subr.mxu0 %v817
      %1191 = vmatpush1.xpose.msra.mxu0 %v815
      %1192 = vmatprep.subr.mxu0 %v821
      %1193 = vmatpush1.xpose.msra.mxu0 %v819
      %1194 = vmatprep.subr.mxu0 %v827
      %1195 = vmatpush1.xpose.msra.mxu0 %v825
      %1196 = vmatprep.subr.mxu0 %v831
      %1197 = vmatpush1.xpose.msra.mxu0 %v829
      %1198 = vmatprep.subr.mxu0 %v837
      %1199 = vmatpush1.xpose.msra.mxu0 %v835
      %1200 = vmatprep.subr.mxu0 %v841
      %1201 = vmatpush1.xpose.msra.mxu0 %v839
      %1202 = vmatprep.subr.mxu0 %v847
      %1203 = vmatpush1.xpose.msra.mxu0 %v845
      %1204 = vmatprep.subr.mxu0 %v851
      %1205 = vmatpush1.xpose.msra.mxu0 %v849
      %1206 = vmatprep.subr.mxu0 %v857
      %1207 = vmatpush1.xpose.msra.mxu0 %v855
      %1208 = vmatprep.subr.mxu0 %v861
      %1209 = vmatpush1.xpose.msra.mxu0 %v859
      %1210 = vmatprep.subr.mxu0 0.0
      %1211 = vmatpush1.xpose.msra.mxu0 0.0
      %1212 = vmatprep.subr.mxu0 0.0
      %1213 = vmatpush1.xpose.msra.mxu0 0.0
      %1214 = vmatprep.subr.mxu0 0.0
      %1215 = vmatpush1.xpose.msra.mxu0 0.0
      %1216 = vmatprep.subr.mxu0 0.0
      %1217 = vmatpush1.xpose.msra.mxu0 0.0
      %1218 = vmatprep.subr.mxu0 0.0
      %1219 = vmatpush1.xpose.msra.mxu0 0.0
      %1220 = vmatprep.subr.mxu0 0.0
      %1221 = vmatpush1.xpose.msra.mxu0 0.0
      %1222 = vmatprep.subr.mxu0 0.0
      %1223 = vmatpush1.xpose.msra.mxu0 0.0
      %1224 = vmatprep.subr.mxu0 0.0
      %1225 = vmatpush1.xpose.msra.mxu0 0.0
      %1226 = vmatprep.subr.mxu0 0.0
      %1227 = vmatpush1.xpose.msra.mxu0 0.0
      %1228 = vmatprep.subr.mxu0 0.0
      %1229 = vmatpush1.xpose.msra.mxu0 0.0
      %1230 = vmatprep.subr.mxu0 0.0
      %1231 = vmatpush1.xpose.msra.mxu0 0.0
      %1232 = vmatprep.subr.mxu0 0.0
      %1233 = vmatpush1.xpose.msra.mxu0 0.0
      %1234 = vmatprep.subr.mxu0 0.0
      %1235 = vmatpush1.xpose.msra.mxu0 0.0
      %1236 = vmatprep.subr.mxu0 0.0
      %1237 = vmatpush1.xpose.msra.mxu0 0.0
      %1238 = vmatprep.subr.mxu0 0.0
      %1239 = vmatpush1.xpose.msra.mxu0 0.0
      %1240 = vmatprep.subr.mxu0 0.0
      %1241 = vmatpush1.xpose.msra.mxu0 0.0
      %1242 = vmatprep.mubr.f32.mxu0 %v1176
      %1243 = vmatmul.mubr.f32.gmra.mrb[0].mxu0 %v1175
      %v1244 = vpop.f32.mrb[0].mxu0
      %v1245 = vadd.f32 0.0, %v1244
      %v1246 = vpop.f32.mrb[0].mxu0
      %1247 = vdwg.mxu0
      %1248 = vmatprep.subr.mxu0 0.0
      %1249 = vmatpush1.xpose.msra.mxu0 %v898
      %1250 = vmatprep.subr.mxu0 0.0
      %1251 = vmatpush1.xpose.msra.mxu0 %v901
      %1252 = vmatprep.subr.mxu0 0.0
      %1253 = vmatpush1.xpose.msra.mxu0 %v906
      %1254 = vmatprep.subr.mxu0 0.0
      %1255 = vmatpush1.xpose.msra.mxu0 %v909
      %1256 = vmatprep.subr.mxu0 0.0
      %1257 = vmatpush1.xpose.msra.mxu0 %v914
      %1258 = vmatprep.subr.mxu0 0.0
      %1259 = vmatpush1.xpose.msra.mxu0 %v917
      %1260 = vmatprep.subr.mxu0 0.0
      %1261 = vmatpush1.xpose.msra.mxu0 %v922
      %1262 = vmatprep.subr.mxu0 0.0
      %1263 = vmatpush1.xpose.msra.mxu0 %v925
      %1264 = vmatprep.subr.mxu0 0.0
      %1265 = vmatpush1.xpose.msra.mxu0 %v930
      %1266 = vmatprep.subr.mxu0 0.0
      %1267 = vmatpush1.xpose.msra.mxu0 %v933
      %1268 = vmatprep.subr.mxu0 0.0
      %1269 = vmatpush1.xpose.msra.mxu0 %v938
      %1270 = vmatprep.subr.mxu0 0.0
      %1271 = vmatpush1.xpose.msra.mxu0 %v941
      %1272 = vmatprep.subr.mxu0 0.0
      %1273 = vmatpush1.xpose.msra.mxu0 %v946
      %1274 = vmatprep.subr.mxu0 0.0
      %1275 = vmatpush1.xpose.msra.mxu0 %v949
      %1276 = vmatprep.subr.mxu0 0.0
      %1277 = vmatpush1.xpose.msra.mxu0 %v954
      %1278 = vmatprep.subr.mxu0 0.0
      %1279 = vmatpush1.xpose.msra.mxu0 %v957
      %1280 = vmatprep.subr.mxu0 0.0
      %1281 = vmatpush1.xpose.msra.mxu0 0.0
      %1282 = vmatprep.subr.mxu0 0.0
      %1283 = vmatpush1.xpose.msra.mxu0 0.0
      %1284 = vmatprep.subr.mxu0 0.0
      %1285 = vmatpush1.xpose.msra.mxu0 0.0
      %1286 = vmatprep.subr.mxu0 0.0
      %1287 = vmatpush1.xpose.msra.mxu0 0.0
      %1288 = vmatprep.subr.mxu0 0.0
      %1289 = vmatpush1.xpose.msra.mxu0 0.0
      %1290 = vmatprep.subr.mxu0 0.0
      %1291 = vmatpush1.xpose.msra.mxu0 0.0
      %1292 = vmatprep.subr.mxu0 0.0
      %1293 = vmatpush1.xpose.msra.mxu0 0.0
      %1294 = vmatprep.subr.mxu0 0.0
      %1295 = vmatpush1.xpose.msra.mxu0 0.0
      %1296 = vmatprep.subr.mxu0 0.0
      %1297 = vmatpush1.xpose.msra.mxu0 0.0
      %1298 = vmatprep.subr.mxu0 0.0
      %1299 = vmatpush1.xpose.msra.mxu0 0.0
      %1300 = vmatprep.subr.mxu0 0.0
      %1301 = vmatpush1.xpose.msra.mxu0 0.0
      %1302 = vmatprep.subr.mxu0 0.0
      %1303 = vmatpush1.xpose.msra.mxu0 0.0
      %1304 = vmatprep.subr.mxu0 0.0
      %1305 = vmatpush1.xpose.msra.mxu0 0.0
      %1306 = vmatprep.subr.mxu0 0.0
      %1307 = vmatpush1.xpose.msra.mxu0 0.0
      %1308 = vmatprep.subr.mxu0 0.0
      %1309 = vmatpush1.xpose.msra.mxu0 0.0
      %1310 = vmatprep.subr.mxu0 0.0
      %1311 = vmatpush1.xpose.msra.mxu0 0.0
      %1312 = vmatprep.mubr.f32.mxu0 0.0
      %1313 = vmatmul.mubr.f32.gmra.mrb[0].mxu0 %v1177
      %v1314 = vpop.f32.mrb[0].mxu0
      %v1315 = vadd.f32 %v1245, %v1314
      %v1316 = vpop.f32.mrb[0].mxu0
      %1317 = vdwg.mxu0
      %v1318 = vlaneseq
      %v1319 = vshrl.u32 %v1318, 7
      %v1320 = vsub.s32 0, %v1319
      %v1321 = vrot.slane %v1315, %v1320
      %v1322 = vadd.f32 %v1000, %v1321
      %v1323 = vadd.f32 %v1002, %v1321
      %v1324 = vadd.f32 %v1004, %v1321
      %v1325 = vadd.f32 %v1006, %v1321
      %v1326 = vadd.f32 %v1008, %v1321
      %v1327 = vadd.f32 %v1010, %v1321
      %v1328 = vadd.f32 %v1012, %v1321
      %v1329 = vadd.f32 %v1014, %v1321
      %v1330 = vadd.f32 %v1016, %v1321
      %v1331 = vadd.f32 %v1018, %v1321
      %v1332 = vadd.f32 %v1020, %v1321
      %v1333 = vadd.f32 %v1022, %v1321
      %v1334 = vadd.f32 %v1024, %v1321
      %v1335 = vadd.f32 %v1026, %v1321
      %v1336 = vadd.f32 %v1028, %v1321
      %v1337 = vadd.f32 %v1030, %v1321
      %v1338 = vmul.f32 %v1322, 0.2
      %v1339 = vmul.f32 %v1323, 0.2
      %v1340 = vmul.f32 %v1324, 0.2
      %v1341 = vmul.f32 %v1325, 0.2
      %v1342 = vmul.f32 %v1326, 0.2
      %v1343 = vmul.f32 %v1327, 0.2
      %v1344 = vmul.f32 %v1328, 0.2
      %v1345 = vmul.f32 %v1329, 0.2
      %v1346 = vmul.f32 %v1330, 0.2
      %v1347 = vmul.f32 %v1331, 0.2
      %v1348 = vmul.f32 %v1332, 0.2
      %v1349 = vmul.f32 %v1333, 0.2
      %v1350 = vmul.f32 %v1334, 0.2
      %v1351 = vmul.f32 %v1335, 0.2
      %v1352 = vmul.f32 %v1336, 0.2
      %v1353 = vmul.f32 %v1337, 0.2
      %v1354 = vmax.f32 %v1322, %v1338
      %v1355 = vmax.f32 %v1323, %v1339
      %v1356 = vmax.f32 %v1324, %v1340
      %v1357 = vmax.f32 %v1325, %v1341
      %v1358 = vmax.f32 %v1326, %v1342
      %v1359 = vmax.f32 %v1327, %v1343
      %v1360 = vmax.f32 %v1328, %v1344
      %v1361 = vmax.f32 %v1329, %v1345
      %v1362 = vmax.f32 %v1330, %v1346
      %v1363 = vmax.f32 %v1331, %v1347
      %v1364 = vmax.f32 %v1332, %v1348
      %v1365 = vmax.f32 %v1333, %v1349
      %v1366 = vmax.f32 %v1334, %v1350
      %v1367 = vmax.f32 %v1335, %v1351
      %v1368 = vmax.f32 %v1336, %v1352
      %v1369 = vmax.f32 %v1337, %v1353
      %v1370 = vadd.f32 %v1354, %v495
      %v1371 = vadd.f32 %v1355, %v496
      %v1372 = vadd.f32 %v1356, %v497
      %v1373 = vadd.f32 %v1357, %v498
      %v1374 = vadd.f32 %v1358, %v499
      %v1375 = vadd.f32 %v1359, %v500
      %v1376 = vadd.f32 %v1360, %v501
      %v1377 = vadd.f32 %v1361, %v502
      %v1378 = vadd.f32 %v1362, %v503
      %v1379 = vadd.f32 %v1363, %v504
      %v1380 = vadd.f32 %v1364, %v505
      %v1381 = vadd.f32 %v1365, %v506
      %v1382 = vadd.f32 %v1366, %v507
      %v1383 = vadd.f32 %v1367, %v508
      %v1384 = vadd.f32 %v1368, %v509
      %v1385 = vadd.f32 %v1369, %v510
      %1386 = vmax.xlane.f32.xlu0 %v1370
      %v1387 = vpop.xlane.xlu0 %1386
      %1388 = vmax.xlane.f32.xlu0 %v1371
      %v1389 = vpop.xlane.xlu0 %1388
      %1390 = vmax.xlane.f32.xlu0 %v1372
      %v1391 = vpop.xlane.xlu0 %1390
      %1392 = vmax.xlane.f32.xlu0 %v1373
      %v1393 = vpop.xlane.xlu0 %1392
      %1394 = vmax.xlane.f32.xlu0 %v1374
      %v1395 = vpop.xlane.xlu0 %1394
      %1396 = vmax.xlane.f32.xlu0 %v1375
      %v1397 = vpop.xlane.xlu0 %1396
      %1398 = vmax.xlane.f32.xlu0 %v1376
      %v1399 = vpop.xlane.xlu0 %1398
      %1400 = vmax.xlane.f32.xlu0 %v1377
      %v1401 = vpop.xlane.xlu0 %1400
      %1402 = vmax.xlane.f32.xlu0 %v1378
      %v1403 = vpop.xlane.xlu0 %1402
      %1404 = vmax.xlane.f32.xlu0 %v1379
      %v1405 = vpop.xlane.xlu0 %1404
      %1406 = vmax.xlane.f32.xlu0 %v1380
      %v1407 = vpop.xlane.xlu0 %1406
      %1408 = vmax.xlane.f32.xlu0 %v1381
      %v1409 = vpop.xlane.xlu0 %1408
      %1410 = vmax.xlane.f32.xlu0 %v1382
      %v1411 = vpop.xlane.xlu0 %1410
      %1412 = vmax.xlane.f32.xlu0 %v1383
      %v1413 = vpop.xlane.xlu0 %1412
      %1414 = vmax.xlane.f32.xlu0 %v1384
      %v1415 = vpop.xlane.xlu0 %1414
      %1416 = vmax.xlane.f32.xlu0 %v1385
      %v1417 = vpop.xlane.xlu0 %1416
      %v1418 = vsub.f32 %v1370, %v1387
      %v1419 = vsub.f32 %v1371, %v1389
      %v1420 = vsub.f32 %v1372, %v1391
      %v1421 = vsub.f32 %v1373, %v1393
      %v1422 = vsub.f32 %v1374, %v1395
      %v1423 = vsub.f32 %v1375, %v1397
      %v1424 = vsub.f32 %v1376, %v1399
      %v1425 = vsub.f32 %v1377, %v1401
      %v1426 = vsub.f32 %v1378, %v1403
      %v1427 = vsub.f32 %v1379, %v1405
      %v1428 = vsub.f32 %v1380, %v1407
      %v1429 = vsub.f32 %v1381, %v1409
      %v1430 = vsub.f32 %v1382, %v1411
      %v1431 = vsub.f32 %v1383, %v1413
      %v1432 = vsub.f32 %v1384, %v1415
      %v1433 = vsub.f32 %v1385, %v1417
      %v1434 = vmul.f32 %v1418, 1.442695
      %v1435 = vpow.pop %v1434
      %v1436 = vmul.f32 %v1419, 1.442695
      %v1437 = vpow.pop %v1436
      %v1438 = vmul.f32 %v1420, 1.442695
      %v1439 = vpow.pop %v1438
      %v1440 = vmul.f32 %v1421, 1.442695
      %v1441 = vpow.pop %v1440
      %v1442 = vmul.f32 %v1422, 1.442695
      %v1443 = vpow.pop %v1442
      %v1444 = vmul.f32 %v1423, 1.442695
      %v1445 = vpow.pop %v1444
      %v1446 = vmul.f32 %v1424, 1.442695
      %v1447 = vpow.pop %v1446
      %v1448 = vmul.f32 %v1425, 1.442695
      %v1449 = vpow.pop %v1448
      %v1450 = vmul.f32 %v1426, 1.442695
      %v1451 = vpow.pop %v1450
      %v1452 = vmul.f32 %v1427, 1.442695
      %v1453 = vpow.pop %v1452
      %v1454 = vmul.f32 %v1428, 1.442695
      %v1455 = vpow.pop %v1454
      %v1456 = vmul.f32 %v1429, 1.442695
      %v1457 = vpow.pop %v1456
      %v1458 = vmul.f32 %v1430, 1.442695
      %v1459 = vpow.pop %v1458
      %v1460 = vmul.f32 %v1431, 1.442695
      %v1461 = vpow.pop %v1460
      %v1462 = vmul.f32 %v1432, 1.442695
      %v1463 = vpow.pop %v1462
      %v1464 = vmul.f32 %v1433, 1.442695
      %v1465 = vpow.pop %v1464
      %1466 = vadd.xlane.f32.xlu0 %v1435
      %v1467 = vpop.xlane.xlu0 %1466
      %1468 = vadd.xlane.f32.xlu0 %v1437
      %v1469 = vpop.xlane.xlu0 %1468
      %1470 = vadd.xlane.f32.xlu0 %v1439
      %v1471 = vpop.xlane.xlu0 %1470
      %1472 = vadd.xlane.f32.xlu0 %v1441
      %v1473 = vpop.xlane.xlu0 %1472
      %1474 = vadd.xlane.f32.xlu0 %v1443
      %v1475 = vpop.xlane.xlu0 %1474
      %1476 = vadd.xlane.f32.xlu0 %v1445
      %v1477 = vpop.xlane.xlu0 %1476
      %1478 = vadd.xlane.f32.xlu0 %v1447
      %v1479 = vpop.xlane.xlu0 %1478
      %1480 = vadd.xlane.f32.xlu0 %v1449
      %v1481 = vpop.xlane.xlu0 %1480
      %1482 = vadd.xlane.f32.xlu0 %v1451
      %v1483 = vpop.xlane.xlu0 %1482
      %1484 = vadd.xlane.f32.xlu0 %v1453
      %v1485 = vpop.xlane.xlu0 %1484
      %1486 = vadd.xlane.f32.xlu0 %v1455
      %v1487 = vpop.xlane.xlu0 %1486
      %1488 = vadd.xlane.f32.xlu0 %v1457
      %v1489 = vpop.xlane.xlu0 %1488
      %1490 = vadd.xlane.f32.xlu0 %v1459
      %v1491 = vpop.xlane.xlu0 %1490
      %1492 = vadd.xlane.f32.xlu0 %v1461
      %v1493 = vpop.xlane.xlu0 %1492
      %1494 = vadd.xlane.f32.xlu0 %v1463
      %v1495 = vpop.xlane.xlu0 %1494
      %1496 = vadd.xlane.f32.xlu0 %v1465
      %v1497 = vpop.xlane.xlu0 %1496
      %v1498 = vrcp.pop %v1467
      %v1499 = vrcp.pop %v1469
      %v1500 = vrcp.pop %v1471
      %v1501 = vrcp.pop %v1473
      %v1502 = vrcp.pop %v1475
      %v1503 = vrcp.pop %v1477
      %v1504 = vrcp.pop %v1479
      %v1505 = vrcp.pop %v1481
      %v1506 = vrcp.pop %v1483
      %v1507 = vrcp.pop %v1485
      %v1508 = vrcp.pop %v1487
      %v1509 = vrcp.pop %v1489
      %v1510 = vrcp.pop %v1491
      %v1511 = vrcp.pop %v1493
      %v1512 = vrcp.pop %v1495
      %v1513 = vrcp.pop %v1497
      %v1514 = vmul.f32 %v1498, 0.33333334
      %v1515 = vmul.f32 %v1499, 0.33333334
      %v1516 = vmul.f32 %v1500, 0.33333334
      %v1517 = vmul.f32 %v1501, 0.33333334
      %v1518 = vmul.f32 %v1502, 0.33333334
      %v1519 = vmul.f32 %v1503, 0.33333334
      %v1520 = vmul.f32 %v1504, 0.33333334
      %v1521 = vmul.f32 %v1505, 0.33333334
      %v1522 = vmul.f32 %v1506, 0.33333334
      %v1523 = vmul.f32 %v1507, 0.33333334
      %v1524 = vmul.f32 %v1508, 0.33333334
      %v1525 = vmul.f32 %v1509, 0.33333334
      %v1526 = vmul.f32 %v1510, 0.33333334
      %v1527 = vmul.f32 %v1511, 0.33333334
      %v1528 = vmul.f32 %v1512, 0.33333334
      %v1529 = vmul.f32 %v1513, 0.33333334
      %v1530 = vmul.f32 %v1435, %v1514
      %v1531 = vmul.f32 %v1437, %v1515
      %v1532 = vmul.f32 %v1439, %v1516
      %v1533 = vmul.f32 %v1441, %v1517
      %v1534 = vmul.f32 %v1443, %v1518
      %v1535 = vmul.f32 %v1445, %v1519
      %v1536 = vmul.f32 %v1447, %v1520
      %v1537 = vmul.f32 %v1449, %v1521
      %v1538 = vmul.f32 %v1451, %v1522
      %v1539 = vmul.f32 %v1453, %v1523
      %v1540 = vmul.f32 %v1455, %v1524
      %v1541 = vmul.f32 %v1457, %v1525
      %v1542 = vmul.f32 %v1459, %v1526
      %v1543 = vmul.f32 %v1461, %v1527
      %v1544 = vmul.f32 %v1463, %v1528
      %v1545 = vmul.f32 %v1465, %v1529
      %v1546 = vpack.c.bf16 %v1531, %v1530
      %v1547 = vpack.c.bf16 %v1533, %v1532
      %v1548 = vpack.c.bf16 %v1535, %v1534
      %v1549 = vpack.c.bf16 %v1537, %v1536
      %v1550 = vpack.c.bf16 %v1539, %v1538
      %v1551 = vpack.c.bf16 %v1541, %v1540
      %v1552 = vpack.c.bf16 %v1543, %v1542
      %v1553 = vpack.c.bf16 %v1545, %v1544
      %1554 = vst [vmem:[#allocation3] sm:$0xff] %v1546
      %1555 = vst [vmem:[#allocation3 + $0x18] sm:$0xff] %v1547
      %1556 = vst [vmem:[#allocation3 + $0x30] sm:$0xff] %v1548
      %1557 = vst [vmem:[#allocation3 + $0x48] sm:$0xff] %v1549
      %1558 = vst [vmem:[#allocation3 + $0x60] sm:$0xff] %v1550
      %1559 = vst [vmem:[#allocation3 + $0x78] sm:$0xff] %v1551
      %1560 = vst [vmem:[#allocation3 + $0x90] sm:$0xff] %v1552
      %1561 = vst [vmem:[#allocation3 + $0xa8] sm:$0xff] %v1553
      %v1562 = vlaneseq
      %v1563 = vshrl.u32 %v1562, 7
      %v1564 = vsub.s32 1, %v1563
      %v1565 = vrot.slane %v1315, %v1564
      %v1566 = vadd.f32 %v1072, %v1565
      %v1567 = vadd.f32 %v1074, %v1565
      %v1568 = vadd.f32 %v1076, %v1565
      %v1569 = vadd.f32 %v1078, %v1565
      %v1570 = vadd.f32 %v1080, %v1565
      %v1571 = vadd.f32 %v1082, %v1565
      %v1572 = vadd.f32 %v1084, %v1565
      %v1573 = vadd.f32 %v1086, %v1565
      %v1574 = vadd.f32 %v1088, %v1565
      %v1575 = vadd.f32 %v1090, %v1565
      %v1576 = vadd.f32 %v1092, %v1565
      %v1577 = vadd.f32 %v1094, %v1565
      %v1578 = vadd.f32 %v1096, %v1565
      %v1579 = vadd.f32 %v1098, %v1565
      %v1580 = vadd.f32 %v1100, %v1565
      %v1581 = vadd.f32 %v1102, %v1565
      %v1582 = vmul.f32 %v1566, 0.2
      %v1583 = vmul.f32 %v1567, 0.2
      %v1584 = vmul.f32 %v1568, 0.2
      %v1585 = vmul.f32 %v1569, 0.2
      %v1586 = vmul.f32 %v1570, 0.2
      %v1587 = vmul.f32 %v1571, 0.2
      %v1588 = vmul.f32 %v1572, 0.2
      %v1589 = vmul.f32 %v1573, 0.2
      %v1590 = vmul.f32 %v1574, 0.2
      %v1591 = vmul.f32 %v1575, 0.2
      %v1592 = vmul.f32 %v1576, 0.2
      %v1593 = vmul.f32 %v1577, 0.2
      %v1594 = vmul.f32 %v1578, 0.2
      %v1595 = vmul.f32 %v1579, 0.2
      %v1596 = vmul.f32 %v1580, 0.2
      %v1597 = vmul.f32 %v1581, 0.2
      %v1598 = vmax.f32 %v1566, %v1582
      %v1599 = vmax.f32 %v1567, %v1583
      %v1600 = vmax.f32 %v1568, %v1584
      %v1601 = vmax.f32 %v1569, %v1585
      %v1602 = vmax.f32 %v1570, %v1586
      %v1603 = vmax.f32 %v1571, %v1587
      %v1604 = vmax.f32 %v1572, %v1588
      %v1605 = vmax.f32 %v1573, %v1589
      %v1606 = vmax.f32 %v1574, %v1590
      %v1607 = vmax.f32 %v1575, %v1591
      %v1608 = vmax.f32 %v1576, %v1592
      %v1609 = vmax.f32 %v1577, %v1593
      %v1610 = vmax.f32 %v1578, %v1594
      %v1611 = vmax.f32 %v1579, %v1595
      %v1612 = vmax.f32 %v1580, %v1596
      %v1613 = vmax.f32 %v1581, %v1597
      %v1614 = vadd.f32 %v1598, %v495
      %v1615 = vadd.f32 %v1599, %v496
      %v1616 = vadd.f32 %v1600, %v497
      %v1617 = vadd.f32 %v1601, %v498
      %v1618 = vadd.f32 %v1602, %v499
      %v1619 = vadd.f32 %v1603, %v500
      %v1620 = vadd.f32 %v1604, %v501
      %v1621 = vadd.f32 %v1605, %v502
      %v1622 = vadd.f32 %v1606, %v503
      %v1623 = vadd.f32 %v1607, %v504
      %v1624 = vadd.f32 %v1608, %v505
      %v1625 = vadd.f32 %v1609, %v506
      %v1626 = vadd.f32 %v1610, %v507
      %v1627 = vadd.f32 %v1611, %v508
      %v1628 = vadd.f32 %v1612, %v509
      %v1629 = vadd.f32 %v1613, %v510
      %1630 = vmax.xlane.f32.xlu0 %v1614
      %v1631 = vpop.xlane.xlu0 %1630
      %1632 = vmax.xlane.f32.xlu0 %v1615
      %v1633 = vpop.xlane.xlu0 %1632
      %1634 = vmax.xlane.f32.xlu0 %v1616
      %v1635 = vpop.xlane.xlu0 %1634
      %1636 = vmax.xlane.f32.xlu0 %v1617
      %v1637 = vpop.xlane.xlu0 %1636
      %1638 = vmax.xlane.f32.xlu0 %v1618
      %v1639 = vpop.xlane.xlu0 %1638
      %1640 = vmax.xlane.f32.xlu0 %v1619
      %v1641 = vpop.xlane.xlu0 %1640
      %1642 = vmax.xlane.f32.xlu0 %v1620
      %v1643 = vpop.xlane.xlu0 %1642
      %1644 = vmax.xlane.f32.xlu0 %v1621
      %v1645 = vpop.xlane.xlu0 %1644
      %1646 = vmax.xlane.f32.xlu0 %v1622
      %v1647 = vpop.xlane.xlu0 %1646
      %1648 = vmax.xlane.f32.xlu0 %v1623
      %v1649 = vpop.xlane.xlu0 %1648
      %1650 = vmax.xlane.f32.xlu0 %v1624
      %v1651 = vpop.xlane.xlu0 %1650
      %1652 = vmax.xlane.f32.xlu0 %v1625
      %v1653 = vpop.xlane.xlu0 %1652
      %1654 = vmax.xlane.f32.xlu0 %v1626
      %v1655 = vpop.xlane.xlu0 %1654
      %1656 = vmax.xlane.f32.xlu0 %v1627
      %v1657 = vpop.xlane.xlu0 %1656
      %1658 = vmax.xlane.f32.xlu0 %v1628
      %v1659 = vpop.xlane.xlu0 %1658
      %1660 = vmax.xlane.f32.xlu0 %v1629
      %v1661 = vpop.xlane.xlu0 %1660
      %v1662 = vsub.f32 %v1614, %v1631
      %v1663 = vsub.f32 %v1615, %v1633
      %v1664 = vsub.f32 %v1616, %v1635
      %v1665 = vsub.f32 %v1617, %v1637
      %v1666 = vsub.f32 %v1618, %v1639
      %v1667 = vsub.f32 %v1619, %v1641
      %v1668 = vsub.f32 %v1620, %v1643
      %v1669 = vsub.f32 %v1621, %v1645
      %v1670 = vsub.f32 %v1622, %v1647
      %v1671 = vsub.f32 %v1623, %v1649
      %v1672 = vsub.f32 %v1624, %v1651
      %v1673 = vsub.f32 %v1625, %v1653
      %v1674 = vsub.f32 %v1626, %v1655
      %v1675 = vsub.f32 %v1627, %v1657
      %v1676 = vsub.f32 %v1628, %v1659
      %v1677 = vsub.f32 %v1629, %v1661
      %v1678 = vmul.f32 %v1662, 1.442695
      %v1679 = vpow.pop %v1678
      %v1680 = vmul.f32 %v1663, 1.442695
      %v1681 = vpow.pop %v1680
      %v1682 = vmul.f32 %v1664, 1.442695
      %v1683 = vpow.pop %v1682
      %v1684 = vmul.f32 %v1665, 1.442695
      %v1685 = vpow.pop %v1684
      %v1686 = vmul.f32 %v1666, 1.442695
      %v1687 = vpow.pop %v1686
      %v1688 = vmul.f32 %v1667, 1.442695
      %v1689 = vpow.pop %v1688
      %v1690 = vmul.f32 %v1668, 1.442695
      %v1691 = vpow.pop %v1690
      %v1692 = vmul.f32 %v1669, 1.442695
      %v1693 = vpow.pop %v1692
      %v1694 = vmul.f32 %v1670, 1.442695
      %v1695 = vpow.pop %v1694
      %v1696 = vmul.f32 %v1671, 1.442695
      %v1697 = vpow.pop %v1696
      %v1698 = vmul.f32 %v1672, 1.442695
      %v1699 = vpow.pop %v1698
      %v1700 = vmul.f32 %v1673, 1.442695
      %v1701 = vpow.pop %v1700
      %v1702 = vmul.f32 %v1674, 1.442695
      %v1703 = vpow.pop %v1702
      %v1704 = vmul.f32 %v1675, 1.442695
      %v1705 = vpow.pop %v1704
      %v1706 = vmul.f32 %v1676, 1.442695
      %v1707 = vpow.pop %v1706
      %v1708 = vmul.f32 %v1677, 1.442695
      %v1709 = vpow.pop %v1708
      %1710 = vadd.xlane.f32.xlu0 %v1679
      %v1711 = vpop.xlane.xlu0 %1710
      %1712 = vadd.xlane.f32.xlu0 %v1681
      %v1713 = vpop.xlane.xlu0 %1712
      %1714 = vadd.xlane.f32.xlu0 %v1683
      %v1715 = vpop.xlane.xlu0 %1714
      %1716 = vadd.xlane.f32.xlu0 %v1685
      %v1717 = vpop.xlane.xlu0 %1716
      %1718 = vadd.xlane.f32.xlu0 %v1687
      %v1719 = vpop.xlane.xlu0 %1718
      %1720 = vadd.xlane.f32.xlu0 %v1689
      %v1721 = vpop.xlane.xlu0 %1720
      %1722 = vadd.xlane.f32.xlu0 %v1691
      %v1723 = vpop.xlane.xlu0 %1722
      %1724 = vadd.xlane.f32.xlu0 %v1693
      %v1725 = vpop.xlane.xlu0 %1724
      %1726 = vadd.xlane.f32.xlu0 %v1695
      %v1727 = vpop.xlane.xlu0 %1726
      %1728 = vadd.xlane.f32.xlu0 %v1697
      %v1729 = vpop.xlane.xlu0 %1728
      %1730 = vadd.xlane.f32.xlu0 %v1699
      %v1731 = vpop.xlane.xlu0 %1730
      %1732 = vadd.xlane.f32.xlu0 %v1701
      %v1733 = vpop.xlane.xlu0 %1732
      %1734 = vadd.xlane.f32.xlu0 %v1703
      %v1735 = vpop.xlane.xlu0 %1734
      %1736 = vadd.xlane.f32.xlu0 %v1705
      %v1737 = vpop.xlane.xlu0 %1736
      %1738 = vadd.xlane.f32.xlu0 %v1707
      %v1739 = vpop.xlane.xlu0 %1738
      %1740 = vadd.xlane.f32.xlu0 %v1709
      %v1741 = vpop.xlane.xlu0 %1740
      %v1742 = vrcp.pop %v1711
      %v1743 = vrcp.pop %v1713
      %v1744 = vrcp.pop %v1715
      %v1745 = vrcp.pop %v1717
      %v1746 = vrcp.pop %v1719
      %v1747 = vrcp.pop %v1721
      %v1748 = vrcp.pop %v1723
      %v1749 = vrcp.pop %v1725
      %v1750 = vrcp.pop %v1727
      %v1751 = vrcp.pop %v1729
      %v1752 = vrcp.pop %v1731
      %v1753 = vrcp.pop %v1733
      %v1754 = vrcp.pop %v1735
      %v1755 = vrcp.pop %v1737
      %v1756 = vrcp.pop %v1739
      %v1757 = vrcp.pop %v1741
      %v1758 = vmul.f32 %v1742, 0.33333334
      %v1759 = vmul.f32 %v1743, 0.33333334
      %v1760 = vmul.f32 %v1744, 0.33333334
      %v1761 = vmul.f32 %v1745, 0.33333334
      %v1762 = vmul.f32 %v1746, 0.33333334
      %v1763 = vmul.f32 %v1747, 0.33333334
      %v1764 = vmul.f32 %v1748, 0.33333334
      %v1765 = vmul.f32 %v1749, 0.33333334
      %v1766 = vmul.f32 %v1750, 0.33333334
      %v1767 = vmul.f32 %v1751, 0.33333334
      %v1768 = vmul.f32 %v1752, 0.33333334
      %v1769 = vmul.f32 %v1753, 0.33333334
      %v1770 = vmul.f32 %v1754, 0.33333334
      %v1771 = vmul.f32 %v1755, 0.33333334
      %v1772 = vmul.f32 %v1756, 0.33333334
      %v1773 = vmul.f32 %v1757, 0.33333334
      %v1774 = vmul.f32 %v1679, %v1758
      %v1775 = vmul.f32 %v1681, %v1759
      %v1776 = vmul.f32 %v1683, %v1760
      %v1777 = vmul.f32 %v1685, %v1761
      %v1778 = vmul.f32 %v1687, %v1762
      %v1779 = vmul.f32 %v1689, %v1763
      %v1780 = vmul.f32 %v1691, %v1764
      %v1781 = vmul.f32 %v1693, %v1765
      %v1782 = vmul.f32 %v1695, %v1766
      %v1783 = vmul.f32 %v1697, %v1767
      %v1784 = vmul.f32 %v1699, %v1768
      %v1785 = vmul.f32 %v1701, %v1769
      %v1786 = vmul.f32 %v1703, %v1770
      %v1787 = vmul.f32 %v1705, %v1771
      %v1788 = vmul.f32 %v1707, %v1772
      %v1789 = vmul.f32 %v1709, %v1773
      %v1790 = vpack.c.bf16 %v1775, %v1774
      %v1791 = vpack.c.bf16 %v1777, %v1776
      %v1792 = vpack.c.bf16 %v1779, %v1778
      %v1793 = vpack.c.bf16 %v1781, %v1780
      %v1794 = vpack.c.bf16 %v1783, %v1782
      %v1795 = vpack.c.bf16 %v1785, %v1784
      %v1796 = vpack.c.bf16 %v1787, %v1786
      %v1797 = vpack.c.bf16 %v1789, %v1788
      %1798 = vst [vmem:[#allocation3 + $0x8] sm:$0xff] %v1790
      %1799 = vst [vmem:[#allocation3 + $0x20] sm:$0xff] %v1791
      %1800 = vst [vmem:[#allocation3 + $0x38] sm:$0xff] %v1792
      %1801 = vst [vmem:[#allocation3 + $0x50] sm:$0xff] %v1793
      %1802 = vst [vmem:[#allocation3 + $0x68] sm:$0xff] %v1794
      %1803 = vst [vmem:[#allocation3 + $0x80] sm:$0xff] %v1795
      %1804 = vst [vmem:[#allocation3 + $0x98] sm:$0xff] %v1796
      %1805 = vst [vmem:[#allocation3 + $0xb0] sm:$0xff] %v1797
      %v1806 = vlaneseq
      %v1807 = vshrl.u32 %v1806, 7
      %v1808 = vsub.s32 2, %v1807
      %v1809 = vrot.slane %v1315, %v1808
      %v1810 = vadd.f32 %v1144, %v1809
      %v1811 = vadd.f32 %v1146, %v1809
      %v1812 = vadd.f32 %v1148, %v1809
      %v1813 = vadd.f32 %v1150, %v1809
      %v1814 = vadd.f32 %v1152, %v1809
      %v1815 = vadd.f32 %v1154, %v1809
      %v1816 = vadd.f32 %v1156, %v1809
      %v1817 = vadd.f32 %v1158, %v1809
      %v1818 = vadd.f32 %v1160, %v1809
      %v1819 = vadd.f32 %v1162, %v1809
      %v1820 = vadd.f32 %v1164, %v1809
      %v1821 = vadd.f32 %v1166, %v1809
      %v1822 = vadd.f32 %v1168, %v1809
      %v1823 = vadd.f32 %v1170, %v1809
      %v1824 = vadd.f32 %v1172, %v1809
      %v1825 = vadd.f32 %v1174, %v1809
      %v1826 = vmul.f32 %v1810, 0.2
      %v1827 = vmul.f32 %v1811, 0.2
      %v1828 = vmul.f32 %v1812, 0.2
      %v1829 = vmul.f32 %v1813, 0.2
      %v1830 = vmul.f32 %v1814, 0.2
      %v1831 = vmul.f32 %v1815, 0.2
      %v1832 = vmul.f32 %v1816, 0.2
      %v1833 = vmul.f32 %v1817, 0.2
      %v1834 = vmul.f32 %v1818, 0.2
      %v1835 = vmul.f32 %v1819, 0.2
      %v1836 = vmul.f32 %v1820, 0.2
      %v1837 = vmul.f32 %v1821, 0.2
      %v1838 = vmul.f32 %v1822, 0.2
      %v1839 = vmul.f32 %v1823, 0.2
      %v1840 = vmul.f32 %v1824, 0.2
      %v1841 = vmul.f32 %v1825, 0.2
      %v1842 = vmax.f32 %v1810, %v1826
      %v1843 = vmax.f32 %v1811, %v1827
      %v1844 = vmax.f32 %v1812, %v1828
      %v1845 = vmax.f32 %v1813, %v1829
      %v1846 = vmax.f32 %v1814, %v1830
      %v1847 = vmax.f32 %v1815, %v1831
      %v1848 = vmax.f32 %v1816, %v1832
      %v1849 = vmax.f32 %v1817, %v1833
      %v1850 = vmax.f32 %v1818, %v1834
      %v1851 = vmax.f32 %v1819, %v1835
      %v1852 = vmax.f32 %v1820, %v1836
      %v1853 = vmax.f32 %v1821, %v1837
      %v1854 = vmax.f32 %v1822, %v1838
      %v1855 = vmax.f32 %v1823, %v1839
      %v1856 = vmax.f32 %v1824, %v1840
      %v1857 = vmax.f32 %v1825, %v1841
      %v1858 = vadd.f32 %v1842, %v495
      %v1859 = vadd.f32 %v1843, %v496
      %v1860 = vadd.f32 %v1844, %v497
      %v1861 = vadd.f32 %v1845, %v498
      %v1862 = vadd.f32 %v1846, %v499
      %v1863 = vadd.f32 %v1847, %v500
      %v1864 = vadd.f32 %v1848, %v501
      %v1865 = vadd.f32 %v1849, %v502
      %v1866 = vadd.f32 %v1850, %v503
      %v1867 = vadd.f32 %v1851, %v504
      %v1868 = vadd.f32 %v1852, %v505
      %v1869 = vadd.f32 %v1853, %v506
      %v1870 = vadd.f32 %v1854, %v507
      %v1871 = vadd.f32 %v1855, %v508
      %v1872 = vadd.f32 %v1856, %v509
      %v1873 = vadd.f32 %v1857, %v510
      %1874 = vmax.xlane.f32.xlu0 %v1858
      %v1875 = vpop.xlane.xlu0 %1874
      %1876 = vmax.xlane.f32.xlu0 %v1859
      %v1877 = vpop.xlane.xlu0 %1876
      %1878 = vmax.xlane.f32.xlu0 %v1860
      %v1879 = vpop.xlane.xlu0 %1878
      %1880 = vmax.xlane.f32.xlu0 %v1861
      %v1881 = vpop.xlane.xlu0 %1880
      %1882 = vmax.xlane.f32.xlu0 %v1862
      %v1883 = vpop.xlane.xlu0 %1882
      %1884 = vmax.xlane.f32.xlu0 %v1863
      %v1885 = vpop.xlane.xlu0 %1884
      %1886 = vmax.xlane.f32.xlu0 %v1864
      %v1887 = vpop.xlane.xlu0 %1886
      %1888 = vmax.xlane.f32.xlu0 %v1865
      %v1889 = vpop.xlane.xlu0 %1888
      %1890 = vmax.xlane.f32.xlu0 %v1866
      %v1891 = vpop.xlane.xlu0 %1890
      %1892 = vmax.xlane.f32.xlu0 %v1867
      %v1893 = vpop.xlane.xlu0 %1892
      %1894 = vmax.xlane.f32.xlu0 %v1868
      %v1895 = vpop.xlane.xlu0 %1894
      %1896 = vmax.xlane.f32.xlu0 %v1869
      %v1897 = vpop.xlane.xlu0 %1896
      %1898 = vmax.xlane.f32.xlu0 %v1870
      %v1899 = vpop.xlane.xlu0 %1898
      %1900 = vmax.xlane.f32.xlu0 %v1871
      %v1901 = vpop.xlane.xlu0 %1900
      %1902 = vmax.xlane.f32.xlu0 %v1872
      %v1903 = vpop.xlane.xlu0 %1902
      %1904 = vmax.xlane.f32.xlu0 %v1873
      %v1905 = vpop.xlane.xlu0 %1904
      %v1906 = vsub.f32 %v1858, %v1875
      %v1907 = vsub.f32 %v1859, %v1877
      %v1908 = vsub.f32 %v1860, %v1879
      %v1909 = vsub.f32 %v1861, %v1881
      %v1910 = vsub.f32 %v1862, %v1883
      %v1911 = vsub.f32 %v1863, %v1885
      %v1912 = vsub.f32 %v1864, %v1887
      %v1913 = vsub.f32 %v1865, %v1889
      %v1914 = vsub.f32 %v1866, %v1891
      %v1915 = vsub.f32 %v1867, %v1893
      %v1916 = vsub.f32 %v1868, %v1895
      %v1917 = vsub.f32 %v1869, %v1897
      %v1918 = vsub.f32 %v1870, %v1899
      %v1919 = vsub.f32 %v1871, %v1901
      %v1920 = vsub.f32 %v1872, %v1903
      %v1921 = vsub.f32 %v1873, %v1905
      %v1922 = vmul.f32 %v1906, 1.442695
      %v1923 = vpow.pop %v1922
      %v1924 = vmul.f32 %v1907, 1.442695
      %v1925 = vpow.pop %v1924
      %v1926 = vmul.f32 %v1908, 1.442695
      %v1927 = vpow.pop %v1926
      %v1928 = vmul.f32 %v1909, 1.442695
      %v1929 = vpow.pop %v1928
      %v1930 = vmul.f32 %v1910, 1.442695
      %v1931 = vpow.pop %v1930
      %v1932 = vmul.f32 %v1911, 1.442695
      %v1933 = vpow.pop %v1932
      %v1934 = vmul.f32 %v1912, 1.442695
      %v1935 = vpow.pop %v1934
      %v1936 = vmul.f32 %v1913, 1.442695
      %v1937 = vpow.pop %v1936
      %v1938 = vmul.f32 %v1914, 1.442695
      %v1939 = vpow.pop %v1938
      %v1940 = vmul.f32 %v1915, 1.442695
      %v1941 = vpow.pop %v1940
      %v1942 = vmul.f32 %v1916, 1.442695
      %v1943 = vpow.pop %v1942
      %v1944 = vmul.f32 %v1917, 1.442695
      %v1945 = vpow.pop %v1944
      %v1946 = vmul.f32 %v1918, 1.442695
      %v1947 = vpow.pop %v1946
      %v1948 = vmul.f32 %v1919, 1.442695
      %v1949 = vpow.pop %v1948
      %v1950 = vmul.f32 %v1920, 1.442695
      %v1951 = vpow.pop %v1950
      %v1952 = vmul.f32 %v1921, 1.442695
      %v1953 = vpow.pop %v1952
      %1954 = vadd.xlane.f32.xlu0 %v1923
      %v1955 = vpop.xlane.xlu0 %1954
      %1956 = vadd.xlane.f32.xlu0 %v1925
      %v1957 = vpop.xlane.xlu0 %1956
      %1958 = vadd.xlane.f32.xlu0 %v1927
      %v1959 = vpop.xlane.xlu0 %1958
      %1960 = vadd.xlane.f32.xlu0 %v1929
      %v1961 = vpop.xlane.xlu0 %1960
      %1962 = vadd.xlane.f32.xlu0 %v1931
      %v1963 = vpop.xlane.xlu0 %1962
      %1964 = vadd.xlane.f32.xlu0 %v1933
      %v1965 = vpop.xlane.xlu0 %1964
      %1966 = vadd.xlane.f32.xlu0 %v1935
      %v1967 = vpop.xlane.xlu0 %1966
      %1968 = vadd.xlane.f32.xlu0 %v1937
      %v1969 = vpop.xlane.xlu0 %1968
      %1970 = vadd.xlane.f32.xlu0 %v1939
      %v1971 = vpop.xlane.xlu0 %1970
      %1972 = vadd.xlane.f32.xlu0 %v1941
      %v1973 = vpop.xlane.xlu0 %1972
      %1974 = vadd.xlane.f32.xlu0 %v1943
      %v1975 = vpop.xlane.xlu0 %1974
      %1976 = vadd.xlane.f32.xlu0 %v1945
      %v1977 = vpop.xlane.xlu0 %1976
      %1978 = vadd.xlane.f32.xlu0 %v1947
      %v1979 = vpop.xlane.xlu0 %1978
      %1980 = vadd.xlane.f32.xlu0 %v1949
      %v1981 = vpop.xlane.xlu0 %1980
      %1982 = vadd.xlane.f32.xlu0 %v1951
      %v1983 = vpop.xlane.xlu0 %1982
      %1984 = vadd.xlane.f32.xlu0 %v1953
      %v1985 = vpop.xlane.xlu0 %1984
      %v1986 = vrcp.pop %v1955
      %v1987 = vrcp.pop %v1957
      %v1988 = vrcp.pop %v1959
      %v1989 = vrcp.pop %v1961
      %v1990 = vrcp.pop %v1963
      %v1991 = vrcp.pop %v1965
      %v1992 = vrcp.pop %v1967
      %v1993 = vrcp.pop %v1969
      %v1994 = vrcp.pop %v1971
      %v1995 = vrcp.pop %v1973
      %v1996 = vrcp.pop %v1975
      %v1997 = vrcp.pop %v1977
      %v1998 = vrcp.pop %v1979
      %v1999 = vrcp.pop %v1981
      %v2000 = vrcp.pop %v1983
      %v2001 = vrcp.pop %v1985
      %v2002 = vmul.f32 %v1986, 0.33333334
      %v2003 = vmul.f32 %v1987, 0.33333334
      %v2004 = vmul.f32 %v1988, 0.33333334
      %v2005 = vmul.f32 %v1989, 0.33333334
      %v2006 = vmul.f32 %v1990, 0.33333334
      %v2007 = vmul.f32 %v1991, 0.33333334
      %v2008 = vmul.f32 %v1992, 0.33333334
      %v2009 = vmul.f32 %v1993, 0.33333334
      %v2010 = vmul.f32 %v1994, 0.33333334
      %v2011 = vmul.f32 %v1995, 0.33333334
      %v2012 = vmul.f32 %v1996, 0.33333334
      %v2013 = vmul.f32 %v1997, 0.33333334
      %v2014 = vmul.f32 %v1998, 0.33333334
      %v2015 = vmul.f32 %v1999, 0.33333334
      %v2016 = vmul.f32 %v2000, 0.33333334
      %v2017 = vmul.f32 %v2001, 0.33333334
      %v2018 = vmul.f32 %v1923, %v2002
      %v2019 = vmul.f32 %v1925, %v2003
      %v2020 = vmul.f32 %v1927, %v2004
      %v2021 = vmul.f32 %v1929, %v2005
      %v2022 = vmul.f32 %v1931, %v2006
      %v2023 = vmul.f32 %v1933, %v2007
      %v2024 = vmul.f32 %v1935, %v2008
      %v2025 = vmul.f32 %v1937, %v2009
      %v2026 = vmul.f32 %v1939, %v2010
      %v2027 = vmul.f32 %v1941, %v2011
      %v2028 = vmul.f32 %v1943, %v2012
      %v2029 = vmul.f32 %v1945, %v2013
      %v2030 = vmul.f32 %v1947, %v2014
      %v2031 = vmul.f32 %v1949, %v2015
      %v2032 = vmul.f32 %v1951, %v2016
      %v2033 = vmul.f32 %v1953, %v2017
      %v2034 = vpack.c.bf16 %v2019, %v2018
      %v2035 = vpack.c.bf16 %v2021, %v2020
      %v2036 = vpack.c.bf16 %v2023, %v2022
      %v2037 = vpack.c.bf16 %v2025, %v2024
      %v2038 = vpack.c.bf16 %v2027, %v2026
      %v2039 = vpack.c.bf16 %v2029, %v2028
      %v2040 = vpack.c.bf16 %v2031, %v2030
      %v2041 = vpack.c.bf16 %v2033, %v2032
      %2042 = vst [vmem:[#allocation3 + $0x10] sm:$0xff] %v2034
      %2043 = vst [vmem:[#allocation3 + $0x28] sm:$0xff] %v2035
      %2044 = vst [vmem:[#allocation3 + $0x40] sm:$0xff] %v2036
      %2045 = vst [vmem:[#allocation3 + $0x58] sm:$0xff] %v2037
      %2046 = vst [vmem:[#allocation3 + $0x70] sm:$0xff] %v2038
      %2047 = vst [vmem:[#allocation3 + $0x88] sm:$0xff] %v2039
      %2048 = vst [vmem:[#allocation3 + $0xa0] sm:$0xff] %v2040
      %2049 = vst [vmem:[#allocation3 + $0xb8] sm:$0xff] %v2041
      %v2050 = vld [vmem:[#allocation3] sm:$0xff]
      %v2051 = vld [vmem:[#allocation3 + $0x8] sm:$0xff]
      %v2052 = vld [vmem:[#allocation3 + $0x10] sm:$0xff]
      %v2053 = vld [vmem:[#allocation3 + $0x18] sm:$0xff]
      %v2054 = vld [vmem:[#allocation3 + $0x20] sm:$0xff]
      %v2055 = vld [vmem:[#allocation3 + $0x28] sm:$0xff]
      %v2056 = vld [vmem:[#allocation3 + $0x30] sm:$0xff]
      %v2057 = vld [vmem:[#allocation3 + $0x38] sm:$0xff]
      %v2058 = vld [vmem:[#allocation3 + $0x40] sm:$0xff]
      %v2059 = vld [vmem:[#allocation3 + $0x48] sm:$0xff]
      %v2060 = vld [vmem:[#allocation3 + $0x50] sm:$0xff]
      %v2061 = vld [vmem:[#allocation3 + $0x58] sm:$0xff]
      %v2062 = vld [vmem:[#allocation3 + $0x60] sm:$0xff]
      %v2063 = vld [vmem:[#allocation3 + $0x68] sm:$0xff]
      %v2064 = vld [vmem:[#allocation3 + $0x70] sm:$0xff]
      %v2065 = vld [vmem:[#allocation3 + $0x78] sm:$0xff]
      %v2066 = vld [vmem:[#allocation3 + $0x80] sm:$0xff]
      %v2067 = vld [vmem:[#allocation3 + $0x88] sm:$0xff]
      %v2068 = vld [vmem:[#allocation3 + $0x90] sm:$0xff]
      %v2069 = vld [vmem:[#allocation3 + $0x98] sm:$0xff]
      %v2070 = vld [vmem:[#allocation3 + $0xa0] sm:$0xff]
      %v2071 = vld [vmem:[#allocation3 + $0xa8] sm:$0xff]
      %v2072 = vld [vmem:[#allocation3 + $0xb0] sm:$0xff]
      %v2073 = vld [vmem:[#allocation3 + $0xb8] sm:$0xff]
      %v2074 = vld [vmem:[#allocation2] sm:$0xff]
      %v2075 = vld [vmem:[#allocation2 + $0x8] sm:$0xff]
      %v2076 = vld [vmem:[#allocation2 + $0x10] sm:$0xff]
      %v2077 = vld [vmem:[#allocation2 + $0x18] sm:$0xff]
      %v2078 = vld [vmem:[#allocation2 + $0x20] sm:$0xff]
      %v2079 = vld [vmem:[#allocation2 + $0x28] sm:$0xff]
      %v2080 = vld [vmem:[#allocation2 + $0x30] sm:$0xff]
      %v2081 = vld [vmem:[#allocation2 + $0x38] sm:$0xff]
      %v2082 = vld [vmem:[#allocation2 + $0x40] sm:$0xff]
      %v2083 = vld [vmem:[#allocation2 + $0x48] sm:$0xff]
      %v2084 = vld [vmem:[#allocation2 + $0x50] sm:$0xff]
      %v2085 = vld [vmem:[#allocation2 + $0x58] sm:$0xff]
      %v2086 = vld [vmem:[#allocation2 + $0x60] sm:$0xff]
      %v2087 = vld [vmem:[#allocation2 + $0x68] sm:$0xff]
      %v2088 = vld [vmem:[#allocation2 + $0x70] sm:$0xff]
      %v2089 = vld [vmem:[#allocation2 + $0x78] sm:$0xff]
      %v2090 = vld [vmem:[#allocation2 + $0x80] sm:$0xff]
      %v2091 = vld [vmem:[#allocation2 + $0x88] sm:$0xff]
      %v2092 = vld [vmem:[#allocation2 + $0x90] sm:$0xff]
      %v2093 = vld [vmem:[#allocation2 + $0x98] sm:$0xff]
      %v2094 = vld [vmem:[#allocation2 + $0xa0] sm:$0xff]
      %v2095 = vld [vmem:[#allocation2 + $0xa8] sm:$0xff]
      %v2096 = vld [vmem:[#allocation2 + $0xb0] sm:$0xff]
      %v2097 = vld [vmem:[#allocation2 + $0xb8] sm:$0xff]
      %v2098 = vld [vmem:[%s464] sm:$0x1]
      %v2100 = vlaneseq
      %v2101 = vshrl.u32 %v2100, 7
      %v2102 = vsub.s32 0, %v2101
      %v2103 = vrot.slane %v2098, %v2102
      %2105 = vmatprep.subr.bf16.mxu0 0
      %2106 = vmatpush1.bf16.msra.mxu0 %v2074
      %2107 = vmatprep.subr.bf16.mxu0 0
      %2108 = vmatpush1.bf16.msra.mxu0 %v2075
      %2109 = vmatprep.subr.bf16.mxu0 0
      %2110 = vmatpush1.bf16.msra.mxu0 %v2076
      %2111 = vmatprep.subr.bf16.mxu0 0
      %2112 = vmatpush1.bf16.msra.mxu0 %v2077
      %2113 = vmatprep.subr.bf16.mxu0 0
      %2114 = vmatpush1.bf16.msra.mxu0 %v2078
      %2115 = vmatprep.subr.bf16.mxu0 0
      %2116 = vmatpush1.bf16.msra.mxu0 %v2079
      %2117 = vmatprep.subr.bf16.mxu0 0
      %2118 = vmatpush1.bf16.msra.mxu0 %v2080
      %2119 = vmatprep.subr.bf16.mxu0 0
      %2120 = vmatpush1.bf16.msra.mxu0 %v2081
      %2121 = vmatprep.subr.bf16.mxu0 0
      %2122 = vmatpush1.bf16.msra.mxu0 %v2082
      %2123 = vmatprep.subr.bf16.mxu0 0
      %2124 = vmatpush1.bf16.msra.mxu0 %v2083
      %2125 = vmatprep.subr.bf16.mxu0 0
      %2126 = vmatpush1.bf16.msra.mxu0 %v2084
      %2127 = vmatprep.subr.bf16.mxu0 0
      %2128 = vmatpush1.bf16.msra.mxu0 %v2085
      %2129 = vmatprep.subr.bf16.mxu0 0
      %2130 = vmatpush1.bf16.msra.mxu0 %v2086
      %2131 = vmatprep.subr.bf16.mxu0 0
      %2132 = vmatpush1.bf16.msra.mxu0 %v2087
      %2133 = vmatprep.subr.bf16.mxu0 0
      %2134 = vmatpush1.bf16.msra.mxu0 %v2088
      %2135 = vmatprep.subr.bf16.mxu0 0
      %2136 = vmatpush1.bf16.msra.mxu0 %v2089
      %2137 = vmatprep.mubr.bf16.mxu0 %v2051
      %2138 = vmatmul.mubr.bf16.gmra.mrb[0].mxu0 %v2050
      %v2139 = vpop.f32.mrb[0].mxu0
      %v2140 = vadd.f32 %v2103, %v2139
      %v2141 = vpop.f32.mrb[0].mxu0
      %v2142 = vpop.f32.mrb[0].mxu0
      %v2143 = vadd.f32 %v2103, %v2142
      %v2144 = vpop.f32.mrb[0].mxu0
      %2145 = vmatprep.mubr.bf16.mxu0 %v2054
      %2146 = vmatmul.mubr.bf16.gmra.mrb[0].mxu0 %v2053
      %v2147 = vpop.f32.mrb[0].mxu0
      %v2148 = vadd.f32 %v2103, %v2147
      %v2149 = vpop.f32.mrb[0].mxu0
      %v2150 = vpop.f32.mrb[0].mxu0
      %v2151 = vadd.f32 %v2103, %v2150
      %v2152 = vpop.f32.mrb[0].mxu0
      %2153 = vmatprep.mubr.bf16.mxu0 %v2057
      %2154 = vmatmul.mubr.bf16.gmra.mrb[0].mxu0 %v2056
      %v2155 = vpop.f32.mrb[0].mxu0
      %v2156 = vadd.f32 %v2103, %v2155
      %v2157 = vpop.f32.mrb[0].mxu0
      %v2158 = vpop.f32.mrb[0].mxu0
      %v2159 = vadd.f32 %v2103, %v2158
      %v2160 = vpop.f32.mrb[0].mxu0
      %2161 = vmatprep.mubr.bf16.mxu0 %v2060
      %2162 = vmatmul.mubr.bf16.gmra.mrb[0].mxu0 %v2059
      %v2163 = vpop.f32.mrb[0].mxu0
      %v2164 = vadd.f32 %v2103, %v2163
      %v2165 = vpop.f32.mrb[0].mxu0
      %v2166 = vpop.f32.mrb[0].mxu0
      %v2167 = vadd.f32 %v2103, %v2166
      %v2168 = vpop.f32.mrb[0].mxu0
      %2169 = vmatprep.mubr.bf16.mxu0 %v2063
      %2170 = vmatmul.mubr.bf16.gmra.mrb[0].mxu0 %v2062
      %v2171 = vpop.f32.mrb[0].mxu0
      %v2172 = vadd.f32 %v2103, %v2171
      %v2173 = vpop.f32.mrb[0].mxu0
      %v2174 = vpop.f32.mrb[0].mxu0
      %v2175 = vadd.f32 %v2103, %v2174
      %v2176 = vpop.f32.mrb[0].mxu0
      %2177 = vmatprep.mubr.bf16.mxu0 %v2066
      %2178 = vmatmul.mubr.bf16.gmra.mrb[0].mxu0 %v2065
      %v2179 = vpop.f32.mrb[0].mxu0
      %v2180 = vadd.f32 %v2103, %v2179
      %v2181 = vpop.f32.mrb[0].mxu0
      %v2182 = vpop.f32.mrb[0].mxu0
      %v2183 = vadd.f32 %v2103, %v2182
      %v2184 = vpop.f32.mrb[0].mxu0
      %2185 = vmatprep.mubr.bf16.mxu0 %v2069
      %2186 = vmatmul.mubr.bf16.gmra.mrb[0].mxu0 %v2068
      %v2187 = vpop.f32.mrb[0].mxu0
      %v2188 = vadd.f32 %v2103, %v2187
      %v2189 = vpop.f32.mrb[0].mxu0
      %v2190 = vpop.f32.mrb[0].mxu0
      %v2191 = vadd.f32 %v2103, %v2190
      %v2192 = vpop.f32.mrb[0].mxu0
      %2193 = vmatprep.mubr.bf16.mxu0 %v2072
      %2194 = vmatmul.mubr.bf16.gmra.mrb[0].mxu0 %v2071
      %v2195 = vpop.f32.mrb[0].mxu0
      %v2196 = vadd.f32 %v2103, %v2195
      %v2197 = vpop.f32.mrb[0].mxu0
      %v2198 = vpop.f32.mrb[0].mxu0
      %v2199 = vadd.f32 %v2103, %v2198
      %v2200 = vpop.f32.mrb[0].mxu0
      %2201 = vdwg.mxu0
      %2202 = vmatprep.subr.bf16.mxu0 0
      %2203 = vmatpush1.bf16.msra.mxu0 %v2090
      %2204 = vmatprep.subr.bf16.mxu0 0
      %2205 = vmatpush1.bf16.msra.mxu0 %v2091
      %2206 = vmatprep.subr.bf16.mxu0 0
      %2207 = vmatpush1.bf16.msra.mxu0 %v2092
      %2208 = vmatprep.subr.bf16.mxu0 0
      %2209 = vmatpush1.bf16.msra.mxu0 %v2093
      %2210 = vmatprep.subr.bf16.mxu0 0
      %2211 = vmatpush1.bf16.msra.mxu0 %v2094
      %2212 = vmatprep.subr.bf16.mxu0 0
      %2213 = vmatpush1.bf16.msra.mxu0 %v2095
      %2214 = vmatprep.subr.bf16.mxu0 0
      %2215 = vmatpush1.bf16.msra.mxu0 %v2096
      %2216 = vmatprep.subr.bf16.mxu0 0
      %2217 = vmatpush1.bf16.msra.mxu0 %v2097
      %2218 = vmatprep.subr.bf16.mxu0 0
      %2219 = vmatpush1.bf16.msra.mxu0 0
      %2220 = vmatprep.subr.bf16.mxu0 0
      %2221 = vmatpush1.bf16.msra.mxu0 0
      %2222 = vmatprep.subr.bf16.mxu0 0
      %2223 = vmatpush1.bf16.msra.mxu0 0
      %2224 = vmatprep.subr.bf16.mxu0 0
      %2225 = vmatpush1.bf16.msra.mxu0 0
      %2226 = vmatprep.subr.bf16.mxu0 0
      %2227 = vmatpush1.bf16.msra.mxu0 0
      %2228 = vmatprep.subr.bf16.mxu0 0
      %2229 = vmatpush1.bf16.msra.mxu0 0
      %2230 = vmatprep.subr.bf16.mxu0 0
      %2231 = vmatpush1.bf16.msra.mxu0 0
      %2232 = vmatprep.subr.bf16.mxu0 0
      %2233 = vmatpush1.bf16.msra.mxu0 0
      %2234 = vmatprep.mubr.bf16.mxu0 0
      %2235 = vmatmul.mubr.bf16.gmra.mrb[0].mxu0 %v2052
      %v2236 = vpop.f32.mrb[0].mxu0
      %v2237 = vadd.f32 %v2140, %v2236
      %v2238 = vpop.f32.mrb[0].mxu0
      %v2239 = vpop.f32.mrb[0].mxu0
      %v2240 = vadd.f32 %v2143, %v2239
      %v2241 = vpop.f32.mrb[0].mxu0
      %2242 = vmatprep.mubr.bf16.mxu0 0
      %2243 = vmatmul.mubr.bf16.gmra.mrb[0].mxu0 %v2055
      %v2244 = vpop.f32.mrb[0].mxu0
      %v2245 = vadd.f32 %v2148, %v2244
      %v2246 = vpop.f32.mrb[0].mxu0
      %v2247 = vpop.f32.mrb[0].mxu0
      %v2248 = vadd.f32 %v2151, %v2247
      %v2249 = vpop.f32.mrb[0].mxu0
      %2250 = vmatprep.mubr.bf16.mxu0 0
      %2251 = vmatmul.mubr.bf16.gmra.mrb[0].mxu0 %v2058
      %v2252 = vpop.f32.mrb[0].mxu0
      %v2253 = vadd.f32 %v2156, %v2252
      %v2254 = vpop.f32.mrb[0].mxu0
      %v2255 = vpop.f32.mrb[0].mxu0
      %v2256 = vadd.f32 %v2159, %v2255
      %v2257 = vpop.f32.mrb[0].mxu0
      %2258 = vmatprep.mubr.bf16.mxu0 0
      %2259 = vmatmul.mubr.bf16.gmra.mrb[0].mxu0 %v2061
      %v2260 = vpop.f32.mrb[0].mxu0
      %v2261 = vadd.f32 %v2164, %v2260
      %v2262 = vpop.f32.mrb[0].mxu0
      %v2263 = vpop.f32.mrb[0].mxu0
      %v2264 = vadd.f32 %v2167, %v2263
      %v2265 = vpop.f32.mrb[0].mxu0
      %2266 = vmatprep.mubr.bf16.mxu0 0
      %2267 = vmatmul.mubr.bf16.gmra.mrb[0].mxu0 %v2064
      %v2268 = vpop.f32.mrb[0].mxu0
      %v2269 = vadd.f32 %v2172, %v2268
      %v2270 = vpop.f32.mrb[0].mxu0
      %v2271 = vpop.f32.mrb[0].mxu0
      %v2272 = vadd.f32 %v2175, %v2271
      %v2273 = vpop.f32.mrb[0].mxu0
      %2274 = vmatprep.mubr.bf16.mxu0 0
      %2275 = vmatmul.mubr.bf16.gmra.mrb[0].mxu0 %v2067
      %v2276 = vpop.f32.mrb[0].mxu0
      %v2277 = vadd.f32 %v2180, %v2276
      %v2278 = vpop.f32.mrb[0].mxu0
      %v2279 = vpop.f32.mrb[0].mxu0
      %v2280 = vadd.f32 %v2183, %v2279
      %v2281 = vpop.f32.mrb[0].mxu0
      %2282 = vmatprep.mubr.bf16.mxu0 0
      %2283 = vmatmul.mubr.bf16.gmra.mrb[0].mxu0 %v2070
      %v2284 = vpop.f32.mrb[0].mxu0
      %v2285 = vadd.f32 %v2188, %v2284
      %v2286 = vpop.f32.mrb[0].mxu0
      %v2287 = vpop.f32.mrb[0].mxu0
      %v2288 = vadd.f32 %v2191, %v2287
      %v2289 = vpop.f32.mrb[0].mxu0
      %2290 = vmatprep.mubr.bf16.mxu0 0
      %2291 = vmatmul.mubr.bf16.gmra.mrb[0].mxu0 %v2073
      %v2292 = vpop.f32.mrb[0].mxu0
      %v2293 = vadd.f32 %v2196, %v2292
      %v2294 = vpop.f32.mrb[0].mxu0
      %v2295 = vpop.f32.mrb[0].mxu0
      %v2296 = vadd.f32 %v2199, %v2295
      %v2297 = vpop.f32.mrb[0].mxu0
      %2298 = vdwg.mxu0
      %2299 = vadd.xlane.f32.xlu0 %v2237
      %v2300 = vpop.xlane.xlu0 %2299
      %2301 = vadd.xlane.f32.xlu0 %v2240
      %v2302 = vpop.xlane.xlu0 %2301
      %2303 = vadd.xlane.f32.xlu0 %v2245
      %v2304 = vpop.xlane.xlu0 %2303
      %2305 = vadd.xlane.f32.xlu0 %v2248
      %v2306 = vpop.xlane.xlu0 %2305
      %2307 = vadd.xlane.f32.xlu0 %v2253
      %v2308 = vpop.xlane.xlu0 %2307
      %2309 = vadd.xlane.f32.xlu0 %v2256
      %v2310 = vpop.xlane.xlu0 %2309
      %2311 = vadd.xlane.f32.xlu0 %v2261
      %v2312 = vpop.xlane.xlu0 %2311
      %2313 = vadd.xlane.f32.xlu0 %v2264
      %v2314 = vpop.xlane.xlu0 %2313
      %2315 = vadd.xlane.f32.xlu0 %v2269
      %v2316 = vpop.xlane.xlu0 %2315
      %2317 = vadd.xlane.f32.xlu0 %v2272
      %v2318 = vpop.xlane.xlu0 %2317
      %2319 = vadd.xlane.f32.xlu0 %v2277
      %v2320 = vpop.xlane.xlu0 %2319
      %2321 = vadd.xlane.f32.xlu0 %v2280
      %v2322 = vpop.xlane.xlu0 %2321
      %2323 = vadd.xlane.f32.xlu0 %v2285
      %v2324 = vpop.xlane.xlu0 %2323
      %2325 = vadd.xlane.f32.xlu0 %v2288
      %v2326 = vpop.xlane.xlu0 %2325
      %2327 = vadd.xlane.f32.xlu0 %v2293
      %v2328 = vpop.xlane.xlu0 %2327
      %2329 = vadd.xlane.f32.xlu0 %v2296
      %v2330 = vpop.xlane.xlu0 %2329
      %v2331 = vrcp.pop 128.0
      %v2332 = vmul.f32 %v2300, %v2331
      %v2333 = vmul.f32 %v2302, %v2331
      %v2334 = vmul.f32 %v2304, %v2331
      %v2335 = vmul.f32 %v2306, %v2331
      %v2336 = vmul.f32 %v2308, %v2331
      %v2337 = vmul.f32 %v2310, %v2331
      %v2338 = vmul.f32 %v2312, %v2331
      %v2339 = vmul.f32 %v2314, %v2331
      %v2340 = vmul.f32 %v2316, %v2331
      %v2341 = vmul.f32 %v2318, %v2331
      %v2342 = vmul.f32 %v2320, %v2331
      %v2343 = vmul.f32 %v2322, %v2331
      %v2344 = vmul.f32 %v2324, %v2331
      %v2345 = vmul.f32 %v2326, %v2331
      %v2346 = vmul.f32 %v2328, %v2331
      %v2347 = vmul.f32 %v2330, %v2331
      %v2348 = vsub.f32 %v2237, %v2332
      %v2349 = vsub.f32 %v2240, %v2333
      %v2350 = vsub.f32 %v2245, %v2334
      %v2351 = vsub.f32 %v2248, %v2335
      %v2352 = vsub.f32 %v2253, %v2336
      %v2353 = vsub.f32 %v2256, %v2337
      %v2354 = vsub.f32 %v2261, %v2338
      %v2355 = vsub.f32 %v2264, %v2339
      %v2356 = vsub.f32 %v2269, %v2340
      %v2357 = vsub.f32 %v2272, %v2341
      %v2358 = vsub.f32 %v2277, %v2342
      %v2359 = vsub.f32 %v2280, %v2343
      %v2360 = vsub.f32 %v2285, %v2344
      %v2361 = vsub.f32 %v2288, %v2345
      %v2362 = vsub.f32 %v2293, %v2346
      %v2363 = vsub.f32 %v2296, %v2347
      %v2364 = vmul.f32 %v2348, %v2348
      %v2365 = vmul.f32 %v2349, %v2349
      %v2366 = vmul.f32 %v2350, %v2350
      %v2367 = vmul.f32 %v2351, %v2351
      %v2368 = vmul.f32 %v2352, %v2352
      %v2369 = vmul.f32 %v2353, %v2353
      %v2370 = vmul.f32 %v2354, %v2354
      %v2371 = vmul.f32 %v2355, %v2355
      %v2372 = vmul.f32 %v2356, %v2356
      %v2373 = vmul.f32 %v2357, %v2357
      %v2374 = vmul.f32 %v2358, %v2358
      %v2375 = vmul.f32 %v2359, %v2359
      %v2376 = vmul.f32 %v2360, %v2360
      %v2377 = vmul.f32 %v2361, %v2361
      %v2378 = vmul.f32 %v2362, %v2362
      %v2379 = vmul.f32 %v2363, %v2363
      %2380 = vadd.xlane.f32.xlu0 %v2364
      %v2381 = vpop.xlane.xlu0 %2380
      %2382 = vadd.xlane.f32.xlu0 %v2365
      %v2383 = vpop.xlane.xlu0 %2382
      %2384 = vadd.xlane.f32.xlu0 %v2366
      %v2385 = vpop.xlane.xlu0 %2384
      %2386 = vadd.xlane.f32.xlu0 %v2367
      %v2387 = vpop.xlane.xlu0 %2386
      %2388 = vadd.xlane.f32.xlu0 %v2368
      %v2389 = vpop.xlane.xlu0 %2388
      %2390 = vadd.xlane.f32.xlu0 %v2369
      %v2391 = vpop.xlane.xlu0 %2390
      %2392 = vadd.xlane.f32.xlu0 %v2370
      %v2393 = vpop.xlane.xlu0 %2392
      %2394 = vadd.xlane.f32.xlu0 %v2371
      %v2395 = vpop.xlane.xlu0 %2394
      %2396 = vadd.xlane.f32.xlu0 %v2372
      %v2397 = vpop.xlane.xlu0 %2396
      %2398 = vadd.xlane.f32.xlu0 %v2373
      %v2399 = vpop.xlane.xlu0 %2398
      %2400 = vadd.xlane.f32.xlu0 %v2374
      %v2401 = vpop.xlane.xlu0 %2400
      %2402 = vadd.xlane.f32.xlu0 %v2375
      %v2403 = vpop.xlane.xlu0 %2402
      %2404 = vadd.xlane.f32.xlu0 %v2376
      %v2405 = vpop.xlane.xlu0 %2404
      %2406 = vadd.xlane.f32.xlu0 %v2377
      %v2407 = vpop.xlane.xlu0 %2406
      %2408 = vadd.xlane.f32.xlu0 %v2378
      %v2409 = vpop.xlane.xlu0 %2408
      %2410 = vadd.xlane.f32.xlu0 %v2379
      %v2411 = vpop.xlane.xlu0 %2410
      %v2412 = vmul.f32 %v2381, %v2331
      %v2413 = vmul.f32 %v2383, %v2331
      %v2414 = vmul.f32 %v2385, %v2331
      %v2415 = vmul.f32 %v2387, %v2331
      %v2416 = vmul.f32 %v2389, %v2331
      %v2417 = vmul.f32 %v2391, %v2331
      %v2418 = vmul.f32 %v2393, %v2331
      %v2419 = vmul.f32 %v2395, %v2331
      %v2420 = vmul.f32 %v2397, %v2331
      %v2421 = vmul.f32 %v2399, %v2331
      %v2422 = vmul.f32 %v2401, %v2331
      %v2423 = vmul.f32 %v2403, %v2331
      %v2424 = vmul.f32 %v2405, %v2331
      %v2425 = vmul.f32 %v2407, %v2331
      %v2426 = vmul.f32 %v2409, %v2331
      %v2427 = vmul.f32 %v2411, %v2331
      %v2428 = vadd.f32 %v2412, 1e-05
      %v2429 = vadd.f32 %v2413, 1e-05
      %v2430 = vadd.f32 %v2414, 1e-05
      %v2431 = vadd.f32 %v2415, 1e-05
      %v2432 = vadd.f32 %v2416, 1e-05
      %v2433 = vadd.f32 %v2417, 1e-05
      %v2434 = vadd.f32 %v2418, 1e-05
      %v2435 = vadd.f32 %v2419, 1e-05
      %v2436 = vadd.f32 %v2420, 1e-05
      %v2437 = vadd.f32 %v2421, 1e-05
      %v2438 = vadd.f32 %v2422, 1e-05
      %v2439 = vadd.f32 %v2423, 1e-05
      %v2440 = vadd.f32 %v2424, 1e-05
      %v2441 = vadd.f32 %v2425, 1e-05
      %v2442 = vadd.f32 %v2426, 1e-05
      %v2443 = vadd.f32 %v2427, 1e-05
      %v2444 = vrsqrt.pop %v2428
      %v2445 = vrsqrt.pop %v2429
      %v2446 = vrsqrt.pop %v2430
      %v2447 = vrsqrt.pop %v2431
      %v2448 = vrsqrt.pop %v2432
      %v2449 = vrsqrt.pop %v2433
      %v2450 = vrsqrt.pop %v2434
      %v2451 = vrsqrt.pop %v2435
      %v2452 = vrsqrt.pop %v2436
      %v2453 = vrsqrt.pop %v2437
      %v2454 = vrsqrt.pop %v2438
      %v2455 = vrsqrt.pop %v2439
      %v2456 = vrsqrt.pop %v2440
      %v2457 = vrsqrt.pop %v2441
      %v2458 = vrsqrt.pop %v2442
      %v2459 = vrsqrt.pop %v2443
      %v2460 = vmul.f32 %v2348, %v2444
      %v2461 = vmul.f32 %v2349, %v2445
      %v2462 = vmul.f32 %v2350, %v2446
      %v2463 = vmul.f32 %v2351, %v2447
      %v2464 = vmul.f32 %v2352, %v2448
      %v2465 = vmul.f32 %v2353, %v2449
      %v2466 = vmul.f32 %v2354, %v2450
      %v2467 = vmul.f32 %v2355, %v2451
      %v2468 = vmul.f32 %v2356, %v2452
      %v2469 = vmul.f32 %v2357, %v2453
      %v2470 = vmul.f32 %v2358, %v2454
      %v2471 = vmul.f32 %v2359, %v2455
      %v2472 = vmul.f32 %v2360, %v2456
      %v2473 = vmul.f32 %v2361, %v2457
      %v2474 = vmul.f32 %v2362, %v2458
      %v2475 = vmul.f32 %v2363, %v2459
      %v2476 = vld [vmem:[%s468] sm:$0x1]
      %v2478 = vlaneseq
      %v2479 = vshrl.u32 %v2478, 7
      %v2480 = vsub.s32 0, %v2479
      %v2481 = vrot.slane %v2476, %v2480
      %v2483 = vmul.f32 %v2460, %v2481
      %v2484 = vmul.f32 %v2461, %v2481
      %v2485 = vmul.f32 %v2462, %v2481
      %v2486 = vmul.f32 %v2463, %v2481
      %v2487 = vmul.f32 %v2464, %v2481
      %v2488 = vmul.f32 %v2465, %v2481
      %v2489 = vmul.f32 %v2466, %v2481
      %v2490 = vmul.f32 %v2467, %v2481
      %v2491 = vmul.f32 %v2468, %v2481
      %v2492 = vmul.f32 %v2469, %v2481
      %v2493 = vmul.f32 %v2470, %v2481
      %v2494 = vmul.f32 %v2471, %v2481
      %v2495 = vmul.f32 %v2472, %v2481
      %v2496 = vmul.f32 %v2473, %v2481
      %v2497 = vmul.f32 %v2474, %v2481
      %v2498 = vmul.f32 %v2475, %v2481
      %v2499 = vld [vmem:[%s472] sm:$0x1]
      %v2501 = vlaneseq
      %v2502 = vshrl.u32 %v2501, 7
      %v2503 = vsub.s32 0, %v2502
      %v2504 = vrot.slane %v2499, %v2503
      %v2506 = vadd.f32 %v2483, %v2504
      %v2507 = vadd.f32 %v2484, %v2504
      %v2508 = vadd.f32 %v2485, %v2504
      %v2509 = vadd.f32 %v2486, %v2504
      %v2510 = vadd.f32 %v2487, %v2504
      %v2511 = vadd.f32 %v2488, %v2504
      %v2512 = vadd.f32 %v2489, %v2504
      %v2513 = vadd.f32 %v2490, %v2504
      %v2514 = vadd.f32 %v2491, %v2504
      %v2515 = vadd.f32 %v2492, %v2504
      %v2516 = vadd.f32 %v2493, %v2504
      %v2517 = vadd.f32 %v2494, %v2504
      %v2518 = vadd.f32 %v2495, %v2504
      %v2519 = vadd.f32 %v2496, %v2504
      %v2520 = vadd.f32 %v2497, %v2504
      %v2521 = vadd.f32 %v2498, %v2504
      %2522 = vmatprep.subr.mxu0 0.0
      %2523 = vmatpush1.msra.mxu0 %v2506
      %2524 = vmatprep.subr.mxu0 0.0
      %2525 = vmatpush1.msra.mxu0 %v2507
      %2526 = vmatprep.subr.mxu0 0.0
      %2527 = vmatpush1.msra.mxu0 %v2508
      %2528 = vmatprep.subr.mxu0 0.0
      %2529 = vmatpush1.msra.mxu0 %v2509
      %2530 = vmatprep.subr.mxu0 0.0
      %2531 = vmatpush1.msra.mxu0 %v2510
      %2532 = vmatprep.subr.mxu0 0.0
      %2533 = vmatpush1.msra.mxu0 %v2511
      %2534 = vmatprep.subr.mxu0 0.0
      %2535 = vmatpush1.msra.mxu0 %v2512
      %2536 = vmatprep.subr.mxu0 0.0
      %2537 = vmatpush1.msra.mxu0 %v2513
      %2538 = vmatprep.subr.mxu0 0.0
      %2539 = vmatpush1.msra.mxu0 %v2514
      %2540 = vmatprep.subr.mxu0 0.0
      %2541 = vmatpush1.msra.mxu0 %v2515
      %2542 = vmatprep.subr.mxu0 0.0
      %2543 = vmatpush1.msra.mxu0 %v2516
      %2544 = vmatprep.subr.mxu0 0.0
      %2545 = vmatpush1.msra.mxu0 %v2517
      %2546 = vmatprep.subr.mxu0 0.0
      %2547 = vmatpush1.msra.mxu0 %v2518
      %2548 = vmatprep.subr.mxu0 0.0
      %2549 = vmatpush1.msra.mxu0 %v2519
      %2550 = vmatprep.subr.mxu0 0.0
      %2551 = vmatpush1.msra.mxu0 %v2520
      %2552 = vmatprep.subr.mxu0 0.0
      %2553 = vmatpush1.msra.mxu0 %v2521
      %2554 = vmatprep.subr.mxu0 0.0
      %2555 = vmatpush1.msra.mxu0 0.0
      %2556 = vmatprep.subr.mxu0 0.0
      %2557 = vmatpush1.msra.mxu0 0.0
      %2558 = vmatprep.subr.mxu0 0.0
      %2559 = vmatpush1.msra.mxu0 0.0
      %2560 = vmatprep.subr.mxu0 0.0
      %2561 = vmatpush1.msra.mxu0 0.0
      %2562 = vmatprep.subr.mxu0 0.0
      %2563 = vmatpush1.msra.mxu0 0.0
      %2564 = vmatprep.subr.mxu0 0.0
      %2565 = vmatpush1.msra.mxu0 0.0
      %2566 = vmatprep.subr.mxu0 0.0
      %2567 = vmatpush1.msra.mxu0 0.0
      %2568 = vmatprep.subr.mxu0 0.0
      %2569 = vmatpush1.msra.mxu0 0.0
      %2570 = vmatprep.subr.mxu0 0.0
      %2571 = vmatpush1.msra.mxu0 0.0
      %2572 = vmatprep.subr.mxu0 0.0
      %2573 = vmatpush1.msra.mxu0 0.0
      %2574 = vmatprep.subr.mxu0 0.0
      %2575 = vmatpush1.msra.mxu0 0.0
      %2576 = vmatprep.subr.mxu0 0.0
      %2577 = vmatpush1.msra.mxu0 0.0
      %2578 = vmatprep.subr.mxu0 0.0
      %2579 = vmatpush1.msra.mxu0 0.0
      %2580 = vmatprep.subr.mxu0 0.0
      %2581 = vmatpush1.msra.mxu0 0.0
      %2582 = vmatprep.subr.mxu0 0.0
      %2583 = vmatpush1.msra.mxu0 0.0
      %2584 = vmatprep.subr.mxu0 0.0
      %2585 = vmatpush1.msra.mxu0 0.0
      %2586 = vmatprep.mubr.f32.mxu0 0.0
      %2587 = vmatmul.mubr.f32.gmra.mrb[0].mxu0 %v511
      %v2588 = vpop.f32.mrb[0].mxu0
      %v2589 = vadd.f32 0.0, %v2588
      %v2590 = vpop.f32.mrb[0].mxu0
      %2591 = vdwg.mxu0
      %v2592 = vpack.c.bf16 %v2507, %v2506
      %v2593 = vpack.c.bf16 %v2509, %v2508
      %v2594 = vpack.c.bf16 %v2511, %v2510
      %v2595 = vpack.c.bf16 %v2513, %v2512
      %v2596 = vpack.c.bf16 %v2515, %v2514
      %v2597 = vpack.c.bf16 %v2517, %v2516
      %v2598 = vpack.c.bf16 %v2519, %v2518
      %v2599 = vpack.c.bf16 %v2521, %v2520
      %s2600 = scalar_lea.vmem %s451, 192
      %v2601 = vld [vmem:[%s2600] sm:$0xff]
      %v2602 = vld [vmem:[%s2600 + $0x8] sm:$0xf]
      %v2603 = vld [vmem:[%s2600 + $0xc] sm:$0xff]
      %v2604 = vld [vmem:[%s2600 + $0x14] sm:$0xf]
      %v2605 = vld [vmem:[%s2600 + $0x18] sm:$0xff]
      %v2606 = vld [vmem:[%s2600 + $0x20] sm:$0xf]
      %v2607 = vld [vmem:[%s2600 + $0x24] sm:$0xff]
      %v2608 = vld [vmem:[%s2600 + $0x2c] sm:$0xf]
      %v2609 = vld [vmem:[%s2600 + $0x30] sm:$0xff]
      %v2610 = vld [vmem:[%s2600 + $0x38] sm:$0xf]
      %v2611 = vld [vmem:[%s2600 + $0x3c] sm:$0xff]
      %v2612 = vld [vmem:[%s2600 + $0x44] sm:$0xf]
      %v2613 = vld [vmem:[%s2600 + $0x48] sm:$0xff]
      %v2614 = vld [vmem:[%s2600 + $0x50] sm:$0xf]
      %v2615 = vld [vmem:[%s2600 + $0x54] sm:$0xff]
      %v2616 = vld [vmem:[%s2600 + $0x5c] sm:$0xf]
      %v2617 = vld [vmem:[%s2600 + $0x60] sm:$0xff]
      %v2618 = vld [vmem:[%s2600 + $0x68] sm:$0xf]
      %v2619 = vld [vmem:[%s2600 + $0x6c] sm:$0xff]
      %v2620 = vld [vmem:[%s2600 + $0x74] sm:$0xf]
      %v2621 = vld [vmem:[%s2600 + $0x78] sm:$0xff]
      %v2622 = vld [vmem:[%s2600 + $0x80] sm:$0xf]
      %v2623 = vld [vmem:[%s2600 + $0x84] sm:$0xff]
      %v2624 = vld [vmem:[%s2600 + $0x8c] sm:$0xf]
      %v2625 = vld [vmem:[%s2600 + $0x90] sm:$0xff]
      %v2626 = vld [vmem:[%s2600 + $0x98] sm:$0xf]
      %v2627 = vld [vmem:[%s2600 + $0x9c] sm:$0xff]
      %v2628 = vld [vmem:[%s2600 + $0xa4] sm:$0xf]
      %v2629 = vld [vmem:[%s2600 + $0xa8] sm:$0xff]
      %v2630 = vld [vmem:[%s2600 + $0xb0] sm:$0xf]
      %v2631 = vld [vmem:[%s2600 + $0xb4] sm:$0xff]
      %v2632 = vld [vmem:[%s2600 + $0xbc] sm:$0xf]
      %v2665 = vunpack.c.l.b16 %v2601
      %v2666 = vunpack.c.h.b16 %v2601
      %v2667 = vunpack.c.l.b16 %v2602
      %v2668 = vunpack.c.l.b16 %v2603
      %v2669 = vunpack.c.h.b16 %v2603
      %v2670 = vunpack.c.l.b16 %v2604
      %v2671 = vunpack.c.l.b16 %v2605
      %v2672 = vunpack.c.h.b16 %v2605
      %v2673 = vunpack.c.l.b16 %v2606
      %v2674 = vunpack.c.l.b16 %v2607
      %v2675 = vunpack.c.h.b16 %v2607
      %v2676 = vunpack.c.l.b16 %v2608
      %v2677 = vunpack.c.l.b16 %v2609
      %v2678 = vunpack.c.h.b16 %v2609
      %v2679 = vunpack.c.l.b16 %v2610
      %v2680 = vunpack.c.l.b16 %v2611
      %v2681 = vunpack.c.h.b16 %v2611
      %v2682 = vunpack.c.l.b16 %v2612
      %v2683 = vunpack.c.l.b16 %v2613
      %v2684 = vunpack.c.h.b16 %v2613
      %v2685 = vunpack.c.l.b16 %v2614
      %v2686 = vunpack.c.l.b16 %v2615
      %v2687 = vunpack.c.h.b16 %v2615
      %v2688 = vunpack.c.l.b16 %v2616
      %v2689 = vunpack.c.l.b16 %v2617
      %v2690 = vunpack.c.h.b16 %v2617
      %v2691 = vunpack.c.l.b16 %v2618
      %v2692 = vunpack.c.l.b16 %v2619
      %v2693 = vunpack.c.h.b16 %v2619
      %v2694 = vunpack.c.l.b16 %v2620
      %v2695 = vunpack.c.l.b16 %v2621
      %v2696 = vunpack.c.h.b16 %v2621
      %v2697 = vunpack.c.l.b16 %v2622
      %v2698 = vunpack.c.l.b16 %v2623
      %v2699 = vunpack.c.h.b16 %v2623
      %v2700 = vunpack.c.l.b16 %v2624
      %v2701 = vunpack.c.l.b16 %v2625
      %v2702 = vunpack.c.h.b16 %v2625
      %v2703 = vunpack.c.l.b16 %v2626
      %v2704 = vunpack.c.l.b16 %v2627
      %v2705 = vunpack.c.h.b16 %v2627
      %v2706 = vunpack.c.l.b16 %v2628
      %v2707 = vunpack.c.l.b16 %v2629
      %v2708 = vunpack.c.h.b16 %v2629
      %v2709 = vunpack.c.l.b16 %v2630
      %v2710 = vunpack.c.l.b16 %v2631
      %v2711 = vunpack.c.h.b16 %v2631
      %v2712 = vunpack.c.l.b16 %v2632
      %v2713 = vpack.c.b16 %v2668, %v2665
      %v2714 = vpack.c.b16 %v2669, %v2666
      %v2715 = vpack.c.b16 %v2670, %v2667
      %v2716 = vpack.c.b16 %v2674, %v2671
      %v2717 = vpack.c.b16 %v2675, %v2672
      %v2718 = vpack.c.b16 %v2676, %v2673
      %v2719 = vpack.c.b16 %v2680, %v2677
      %v2720 = vpack.c.b16 %v2681, %v2678
      %v2721 = vpack.c.b16 %v2682, %v2679
      %v2722 = vpack.c.b16 %v2686, %v2683
      %v2723 = vpack.c.b16 %v2687, %v2684
      %v2724 = vpack.c.b16 %v2688, %v2685
      %v2725 = vpack.c.b16 %v2692, %v2689
      %v2726 = vpack.c.b16 %v2693, %v2690
      %v2727 = vpack.c.b16 %v2694, %v2691
      %v2728 = vpack.c.b16 %v2698, %v2695
      %v2729 = vpack.c.b16 %v2699, %v2696
      %v2730 = vpack.c.b16 %v2700, %v2697
      %v2731 = vpack.c.b16 %v2704, %v2701
      %v2732 = vpack.c.b16 %v2705, %v2702
      %v2733 = vpack.c.b16 %v2706, %v2703
      %v2734 = vpack.c.b16 %v2710, %v2707
      %v2735 = vpack.c.b16 %v2711, %v2708
      %v2736 = vpack.c.b16 %v2712, %v2709
      %2761 = vmatprep.subr.bf16.mxu0 %v2714
      %2762 = vmatpush1.bf16.msra.mxu0 %v2713
      %2763 = vmatprep.subr.bf16.mxu0 %v2717
      %2764 = vmatpush1.bf16.msra.mxu0 %v2716
      %2765 = vmatprep.subr.bf16.mxu0 %v2720
      %2766 = vmatpush1.bf16.msra.mxu0 %v2719
      %2767 = vmatprep.subr.bf16.mxu0 %v2723
      %2768 = vmatpush1.bf16.msra.mxu0 %v2722
      %2769 = vmatprep.subr.bf16.mxu0 %v2726
      %2770 = vmatpush1.bf16.msra.mxu0 %v2725
      %2771 = vmatprep.subr.bf16.mxu0 %v2729
      %2772 = vmatpush1.bf16.msra.mxu0 %v2728
      %2773 = vmatprep.subr.bf16.mxu0 %v2732
      %2774 = vmatpush1.bf16.msra.mxu0 %v2731
      %2775 = vmatprep.subr.bf16.mxu0 %v2735
      %2776 = vmatpush1.bf16.msra.mxu0 %v2734
      %2777 = vmatprep.subr.bf16.mxu0 0
      %2778 = vmatpush1.bf16.msra.mxu0 0
      %2779 = vmatprep.subr.bf16.mxu0 0
      %2780 = vmatpush1.bf16.msra.mxu0 0
      %2781 = vmatprep.subr.bf16.mxu0 0
      %2782 = vmatpush1.bf16.msra.mxu0 0
      %2783 = vmatprep.subr.bf16.mxu0 0
      %2784 = vmatpush1.bf16.msra.mxu0 0
      %2785 = vmatprep.subr.bf16.mxu0 0
      %2786 = vmatpush1.bf16.msra.mxu0 0
      %2787 = vmatprep.subr.bf16.mxu0 0
      %2788 = vmatpush1.bf16.msra.mxu0 0
      %2789 = vmatprep.subr.bf16.mxu0 0
      %2790 = vmatpush1.bf16.msra.mxu0 0
      %2791 = vmatprep.subr.bf16.mxu0 0
      %2792 = vmatpush1.bf16.msra.mxu0 0
      %2793 = vmatprep.mubr.bf16.mxu0 0
      %2794 = vmatmul.mubr.bf16.gmra.mrb[0].mxu0 %v2592
      %v2795 = vpop.f32.mrb[0].mxu0
      %v2796 = vadd.f32 0.0, %v2795
      %v2797 = vpop.f32.mrb[0].mxu0
      %v2798 = vadd.f32 0.0, %v2797
      %v2799 = vpop.f32.mrb[0].mxu0
      %v2800 = vadd.f32 0.0, %v2799
      %v2801 = vpop.f32.mrb[0].mxu0
      %v2802 = vadd.f32 0.0, %v2801
      %2803 = vmatprep.mubr.bf16.mxu0 0
      %2804 = vmatmul.mubr.bf16.gmra.mrb[0].mxu0 %v2593
      %v2805 = vpop.f32.mrb[0].mxu0
      %v2806 = vadd.f32 0.0, %v2805
      %v2807 = vpop.f32.mrb[0].mxu0
      %v2808 = vadd.f32 0.0, %v2807
      %v2809 = vpop.f32.mrb[0].mxu0
      %v2810 = vadd.f32 0.0, %v2809
      %v2811 = vpop.f32.mrb[0].mxu0
      %v2812 = vadd.f32 0.0, %v2811
      %2813 = vmatprep.mubr.bf16.mxu0 0
      %2814 = vmatmul.mubr.bf16.gmra.mrb[0].mxu0 %v2594
      %v2815 = vpop.f32.mrb[0].mxu0
      %v2816 = vadd.f32 0.0, %v2815
      %v2817 = vpop.f32.mrb[0].mxu0
      %v2818 = vadd.f32 0.0, %v2817
      %v2819 = vpop.f32.mrb[0].mxu0
      %v2820 = vadd.f32 0.0, %v2819
      %v2821 = vpop.f32.mrb[0].mxu0
      %v2822 = vadd.f32 0.0, %v2821
      %2823 = vmatprep.mubr.bf16.mxu0 0
      %2824 = vmatmul.mubr.bf16.gmra.mrb[0].mxu0 %v2595
      %v2825 = vpop.f32.mrb[0].mxu0
      %v2826 = vadd.f32 0.0, %v2825
      %v2827 = vpop.f32.mrb[0].mxu0
      %v2828 = vadd.f32 0.0, %v2827
      %v2829 = vpop.f32.mrb[0].mxu0
      %v2830 = vadd.f32 0.0, %v2829
      %v2831 = vpop.f32.mrb[0].mxu0
      %v2832 = vadd.f32 0.0, %v2831
      %2833 = vmatprep.mubr.bf16.mxu0 0
      %2834 = vmatmul.mubr.bf16.gmra.mrb[0].mxu0 %v2596
      %v2835 = vpop.f32.mrb[0].mxu0
      %v2836 = vadd.f32 0.0, %v2835
      %v2837 = vpop.f32.mrb[0].mxu0
      %v2838 = vadd.f32 0.0, %v2837
      %v2839 = vpop.f32.mrb[0].mxu0
      %v2840 = vadd.f32 0.0, %v2839
      %v2841 = vpop.f32.mrb[0].mxu0
      %v2842 = vadd.f32 0.0, %v2841
      %2843 = vmatprep.mubr.bf16.mxu0 0
      %2844 = vmatmul.mubr.bf16.gmra.mrb[0].mxu0 %v2597
      %v2845 = vpop.f32.mrb[0].mxu0
      %v2846 = vadd.f32 0.0, %v2845
      %v2847 = vpop.f32.mrb[0].mxu0
      %v2848 = vadd.f32 0.0, %v2847
      %v2849 = vpop.f32.mrb[0].mxu0
      %v2850 = vadd.f32 0.0, %v2849
      %v2851 = vpop.f32.mrb[0].mxu0
      %v2852 = vadd.f32 0.0, %v2851
      %2853 = vmatprep.mubr.bf16.mxu0 0
      %2854 = vmatmul.mubr.bf16.gmra.mrb[0].mxu0 %v2598
      %v2855 = vpop.f32.mrb[0].mxu0
      %v2856 = vadd.f32 0.0, %v2855
      %v2857 = vpop.f32.mrb[0].mxu0
      %v2858 = vadd.f32 0.0, %v2857
      %v2859 = vpop.f32.mrb[0].mxu0
      %v2860 = vadd.f32 0.0, %v2859
      %v2861 = vpop.f32.mrb[0].mxu0
      %v2862 = vadd.f32 0.0, %v2861
      %2863 = vmatprep.mubr.bf16.mxu0 0
      %2864 = vmatmul.mubr.bf16.gmra.mrb[0].mxu0 %v2599
      %v2865 = vpop.f32.mrb[0].mxu0
      %v2866 = vadd.f32 0.0, %v2865
      %v2867 = vpop.f32.mrb[0].mxu0
      %v2868 = vadd.f32 0.0, %v2867
      %v2869 = vpop.f32.mrb[0].mxu0
      %v2870 = vadd.f32 0.0, %v2869
      %v2871 = vpop.f32.mrb[0].mxu0
      %v2872 = vadd.f32 0.0, %v2871
      %2873 = vdwg.mxu0
      %2874 = vmatprep.subr.bf16.mxu0 0
      %2875 = vmatpush1.bf16.msra.mxu0 %v2715
      %2876 = vmatprep.subr.bf16.mxu0 0
      %2877 = vmatpush1.bf16.msra.mxu0 %v2718
      %2878 = vmatprep.subr.bf16.mxu0 0
      %2879 = vmatpush1.bf16.msra.mxu0 %v2721
      %2880 = vmatprep.subr.bf16.mxu0 0
      %2881 = vmatpush1.bf16.msra.mxu0 %v2724
      %2882 = vmatprep.subr.bf16.mxu0 0
      %2883 = vmatpush1.bf16.msra.mxu0 %v2727
      %2884 = vmatprep.subr.bf16.mxu0 0
      %2885 = vmatpush1.bf16.msra.mxu0 %v2730
      %2886 = vmatprep.subr.bf16.mxu0 0
      %2887 = vmatpush1.bf16.msra.mxu0 %v2733
      %2888 = vmatprep.subr.bf16.mxu0 0
      %2889 = vmatpush1.bf16.msra.mxu0 %v2736
      %2890 = vmatprep.subr.bf16.mxu0 0
      %2891 = vmatpush1.bf16.msra.mxu0 0
      %2892 = vmatprep.subr.bf16.mxu0 0
      %2893 = vmatpush1.bf16.msra.mxu0 0
      %2894 = vmatprep.subr.bf16.mxu0 0
      %2895 = vmatpush1.bf16.msra.mxu0 0
      %2896 = vmatprep.subr.bf16.mxu0 0
      %2897 = vmatpush1.bf16.msra.mxu0 0
      %2898 = vmatprep.subr.bf16.mxu0 0
      %2899 = vmatpush1.bf16.msra.mxu0 0
      %2900 = vmatprep.subr.bf16.mxu0 0
      %2901 = vmatpush1.bf16.msra.mxu0 0
      %2902 = vmatprep.subr.bf16.mxu0 0
      %2903 = vmatpush1.bf16.msra.mxu0 0
      %2904 = vmatprep.subr.bf16.mxu0 0
      %2905 = vmatpush1.bf16.msra.mxu0 0
      %2906 = vmatprep.mubr.bf16.mxu0 0
      %2907 = vmatmul.mubr.bf16.gmra.mrb[0].mxu0 %v2592
      %v2908 = vpop.f32.mrb[0].mxu0
      %v2909 = vadd.f32 0.0, %v2908
      %v2910 = vpop.f32.mrb[0].mxu0
      %v2911 = vpop.f32.mrb[0].mxu0
      %v2912 = vadd.f32 0.0, %v2911
      %v2913 = vpop.f32.mrb[0].mxu0
      %2914 = vmatprep.mubr.bf16.mxu0 0
      %2915 = vmatmul.mubr.bf16.gmra.mrb[0].mxu0 %v2593
      %v2916 = vpop.f32.mrb[0].mxu0
      %v2917 = vadd.f32 0.0, %v2916
      %v2918 = vpop.f32.mrb[0].mxu0
      %v2919 = vpop.f32.mrb[0].mxu0
      %v2920 = vadd.f32 0.0, %v2919
      %v2921 = vpop.f32.mrb[0].mxu0
      %2922 = vmatprep.mubr.bf16.mxu0 0
      %2923 = vmatmul.mubr.bf16.gmra.mrb[0].mxu0 %v2594
      %v2924 = vpop.f32.mrb[0].mxu0
      %v2925 = vadd.f32 0.0, %v2924
      %v2926 = vpop.f32.mrb[0].mxu0
      %v2927 = vpop.f32.mrb[0].mxu0
      %v2928 = vadd.f32 0.0, %v2927
      %v2929 = vpop.f32.mrb[0].mxu0
      %2930 = vmatprep.mubr.bf16.mxu0 0
      %2931 = vmatmul.mubr.bf16.gmra.mrb[0].mxu0 %v2595
      %v2932 = vpop.f32.mrb[0].mxu0
      %v2933 = vadd.f32 0.0, %v2932
      %v2934 = vpop.f32.mrb[0].mxu0
      %v2935 = vpop.f32.mrb[0].mxu0
      %v2936 = vadd.f32 0.0, %v2935
      %v2937 = vpop.f32.mrb[0].mxu0
      %2938 = vmatprep.mubr.bf16.mxu0 0
      %2939 = vmatmul.mubr.bf16.gmra.mrb[0].mxu0 %v2596
      %v2940 = vpop.f32.mrb[0].mxu0
      %v2941 = vadd.f32 0.0, %v2940
      %v2942 = vpop.f32.mrb[0].mxu0
      %v2943 = vpop.f32.mrb[0].mxu0
      %v2944 = vadd.f32 0.0, %v2943
      %v2945 = vpop.f32.mrb[0].mxu0
      %2946 = vmatprep.mubr.bf16.mxu0 0
      %2947 = vmatmul.mubr.bf16.gmra.mrb[0].mxu0 %v2597
      %v2948 = vpop.f32.mrb[0].mxu0
      %v2949 = vadd.f32 0.0, %v2948
      %v2950 = vpop.f32.mrb[0].mxu0
      %v2951 = vpop.f32.mrb[0].mxu0
      %v2952 = vadd.f32 0.0, %v2951
      %v2953 = vpop.f32.mrb[0].mxu0
      %2954 = vmatprep.mubr.bf16.mxu0 0
      %2955 = vmatmul.mubr.bf16.gmra.mrb[0].mxu0 %v2598
      %v2956 = vpop.f32.mrb[0].mxu0
      %v2957 = vadd.f32 0.0, %v2956
      %v2958 = vpop.f32.mrb[0].mxu0
      %v2959 = vpop.f32.mrb[0].mxu0
      %v2960 = vadd.f32 0.0, %v2959
      %v2961 = vpop.f32.mrb[0].mxu0
      %2962 = vmatprep.mubr.bf16.mxu0 0
      %2963 = vmatmul.mubr.bf16.gmra.mrb[0].mxu0 %v2599
      %v2964 = vpop.f32.mrb[0].mxu0
      %v2965 = vadd.f32 0.0, %v2964
      %v2966 = vpop.f32.mrb[0].mxu0
      %v2967 = vpop.f32.mrb[0].mxu0
      %v2968 = vadd.f32 0.0, %v2967
      %v2969 = vpop.f32.mrb[0].mxu0
      %2970 = vdwg.mxu0
      %v2971 = vpack.c.bf16 %v2800, %v2796
      %v2972 = vpack.c.bf16 %v2810, %v2806
      %v2973 = vpack.c.bf16 %v2820, %v2816
      %v2974 = vpack.c.bf16 %v2830, %v2826
      %v2975 = vpack.c.bf16 %v2840, %v2836
      %v2976 = vpack.c.bf16 %v2850, %v2846
      %v2977 = vpack.c.bf16 %v2860, %v2856
      %v2978 = vpack.c.bf16 %v2870, %v2866
      %2979 = vst [vmem:[#allocation2] sm:$0xff] %v2971
      %2980 = vst [vmem:[#allocation2 + $0x8] sm:$0xff] %v2972
      %2981 = vst [vmem:[#allocation2 + $0x10] sm:$0xff] %v2973
      %2982 = vst [vmem:[#allocation2 + $0x18] sm:$0xff] %v2974
      %2983 = vst [vmem:[#allocation2 + $0x20] sm:$0xff] %v2975
      %2984 = vst [vmem:[#allocation2 + $0x28] sm:$0xff] %v2976
      %2985 = vst [vmem:[#allocation2 + $0x30] sm:$0xff] %v2977
      %2986 = vst [vmem:[#allocation2 + $0x38] sm:$0xff] %v2978
      %s2987 = scalar_lea.vmem %s460, 3
      %v2988 = vld [vmem:[%s2987] sm:$0x1]
      %v2990 = vlaneseq
      %v2991 = vshrl.u32 %v2990, 7
      %v2992 = vsub.s32 0, %v2991
      %v2993 = vrot.slane %v2988, %v2992
      %v2995 = vmul.f32 %v2796, %v2993
      %v2996 = vmul.f32 %v2800, %v2993
      %v2997 = vmul.f32 %v2806, %v2993
      %v2998 = vmul.f32 %v2810, %v2993
      %v2999 = vmul.f32 %v2816, %v2993
      %v3000 = vmul.f32 %v2820, %v2993
      %v3001 = vmul.f32 %v2826, %v2993
      %v3002 = vmul.f32 %v2830, %v2993
      %v3003 = vmul.f32 %v2836, %v2993
      %v3004 = vmul.f32 %v2840, %v2993
      %v3005 = vmul.f32 %v2846, %v2993
      %v3006 = vmul.f32 %v2850, %v2993
      %v3007 = vmul.f32 %v2856, %v2993
      %v3008 = vmul.f32 %v2860, %v2993
      %v3009 = vmul.f32 %v2866, %v2993
      %v3010 = vmul.f32 %v2870, %v2993
      %3011 = vadd.xlane.f32.xlu0 %v2995
      %v3012 = vpop.xlane.xlu0 %3011
      %3013 = vadd.xlane.f32.xlu0 %v2996
      %v3014 = vpop.xlane.xlu0 %3013
      %3015 = vadd.xlane.f32.xlu0 %v2997
      %v3016 = vpop.xlane.xlu0 %3015
      %3017 = vadd.xlane.f32.xlu0 %v2998
      %v3018 = vpop.xlane.xlu0 %3017
      %3019 = vadd.xlane.f32.xlu0 %v2999
      %v3020 = vpop.xlane.xlu0 %3019
      %3021 = vadd.xlane.f32.xlu0 %v3000
      %v3022 = vpop.xlane.xlu0 %3021
      %3023 = vadd.xlane.f32.xlu0 %v3001
      %v3024 = vpop.xlane.xlu0 %3023
      %3025 = vadd.xlane.f32.xlu0 %v3002
      %v3026 = vpop.xlane.xlu0 %3025
      %3027 = vadd.xlane.f32.xlu0 %v3003
      %v3028 = vpop.xlane.xlu0 %3027
      %3029 = vadd.xlane.f32.xlu0 %v3004
      %v3030 = vpop.xlane.xlu0 %3029
      %3031 = vadd.xlane.f32.xlu0 %v3005
      %v3032 = vpop.xlane.xlu0 %3031
      %3033 = vadd.xlane.f32.xlu0 %v3006
      %v3034 = vpop.xlane.xlu0 %3033
      %3035 = vadd.xlane.f32.xlu0 %v3007
      %v3036 = vpop.xlane.xlu0 %3035
      %3037 = vadd.xlane.f32.xlu0 %v3008
      %v3038 = vpop.xlane.xlu0 %3037
      %3039 = vadd.xlane.f32.xlu0 %v3009
      %v3040 = vpop.xlane.xlu0 %3039
      %3041 = vadd.xlane.f32.xlu0 %v3010
      %v3042 = vpop.xlane.xlu0 %3041
      %v3043 = vpack.c.bf16 %v2802, %v2798
      %v3044 = vpack.c.bf16 %v2812, %v2808
      %v3045 = vpack.c.bf16 %v2822, %v2818
      %v3046 = vpack.c.bf16 %v2832, %v2828
      %v3047 = vpack.c.bf16 %v2842, %v2838
      %v3048 = vpack.c.bf16 %v2852, %v2848
      %v3049 = vpack.c.bf16 %v2862, %v2858
      %v3050 = vpack.c.bf16 %v2872, %v2868
      %3051 = vst [vmem:[#allocation2 + $0x40] sm:$0xff] %v3043
      %3052 = vst [vmem:[#allocation2 + $0x48] sm:$0xff] %v3044
      %3053 = vst [vmem:[#allocation2 + $0x50] sm:$0xff] %v3045
      %3054 = vst [vmem:[#allocation2 + $0x58] sm:$0xff] %v3046
      %3055 = vst [vmem:[#allocation2 + $0x60] sm:$0xff] %v3047
      %3056 = vst [vmem:[#allocation2 + $0x68] sm:$0xff] %v3048
      %3057 = vst [vmem:[#allocation2 + $0x70] sm:$0xff] %v3049
      %3058 = vst [vmem:[#allocation2 + $0x78] sm:$0xff] %v3050
      %s3059 = scalar_lea.vmem %s460, 4
      %v3060 = vld [vmem:[%s3059] sm:$0x1]
      %v3062 = vlaneseq
      %v3063 = vshrl.u32 %v3062, 7
      %v3064 = vsub.s32 0, %v3063
      %v3065 = vrot.slane %v3060, %v3064
      %v3067 = vmul.f32 %v2798, %v3065
      %v3068 = vmul.f32 %v2802, %v3065
      %v3069 = vmul.f32 %v2808, %v3065
      %v3070 = vmul.f32 %v2812, %v3065
      %v3071 = vmul.f32 %v2818, %v3065
      %v3072 = vmul.f32 %v2822, %v3065
      %v3073 = vmul.f32 %v2828, %v3065
      %v3074 = vmul.f32 %v2832, %v3065
      %v3075 = vmul.f32 %v2838, %v3065
      %v3076 = vmul.f32 %v2842, %v3065
      %v3077 = vmul.f32 %v2848, %v3065
      %v3078 = vmul.f32 %v2852, %v3065
      %v3079 = vmul.f32 %v2858, %v3065
      %v3080 = vmul.f32 %v2862, %v3065
      %v3081 = vmul.f32 %v2868, %v3065
      %v3082 = vmul.f32 %v2872, %v3065
      %3083 = vadd.xlane.f32.xlu0 %v3067
      %v3084 = vpop.xlane.xlu0 %3083
      %3085 = vadd.xlane.f32.xlu0 %v3068
      %v3086 = vpop.xlane.xlu0 %3085
      %3087 = vadd.xlane.f32.xlu0 %v3069
      %v3088 = vpop.xlane.xlu0 %3087
      %3089 = vadd.xlane.f32.xlu0 %v3070
      %v3090 = vpop.xlane.xlu0 %3089
      %3091 = vadd.xlane.f32.xlu0 %v3071
      %v3092 = vpop.xlane.xlu0 %3091
      %3093 = vadd.xlane.f32.xlu0 %v3072
      %v3094 = vpop.xlane.xlu0 %3093
      %3095 = vadd.xlane.f32.xlu0 %v3073
      %v3096 = vpop.xlane.xlu0 %3095
      %3097 = vadd.xlane.f32.xlu0 %v3074
      %v3098 = vpop.xlane.xlu0 %3097
      %3099 = vadd.xlane.f32.xlu0 %v3075
      %v3100 = vpop.xlane.xlu0 %3099
      %3101 = vadd.xlane.f32.xlu0 %v3076
      %v3102 = vpop.xlane.xlu0 %3101
      %3103 = vadd.xlane.f32.xlu0 %v3077
      %v3104 = vpop.xlane.xlu0 %3103
      %3105 = vadd.xlane.f32.xlu0 %v3078
      %v3106 = vpop.xlane.xlu0 %3105
      %3107 = vadd.xlane.f32.xlu0 %v3079
      %v3108 = vpop.xlane.xlu0 %3107
      %3109 = vadd.xlane.f32.xlu0 %v3080
      %v3110 = vpop.xlane.xlu0 %3109
      %3111 = vadd.xlane.f32.xlu0 %v3081
      %v3112 = vpop.xlane.xlu0 %3111
      %3113 = vadd.xlane.f32.xlu0 %v3082
      %v3114 = vpop.xlane.xlu0 %3113
      %v3115 = vpack.c.bf16 %v2912, %v2909
      %v3116 = vpack.c.bf16 %v2920, %v2917
      %v3117 = vpack.c.bf16 %v2928, %v2925
      %v3118 = vpack.c.bf16 %v2936, %v2933
      %v3119 = vpack.c.bf16 %v2944, %v2941
      %v3120 = vpack.c.bf16 %v2952, %v2949
      %v3121 = vpack.c.bf16 %v2960, %v2957
      %v3122 = vpack.c.bf16 %v2968, %v2965
      %3123 = vst [vmem:[#allocation2 + $0x80] sm:$0xff] %v3115
      %3124 = vst [vmem:[#allocation2 + $0x88] sm:$0xff] %v3116
      %3125 = vst [vmem:[#allocation2 + $0x90] sm:$0xff] %v3117
      %3126 = vst [vmem:[#allocation2 + $0x98] sm:$0xff] %v3118
      %3127 = vst [vmem:[#allocation2 + $0xa0] sm:$0xff] %v3119
      %3128 = vst [vmem:[#allocation2 + $0xa8] sm:$0xff] %v3120
      %3129 = vst [vmem:[#allocation2 + $0xb0] sm:$0xff] %v3121
      %3130 = vst [vmem:[#allocation2 + $0xb8] sm:$0xff] %v3122
      %s3131 = scalar_lea.vmem %s460, 5
      %v3132 = vld [vmem:[%s3131] sm:$0x1]
      %v3134 = vlaneseq
      %v3135 = vshrl.u32 %v3134, 7
      %v3136 = vsub.s32 0, %v3135
      %v3137 = vrot.slane %v3132, %v3136
      %v3139 = vmul.f32 %v2909, %v3137
      %v3140 = vmul.f32 %v2912, %v3137
      %v3141 = vmul.f32 %v2917, %v3137
      %v3142 = vmul.f32 %v2920, %v3137
      %v3143 = vmul.f32 %v2925, %v3137
      %v3144 = vmul.f32 %v2928, %v3137
      %v3145 = vmul.f32 %v2933, %v3137
      %v3146 = vmul.f32 %v2936, %v3137
      %v3147 = vmul.f32 %v2941, %v3137
      %v3148 = vmul.f32 %v2944, %v3137
      %v3149 = vmul.f32 %v2949, %v3137
      %v3150 = vmul.f32 %v2952, %v3137
      %v3151 = vmul.f32 %v2957, %v3137
      %v3152 = vmul.f32 %v2960, %v3137
      %v3153 = vmul.f32 %v2965, %v3137
      %v3154 = vmul.f32 %v2968, %v3137
      %3155 = vadd.xlane.f32.xlu0 %v3139
      %v3156 = vpop.xlane.xlu0 %3155
      %3157 = vadd.xlane.f32.xlu0 %v3140
      %v3158 = vpop.xlane.xlu0 %3157
      %3159 = vadd.xlane.f32.xlu0 %v3141
      %v3160 = vpop.xlane.xlu0 %3159
      %3161 = vadd.xlane.f32.xlu0 %v3142
      %v3162 = vpop.xlane.xlu0 %3161
      %3163 = vadd.xlane.f32.xlu0 %v3143
      %v3164 = vpop.xlane.xlu0 %3163
      %3165 = vadd.xlane.f32.xlu0 %v3144
      %v3166 = vpop.xlane.xlu0 %3165
      %3167 = vadd.xlane.f32.xlu0 %v3145
      %v3168 = vpop.xlane.xlu0 %3167
      %3169 = vadd.xlane.f32.xlu0 %v3146
      %v3170 = vpop.xlane.xlu0 %3169
      %3171 = vadd.xlane.f32.xlu0 %v3147
      %v3172 = vpop.xlane.xlu0 %3171
      %3173 = vadd.xlane.f32.xlu0 %v3148
      %v3174 = vpop.xlane.xlu0 %3173
      %3175 = vadd.xlane.f32.xlu0 %v3149
      %v3176 = vpop.xlane.xlu0 %3175
      %3177 = vadd.xlane.f32.xlu0 %v3150
      %v3178 = vpop.xlane.xlu0 %3177
      %3179 = vadd.xlane.f32.xlu0 %v3151
      %v3180 = vpop.xlane.xlu0 %3179
      %3181 = vadd.xlane.f32.xlu0 %v3152
      %v3182 = vpop.xlane.xlu0 %3181
      %3183 = vadd.xlane.f32.xlu0 %v3153
      %v3184 = vpop.xlane.xlu0 %3183
      %3185 = vadd.xlane.f32.xlu0 %v3154
      %v3186 = vpop.xlane.xlu0 %3185
      %s3187 = scalar_lea.vmem %s456, 24
      %v3188 = vld [vmem:[%s3187] sm:$0xff]
      %v3189 = vld [vmem:[%s3187 + $0x8] sm:$0xff]
      %v3190 = vld [vmem:[%s3187 + $0x10] sm:$0xff]
      %3191 = vmatprep.subr.mxu0 %v2798
      %3192 = vmatpush1.xpose.msra.mxu0 %v2796
      %3193 = vmatprep.subr.mxu0 %v2802
      %3194 = vmatpush1.xpose.msra.mxu0 %v2800
      %3195 = vmatprep.subr.mxu0 %v2808
      %3196 = vmatpush1.xpose.msra.mxu0 %v2806
      %3197 = vmatprep.subr.mxu0 %v2812
      %3198 = vmatpush1.xpose.msra.mxu0 %v2810
      %3199 = vmatprep.subr.mxu0 %v2818
      %3200 = vmatpush1.xpose.msra.mxu0 %v2816
      %3201 = vmatprep.subr.mxu0 %v2822
      %3202 = vmatpush1.xpose.msra.mxu0 %v2820
      %3203 = vmatprep.subr.mxu0 %v2828
      %3204 = vmatpush1.xpose.msra.mxu0 %v2826
      %3205 = vmatprep.subr.mxu0 %v2832
      %3206 = vmatpush1.xpose.msra.mxu0 %v2830
      %3207 = vmatprep.subr.mxu0 %v2838
      %3208 = vmatpush1.xpose.msra.mxu0 %v2836
      %3209 = vmatprep.subr.mxu0 %v2842
      %3210 = vmatpush1.xpose.msra.mxu0 %v2840
      %3211 = vmatprep.subr.mxu0 %v2848
      %3212 = vmatpush1.xpose.msra.mxu0 %v2846
      %3213 = vmatprep.subr.mxu0 %v2852
      %3214 = vmatpush1.xpose.msra.mxu0 %v2850
      %3215 = vmatprep.subr.mxu0 %v2858
      %3216 = vmatpush1.xpose.msra.mxu0 %v2856
      %3217 = vmatprep.subr.mxu0 %v2862
      %3218 = vmatpush1.xpose.msra.mxu0 %v2860
      %3219 = vmatprep.subr.mxu0 %v2868
      %3220 = vmatpush1.xpose.msra.mxu0 %v2866
      %3221 = vmatprep.subr.mxu0 %v2872
      %3222 = vmatpush1.xpose.msra.mxu0 %v2870
      %3223 = vmatprep.subr.mxu0 0.0
      %3224 = vmatpush1.xpose.msra.mxu0 0.0
      %3225 = vmatprep.subr.mxu0 0.0
      %3226 = vmatpush1.xpose.msra.mxu0 0.0
      %3227 = vmatprep.subr.mxu0 0.0
      %3228 = vmatpush1.xpose.msra.mxu0 0.0
      %3229 = vmatprep.subr.mxu0 0.0
      %3230 = vmatpush1.xpose.msra.mxu0 0.0
      %3231 = vmatprep.subr.mxu0 0.0
      %3232 = vmatpush1.xpose.msra.mxu0 0.0
      %3233 = vmatprep.subr.mxu0 0.0
      %3234 = vmatpush1.xpose.msra.mxu0 0.0
      %3235 = vmatprep.subr.mxu0 0.0
      %3236 = vmatpush1.xpose.msra.mxu0 0.0
      %3237 = vmatprep.subr.mxu0 0.0
      %3238 = vmatpush1.xpose.msra.mxu0 0.0
      %3239 = vmatprep.subr.mxu0 0.0
      %3240 = vmatpush1.xpose.msra.mxu0 0.0
      %3241 = vmatprep.subr.mxu0 0.0
      %3242 = vmatpush1.xpose.msra.mxu0 0.0
      %3243 = vmatprep.subr.mxu0 0.0
      %3244 = vmatpush1.xpose.msra.mxu0 0.0
      %3245 = vmatprep.subr.mxu0 0.0
      %3246 = vmatpush1.xpose.msra.mxu0 0.0
      %3247 = vmatprep.subr.mxu0 0.0
      %3248 = vmatpush1.xpose.msra.mxu0 0.0
      %3249 = vmatprep.subr.mxu0 0.0
      %3250 = vmatpush1.xpose.msra.mxu0 0.0
      %3251 = vmatprep.subr.mxu0 0.0
      %3252 = vmatpush1.xpose.msra.mxu0 0.0
      %3253 = vmatprep.subr.mxu0 0.0
      %3254 = vmatpush1.xpose.msra.mxu0 0.0
      %3255 = vmatprep.mubr.f32.mxu0 %v3189
      %3256 = vmatmul.mubr.f32.gmra.mrb[0].mxu0 %v3188
      %v3257 = vpop.f32.mrb[0].mxu0
      %v3258 = vadd.f32 0.0, %v3257
      %v3259 = vpop.f32.mrb[0].mxu0
      %3260 = vdwg.mxu0
      %3261 = vmatprep.subr.mxu0 0.0
      %3262 = vmatpush1.xpose.msra.mxu0 %v2909
      %3263 = vmatprep.subr.mxu0 0.0
      %3264 = vmatpush1.xpose.msra.mxu0 %v2912
      %3265 = vmatprep.subr.mxu0 0.0
      %3266 = vmatpush1.xpose.msra.mxu0 %v2917
      %3267 = vmatprep.subr.mxu0 0.0
      %3268 = vmatpush1.xpose.msra.mxu0 %v2920
      %3269 = vmatprep.subr.mxu0 0.0
      %3270 = vmatpush1.xpose.msra.mxu0 %v2925
      %3271 = vmatprep.subr.mxu0 0.0
      %3272 = vmatpush1.xpose.msra.mxu0 %v2928
      %3273 = vmatprep.subr.mxu0 0.0
      %3274 = vmatpush1.xpose.msra.mxu0 %v2933
      %3275 = vmatprep.subr.mxu0 0.0
      %3276 = vmatpush1.xpose.msra.mxu0 %v2936
      %3277 = vmatprep.subr.mxu0 0.0
      %3278 = vmatpush1.xpose.msra.mxu0 %v2941
      %3279 = vmatprep.subr.mxu0 0.0
      %3280 = vmatpush1.xpose.msra.mxu0 %v2944
      %3281 = vmatprep.subr.mxu0 0.0
      %3282 = vmatpush1.xpose.msra.mxu0 %v2949
      %3283 = vmatprep.subr.mxu0 0.0
      %3284 = vmatpush1.xpose.msra.mxu0 %v2952
      %3285 = vmatprep.subr.mxu0 0.0
      %3286 = vmatpush1.xpose.msra.mxu0 %v2957
      %3287 = vmatprep.subr.mxu0 0.0
      %3288 = vmatpush1.xpose.msra.mxu0 %v2960
      %3289 = vmatprep.subr.mxu0 0.0
      %3290 = vmatpush1.xpose.msra.mxu0 %v2965
      %3291 = vmatprep.subr.mxu0 0.0
      %3292 = vmatpush1.xpose.msra.mxu0 %v2968
      %3293 = vmatprep.subr.mxu0 0.0
      %3294 = vmatpush1.xpose.msra.mxu0 0.0
      %3295 = vmatprep.subr.mxu0 0.0
      %3296 = vmatpush1.xpose.msra.mxu0 0.0
      %3297 = vmatprep.subr.mxu0 0.0
      %3298 = vmatpush1.xpose.msra.mxu0 0.0
      %3299 = vmatprep.subr.mxu0 0.0
      %3300 = vmatpush1.xpose.msra.mxu0 0.0
      %3301 = vmatprep.subr.mxu0 0.0
      %3302 = vmatpush1.xpose.msra.mxu0 0.0
      %3303 = vmatprep.subr.mxu0 0.0
      %3304 = vmatpush1.xpose.msra.mxu0 0.0
      %3305 = vmatprep.subr.mxu0 0.0
      %3306 = vmatpush1.xpose.msra.mxu0 0.0
      %3307 = vmatprep.subr.mxu0 0.0
      %3308 = vmatpush1.xpose.msra.mxu0 0.0
      %3309 = vmatprep.subr.mxu0 0.0
      %3310 = vmatpush1.xpose.msra.mxu0 0.0
      %3311 = vmatprep.subr.mxu0 0.0
      %3312 = vmatpush1.xpose.msra.mxu0 0.0
      %3313 = vmatprep.subr.mxu0 0.0
      %3314 = vmatpush1.xpose.msra.mxu0 0.0
      %3315 = vmatprep.subr.mxu0 0.0
      %3316 = vmatpush1.xpose.msra.mxu0 0.0
      %3317 = vmatprep.subr.mxu0 0.0
      %3318 = vmatpush1.xpose.msra.mxu0 0.0
      %3319 = vmatprep.subr.mxu0 0.0
      %3320 = vmatpush1.xpose.msra.mxu0 0.0
      %3321 = vmatprep.subr.mxu0 0.0
      %3322 = vmatpush1.xpose.msra.mxu0 0.0
      %3323 = vmatprep.subr.mxu0 0.0
      %3324 = vmatpush1.xpose.msra.mxu0 0.0
      %3325 = vmatprep.mubr.f32.mxu0 0.0
      %3326 = vmatmul.mubr.f32.gmra.mrb[0].mxu0 %v3190
      %v3327 = vpop.f32.mrb[0].mxu0
      %v3328 = vadd.f32 %v3258, %v3327
      %v3329 = vpop.f32.mrb[0].mxu0
      %3330 = vdwg.mxu0
      %v3331 = vlaneseq
      %v3332 = vshrl.u32 %v3331, 7
      %v3333 = vsub.s32 0, %v3332
      %v3334 = vrot.slane %v3328, %v3333
      %v3335 = vadd.f32 %v3012, %v3334
      %v3336 = vadd.f32 %v3014, %v3334
      %v3337 = vadd.f32 %v3016, %v3334
      %v3338 = vadd.f32 %v3018, %v3334
      %v3339 = vadd.f32 %v3020, %v3334
      %v3340 = vadd.f32 %v3022, %v3334
      %v3341 = vadd.f32 %v3024, %v3334
      %v3342 = vadd.f32 %v3026, %v3334
      %v3343 = vadd.f32 %v3028, %v3334
      %v3344 = vadd.f32 %v3030, %v3334
      %v3345 = vadd.f32 %v3032, %v3334
      %v3346 = vadd.f32 %v3034, %v3334
      %v3347 = vadd.f32 %v3036, %v3334
      %v3348 = vadd.f32 %v3038, %v3334
      %v3349 = vadd.f32 %v3040, %v3334
      %v3350 = vadd.f32 %v3042, %v3334
      %v3351 = vmul.f32 %v3335, 0.2
      %v3352 = vmul.f32 %v3336, 0.2
      %v3353 = vmul.f32 %v3337, 0.2
      %v3354 = vmul.f32 %v3338, 0.2
      %v3355 = vmul.f32 %v3339, 0.2
      %v3356 = vmul.f32 %v3340, 0.2
      %v3357 = vmul.f32 %v3341, 0.2
      %v3358 = vmul.f32 %v3342, 0.2
      %v3359 = vmul.f32 %v3343, 0.2
      %v3360 = vmul.f32 %v3344, 0.2
      %v3361 = vmul.f32 %v3345, 0.2
      %v3362 = vmul.f32 %v3346, 0.2
      %v3363 = vmul.f32 %v3347, 0.2
      %v3364 = vmul.f32 %v3348, 0.2
      %v3365 = vmul.f32 %v3349, 0.2
      %v3366 = vmul.f32 %v3350, 0.2
      %v3367 = vmax.f32 %v3335, %v3351
      %v3368 = vmax.f32 %v3336, %v3352
      %v3369 = vmax.f32 %v3337, %v3353
      %v3370 = vmax.f32 %v3338, %v3354
      %v3371 = vmax.f32 %v3339, %v3355
      %v3372 = vmax.f32 %v3340, %v3356
      %v3373 = vmax.f32 %v3341, %v3357
      %v3374 = vmax.f32 %v3342, %v3358
      %v3375 = vmax.f32 %v3343, %v3359
      %v3376 = vmax.f32 %v3344, %v3360
      %v3377 = vmax.f32 %v3345, %v3361
      %v3378 = vmax.f32 %v3346, %v3362
      %v3379 = vmax.f32 %v3347, %v3363
      %v3380 = vmax.f32 %v3348, %v3364
      %v3381 = vmax.f32 %v3349, %v3365
      %v3382 = vmax.f32 %v3350, %v3366
      %v3383 = vadd.f32 %v3367, %v495
      %v3384 = vadd.f32 %v3368, %v496
      %v3385 = vadd.f32 %v3369, %v497
      %v3386 = vadd.f32 %v3370, %v498
      %v3387 = vadd.f32 %v3371, %v499
      %v3388 = vadd.f32 %v3372, %v500
      %v3389 = vadd.f32 %v3373, %v501
      %v3390 = vadd.f32 %v3374, %v502
      %v3391 = vadd.f32 %v3375, %v503
      %v3392 = vadd.f32 %v3376, %v504
      %v3393 = vadd.f32 %v3377, %v505
      %v3394 = vadd.f32 %v3378, %v506
      %v3395 = vadd.f32 %v3379, %v507
      %v3396 = vadd.f32 %v3380, %v508
      %v3397 = vadd.f32 %v3381, %v509
      %v3398 = vadd.f32 %v3382, %v510
      %3399 = vmax.xlane.f32.xlu0 %v3383
      %v3400 = vpop.xlane.xlu0 %3399
      %3401 = vmax.xlane.f32.xlu0 %v3384
      %v3402 = vpop.xlane.xlu0 %3401
      %3403 = vmax.xlane.f32.xlu0 %v3385
      %v3404 = vpop.xlane.xlu0 %3403
      %3405 = vmax.xlane.f32.xlu0 %v3386
      %v3406 = vpop.xlane.xlu0 %3405
      %3407 = vmax.xlane.f32.xlu0 %v3387
      %v3408 = vpop.xlane.xlu0 %3407
      %3409 = vmax.xlane.f32.xlu0 %v3388
      %v3410 = vpop.xlane.xlu0 %3409
      %3411 = vmax.xlane.f32.xlu0 %v3389
      %v3412 = vpop.xlane.xlu0 %3411
      %3413 = vmax.xlane.f32.xlu0 %v3390
      %v3414 = vpop.xlane.xlu0 %3413
      %3415 = vmax.xlane.f32.xlu0 %v3391
      %v3416 = vpop.xlane.xlu0 %3415
      %3417 = vmax.xlane.f32.xlu0 %v3392
      %v3418 = vpop.xlane.xlu0 %3417
      %3419 = vmax.xlane.f32.xlu0 %v3393
      %v3420 = vpop.xlane.xlu0 %3419
      %3421 = vmax.xlane.f32.xlu0 %v3394
      %v3422 = vpop.xlane.xlu0 %3421
      %3423 = vmax.xlane.f32.xlu0 %v3395
      %v3424 = vpop.xlane.xlu0 %3423
      %3425 = vmax.xlane.f32.xlu0 %v3396
      %v3426 = vpop.xlane.xlu0 %3425
      %3427 = vmax.xlane.f32.xlu0 %v3397
      %v3428 = vpop.xlane.xlu0 %3427
      %3429 = vmax.xlane.f32.xlu0 %v3398
      %v3430 = vpop.xlane.xlu0 %3429
      %v3431 = vsub.f32 %v3383, %v3400
      %v3432 = vsub.f32 %v3384, %v3402
      %v3433 = vsub.f32 %v3385, %v3404
      %v3434 = vsub.f32 %v3386, %v3406
      %v3435 = vsub.f32 %v3387, %v3408
      %v3436 = vsub.f32 %v3388, %v3410
      %v3437 = vsub.f32 %v3389, %v3412
      %v3438 = vsub.f32 %v3390, %v3414
      %v3439 = vsub.f32 %v3391, %v3416
      %v3440 = vsub.f32 %v3392, %v3418
      %v3441 = vsub.f32 %v3393, %v3420
      %v3442 = vsub.f32 %v3394, %v3422
      %v3443 = vsub.f32 %v3395, %v3424
      %v3444 = vsub.f32 %v3396, %v3426
      %v3445 = vsub.f32 %v3397, %v3428
      %v3446 = vsub.f32 %v3398, %v3430
      %v3447 = vmul.f32 %v3431, 1.442695
      %v3448 = vpow.pop %v3447
      %v3449 = vmul.f32 %v3432, 1.442695
      %v3450 = vpow.pop %v3449
      %v3451 = vmul.f32 %v3433, 1.442695
      %v3452 = vpow.pop %v3451
      %v3453 = vmul.f32 %v3434, 1.442695
      %v3454 = vpow.pop %v3453
      %v3455 = vmul.f32 %v3435, 1.442695
      %v3456 = vpow.pop %v3455
      %v3457 = vmul.f32 %v3436, 1.442695
      %v3458 = vpow.pop %v3457
      %v3459 = vmul.f32 %v3437, 1.442695
      %v3460 = vpow.pop %v3459
      %v3461 = vmul.f32 %v3438, 1.442695
      %v3462 = vpow.pop %v3461
      %v3463 = vmul.f32 %v3439, 1.442695
      %v3464 = vpow.pop %v3463
      %v3465 = vmul.f32 %v3440, 1.442695
      %v3466 = vpow.pop %v3465
      %v3467 = vmul.f32 %v3441, 1.442695
      %v3468 = vpow.pop %v3467
      %v3469 = vmul.f32 %v3442, 1.442695
      %v3470 = vpow.pop %v3469
      %v3471 = vmul.f32 %v3443, 1.442695
      %v3472 = vpow.pop %v3471
      %v3473 = vmul.f32 %v3444, 1.442695
      %v3474 = vpow.pop %v3473
      %v3475 = vmul.f32 %v3445, 1.442695
      %v3476 = vpow.pop %v3475
      %v3477 = vmul.f32 %v3446, 1.442695
      %v3478 = vpow.pop %v3477
      %3479 = vadd.xlane.f32.xlu0 %v3448
      %v3480 = vpop.xlane.xlu0 %3479
      %3481 = vadd.xlane.f32.xlu0 %v3450
      %v3482 = vpop.xlane.xlu0 %3481
      %3483 = vadd.xlane.f32.xlu0 %v3452
      %v3484 = vpop.xlane.xlu0 %3483
      %3485 = vadd.xlane.f32.xlu0 %v3454
      %v3486 = vpop.xlane.xlu0 %3485
      %3487 = vadd.xlane.f32.xlu0 %v3456
      %v3488 = vpop.xlane.xlu0 %3487
      %3489 = vadd.xlane.f32.xlu0 %v3458
      %v3490 = vpop.xlane.xlu0 %3489
      %3491 = vadd.xlane.f32.xlu0 %v3460
      %v3492 = vpop.xlane.xlu0 %3491
      %3493 = vadd.xlane.f32.xlu0 %v3462
      %v3494 = vpop.xlane.xlu0 %3493
      %3495 = vadd.xlane.f32.xlu0 %v3464
      %v3496 = vpop.xlane.xlu0 %3495
      %3497 = vadd.xlane.f32.xlu0 %v3466
      %v3498 = vpop.xlane.xlu0 %3497
      %3499 = vadd.xlane.f32.xlu0 %v3468
      %v3500 = vpop.xlane.xlu0 %3499
      %3501 = vadd.xlane.f32.xlu0 %v3470
      %v3502 = vpop.xlane.xlu0 %3501
      %3503 = vadd.xlane.f32.xlu0 %v3472
      %v3504 = vpop.xlane.xlu0 %3503
      %3505 = vadd.xlane.f32.xlu0 %v3474
      %v3506 = vpop.xlane.xlu0 %3505
      %3507 = vadd.xlane.f32.xlu0 %v3476
      %v3508 = vpop.xlane.xlu0 %3507
      %3509 = vadd.xlane.f32.xlu0 %v3478
      %v3510 = vpop.xlane.xlu0 %3509
      %v3511 = vrcp.pop %v3480
      %v3512 = vrcp.pop %v3482
      %v3513 = vrcp.pop %v3484
      %v3514 = vrcp.pop %v3486
      %v3515 = vrcp.pop %v3488
      %v3516 = vrcp.pop %v3490
      %v3517 = vrcp.pop %v3492
      %v3518 = vrcp.pop %v3494
      %v3519 = vrcp.pop %v3496
      %v3520 = vrcp.pop %v3498
      %v3521 = vrcp.pop %v3500
      %v3522 = vrcp.pop %v3502
      %v3523 = vrcp.pop %v3504
      %v3524 = vrcp.pop %v3506
      %v3525 = vrcp.pop %v3508
      %v3526 = vrcp.pop %v3510
      %v3527 = vmul.f32 %v3511, 0.33333334
      %v3528 = vmul.f32 %v3512, 0.33333334
      %v3529 = vmul.f32 %v3513, 0.33333334
      %v3530 = vmul.f32 %v3514, 0.33333334
      %v3531 = vmul.f32 %v3515, 0.33333334
      %v3532 = vmul.f32 %v3516, 0.33333334
      %v3533 = vmul.f32 %v3517, 0.33333334
      %v3534 = vmul.f32 %v3518, 0.33333334
      %v3535 = vmul.f32 %v3519, 0.33333334
      %v3536 = vmul.f32 %v3520, 0.33333334
      %v3537 = vmul.f32 %v3521, 0.33333334
      %v3538 = vmul.f32 %v3522, 0.33333334
      %v3539 = vmul.f32 %v3523, 0.33333334
      %v3540 = vmul.f32 %v3524, 0.33333334
      %v3541 = vmul.f32 %v3525, 0.33333334
      %v3542 = vmul.f32 %v3526, 0.33333334
      %v3543 = vmul.f32 %v3448, %v3527
      %v3544 = vmul.f32 %v3450, %v3528
      %v3545 = vmul.f32 %v3452, %v3529
      %v3546 = vmul.f32 %v3454, %v3530
      %v3547 = vmul.f32 %v3456, %v3531
      %v3548 = vmul.f32 %v3458, %v3532
      %v3549 = vmul.f32 %v3460, %v3533
      %v3550 = vmul.f32 %v3462, %v3534
      %v3551 = vmul.f32 %v3464, %v3535
      %v3552 = vmul.f32 %v3466, %v3536
      %v3553 = vmul.f32 %v3468, %v3537
      %v3554 = vmul.f32 %v3470, %v3538
      %v3555 = vmul.f32 %v3472, %v3539
      %v3556 = vmul.f32 %v3474, %v3540
      %v3557 = vmul.f32 %v3476, %v3541
      %v3558 = vmul.f32 %v3478, %v3542
      %v3559 = vpack.c.bf16 %v3544, %v3543
      %v3560 = vpack.c.bf16 %v3546, %v3545
      %v3561 = vpack.c.bf16 %v3548, %v3547
      %v3562 = vpack.c.bf16 %v3550, %v3549
      %v3563 = vpack.c.bf16 %v3552, %v3551
      %v3564 = vpack.c.bf16 %v3554, %v3553
      %v3565 = vpack.c.bf16 %v3556, %v3555
      %v3566 = vpack.c.bf16 %v3558, %v3557
      %3567 = vst [vmem:[#allocation3] sm:$0xff] %v3559
      %3568 = vst [vmem:[#allocation3 + $0x18] sm:$0xff] %v3560
      %3569 = vst [vmem:[#allocation3 + $0x30] sm:$0xff] %v3561
      %3570 = vst [vmem:[#allocation3 + $0x48] sm:$0xff] %v3562
      %3571 = vst [vmem:[#allocation3 + $0x60] sm:$0xff] %v3563
      %3572 = vst [vmem:[#allocation3 + $0x78] sm:$0xff] %v3564
      %3573 = vst [vmem:[#allocation3 + $0x90] sm:$0xff] %v3565
      %3574 = vst [vmem:[#allocation3 + $0xa8] sm:$0xff] %v3566
      %v3575 = vlaneseq
      %v3576 = vshrl.u32 %v3575, 7
      %v3577 = vsub.s32 1, %v3576
      %v3578 = vrot.slane %v3328, %v3577
      %v3579 = vadd.f32 %v3084, %v3578
      %v3580 = vadd.f32 %v3086, %v3578
      %v3581 = vadd.f32 %v3088, %v3578
      %v3582 = vadd.f32 %v3090, %v3578
      %v3583 = vadd.f32 %v3092, %v3578
      %v3584 = vadd.f32 %v3094, %v3578
      %v3585 = vadd.f32 %v3096, %v3578
      %v3586 = vadd.f32 %v3098, %v3578
      %v3587 = vadd.f32 %v3100, %v3578
      %v3588 = vadd.f32 %v3102, %v3578
      %v3589 = vadd.f32 %v3104, %v3578
      %v3590 = vadd.f32 %v3106, %v3578
      %v3591 = vadd.f32 %v3108, %v3578
      %v3592 = vadd.f32 %v3110, %v3578
      %v3593 = vadd.f32 %v3112, %v3578
      %v3594 = vadd.f32 %v3114, %v3578
      %v3595 = vmul.f32 %v3579, 0.2
      %v3596 = vmul.f32 %v3580, 0.2
      %v3597 = vmul.f32 %v3581, 0.2
      %v3598 = vmul.f32 %v3582, 0.2
      %v3599 = vmul.f32 %v3583, 0.2
      %v3600 = vmul.f32 %v3584, 0.2
      %v3601 = vmul.f32 %v3585, 0.2
      %v3602 = vmul.f32 %v3586, 0.2
      %v3603 = vmul.f32 %v3587, 0.2
      %v3604 = vmul.f32 %v3588, 0.2
      %v3605 = vmul.f32 %v3589, 0.2
      %v3606 = vmul.f32 %v3590, 0.2
      %v3607 = vmul.f32 %v3591, 0.2
      %v3608 = vmul.f32 %v3592, 0.2
      %v3609 = vmul.f32 %v3593, 0.2
      %v3610 = vmul.f32 %v3594, 0.2
      %v3611 = vmax.f32 %v3579, %v3595
      %v3612 = vmax.f32 %v3580, %v3596
      %v3613 = vmax.f32 %v3581, %v3597
      %v3614 = vmax.f32 %v3582, %v3598
      %v3615 = vmax.f32 %v3583, %v3599
      %v3616 = vmax.f32 %v3584, %v3600
      %v3617 = vmax.f32 %v3585, %v3601
      %v3618 = vmax.f32 %v3586, %v3602
      %v3619 = vmax.f32 %v3587, %v3603
      %v3620 = vmax.f32 %v3588, %v3604
      %v3621 = vmax.f32 %v3589, %v3605
      %v3622 = vmax.f32 %v3590, %v3606
      %v3623 = vmax.f32 %v3591, %v3607
      %v3624 = vmax.f32 %v3592, %v3608
      %v3625 = vmax.f32 %v3593, %v3609
      %v3626 = vmax.f32 %v3594, %v3610
      %v3627 = vadd.f32 %v3611, %v495
      %v3628 = vadd.f32 %v3612, %v496
      %v3629 = vadd.f32 %v3613, %v497
      %v3630 = vadd.f32 %v3614, %v498
      %v3631 = vadd.f32 %v3615, %v499
      %v3632 = vadd.f32 %v3616, %v500
      %v3633 = vadd.f32 %v3617, %v501
      %v3634 = vadd.f32 %v3618, %v502
      %v3635 = vadd.f32 %v3619, %v503
      %v3636 = vadd.f32 %v3620, %v504
      %v3637 = vadd.f32 %v3621, %v505
      %v3638 = vadd.f32 %v3622, %v506
      %v3639 = vadd.f32 %v3623, %v507
      %v3640 = vadd.f32 %v3624, %v508
      %v3641 = vadd.f32 %v3625, %v509
      %v3642 = vadd.f32 %v3626, %v510
      %3643 = vmax.xlane.f32.xlu0 %v3627
      %v3644 = vpop.xlane.xlu0 %3643
      %3645 = vmax.xlane.f32.xlu0 %v3628
      %v3646 = vpop.xlane.xlu0 %3645
      %3647 = vmax.xlane.f32.xlu0 %v3629
      %v3648 = vpop.xlane.xlu0 %3647
      %3649 = vmax.xlane.f32.xlu0 %v3630
      %v3650 = vpop.xlane.xlu0 %3649
      %3651 = vmax.xlane.f32.xlu0 %v3631
      %v3652 = vpop.xlane.xlu0 %3651
      %3653 = vmax.xlane.f32.xlu0 %v3632
      %v3654 = vpop.xlane.xlu0 %3653
      %3655 = vmax.xlane.f32.xlu0 %v3633
      %v3656 = vpop.xlane.xlu0 %3655
      %3657 = vmax.xlane.f32.xlu0 %v3634
      %v3658 = vpop.xlane.xlu0 %3657
      %3659 = vmax.xlane.f32.xlu0 %v3635
      %v3660 = vpop.xlane.xlu0 %3659
      %3661 = vmax.xlane.f32.xlu0 %v3636
      %v3662 = vpop.xlane.xlu0 %3661
      %3663 = vmax.xlane.f32.xlu0 %v3637
      %v3664 = vpop.xlane.xlu0 %3663
      %3665 = vmax.xlane.f32.xlu0 %v3638
      %v3666 = vpop.xlane.xlu0 %3665
      %3667 = vmax.xlane.f32.xlu0 %v3639
      %v3668 = vpop.xlane.xlu0 %3667
      %3669 = vmax.xlane.f32.xlu0 %v3640
      %v3670 = vpop.xlane.xlu0 %3669
      %3671 = vmax.xlane.f32.xlu0 %v3641
      %v3672 = vpop.xlane.xlu0 %3671
      %3673 = vmax.xlane.f32.xlu0 %v3642
      %v3674 = vpop.xlane.xlu0 %3673
      %v3675 = vsub.f32 %v3627, %v3644
      %v3676 = vsub.f32 %v3628, %v3646
      %v3677 = vsub.f32 %v3629, %v3648
      %v3678 = vsub.f32 %v3630, %v3650
      %v3679 = vsub.f32 %v3631, %v3652
      %v3680 = vsub.f32 %v3632, %v3654
      %v3681 = vsub.f32 %v3633, %v3656
      %v3682 = vsub.f32 %v3634, %v3658
      %v3683 = vsub.f32 %v3635, %v3660
      %v3684 = vsub.f32 %v3636, %v3662
      %v3685 = vsub.f32 %v3637, %v3664
      %v3686 = vsub.f32 %v3638, %v3666
      %v3687 = vsub.f32 %v3639, %v3668
      %v3688 = vsub.f32 %v3640, %v3670
      %v3689 = vsub.f32 %v3641, %v3672
      %v3690 = vsub.f32 %v3642, %v3674
      %v3691 = vmul.f32 %v3675, 1.442695
      %v3692 = vpow.pop %v3691
      %v3693 = vmul.f32 %v3676, 1.442695
      %v3694 = vpow.pop %v3693
      %v3695 = vmul.f32 %v3677, 1.442695
      %v3696 = vpow.pop %v3695
      %v3697 = vmul.f32 %v3678, 1.442695
      %v3698 = vpow.pop %v3697
      %v3699 = vmul.f32 %v3679, 1.442695
      %v3700 = vpow.pop %v3699
      %v3701 = vmul.f32 %v3680, 1.442695
      %v3702 = vpow.pop %v3701
      %v3703 = vmul.f32 %v3681, 1.442695
      %v3704 = vpow.pop %v3703
      %v3705 = vmul.f32 %v3682, 1.442695
      %v3706 = vpow.pop %v3705
      %v3707 = vmul.f32 %v3683, 1.442695
      %v3708 = vpow.pop %v3707
      %v3709 = vmul.f32 %v3684, 1.442695
      %v3710 = vpow.pop %v3709
      %v3711 = vmul.f32 %v3685, 1.442695
      %v3712 = vpow.pop %v3711
      %v3713 = vmul.f32 %v3686, 1.442695
      %v3714 = vpow.pop %v3713
      %v3715 = vmul.f32 %v3687, 1.442695
      %v3716 = vpow.pop %v3715
      %v3717 = vmul.f32 %v3688, 1.442695
      %v3718 = vpow.pop %v3717
      %v3719 = vmul.f32 %v3689, 1.442695
      %v3720 = vpow.pop %v3719
      %v3721 = vmul.f32 %v3690, 1.442695
      %v3722 = vpow.pop %v3721
      %3723 = vadd.xlane.f32.xlu0 %v3692
      %v3724 = vpop.xlane.xlu0 %3723
      %3725 = vadd.xlane.f32.xlu0 %v3694
      %v3726 = vpop.xlane.xlu0 %3725
      %3727 = vadd.xlane.f32.xlu0 %v3696
      %v3728 = vpop.xlane.xlu0 %3727
      %3729 = vadd.xlane.f32.xlu0 %v3698
      %v3730 = vpop.xlane.xlu0 %3729
      %3731 = vadd.xlane.f32.xlu0 %v3700
      %v3732 = vpop.xlane.xlu0 %3731
      %3733 = vadd.xlane.f32.xlu0 %v3702
      %v3734 = vpop.xlane.xlu0 %3733
      %3735 = vadd.xlane.f32.xlu0 %v3704
      %v3736 = vpop.xlane.xlu0 %3735
      %3737 = vadd.xlane.f32.xlu0 %v3706
      %v3738 = vpop.xlane.xlu0 %3737
      %3739 = vadd.xlane.f32.xlu0 %v3708
      %v3740 = vpop.xlane.xlu0 %3739
      %3741 = vadd.xlane.f32.xlu0 %v3710
      %v3742 = vpop.xlane.xlu0 %3741
      %3743 = vadd.xlane.f32.xlu0 %v3712
      %v3744 = vpop.xlane.xlu0 %3743
      %3745 = vadd.xlane.f32.xlu0 %v3714
      %v3746 = vpop.xlane.xlu0 %3745
      %3747 = vadd.xlane.f32.xlu0 %v3716
      %v3748 = vpop.xlane.xlu0 %3747
      %3749 = vadd.xlane.f32.xlu0 %v3718
      %v3750 = vpop.xlane.xlu0 %3749
      %3751 = vadd.xlane.f32.xlu0 %v3720
      %v3752 = vpop.xlane.xlu0 %3751
      %3753 = vadd.xlane.f32.xlu0 %v3722
      %v3754 = vpop.xlane.xlu0 %3753
      %v3755 = vrcp.pop %v3724
      %v3756 = vrcp.pop %v3726
      %v3757 = vrcp.pop %v3728
      %v3758 = vrcp.pop %v3730
      %v3759 = vrcp.pop %v3732
      %v3760 = vrcp.pop %v3734
      %v3761 = vrcp.pop %v3736
      %v3762 = vrcp.pop %v3738
      %v3763 = vrcp.pop %v3740
      %v3764 = vrcp.pop %v3742
      %v3765 = vrcp.pop %v3744
      %v3766 = vrcp.pop %v3746
      %v3767 = vrcp.pop %v3748
      %v3768 = vrcp.pop %v3750
      %v3769 = vrcp.pop %v3752
      %v3770 = vrcp.pop %v3754
      %v3771 = vmul.f32 %v3755, 0.33333334
      %v3772 = vmul.f32 %v3756, 0.33333334
      %v3773 = vmul.f32 %v3757, 0.33333334
      %v3774 = vmul.f32 %v3758, 0.33333334
      %v3775 = vmul.f32 %v3759, 0.33333334
      %v3776 = vmul.f32 %v3760, 0.33333334
      %v3777 = vmul.f32 %v3761, 0.33333334
      %v3778 = vmul.f32 %v3762, 0.33333334
      %v3779 = vmul.f32 %v3763, 0.33333334
      %v3780 = vmul.f32 %v3764, 0.33333334
      %v3781 = vmul.f32 %v3765, 0.33333334
      %v3782 = vmul.f32 %v3766, 0.33333334
      %v3783 = vmul.f32 %v3767, 0.33333334
      %v3784 = vmul.f32 %v3768, 0.33333334
      %v3785 = vmul.f32 %v3769, 0.33333334
      %v3786 = vmul.f32 %v3770, 0.33333334
      %v3787 = vmul.f32 %v3692, %v3771
      %v3788 = vmul.f32 %v3694, %v3772
      %v3789 = vmul.f32 %v3696, %v3773
      %v3790 = vmul.f32 %v3698, %v3774
      %v3791 = vmul.f32 %v3700, %v3775
      %v3792 = vmul.f32 %v3702, %v3776
      %v3793 = vmul.f32 %v3704, %v3777
      %v3794 = vmul.f32 %v3706, %v3778
      %v3795 = vmul.f32 %v3708, %v3779
      %v3796 = vmul.f32 %v3710, %v3780
      %v3797 = vmul.f32 %v3712, %v3781
      %v3798 = vmul.f32 %v3714, %v3782
      %v3799 = vmul.f32 %v3716, %v3783
      %v3800 = vmul.f32 %v3718, %v3784
      %v3801 = vmul.f32 %v3720, %v3785
      %v3802 = vmul.f32 %v3722, %v3786
      %v3803 = vpack.c.bf16 %v3788, %v3787
      %v3804 = vpack.c.bf16 %v3790, %v3789
      %v3805 = vpack.c.bf16 %v3792, %v3791
      %v3806 = vpack.c.bf16 %v3794, %v3793
      %v3807 = vpack.c.bf16 %v3796, %v3795
      %v3808 = vpack.c.bf16 %v3798, %v3797
      %v3809 = vpack.c.bf16 %v3800, %v3799
      %v3810 = vpack.c.bf16 %v3802, %v3801
      %3811 = vst [vmem:[#allocation3 + $0x8] sm:$0xff] %v3803
      %3812 = vst [vmem:[#allocation3 + $0x20] sm:$0xff] %v3804
      %3813 = vst [vmem:[#allocation3 + $0x38] sm:$0xff] %v3805
      %3814 = vst [vmem:[#allocation3 + $0x50] sm:$0xff] %v3806
      %3815 = vst [vmem:[#allocation3 + $0x68] sm:$0xff] %v3807
      %3816 = vst [vmem:[#allocation3 + $0x80] sm:$0xff] %v3808
      %3817 = vst [vmem:[#allocation3 + $0x98] sm:$0xff] %v3809
      %3818 = vst [vmem:[#allocation3 + $0xb0] sm:$0xff] %v3810
      %v3819 = vlaneseq
      %v3820 = vshrl.u32 %v3819, 7
      %v3821 = vsub.s32 2, %v3820
      %v3822 = vrot.slane %v3328, %v3821
      %v3823 = vadd.f32 %v3156, %v3822
      %v3824 = vadd.f32 %v3158, %v3822
      %v3825 = vadd.f32 %v3160, %v3822
      %v3826 = vadd.f32 %v3162, %v3822
      %v3827 = vadd.f32 %v3164, %v3822
      %v3828 = vadd.f32 %v3166, %v3822
      %v3829 = vadd.f32 %v3168, %v3822
      %v3830 = vadd.f32 %v3170, %v3822
      %v3831 = vadd.f32 %v3172, %v3822
      %v3832 = vadd.f32 %v3174, %v3822
      %v3833 = vadd.f32 %v3176, %v3822
      %v3834 = vadd.f32 %v3178, %v3822
      %v3835 = vadd.f32 %v3180, %v3822
      %v3836 = vadd.f32 %v3182, %v3822
      %v3837 = vadd.f32 %v3184, %v3822
      %v3838 = vadd.f32 %v3186, %v3822
      %v3839 = vmul.f32 %v3823, 0.2
      %v3840 = vmul.f32 %v3824, 0.2
      %v3841 = vmul.f32 %v3825, 0.2
      %v3842 = vmul.f32 %v3826, 0.2
      %v3843 = vmul.f32 %v3827, 0.2
      %v3844 = vmul.f32 %v3828, 0.2
      %v3845 = vmul.f32 %v3829, 0.2
      %v3846 = vmul.f32 %v3830, 0.2
      %v3847 = vmul.f32 %v3831, 0.2
      %v3848 = vmul.f32 %v3832, 0.2
      %v3849 = vmul.f32 %v3833, 0.2
      %v3850 = vmul.f32 %v3834, 0.2
      %v3851 = vmul.f32 %v3835, 0.2
      %v3852 = vmul.f32 %v3836, 0.2
      %v3853 = vmul.f32 %v3837, 0.2
      %v3854 = vmul.f32 %v3838, 0.2
      %v3855 = vmax.f32 %v3823, %v3839
      %v3856 = vmax.f32 %v3824, %v3840
      %v3857 = vmax.f32 %v3825, %v3841
      %v3858 = vmax.f32 %v3826, %v3842
      %v3859 = vmax.f32 %v3827, %v3843
      %v3860 = vmax.f32 %v3828, %v3844
      %v3861 = vmax.f32 %v3829, %v3845
      %v3862 = vmax.f32 %v3830, %v3846
      %v3863 = vmax.f32 %v3831, %v3847
      %v3864 = vmax.f32 %v3832, %v3848
      %v3865 = vmax.f32 %v3833, %v3849
      %v3866 = vmax.f32 %v3834, %v3850
      %v3867 = vmax.f32 %v3835, %v3851
      %v3868 = vmax.f32 %v3836, %v3852
      %v3869 = vmax.f32 %v3837, %v3853
      %v3870 = vmax.f32 %v3838, %v3854
      %v3871 = vadd.f32 %v3855, %v495
      %v3872 = vadd.f32 %v3856, %v496
      %v3873 = vadd.f32 %v3857, %v497
      %v3874 = vadd.f32 %v3858, %v498
      %v3875 = vadd.f32 %v3859, %v499
      %v3876 = vadd.f32 %v3860, %v500
      %v3877 = vadd.f32 %v3861, %v501
      %v3878 = vadd.f32 %v3862, %v502
      %v3879 = vadd.f32 %v3863, %v503
      %v3880 = vadd.f32 %v3864, %v504
      %v3881 = vadd.f32 %v3865, %v505
      %v3882 = vadd.f32 %v3866, %v506
      %v3883 = vadd.f32 %v3867, %v507
      %v3884 = vadd.f32 %v3868, %v508
      %v3885 = vadd.f32 %v3869, %v509
      %v3886 = vadd.f32 %v3870, %v510
      %3887 = vmax.xlane.f32.xlu0 %v3871
      %v3888 = vpop.xlane.xlu0 %3887
      %3889 = vmax.xlane.f32.xlu0 %v3872
      %v3890 = vpop.xlane.xlu0 %3889
      %3891 = vmax.xlane.f32.xlu0 %v3873
      %v3892 = vpop.xlane.xlu0 %3891
      %3893 = vmax.xlane.f32.xlu0 %v3874
      %v3894 = vpop.xlane.xlu0 %3893
      %3895 = vmax.xlane.f32.xlu0 %v3875
      %v3896 = vpop.xlane.xlu0 %3895
      %3897 = vmax.xlane.f32.xlu0 %v3876
      %v3898 = vpop.xlane.xlu0 %3897
      %3899 = vmax.xlane.f32.xlu0 %v3877
      %v3900 = vpop.xlane.xlu0 %3899
      %3901 = vmax.xlane.f32.xlu0 %v3878
      %v3902 = vpop.xlane.xlu0 %3901
      %3903 = vmax.xlane.f32.xlu0 %v3879
      %v3904 = vpop.xlane.xlu0 %3903
      %3905 = vmax.xlane.f32.xlu0 %v3880
      %v3906 = vpop.xlane.xlu0 %3905
      %3907 = vmax.xlane.f32.xlu0 %v3881
      %v3908 = vpop.xlane.xlu0 %3907
      %3909 = vmax.xlane.f32.xlu0 %v3882
      %v3910 = vpop.xlane.xlu0 %3909
      %3911 = vmax.xlane.f32.xlu0 %v3883
      %v3912 = vpop.xlane.xlu0 %3911
      %3913 = vmax.xlane.f32.xlu0 %v3884
      %v3914 = vpop.xlane.xlu0 %3913
      %3915 = vmax.xlane.f32.xlu0 %v3885
      %v3916 = vpop.xlane.xlu0 %3915
      %3917 = vmax.xlane.f32.xlu0 %v3886
      %v3918 = vpop.xlane.xlu0 %3917
      %v3919 = vsub.f32 %v3871, %v3888
      %v3920 = vsub.f32 %v3872, %v3890
      %v3921 = vsub.f32 %v3873, %v3892
      %v3922 = vsub.f32 %v3874, %v3894
      %v3923 = vsub.f32 %v3875, %v3896
      %v3924 = vsub.f32 %v3876, %v3898
      %v3925 = vsub.f32 %v3877, %v3900
      %v3926 = vsub.f32 %v3878, %v3902
      %v3927 = vsub.f32 %v3879, %v3904
      %v3928 = vsub.f32 %v3880, %v3906
      %v3929 = vsub.f32 %v3881, %v3908
      %v3930 = vsub.f32 %v3882, %v3910
      %v3931 = vsub.f32 %v3883, %v3912
      %v3932 = vsub.f32 %v3884, %v3914
      %v3933 = vsub.f32 %v3885, %v3916
      %v3934 = vsub.f32 %v3886, %v3918
      %v3935 = vmul.f32 %v3919, 1.442695
      %v3936 = vpow.pop %v3935
      %v3937 = vmul.f32 %v3920, 1.442695
      %v3938 = vpow.pop %v3937
      %v3939 = vmul.f32 %v3921, 1.442695
      %v3940 = vpow.pop %v3939
      %v3941 = vmul.f32 %v3922, 1.442695
      %v3942 = vpow.pop %v3941
      %v3943 = vmul.f32 %v3923, 1.442695
      %v3944 = vpow.pop %v3943
      %v3945 = vmul.f32 %v3924, 1.442695
      %v3946 = vpow.pop %v3945
      %v3947 = vmul.f32 %v3925, 1.442695
      %v3948 = vpow.pop %v3947
      %v3949 = vmul.f32 %v3926, 1.442695
      %v3950 = vpow.pop %v3949
      %v3951 = vmul.f32 %v3927, 1.442695
      %v3952 = vpow.pop %v3951
      %v3953 = vmul.f32 %v3928, 1.442695
      %v3954 = vpow.pop %v3953
      %v3955 = vmul.f32 %v3929, 1.442695
      %v3956 = vpow.pop %v3955
      %v3957 = vmul.f32 %v3930, 1.442695
      %v3958 = vpow.pop %v3957
      %v3959 = vmul.f32 %v3931, 1.442695
      %v3960 = vpow.pop %v3959
      %v3961 = vmul.f32 %v3932, 1.442695
      %v3962 = vpow.pop %v3961
      %v3963 = vmul.f32 %v3933, 1.442695
      %v3964 = vpow.pop %v3963
      %v3965 = vmul.f32 %v3934, 1.442695
      %v3966 = vpow.pop %v3965
      %3967 = vadd.xlane.f32.xlu0 %v3936
      %v3968 = vpop.xlane.xlu0 %3967
      %3969 = vadd.xlane.f32.xlu0 %v3938
      %v3970 = vpop.xlane.xlu0 %3969
      %3971 = vadd.xlane.f32.xlu0 %v3940
      %v3972 = vpop.xlane.xlu0 %3971
      %3973 = vadd.xlane.f32.xlu0 %v3942
      %v3974 = vpop.xlane.xlu0 %3973
      %3975 = vadd.xlane.f32.xlu0 %v3944
      %v3976 = vpop.xlane.xlu0 %3975
      %3977 = vadd.xlane.f32.xlu0 %v3946
      %v3978 = vpop.xlane.xlu0 %3977
      %3979 = vadd.xlane.f32.xlu0 %v3948
      %v3980 = vpop.xlane.xlu0 %3979
      %3981 = vadd.xlane.f32.xlu0 %v3950
      %v3982 = vpop.xlane.xlu0 %3981
      %3983 = vadd.xlane.f32.xlu0 %v3952
      %v3984 = vpop.xlane.xlu0 %3983
      %3985 = vadd.xlane.f32.xlu0 %v3954
      %v3986 = vpop.xlane.xlu0 %3985
      %3987 = vadd.xlane.f32.xlu0 %v3956
      %v3988 = vpop.xlane.xlu0 %3987
      %3989 = vadd.xlane.f32.xlu0 %v3958
      %v3990 = vpop.xlane.xlu0 %3989
      %3991 = vadd.xlane.f32.xlu0 %v3960
      %v3992 = vpop.xlane.xlu0 %3991
      %3993 = vadd.xlane.f32.xlu0 %v3962
      %v3994 = vpop.xlane.xlu0 %3993
      %3995 = vadd.xlane.f32.xlu0 %v3964
      %v3996 = vpop.xlane.xlu0 %3995
      %3997 = vadd.xlane.f32.xlu0 %v3966
      %v3998 = vpop.xlane.xlu0 %3997
      %v3999 = vrcp.pop %v3968
      %v4000 = vrcp.pop %v3970
      %v4001 = vrcp.pop %v3972
      %v4002 = vrcp.pop %v3974
      %v4003 = vrcp.pop %v3976
      %v4004 = vrcp.pop %v3978
      %v4005 = vrcp.pop %v3980
      %v4006 = vrcp.pop %v3982
      %v4007 = vrcp.pop %v3984
      %v4008 = vrcp.pop %v3986
      %v4009 = vrcp.pop %v3988
      %v4010 = vrcp.pop %v3990
      %v4011 = vrcp.pop %v3992
      %v4012 = vrcp.pop %v3994
      %v4013 = vrcp.pop %v3996
      %v4014 = vrcp.pop %v3998
      %v4015 = vmul.f32 %v3999, 0.33333334
      %v4016 = vmul.f32 %v4000, 0.33333334
      %v4017 = vmul.f32 %v4001, 0.33333334
      %v4018 = vmul.f32 %v4002, 0.33333334
      %v4019 = vmul.f32 %v4003, 0.33333334
      %v4020 = vmul.f32 %v4004, 0.33333334
      %v4021 = vmul.f32 %v4005, 0.33333334
      %v4022 = vmul.f32 %v4006, 0.33333334
      %v4023 = vmul.f32 %v4007, 0.33333334
      %v4024 = vmul.f32 %v4008, 0.33333334
      %v4025 = vmul.f32 %v4009, 0.33333334
      %v4026 = vmul.f32 %v4010, 0.33333334
      %v4027 = vmul.f32 %v4011, 0.33333334
      %v4028 = vmul.f32 %v4012, 0.33333334
      %v4029 = vmul.f32 %v4013, 0.33333334
      %v4030 = vmul.f32 %v4014, 0.33333334
      %v4031 = vmul.f32 %v3936, %v4015
      %v4032 = vmul.f32 %v3938, %v4016
      %v4033 = vmul.f32 %v3940, %v4017
      %v4034 = vmul.f32 %v3942, %v4018
      %v4035 = vmul.f32 %v3944, %v4019
      %v4036 = vmul.f32 %v3946, %v4020
      %v4037 = vmul.f32 %v3948, %v4021
      %v4038 = vmul.f32 %v3950, %v4022
      %v4039 = vmul.f32 %v3952, %v4023
      %v4040 = vmul.f32 %v3954, %v4024
      %v4041 = vmul.f32 %v3956, %v4025
      %v4042 = vmul.f32 %v3958, %v4026
      %v4043 = vmul.f32 %v3960, %v4027
      %v4044 = vmul.f32 %v3962, %v4028
      %v4045 = vmul.f32 %v3964, %v4029
      %v4046 = vmul.f32 %v3966, %v4030
      %v4047 = vpack.c.bf16 %v4032, %v4031
      %v4048 = vpack.c.bf16 %v4034, %v4033
      %v4049 = vpack.c.bf16 %v4036, %v4035
      %v4050 = vpack.c.bf16 %v4038, %v4037
      %v4051 = vpack.c.bf16 %v4040, %v4039
      %v4052 = vpack.c.bf16 %v4042, %v4041
      %v4053 = vpack.c.bf16 %v4044, %v4043
      %v4054 = vpack.c.bf16 %v4046, %v4045
      %4055 = vst [vmem:[#allocation3 + $0x10] sm:$0xff] %v4047
      %4056 = vst [vmem:[#allocation3 + $0x28] sm:$0xff] %v4048
      %4057 = vst [vmem:[#allocation3 + $0x40] sm:$0xff] %v4049
      %4058 = vst [vmem:[#allocation3 + $0x58] sm:$0xff] %v4050
      %4059 = vst [vmem:[#allocation3 + $0x70] sm:$0xff] %v4051
      %4060 = vst [vmem:[#allocation3 + $0x88] sm:$0xff] %v4052
      %4061 = vst [vmem:[#allocation3 + $0xa0] sm:$0xff] %v4053
      %4062 = vst [vmem:[#allocation3 + $0xb8] sm:$0xff] %v4054
      %v4063 = vld [vmem:[#allocation3] sm:$0xff]
      %v4064 = vld [vmem:[#allocation3 + $0x8] sm:$0xff]
      %v4065 = vld [vmem:[#allocation3 + $0x10] sm:$0xff]
      %v4066 = vld [vmem:[#allocation3 + $0x18] sm:$0xff]
      %v4067 = vld [vmem:[#allocation3 + $0x20] sm:$0xff]
      %v4068 = vld [vmem:[#allocation3 + $0x28] sm:$0xff]
      %v4069 = vld [vmem:[#allocation3 + $0x30] sm:$0xff]
      %v4070 = vld [vmem:[#allocation3 + $0x38] sm:$0xff]
      %v4071 = vld [vmem:[#allocation3 + $0x40] sm:$0xff]
      %v4072 = vld [vmem:[#allocation3 + $0x48] sm:$0xff]
      %v4073 = vld [vmem:[#allocation3 + $0x50] sm:$0xff]
      %v4074 = vld [vmem:[#allocation3 + $0x58] sm:$0xff]
      %v4075 = vld [vmem:[#allocation3 + $0x60] sm:$0xff]
      %v4076 = vld [vmem:[#allocation3 + $0x68] sm:$0xff]
      %v4077 = vld [vmem:[#allocation3 + $0x70] sm:$0xff]
      %v4078 = vld [vmem:[#allocation3 + $0x78] sm:$0xff]
      %v4079 = vld [vmem:[#allocation3 + $0x80] sm:$0xff]
      %v4080 = vld [vmem:[#allocation3 + $0x88] sm:$0xff]
      %v4081 = vld [vmem:[#allocation3 + $0x90] sm:$0xff]
      %v4082 = vld [vmem:[#allocation3 + $0x98] sm:$0xff]
      %v4083 = vld [vmem:[#allocation3 + $0xa0] sm:$0xff]
      %v4084 = vld [vmem:[#allocation3 + $0xa8] sm:$0xff]
      %v4085 = vld [vmem:[#allocation3 + $0xb0] sm:$0xff]
      %v4086 = vld [vmem:[#allocation3 + $0xb8] sm:$0xff]
      %v4087 = vld [vmem:[#allocation2] sm:$0xff]
      %v4088 = vld [vmem:[#allocation2 + $0x8] sm:$0xff]
      %v4089 = vld [vmem:[#allocation2 + $0x10] sm:$0xff]
      %v4090 = vld [vmem:[#allocation2 + $0x18] sm:$0xff]
      %v4091 = vld [vmem:[#allocation2 + $0x20] sm:$0xff]
      %v4092 = vld [vmem:[#allocation2 + $0x28] sm:$0xff]
      %v4093 = vld [vmem:[#allocation2 + $0x30] sm:$0xff]
      %v4094 = vld [vmem:[#allocation2 + $0x38] sm:$0xff]
      %v4095 = vld [vmem:[#allocation2 + $0x40] sm:$0xff]
      %v4096 = vld [vmem:[#allocation2 + $0x48] sm:$0xff]
      %v4097 = vld [vmem:[#allocation2 + $0x50] sm:$0xff]
      %v4098 = vld [vmem:[#allocation2 + $0x58] sm:$0xff]
      %v4099 = vld [vmem:[#allocation2 + $0x60] sm:$0xff]
      %v4100 = vld [vmem:[#allocation2 + $0x68] sm:$0xff]
      %v4101 = vld [vmem:[#allocation2 + $0x70] sm:$0xff]
      %v4102 = vld [vmem:[#allocation2 + $0x78] sm:$0xff]
      %v4103 = vld [vmem:[#allocation2 + $0x80] sm:$0xff]
      %v4104 = vld [vmem:[#allocation2 + $0x88] sm:$0xff]
      %v4105 = vld [vmem:[#allocation2 + $0x90] sm:$0xff]
      %v4106 = vld [vmem:[#allocation2 + $0x98] sm:$0xff]
      %v4107 = vld [vmem:[#allocation2 + $0xa0] sm:$0xff]
      %v4108 = vld [vmem:[#allocation2 + $0xa8] sm:$0xff]
      %v4109 = vld [vmem:[#allocation2 + $0xb0] sm:$0xff]
      %v4110 = vld [vmem:[#allocation2 + $0xb8] sm:$0xff]
      %s4111 = scalar_lea.vmem %s464, 1
      %v4112 = vld [vmem:[%s4111] sm:$0x1]
      %v4114 = vlaneseq
      %v4115 = vshrl.u32 %v4114, 7
      %v4116 = vsub.s32 0, %v4115
      %v4117 = vrot.slane %v4112, %v4116
      %4119 = vmatprep.subr.bf16.mxu0 0
      %4120 = vmatpush1.bf16.msra.mxu0 %v4087
      %4121 = vmatprep.subr.bf16.mxu0 0
      %4122 = vmatpush1.bf16.msra.mxu0 %v4088
      %4123 = vmatprep.subr.bf16.mxu0 0
      %4124 = vmatpush1.bf16.msra.mxu0 %v4089
      %4125 = vmatprep.subr.bf16.mxu0 0
      %4126 = vmatpush1.bf16.msra.mxu0 %v4090
      %4127 = vmatprep.subr.bf16.mxu0 0
      %4128 = vmatpush1.bf16.msra.mxu0 %v4091
      %4129 = vmatprep.subr.bf16.mxu0 0
      %4130 = vmatpush1.bf16.msra.mxu0 %v4092
      %4131 = vmatprep.subr.bf16.mxu0 0
      %4132 = vmatpush1.bf16.msra.mxu0 %v4093
      %4133 = vmatprep.subr.bf16.mxu0 0
      %4134 = vmatpush1.bf16.msra.mxu0 %v4094
      %4135 = vmatprep.subr.bf16.mxu0 0
      %4136 = vmatpush1.bf16.msra.mxu0 %v4095
      %4137 = vmatprep.subr.bf16.mxu0 0
      %4138 = vmatpush1.bf16.msra.mxu0 %v4096
      %4139 = vmatprep.subr.bf16.mxu0 0
      %4140 = vmatpush1.bf16.msra.mxu0 %v4097
      %4141 = vmatprep.subr.bf16.mxu0 0
      %4142 = vmatpush1.bf16.msra.mxu0 %v4098
      %4143 = vmatprep.subr.bf16.mxu0 0
      %4144 = vmatpush1.bf16.msra.mxu0 %v4099
      %4145 = vmatprep.subr.bf16.mxu0 0
      %4146 = vmatpush1.bf16.msra.mxu0 %v4100
      %4147 = vmatprep.subr.bf16.mxu0 0
      %4148 = vmatpush1.bf16.msra.mxu0 %v4101
      %4149 = vmatprep.subr.bf16.mxu0 0
      %4150 = vmatpush1.bf16.msra.mxu0 %v4102
      %4151 = vmatprep.mubr.bf16.mxu0 %v4064
      %4152 = vmatmul.mubr.bf16.gmra.mrb[0].mxu0 %v4063
      %v4153 = vpop.f32.mrb[0].mxu0
      %v4154 = vadd.f32 %v4117, %v4153
      %v4155 = vpop.f32.mrb[0].mxu0
      %v4156 = vpop.f32.mrb[0].mxu0
      %v4157 = vadd.f32 %v4117, %v4156
      %v4158 = vpop.f32.mrb[0].mxu0
      %4159 = vmatprep.mubr.bf16.mxu0 %v4067
      %4160 = vmatmul.mubr.bf16.gmra.mrb[0].mxu0 %v4066
      %v4161 = vpop.f32.mrb[0].mxu0
      %v4162 = vadd.f32 %v4117, %v4161
      %v4163 = vpop.f32.mrb[0].mxu0
      %v4164 = vpop.f32.mrb[0].mxu0
      %v4165 = vadd.f32 %v4117, %v4164
      %v4166 = vpop.f32.mrb[0].mxu0
      %4167 = vmatprep.mubr.bf16.mxu0 %v4070
      %4168 = vmatmul.mubr.bf16.gmra.mrb[0].mxu0 %v4069
      %v4169 = vpop.f32.mrb[0].mxu0
      %v4170 = vadd.f32 %v4117, %v4169
      %v4171 = vpop.f32.mrb[0].mxu0
      %v4172 = vpop.f32.mrb[0].mxu0
      %v4173 = vadd.f32 %v4117, %v4172
      %v4174 = vpop.f32.mrb[0].mxu0
      %4175 = vmatprep.mubr.bf16.mxu0 %v4073
      %4176 = vmatmul.mubr.bf16.gmra.mrb[0].mxu0 %v4072
      %v4177 = vpop.f32.mrb[0].mxu0
      %v4178 = vadd.f32 %v4117, %v4177
      %v4179 = vpop.f32.mrb[0].mxu0
      %v4180 = vpop.f32.mrb[0].mxu0
      %v4181 = vadd.f32 %v4117, %v4180
      %v4182 = vpop.f32.mrb[0].mxu0
      %4183 = vmatprep.mubr.bf16.mxu0 %v4076
      %4184 = vmatmul.mubr.bf16.gmra.mrb[0].mxu0 %v4075
      %v4185 = vpop.f32.mrb[0].mxu0
      %v4186 = vadd.f32 %v4117, %v4185
      %v4187 = vpop.f32.mrb[0].mxu0
      %v4188 = vpop.f32.mrb[0].mxu0
      %v4189 = vadd.f32 %v4117, %v4188
      %v4190 = vpop.f32.mrb[0].mxu0
      %4191 = vmatprep.mubr.bf16.mxu0 %v4079
      %4192 = vmatmul.mubr.bf16.gmra.mrb[0].mxu0 %v4078
      %v4193 = vpop.f32.mrb[0].mxu0
      %v4194 = vadd.f32 %v4117, %v4193
      %v4195 = vpop.f32.mrb[0].mxu0
      %v4196 = vpop.f32.mrb[0].mxu0
      %v4197 = vadd.f32 %v4117, %v4196
      %v4198 = vpop.f32.mrb[0].mxu0
      %4199 = vmatprep.mubr.bf16.mxu0 %v4082
      %4200 = vmatmul.mubr.bf16.gmra.mrb[0].mxu0 %v4081
      %v4201 = vpop.f32.mrb[0].mxu0
      %v4202 = vadd.f32 %v4117, %v4201
      %v4203 = vpop.f32.mrb[0].mxu0
      %v4204 = vpop.f32.mrb[0].mxu0
      %v4205 = vadd.f32 %v4117, %v4204
      %v4206 = vpop.f32.mrb[0].mxu0
      %4207 = vmatprep.mubr.bf16.mxu0 %v4085
      %4208 = vmatmul.mubr.bf16.gmra.mrb[0].mxu0 %v4084
      %v4209 = vpop.f32.mrb[0].mxu0
      %v4210 = vadd.f32 %v4117, %v4209
      %v4211 = vpop.f32.mrb[0].mxu0
      %v4212 = vpop.f32.mrb[0].mxu0
      %v4213 = vadd.f32 %v4117, %v4212
      %v4214 = vpop.f32.mrb[0].mxu0
      %4215 = vdwg.mxu0
      %4216 = vmatprep.subr.bf16.mxu0 0
      %4217 = vmatpush1.bf16.msra.mxu0 %v4103
      %4218 = vmatprep.subr.bf16.mxu0 0
      %4219 = vmatpush1.bf16.msra.mxu0 %v4104
      %4220 = vmatprep.subr.bf16.mxu0 0
      %4221 = vmatpush1.bf16.msra.mxu0 %v4105
      %4222 = vmatprep.subr.bf16.mxu0 0
      %4223 = vmatpush1.bf16.msra.mxu0 %v4106
      %4224 = vmatprep.subr.bf16.mxu0 0
      %4225 = vmatpush1.bf16.msra.mxu0 %v4107
      %4226 = vmatprep.subr.bf16.mxu0 0
      %4227 = vmatpush1.bf16.msra.mxu0 %v4108
      %4228 = vmatprep.subr.bf16.mxu0 0
      %4229 = vmatpush1.bf16.msra.mxu0 %v4109
      %4230 = vmatprep.subr.bf16.mxu0 0
      %4231 = vmatpush1.bf16.msra.mxu0 %v4110
      %4232 = vmatprep.subr.bf16.mxu0 0
      %4233 = vmatpush1.bf16.msra.mxu0 0
      %4234 = vmatprep.subr.bf16.mxu0 0
      %4235 = vmatpush1.bf16.msra.mxu0 0
      %4236 = vmatprep.subr.bf16.mxu0 0
      %4237 = vmatpush1.bf16.msra.mxu0 0
      %4238 = vmatprep.subr.bf16.mxu0 0
      %4239 = vmatpush1.bf16.msra.mxu0 0
      %4240 = vmatprep.subr.bf16.mxu0 0
      %4241 = vmatpush1.bf16.msra.mxu0 0
      %4242 = vmatprep.subr.bf16.mxu0 0
      %4243 = vmatpush1.bf16.msra.mxu0 0
      %4244 = vmatprep.subr.bf16.mxu0 0
      %4245 = vmatpush1.bf16.msra.mxu0 0
      %4246 = vmatprep.subr.bf16.mxu0 0
      %4247 = vmatpush1.bf16.msra.mxu0 0
      %4248 = vmatprep.mubr.bf16.mxu0 0
      %4249 = vmatmul.mubr.bf16.gmra.mrb[0].mxu0 %v4065
      %v4250 = vpop.f32.mrb[0].mxu0
      %v4251 = vadd.f32 %v4154, %v4250
      %v4252 = vpop.f32.mrb[0].mxu0
      %v4253 = vpop.f32.mrb[0].mxu0
      %v4254 = vadd.f32 %v4157, %v4253
      %v4255 = vpop.f32.mrb[0].mxu0
      %4256 = vmatprep.mubr.bf16.mxu0 0
      %4257 = vmatmul.mubr.bf16.gmra.mrb[0].mxu0 %v4068
      %v4258 = vpop.f32.mrb[0].mxu0
      %v4259 = vadd.f32 %v4162, %v4258
      %v4260 = vpop.f32.mrb[0].mxu0
      %v4261 = vpop.f32.mrb[0].mxu0
      %v4262 = vadd.f32 %v4165, %v4261
      %v4263 = vpop.f32.mrb[0].mxu0
      %4264 = vmatprep.mubr.bf16.mxu0 0
      %4265 = vmatmul.mubr.bf16.gmra.mrb[0].mxu0 %v4071
      %v4266 = vpop.f32.mrb[0].mxu0
      %v4267 = vadd.f32 %v4170, %v4266
      %v4268 = vpop.f32.mrb[0].mxu0
      %v4269 = vpop.f32.mrb[0].mxu0
      %v4270 = vadd.f32 %v4173, %v4269
      %v4271 = vpop.f32.mrb[0].mxu0
      %4272 = vmatprep.mubr.bf16.mxu0 0
      %4273 = vmatmul.mubr.bf16.gmra.mrb[0].mxu0 %v4074
      %v4274 = vpop.f32.mrb[0].mxu0
      %v4275 = vadd.f32 %v4178, %v4274
      %v4276 = vpop.f32.mrb[0].mxu0
      %v4277 = vpop.f32.mrb[0].mxu0
      %v4278 = vadd.f32 %v4181, %v4277
      %v4279 = vpop.f32.mrb[0].mxu0
      %4280 = vmatprep.mubr.bf16.mxu0 0
      %4281 = vmatmul.mubr.bf16.gmra.mrb[0].mxu0 %v4077
      %v4282 = vpop.f32.mrb[0].mxu0
      %v4283 = vadd.f32 %v4186, %v4282
      %v4284 = vpop.f32.mrb[0].mxu0
      %v4285 = vpop.f32.mrb[0].mxu0
      %v4286 = vadd.f32 %v4189, %v4285
      %v4287 = vpop.f32.mrb[0].mxu0
      %4288 = vmatprep.mubr.bf16.mxu0 0
      %4289 = vmatmul.mubr.bf16.gmra.mrb[0].mxu0 %v4080
      %v4290 = vpop.f32.mrb[0].mxu0
      %v4291 = vadd.f32 %v4194, %v4290
      %v4292 = vpop.f32.mrb[0].mxu0
      %v4293 = vpop.f32.mrb[0].mxu0
      %v4294 = vadd.f32 %v4197, %v4293
      %v4295 = vpop.f32.mrb[0].mxu0
      %4296 = vmatprep.mubr.bf16.mxu0 0
      %4297 = vmatmul.mubr.bf16.gmra.mrb[0].mxu0 %v4083
      %v4298 = vpop.f32.mrb[0].mxu0
      %v4299 = vadd.f32 %v4202, %v4298
      %v4300 = vpop.f32.mrb[0].mxu0
      %v4301 = vpop.f32.mrb[0].mxu0
      %v4302 = vadd.f32 %v4205, %v4301
      %v4303 = vpop.f32.mrb[0].mxu0
      %4304 = vmatprep.mubr.bf16.mxu0 0
      %4305 = vmatmul.mubr.bf16.gmra.mrb[0].mxu0 %v4086
      %v4306 = vpop.f32.mrb[0].mxu0
      %v4307 = vadd.f32 %v4210, %v4306
      %v4308 = vpop.f32.mrb[0].mxu0
      %v4309 = vpop.f32.mrb[0].mxu0
      %v4310 = vadd.f32 %v4213, %v4309
      %v4311 = vpop.f32.mrb[0].mxu0
      %4312 = vdwg.mxu0
      %4313 = vadd.xlane.f32.xlu0 %v4251
      %v4314 = vpop.xlane.xlu0 %4313
      %4315 = vadd.xlane.f32.xlu0 %v4254
      %v4316 = vpop.xlane.xlu0 %4315
      %4317 = vadd.xlane.f32.xlu0 %v4259
      %v4318 = vpop.xlane.xlu0 %4317
      %4319 = vadd.xlane.f32.xlu0 %v4262
      %v4320 = vpop.xlane.xlu0 %4319
      %4321 = vadd.xlane.f32.xlu0 %v4267
      %v4322 = vpop.xlane.xlu0 %4321
      %4323 = vadd.xlane.f32.xlu0 %v4270
      %v4324 = vpop.xlane.xlu0 %4323
      %4325 = vadd.xlane.f32.xlu0 %v4275
      %v4326 = vpop.xlane.xlu0 %4325
      %4327 = vadd.xlane.f32.xlu0 %v4278
      %v4328 = vpop.xlane.xlu0 %4327
      %4329 = vadd.xlane.f32.xlu0 %v4283
      %v4330 = vpop.xlane.xlu0 %4329
      %4331 = vadd.xlane.f32.xlu0 %v4286
      %v4332 = vpop.xlane.xlu0 %4331
      %4333 = vadd.xlane.f32.xlu0 %v4291
      %v4334 = vpop.xlane.xlu0 %4333
      %4335 = vadd.xlane.f32.xlu0 %v4294
      %v4336 = vpop.xlane.xlu0 %4335
      %4337 = vadd.xlane.f32.xlu0 %v4299
      %v4338 = vpop.xlane.xlu0 %4337
      %4339 = vadd.xlane.f32.xlu0 %v4302
      %v4340 = vpop.xlane.xlu0 %4339
      %4341 = vadd.xlane.f32.xlu0 %v4307
      %v4342 = vpop.xlane.xlu0 %4341
      %4343 = vadd.xlane.f32.xlu0 %v4310
      %v4344 = vpop.xlane.xlu0 %4343
      %v4345 = vmul.f32 %v4314, %v2331
      %v4346 = vmul.f32 %v4316, %v2331
      %v4347 = vmul.f32 %v4318, %v2331
      %v4348 = vmul.f32 %v4320, %v2331
      %v4349 = vmul.f32 %v4322, %v2331
      %v4350 = vmul.f32 %v4324, %v2331
      %v4351 = vmul.f32 %v4326, %v2331
      %v4352 = vmul.f32 %v4328, %v2331
      %v4353 = vmul.f32 %v4330, %v2331
      %v4354 = vmul.f32 %v4332, %v2331
      %v4355 = vmul.f32 %v4334, %v2331
      %v4356 = vmul.f32 %v4336, %v2331
      %v4357 = vmul.f32 %v4338, %v2331
      %v4358 = vmul.f32 %v4340, %v2331
      %v4359 = vmul.f32 %v4342, %v2331
      %v4360 = vmul.f32 %v4344, %v2331
      %v4361 = vsub.f32 %v4251, %v4345
      %v4362 = vsub.f32 %v4254, %v4346
      %v4363 = vsub.f32 %v4259, %v4347
      %v4364 = vsub.f32 %v4262, %v4348
      %v4365 = vsub.f32 %v4267, %v4349
      %v4366 = vsub.f32 %v4270, %v4350
      %v4367 = vsub.f32 %v4275, %v4351
      %v4368 = vsub.f32 %v4278, %v4352
      %v4369 = vsub.f32 %v4283, %v4353
      %v4370 = vsub.f32 %v4286, %v4354
      %v4371 = vsub.f32 %v4291, %v4355
      %v4372 = vsub.f32 %v4294, %v4356
      %v4373 = vsub.f32 %v4299, %v4357
      %v4374 = vsub.f32 %v4302, %v4358
      %v4375 = vsub.f32 %v4307, %v4359
      %v4376 = vsub.f32 %v4310, %v4360
      %v4377 = vmul.f32 %v4361, %v4361
      %v4378 = vmul.f32 %v4362, %v4362
      %v4379 = vmul.f32 %v4363, %v4363
      %v4380 = vmul.f32 %v4364, %v4364
      %v4381 = vmul.f32 %v4365, %v4365
      %v4382 = vmul.f32 %v4366, %v4366
      %v4383 = vmul.f32 %v4367, %v4367
      %v4384 = vmul.f32 %v4368, %v4368
      %v4385 = vmul.f32 %v4369, %v4369
      %v4386 = vmul.f32 %v4370, %v4370
      %v4387 = vmul.f32 %v4371, %v4371
      %v4388 = vmul.f32 %v4372, %v4372
      %v4389 = vmul.f32 %v4373, %v4373
      %v4390 = vmul.f32 %v4374, %v4374
      %v4391 = vmul.f32 %v4375, %v4375
      %v4392 = vmul.f32 %v4376, %v4376
      %4393 = vadd.xlane.f32.xlu0 %v4377
      %v4394 = vpop.xlane.xlu0 %4393
      %4395 = vadd.xlane.f32.xlu0 %v4378
      %v4396 = vpop.xlane.xlu0 %4395
      %4397 = vadd.xlane.f32.xlu0 %v4379
      %v4398 = vpop.xlane.xlu0 %4397
      %4399 = vadd.xlane.f32.xlu0 %v4380
      %v4400 = vpop.xlane.xlu0 %4399
      %4401 = vadd.xlane.f32.xlu0 %v4381
      %v4402 = vpop.xlane.xlu0 %4401
      %4403 = vadd.xlane.f32.xlu0 %v4382
      %v4404 = vpop.xlane.xlu0 %4403
      %4405 = vadd.xlane.f32.xlu0 %v4383
      %v4406 = vpop.xlane.xlu0 %4405
      %4407 = vadd.xlane.f32.xlu0 %v4384
      %v4408 = vpop.xlane.xlu0 %4407
      %4409 = vadd.xlane.f32.xlu0 %v4385
      %v4410 = vpop.xlane.xlu0 %4409
      %4411 = vadd.xlane.f32.xlu0 %v4386
      %v4412 = vpop.xlane.xlu0 %4411
      %4413 = vadd.xlane.f32.xlu0 %v4387
      %v4414 = vpop.xlane.xlu0 %4413
      %4415 = vadd.xlane.f32.xlu0 %v4388
      %v4416 = vpop.xlane.xlu0 %4415
      %4417 = vadd.xlane.f32.xlu0 %v4389
      %v4418 = vpop.xlane.xlu0 %4417
      %4419 = vadd.xlane.f32.xlu0 %v4390
      %v4420 = vpop.xlane.xlu0 %4419
      %4421 = vadd.xlane.f32.xlu0 %v4391
      %v4422 = vpop.xlane.xlu0 %4421
      %4423 = vadd.xlane.f32.xlu0 %v4392
      %v4424 = vpop.xlane.xlu0 %4423
      %v4425 = vmul.f32 %v4394, %v2331
      %v4426 = vmul.f32 %v4396, %v2331
      %v4427 = vmul.f32 %v4398, %v2331
      %v4428 = vmul.f32 %v4400, %v2331
      %v4429 = vmul.f32 %v4402, %v2331
      %v4430 = vmul.f32 %v4404, %v2331
      %v4431 = vmul.f32 %v4406, %v2331
      %v4432 = vmul.f32 %v4408, %v2331
      %v4433 = vmul.f32 %v4410, %v2331
      %v4434 = vmul.f32 %v4412, %v2331
      %v4435 = vmul.f32 %v4414, %v2331
      %v4436 = vmul.f32 %v4416, %v2331
      %v4437 = vmul.f32 %v4418, %v2331
      %v4438 = vmul.f32 %v4420, %v2331
      %v4439 = vmul.f32 %v4422, %v2331
      %v4440 = vmul.f32 %v4424, %v2331
      %v4441 = vadd.f32 %v4425, 1e-05
      %v4442 = vadd.f32 %v4426, 1e-05
      %v4443 = vadd.f32 %v4427, 1e-05
      %v4444 = vadd.f32 %v4428, 1e-05
      %v4445 = vadd.f32 %v4429, 1e-05
      %v4446 = vadd.f32 %v4430, 1e-05
      %v4447 = vadd.f32 %v4431, 1e-05
      %v4448 = vadd.f32 %v4432, 1e-05
      %v4449 = vadd.f32 %v4433, 1e-05
      %v4450 = vadd.f32 %v4434, 1e-05
      %v4451 = vadd.f32 %v4435, 1e-05
      %v4452 = vadd.f32 %v4436, 1e-05
      %v4453 = vadd.f32 %v4437, 1e-05
      %v4454 = vadd.f32 %v4438, 1e-05
      %v4455 = vadd.f32 %v4439, 1e-05
      %v4456 = vadd.f32 %v4440, 1e-05
      %v4457 = vrsqrt.pop %v4441
      %v4458 = vrsqrt.pop %v4442
      %v4459 = vrsqrt.pop %v4443
      %v4460 = vrsqrt.pop %v4444
      %v4461 = vrsqrt.pop %v4445
      %v4462 = vrsqrt.pop %v4446
      %v4463 = vrsqrt.pop %v4447
      %v4464 = vrsqrt.pop %v4448
      %v4465 = vrsqrt.pop %v4449
      %v4466 = vrsqrt.pop %v4450
      %v4467 = vrsqrt.pop %v4451
      %v4468 = vrsqrt.pop %v4452
      %v4469 = vrsqrt.pop %v4453
      %v4470 = vrsqrt.pop %v4454
      %v4471 = vrsqrt.pop %v4455
      %v4472 = vrsqrt.pop %v4456
      %v4473 = vmul.f32 %v4361, %v4457
      %v4474 = vmul.f32 %v4362, %v4458
      %v4475 = vmul.f32 %v4363, %v4459
      %v4476 = vmul.f32 %v4364, %v4460
      %v4477 = vmul.f32 %v4365, %v4461
      %v4478 = vmul.f32 %v4366, %v4462
      %v4479 = vmul.f32 %v4367, %v4463
      %v4480 = vmul.f32 %v4368, %v4464
      %v4481 = vmul.f32 %v4369, %v4465
      %v4482 = vmul.f32 %v4370, %v4466
      %v4483 = vmul.f32 %v4371, %v4467
      %v4484 = vmul.f32 %v4372, %v4468
      %v4485 = vmul.f32 %v4373, %v4469
      %v4486 = vmul.f32 %v4374, %v4470
      %v4487 = vmul.f32 %v4375, %v4471
      %v4488 = vmul.f32 %v4376, %v4472
      %s4489 = scalar_lea.vmem %s468, 1
      %v4490 = vld [vmem:[%s4489] sm:$0x1]
      %v4492 = vlaneseq
      %v4493 = vshrl.u32 %v4492, 7
      %v4494 = vsub.s32 0, %v4493
      %v4495 = vrot.slane %v4490, %v4494
      %v4497 = vmul.f32 %v4473, %v4495
      %v4498 = vmul.f32 %v4474, %v4495
      %v4499 = vmul.f32 %v4475, %v4495
      %v4500 = vmul.f32 %v4476, %v4495
      %v4501 = vmul.f32 %v4477, %v4495
      %v4502 = vmul.f32 %v4478, %v4495
      %v4503 = vmul.f32 %v4479, %v4495
      %v4504 = vmul.f32 %v4480, %v4495
      %v4505 = vmul.f32 %v4481, %v4495
      %v4506 = vmul.f32 %v4482, %v4495
      %v4507 = vmul.f32 %v4483, %v4495
      %v4508 = vmul.f32 %v4484, %v4495
      %v4509 = vmul.f32 %v4485, %v4495
      %v4510 = vmul.f32 %v4486, %v4495
      %v4511 = vmul.f32 %v4487, %v4495
      %v4512 = vmul.f32 %v4488, %v4495
      %s4513 = scalar_lea.vmem %s472, 1
      %v4514 = vld [vmem:[%s4513] sm:$0x1]
      %v4516 = vlaneseq
      %v4517 = vshrl.u32 %v4516, 7
      %v4518 = vsub.s32 0, %v4517
      %v4519 = vrot.slane %v4514, %v4518
      %v4521 = vadd.f32 %v4497, %v4519
      %v4522 = vadd.f32 %v4498, %v4519
      %v4523 = vadd.f32 %v4499, %v4519
      %v4524 = vadd.f32 %v4500, %v4519
      %v4525 = vadd.f32 %v4501, %v4519
      %v4526 = vadd.f32 %v4502, %v4519
      %v4527 = vadd.f32 %v4503, %v4519
      %v4528 = vadd.f32 %v4504, %v4519
      %v4529 = vadd.f32 %v4505, %v4519
      %v4530 = vadd.f32 %v4506, %v4519
      %v4531 = vadd.f32 %v4507, %v4519
      %v4532 = vadd.f32 %v4508, %v4519
      %v4533 = vadd.f32 %v4509, %v4519
      %v4534 = vadd.f32 %v4510, %v4519
      %v4535 = vadd.f32 %v4511, %v4519
      %v4536 = vadd.f32 %v4512, %v4519
      %4537 = vmatprep.subr.mxu0 0.0
      %4538 = vmatpush1.msra.mxu0 %v4521
      %4539 = vmatprep.subr.mxu0 0.0
      %4540 = vmatpush1.msra.mxu0 %v4522
      %4541 = vmatprep.subr.mxu0 0.0
      %4542 = vmatpush1.msra.mxu0 %v4523
      %4543 = vmatprep.subr.mxu0 0.0
      %4544 = vmatpush1.msra.mxu0 %v4524
      %4545 = vmatprep.subr.mxu0 0.0
      %4546 = vmatpush1.msra.mxu0 %v4525
      %4547 = vmatprep.subr.mxu0 0.0
      %4548 = vmatpush1.msra.mxu0 %v4526
      %4549 = vmatprep.subr.mxu0 0.0
      %4550 = vmatpush1.msra.mxu0 %v4527
      %4551 = vmatprep.subr.mxu0 0.0
      %4552 = vmatpush1.msra.mxu0 %v4528
      %4553 = vmatprep.subr.mxu0 0.0
      %4554 = vmatpush1.msra.mxu0 %v4529
      %4555 = vmatprep.subr.mxu0 0.0
      %4556 = vmatpush1.msra.mxu0 %v4530
      %4557 = vmatprep.subr.mxu0 0.0
      %4558 = vmatpush1.msra.mxu0 %v4531
      %4559 = vmatprep.subr.mxu0 0.0
      %4560 = vmatpush1.msra.mxu0 %v4532
      %4561 = vmatprep.subr.mxu0 0.0
      %4562 = vmatpush1.msra.mxu0 %v4533
      %4563 = vmatprep.subr.mxu0 0.0
      %4564 = vmatpush1.msra.mxu0 %v4534
      %4565 = vmatprep.subr.mxu0 0.0
      %4566 = vmatpush1.msra.mxu0 %v4535
      %4567 = vmatprep.subr.mxu0 0.0
      %4568 = vmatpush1.msra.mxu0 %v4536
      %4569 = vmatprep.subr.mxu0 0.0
      %4570 = vmatpush1.msra.mxu0 0.0
      %4571 = vmatprep.subr.mxu0 0.0
      %4572 = vmatpush1.msra.mxu0 0.0
      %4573 = vmatprep.subr.mxu0 0.0
      %4574 = vmatpush1.msra.mxu0 0.0
      %4575 = vmatprep.subr.mxu0 0.0
      %4576 = vmatpush1.msra.mxu0 0.0
      %4577 = vmatprep.subr.mxu0 0.0
      %4578 = vmatpush1.msra.mxu0 0.0
      %4579 = vmatprep.subr.mxu0 0.0
      %4580 = vmatpush1.msra.mxu0 0.0
      %4581 = vmatprep.subr.mxu0 0.0
      %4582 = vmatpush1.msra.mxu0 0.0
      %4583 = vmatprep.subr.mxu0 0.0
      %4584 = vmatpush1.msra.mxu0 0.0
      %4585 = vmatprep.subr.mxu0 0.0
      %4586 = vmatpush1.msra.mxu0 0.0
      %4587 = vmatprep.subr.mxu0 0.0
      %4588 = vmatpush1.msra.mxu0 0.0
      %4589 = vmatprep.subr.mxu0 0.0
      %4590 = vmatpush1.msra.mxu0 0.0
      %4591 = vmatprep.subr.mxu0 0.0
      %4592 = vmatpush1.msra.mxu0 0.0
      %4593 = vmatprep.subr.mxu0 0.0
      %4594 = vmatpush1.msra.mxu0 0.0
      %4595 = vmatprep.subr.mxu0 0.0
      %4596 = vmatpush1.msra.mxu0 0.0
      %4597 = vmatprep.subr.mxu0 0.0
      %4598 = vmatpush1.msra.mxu0 0.0
      %4599 = vmatprep.subr.mxu0 0.0
      %4600 = vmatpush1.msra.mxu0 0.0
      %4601 = vmatprep.mubr.f32.mxu0 0.0
      %4602 = vmatmul.mubr.f32.gmra.mrb[0].mxu0 %v511
      %v4603 = vpop.f32.mrb[0].mxu0
      %v4604 = vadd.f32 0.0, %v4603
      %v4605 = vpop.f32.mrb[0].mxu0
      %4606 = vdwg.mxu0
      %v4607 = vpack.c.bf16 %v4522, %v4521
      %v4608 = vpack.c.bf16 %v4524, %v4523
      %v4609 = vpack.c.bf16 %v4526, %v4525
      %v4610 = vpack.c.bf16 %v4528, %v4527
      %v4611 = vpack.c.bf16 %v4530, %v4529
      %v4612 = vpack.c.bf16 %v4532, %v4531
      %v4613 = vpack.c.bf16 %v4534, %v4533
      %v4614 = vpack.c.bf16 %v4536, %v4535
      %s4615 = scalar_lea.vmem %s451, 384
      %v4616 = vld [vmem:[%s4615] sm:$0xff]
      %v4617 = vld [vmem:[%s4615 + $0x8] sm:$0xf]
      %v4618 = vld [vmem:[%s4615 + $0xc] sm:$0xff]
      %v4619 = vld [vmem:[%s4615 + $0x14] sm:$0xf]
      %v4620 = vld [vmem:[%s4615 + $0x18] sm:$0xff]
      %v4621 = vld [vmem:[%s4615 + $0x20] sm:$0xf]
      %v4622 = vld [vmem:[%s4615 + $0x24] sm:$0xff]
      %v4623 = vld [vmem:[%s4615 + $0x2c] sm:$0xf]
      %v4624 = vld [vmem:[%s4615 + $0x30] sm:$0xff]
      %v4625 = vld [vmem:[%s4615 + $0x38] sm:$0xf]
      %v4626 = vld [vmem:[%s4615 + $0x3c] sm:$0xff]
      %v4627 = vld [vmem:[%s4615 + $0x44] sm:$0xf]
      %v4628 = vld [vmem:[%s4615 + $0x48] sm:$0xff]
      %v4629 = vld [vmem:[%s4615 + $0x50] sm:$0xf]
      %v4630 = vld [vmem:[%s4615 + $0x54] sm:$0xff]
      %v4631 = vld [vmem:[%s4615 + $0x5c] sm:$0xf]
      %v4632 = vld [vmem:[%s4615 + $0x60] sm:$0xff]
      %v4633 = vld [vmem:[%s4615 + $0x68] sm:$0xf]
      %v4634 = vld [vmem:[%s4615 + $0x6c] sm:$0xff]
      %v4635 = vld [vmem:[%s4615 + $0x74] sm:$0xf]
      %v4636 = vld [vmem:[%s4615 + $0x78] sm:$0xff]
      %v4637 = vld [vmem:[%s4615 + $0x80] sm:$0xf]
      %v4638 = vld [vmem:[%s4615 + $0x84] sm:$0xff]
      %v4639 = vld [vmem:[%s4615 + $0x8c] sm:$0xf]
      %v4640 = vld [vmem:[%s4615 + $0x90] sm:$0xff]
      %v4641 = vld [vmem:[%s4615 + $0x98] sm:$0xf]
      %v4642 = vld [vmem:[%s4615 + $0x9c] sm:$0xff]
      %v4643 = vld [vmem:[%s4615 + $0xa4] sm:$0xf]
      %v4644 = vld [vmem:[%s4615 + $0xa8] sm:$0xff]
      %v4645 = vld [vmem:[%s4615 + $0xb0] sm:$0xf]
      %v4646 = vld [vmem:[%s4615 + $0xb4] sm:$0xff]
      %v4647 = vld [vmem:[%s4615 + $0xbc] sm:$0xf]
      %v4680 = vunpack.c.l.b16 %v4616
      %v4681 = vunpack.c.h.b16 %v4616
      %v4682 = vunpack.c.l.b16 %v4617
      %v4683 = vunpack.c.l.b16 %v4618
      %v4684 = vunpack.c.h.b16 %v4618
      %v4685 = vunpack.c.l.b16 %v4619
      %v4686 = vunpack.c.l.b16 %v4620
      %v4687 = vunpack.c.h.b16 %v4620
      %v4688 = vunpack.c.l.b16 %v4621
      %v4689 = vunpack.c.l.b16 %v4622
      %v4690 = vunpack.c.h.b16 %v4622
      %v4691 = vunpack.c.l.b16 %v4623
      %v4692 = vunpack.c.l.b16 %v4624
      %v4693 = vunpack.c.h.b16 %v4624
      %v4694 = vunpack.c.l.b16 %v4625
      %v4695 = vunpack.c.l.b16 %v4626
      %v4696 = vunpack.c.h.b16 %v4626
      %v4697 = vunpack.c.l.b16 %v4627
      %v4698 = vunpack.c.l.b16 %v4628
      %v4699 = vunpack.c.h.b16 %v4628
      %v4700 = vunpack.c.l.b16 %v4629
      %v4701 = vunpack.c.l.b16 %v4630
      %v4702 = vunpack.c.h.b16 %v4630
      %v4703 = vunpack.c.l.b16 %v4631
      %v4704 = vunpack.c.l.b16 %v4632
      %v4705 = vunpack.c.h.b16 %v4632
      %v4706 = vunpack.c.l.b16 %v4633
      %v4707 = vunpack.c.l.b16 %v4634
      %v4708 = vunpack.c.h.b16 %v4634
      %v4709 = vunpack.c.l.b16 %v4635
      %v4710 = vunpack.c.l.b16 %v4636
      %v4711 = vunpack.c.h.b16 %v4636
      %v4712 = vunpack.c.l.b16 %v4637
      %v4713 = vunpack.c.l.b16 %v4638
      %v4714 = vunpack.c.h.b16 %v4638
      %v4715 = vunpack.c.l.b16 %v4639
      %v4716 = vunpack.c.l.b16 %v4640
      %v4717 = vunpack.c.h.b16 %v4640
      %v4718 = vunpack.c.l.b16 %v4641
      %v4719 = vunpack.c.l.b16 %v4642
      %v4720 = vunpack.c.h.b16 %v4642
      %v4721 = vunpack.c.l.b16 %v4643
      %v4722 = vunpack.c.l.b16 %v4644
      %v4723 = vunpack.c.h.b16 %v4644
      %v4724 = vunpack.c.l.b16 %v4645
      %v4725 = vunpack.c.l.b16 %v4646
      %v4726 = vunpack.c.h.b16 %v4646
      %v4727 = vunpack.c.l.b16 %v4647
      %v4728 = vpack.c.b16 %v4683, %v4680
      %v4729 = vpack.c.b16 %v4684, %v4681
      %v4730 = vpack.c.b16 %v4685, %v4682
      %v4731 = vpack.c.b16 %v4689, %v4686
      %v4732 = vpack.c.b16 %v4690, %v4687
      %v4733 = vpack.c.b16 %v4691, %v4688
      %v4734 = vpack.c.b16 %v4695, %v4692
      %v4735 = vpack.c.b16 %v4696, %v4693
      %v4736 = vpack.c.b16 %v4697, %v4694
      %v4737 = vpack.c.b16 %v4701, %v4698
      %v4738 = vpack.c.b16 %v4702, %v4699
      %v4739 = vpack.c.b16 %v4703, %v4700
      %v4740 = vpack.c.b16 %v4707, %v4704
      %v4741 = vpack.c.b16 %v4708, %v4705
      %v4742 = vpack.c.b16 %v4709, %v4706
      %v4743 = vpack.c.b16 %v4713, %v4710
      %v4744 = vpack.c.b16 %v4714, %v4711
      %v4745 = vpack.c.b16 %v4715, %v4712
      %v4746 = vpack.c.b16 %v4719, %v4716
      %v4747 = vpack.c.b16 %v4720, %v4717
      %v4748 = vpack.c.b16 %v4721, %v4718
      %v4749 = vpack.c.b16 %v4725, %v4722
      %v4750 = vpack.c.b16 %v4726, %v4723
      %v4751 = vpack.c.b16 %v4727, %v4724
      %4776 = vmatprep.subr.bf16.mxu0 %v4729
      %4777 = vmatpush1.bf16.msra.mxu0 %v4728
      %4778 = vmatprep.subr.bf16.mxu0 %v4732
      %4779 = vmatpush1.bf16.msra.mxu0 %v4731
      %4780 = vmatprep.subr.bf16.mxu0 %v4735
      %4781 = vmatpush1.bf16.msra.mxu0 %v4734
      %4782 = vmatprep.subr.bf16.mxu0 %v4738
      %4783 = vmatpush1.bf16.msra.mxu0 %v4737
      %4784 = vmatprep.subr.bf16.mxu0 %v4741
      %4785 = vmatpush1.bf16.msra.mxu0 %v4740
      %4786 = vmatprep.subr.bf16.mxu0 %v4744
      %4787 = vmatpush1.bf16.msra.mxu0 %v4743
      %4788 = vmatprep.subr.bf16.mxu0 %v4747
      %4789 = vmatpush1.bf16.msra.mxu0 %v4746
      %4790 = vmatprep.subr.bf16.mxu0 %v4750
      %4791 = vmatpush1.bf16.msra.mxu0 %v4749
      %4792 = vmatprep.subr.bf16.mxu0 0
      %4793 = vmatpush1.bf16.msra.mxu0 0
      %4794 = vmatprep.subr.bf16.mxu0 0
      %4795 = vmatpush1.bf16.msra.mxu0 0
      %4796 = vmatprep.subr.bf16.mxu0 0
      %4797 = vmatpush1.bf16.msra.mxu0 0
      %4798 = vmatprep.subr.bf16.mxu0 0
      %4799 = vmatpush1.bf16.msra.mxu0 0
      %4800 = vmatprep.subr.bf16.mxu0 0
      %4801 = vmatpush1.bf16.msra.mxu0 0
      %4802 = vmatprep.subr.bf16.mxu0 0
      %4803 = vmatpush1.bf16.msra.mxu0 0
      %4804 = vmatprep.subr.bf16.mxu0 0
      %4805 = vmatpush1.bf16.msra.mxu0 0
      %4806 = vmatprep.subr.bf16.mxu0 0
      %4807 = vmatpush1.bf16.msra.mxu0 0
      %4808 = vmatprep.mubr.bf16.mxu0 0
      %4809 = vmatmul.mubr.bf16.gmra.mrb[0].mxu0 %v4607
      %v4810 = vpop.f32.mrb[0].mxu0
      %v4811 = vadd.f32 0.0, %v4810
      %v4812 = vpop.f32.mrb[0].mxu0
      %v4813 = vadd.f32 0.0, %v4812
      %v4814 = vpop.f32.mrb[0].mxu0
      %v4815 = vadd.f32 0.0, %v4814
      %v4816 = vpop.f32.mrb[0].mxu0
      %v4817 = vadd.f32 0.0, %v4816
      %4818 = vmatprep.mubr.bf16.mxu0 0
      %4819 = vmatmul.mubr.bf16.gmra.mrb[0].mxu0 %v4608
      %v4820 = vpop.f32.mrb[0].mxu0
      %v4821 = vadd.f32 0.0, %v4820
      %v4822 = vpop.f32.mrb[0].mxu0
      %v4823 = vadd.f32 0.0, %v4822
      %v4824 = vpop.f32.mrb[0].mxu0
      %v4825 = vadd.f32 0.0, %v4824
      %v4826 = vpop.f32.mrb[0].mxu0
      %v4827 = vadd.f32 0.0, %v4826
      %4828 = vmatprep.mubr.bf16.mxu0 0
      %4829 = vmatmul.mubr.bf16.gmra.mrb[0].mxu0 %v4609
      %v4830 = vpop.f32.mrb[0].mxu0
      %v4831 = vadd.f32 0.0, %v4830
      %v4832 = vpop.f32.mrb[0].mxu0
      %v4833 = vadd.f32 0.0, %v4832
      %v4834 = vpop.f32.mrb[0].mxu0
      %v4835 = vadd.f32 0.0, %v4834
      %v4836 = vpop.f32.mrb[0].mxu0
      %v4837 = vadd.f32 0.0, %v4836
      %4838 = vmatprep.mubr.bf16.mxu0 0
      %4839 = vmatmul.mubr.bf16.gmra.mrb[0].mxu0 %v4610
      %v4840 = vpop.f32.mrb[0].mxu0
      %v4841 = vadd.f32 0.0, %v4840
      %v4842 = vpop.f32.mrb[0].mxu0
      %v4843 = vadd.f32 0.0, %v4842
      %v4844 = vpop.f32.mrb[0].mxu0
      %v4845 = vadd.f32 0.0, %v4844
      %v4846 = vpop.f32.mrb[0].mxu0
      %v4847 = vadd.f32 0.0, %v4846
      %4848 = vmatprep.mubr.bf16.mxu0 0
      %4849 = vmatmul.mubr.bf16.gmra.mrb[0].mxu0 %v4611
      %v4850 = vpop.f32.mrb[0].mxu0
      %v4851 = vadd.f32 0.0, %v4850
      %v4852 = vpop.f32.mrb[0].mxu0
      %v4853 = vadd.f32 0.0, %v4852
      %v4854 = vpop.f32.mrb[0].mxu0
      %v4855 = vadd.f32 0.0, %v4854
      %v4856 = vpop.f32.mrb[0].mxu0
      %v4857 = vadd.f32 0.0, %v4856
      %4858 = vmatprep.mubr.bf16.mxu0 0
      %4859 = vmatmul.mubr.bf16.gmra.mrb[0].mxu0 %v4612
      %v4860 = vpop.f32.mrb[0].mxu0
      %v4861 = vadd.f32 0.0, %v4860
      %v4862 = vpop.f32.mrb[0].mxu0
      %v4863 = vadd.f32 0.0, %v4862
      %v4864 = vpop.f32.mrb[0].mxu0
      %v4865 = vadd.f32 0.0, %v4864
      %v4866 = vpop.f32.mrb[0].mxu0
      %v4867 = vadd.f32 0.0, %v4866
      %4868 = vmatprep.mubr.bf16.mxu0 0
      %4869 = vmatmul.mubr.bf16.gmra.mrb[0].mxu0 %v4613
      %v4870 = vpop.f32.mrb[0].mxu0
      %v4871 = vadd.f32 0.0, %v4870
      %v4872 = vpop.f32.mrb[0].mxu0
      %v4873 = vadd.f32 0.0, %v4872
      %v4874 = vpop.f32.mrb[0].mxu0
      %v4875 = vadd.f32 0.0, %v4874
      %v4876 = vpop.f32.mrb[0].mxu0
      %v4877 = vadd.f32 0.0, %v4876
      %4878 = vmatprep.mubr.bf16.mxu0 0
      %4879 = vmatmul.mubr.bf16.gmra.mrb[0].mxu0 %v4614
      %v4880 = vpop.f32.mrb[0].mxu0
      %v4881 = vadd.f32 0.0, %v4880
      %v4882 = vpop.f32.mrb[0].mxu0
      %v4883 = vadd.f32 0.0, %v4882
      %v4884 = vpop.f32.mrb[0].mxu0
      %v4885 = vadd.f32 0.0, %v4884
      %v4886 = vpop.f32.mrb[0].mxu0
      %v4887 = vadd.f32 0.0, %v4886
      %4888 = vdwg.mxu0
      %4889 = vmatprep.subr.bf16.mxu0 0
      %4890 = vmatpush1.bf16.msra.mxu0 %v4730
      %4891 = vmatprep.subr.bf16.mxu0 0
      %4892 = vmatpush1.bf16.msra.mxu0 %v4733
      %4893 = vmatprep.subr.bf16.mxu0 0
      %4894 = vmatpush1.bf16.msra.mxu0 %v4736
      %4895 = vmatprep.subr.bf16.mxu0 0
      %4896 = vmatpush1.bf16.msra.mxu0 %v4739
      %4897 = vmatprep.subr.bf16.mxu0 0
      %4898 = vmatpush1.bf16.msra.mxu0 %v4742
      %4899 = vmatprep.subr.bf16.mxu0 0
      %4900 = vmatpush1.bf16.msra.mxu0 %v4745
      %4901 = vmatprep.subr.bf16.mxu0 0
      %4902 = vmatpush1.bf16.msra.mxu0 %v4748
      %4903 = vmatprep.subr.bf16.mxu0 0
      %4904 = vmatpush1.bf16.msra.mxu0 %v4751
      %4905 = vmatprep.subr.bf16.mxu0 0
      %4906 = vmatpush1.bf16.msra.mxu0 0
      %4907 = vmatprep.subr.bf16.mxu0 0
      %4908 = vmatpush1.bf16.msra.mxu0 0
      %4909 = vmatprep.subr.bf16.mxu0 0
      %4910 = vmatpush1.bf16.msra.mxu0 0
      %4911 = vmatprep.subr.bf16.mxu0 0
      %4912 = vmatpush1.bf16.msra.mxu0 0
      %4913 = vmatprep.subr.bf16.mxu0 0
      %4914 = vmatpush1.bf16.msra.mxu0 0
      %4915 = vmatprep.subr.bf16.mxu0 0
      %4916 = vmatpush1.bf16.msra.mxu0 0
      %4917 = vmatprep.subr.bf16.mxu0 0
      %4918 = vmatpush1.bf16.msra.mxu0 0
      %4919 = vmatprep.subr.bf16.mxu0 0
      %4920 = vmatpush1.bf16.msra.mxu0 0
      %4921 = vmatprep.mubr.bf16.mxu0 0
      %4922 = vmatmul.mubr.bf16.gmra.mrb[0].mxu0 %v4607
      %v4923 = vpop.f32.mrb[0].mxu0
      %v4924 = vadd.f32 0.0, %v4923
      %v4925 = vpop.f32.mrb[0].mxu0
      %v4926 = vpop.f32.mrb[0].mxu0
      %v4927 = vadd.f32 0.0, %v4926
      %v4928 = vpop.f32.mrb[0].mxu0
      %4929 = vmatprep.mubr.bf16.mxu0 0
      %4930 = vmatmul.mubr.bf16.gmra.mrb[0].mxu0 %v4608
      %v4931 = vpop.f32.mrb[0].mxu0
      %v4932 = vadd.f32 0.0, %v4931
      %v4933 = vpop.f32.mrb[0].mxu0
      %v4934 = vpop.f32.mrb[0].mxu0
      %v4935 = vadd.f32 0.0, %v4934
      %v4936 = vpop.f32.mrb[0].mxu0
      %4937 = vmatprep.mubr.bf16.mxu0 0
      %4938 = vmatmul.mubr.bf16.gmra.mrb[0].mxu0 %v4609
      %v4939 = vpop.f32.mrb[0].mxu0
      %v4940 = vadd.f32 0.0, %v4939
      %v4941 = vpop.f32.mrb[0].mxu0
      %v4942 = vpop.f32.mrb[0].mxu0
      %v4943 = vadd.f32 0.0, %v4942
      %v4944 = vpop.f32.mrb[0].mxu0
      %4945 = vmatprep.mubr.bf16.mxu0 0
      %4946 = vmatmul.mubr.bf16.gmra.mrb[0].mxu0 %v4610
      %v4947 = vpop.f32.mrb[0].mxu0
      %v4948 = vadd.f32 0.0, %v4947
      %v4949 = vpop.f32.mrb[0].mxu0
      %v4950 = vpop.f32.mrb[0].mxu0
      %v4951 = vadd.f32 0.0, %v4950
      %v4952 = vpop.f32.mrb[0].mxu0
      %4953 = vmatprep.mubr.bf16.mxu0 0
      %4954 = vmatmul.mubr.bf16.gmra.mrb[0].mxu0 %v4611
      %v4955 = vpop.f32.mrb[0].mxu0
      %v4956 = vadd.f32 0.0, %v4955
      %v4957 = vpop.f32.mrb[0].mxu0
      %v4958 = vpop.f32.mrb[0].mxu0
      %v4959 = vadd.f32 0.0, %v4958
      %v4960 = vpop.f32.mrb[0].mxu0
      %4961 = vmatprep.mubr.bf16.mxu0 0
      %4962 = vmatmul.mubr.bf16.gmra.mrb[0].mxu0 %v4612
      %v4963 = vpop.f32.mrb[0].mxu0
      %v4964 = vadd.f32 0.0, %v4963
      %v4965 = vpop.f32.mrb[0].mxu0
      %v4966 = vpop.f32.mrb[0].mxu0
      %v4967 = vadd.f32 0.0, %v4966
      %v4968 = vpop.f32.mrb[0].mxu0
      %4969 = vmatprep.mubr.bf16.mxu0 0
      %4970 = vmatmul.mubr.bf16.gmra.mrb[0].mxu0 %v4613
      %v4971 = vpop.f32.mrb[0].mxu0
      %v4972 = vadd.f32 0.0, %v4971
      %v4973 = vpop.f32.mrb[0].mxu0
      %v4974 = vpop.f32.mrb[0].mxu0
      %v4975 = vadd.f32 0.0, %v4974
      %v4976 = vpop.f32.mrb[0].mxu0
      %4977 = vmatprep.mubr.bf16.mxu0 0
      %4978 = vmatmul.mubr.bf16.gmra.mrb[0].mxu0 %v4614
      %v4979 = vpop.f32.mrb[0].mxu0
      %v4980 = vadd.f32 0.0, %v4979
      %v4981 = vpop.f32.mrb[0].mxu0
      %v4982 = vpop.f32.mrb[0].mxu0
      %v4983 = vadd.f32 0.0, %v4982
      %v4984 = vpop.f32.mrb[0].mxu0
      %4985 = vdwg.mxu0
      %v4986 = vpack.c.bf16 %v4815, %v4811
      %v4987 = vpack.c.bf16 %v4825, %v4821
      %v4988 = vpack.c.bf16 %v4835, %v4831
      %v4989 = vpack.c.bf16 %v4845, %v4841
      %v4990 = vpack.c.bf16 %v4855, %v4851
      %v4991 = vpack.c.bf16 %v4865, %v4861
      %v4992 = vpack.c.bf16 %v4875, %v4871
      %v4993 = vpack.c.bf16 %v4885, %v4881
      %4994 = vst [vmem:[#allocation2] sm:$0xff] %v4986
      %4995 = vst [vmem:[#allocation2 + $0x8] sm:$0xff] %v4987
      %4996 = vst [vmem:[#allocation2 + $0x10] sm:$0xff] %v4988
      %4997 = vst [vmem:[#allocation2 + $0x18] sm:$0xff] %v4989
      %4998 = vst [vmem:[#allocation2 + $0x20] sm:$0xff] %v4990
      %4999 = vst [vmem:[#allocation2 + $0x28] sm:$0xff] %v4991
      %5000 = vst [vmem:[#allocation2 + $0x30] sm:$0xff] %v4992
      %5001 = vst [vmem:[#allocation2 + $0x38] sm:$0xff] %v4993
      %s5002 = scalar_lea.vmem %s460, 6
      %v5003 = vld [vmem:[%s5002] sm:$0x1]
      %v5005 = vlaneseq
      %v5006 = vshrl.u32 %v5005, 7
      %v5007 = vsub.s32 0, %v5006
      %v5008 = vrot.slane %v5003, %v5007
      %v5010 = vmul.f32 %v4811, %v5008
      %v5011 = vmul.f32 %v4815, %v5008
      %v5012 = vmul.f32 %v4821, %v5008
      %v5013 = vmul.f32 %v4825, %v5008
      %v5014 = vmul.f32 %v4831, %v5008
      %v5015 = vmul.f32 %v4835, %v5008
      %v5016 = vmul.f32 %v4841, %v5008
      %v5017 = vmul.f32 %v4845, %v5008
      %v5018 = vmul.f32 %v4851, %v5008
      %v5019 = vmul.f32 %v4855, %v5008
      %v5020 = vmul.f32 %v4861, %v5008
      %v5021 = vmul.f32 %v4865, %v5008
      %v5022 = vmul.f32 %v4871, %v5008
      %v5023 = vmul.f32 %v4875, %v5008
      %v5024 = vmul.f32 %v4881, %v5008
      %v5025 = vmul.f32 %v4885, %v5008
      %5026 = vadd.xlane.f32.xlu0 %v5010
      %v5027 = vpop.xlane.xlu0 %5026
      %5028 = vadd.xlane.f32.xlu0 %v5011
      %v5029 = vpop.xlane.xlu0 %5028
      %5030 = vadd.xlane.f32.xlu0 %v5012
      %v5031 = vpop.xlane.xlu0 %5030
      %5032 = vadd.xlane.f32.xlu0 %v5013
      %v5033 = vpop.xlane.xlu0 %5032
      %5034 = vadd.xlane.f32.xlu0 %v5014
      %v5035 = vpop.xlane.xlu0 %5034
      %5036 = vadd.xlane.f32.xlu0 %v5015
      %v5037 = vpop.xlane.xlu0 %5036
      %5038 = vadd.xlane.f32.xlu0 %v5016
      %v5039 = vpop.xlane.xlu0 %5038
      %5040 = vadd.xlane.f32.xlu0 %v5017
      %v5041 = vpop.xlane.xlu0 %5040
      %5042 = vadd.xlane.f32.xlu0 %v5018
      %v5043 = vpop.xlane.xlu0 %5042
      %5044 = vadd.xlane.f32.xlu0 %v5019
      %v5045 = vpop.xlane.xlu0 %5044
      %5046 = vadd.xlane.f32.xlu0 %v5020
      %v5047 = vpop.xlane.xlu0 %5046
      %5048 = vadd.xlane.f32.xlu0 %v5021
      %v5049 = vpop.xlane.xlu0 %5048
      %5050 = vadd.xlane.f32.xlu0 %v5022
      %v5051 = vpop.xlane.xlu0 %5050
      %5052 = vadd.xlane.f32.xlu0 %v5023
      %v5053 = vpop.xlane.xlu0 %5052
      %5054 = vadd.xlane.f32.xlu0 %v5024
      %v5055 = vpop.xlane.xlu0 %5054
      %5056 = vadd.xlane.f32.xlu0 %v5025
      %v5057 = vpop.xlane.xlu0 %5056
      %v5058 = vpack.c.bf16 %v4817, %v4813
      %v5059 = vpack.c.bf16 %v4827, %v4823
      %v5060 = vpack.c.bf16 %v4837, %v4833
      %v5061 = vpack.c.bf16 %v4847, %v4843
      %v5062 = vpack.c.bf16 %v4857, %v4853
      %v5063 = vpack.c.bf16 %v4867, %v4863
      %v5064 = vpack.c.bf16 %v4877, %v4873
      %v5065 = vpack.c.bf16 %v4887, %v4883
      %5066 = vst [vmem:[#allocation2 + $0x40] sm:$0xff] %v5058
      %5067 = vst [vmem:[#allocation2 + $0x48] sm:$0xff] %v5059
      %5068 = vst [vmem:[#allocation2 + $0x50] sm:$0xff] %v5060
      %5069 = vst [vmem:[#allocation2 + $0x58] sm:$0xff] %v5061
      %5070 = vst [vmem:[#allocation2 + $0x60] sm:$0xff] %v5062
      %5071 = vst [vmem:[#allocation2 + $0x68] sm:$0xff] %v5063
      %5072 = vst [vmem:[#allocation2 + $0x70] sm:$0xff] %v5064
      %5073 = vst [vmem:[#allocation2 + $0x78] sm:$0xff] %v5065
      %s5074 = scalar_lea.vmem %s460, 7
      %v5075 = vld [vmem:[%s5074] sm:$0x1]
      %v5077 = vlaneseq
      %v5078 = vshrl.u32 %v5077, 7
      %v5079 = vsub.s32 0, %v5078
      %v5080 = vrot.slane %v5075, %v5079
      %v5082 = vmul.f32 %v4813, %v5080
      %v5083 = vmul.f32 %v4817, %v5080
      %v5084 = vmul.f32 %v4823, %v5080
      %v5085 = vmul.f32 %v4827, %v5080
      %v5086 = vmul.f32 %v4833, %v5080
      %v5087 = vmul.f32 %v4837, %v5080
      %v5088 = vmul.f32 %v4843, %v5080
      %v5089 = vmul.f32 %v4847, %v5080
      %v5090 = vmul.f32 %v4853, %v5080
      %v5091 = vmul.f32 %v4857, %v5080
      %v5092 = vmul.f32 %v4863, %v5080
      %v5093 = vmul.f32 %v4867, %v5080
      %v5094 = vmul.f32 %v4873, %v5080
      %v5095 = vmul.f32 %v4877, %v5080
      %v5096 = vmul.f32 %v4883, %v5080
      %v5097 = vmul.f32 %v4887, %v5080
      %5098 = vadd.xlane.f32.xlu0 %v5082
      %v5099 = vpop.xlane.xlu0 %5098
      %5100 = vadd.xlane.f32.xlu0 %v5083
      %v5101 = vpop.xlane.xlu0 %5100
      %5102 = vadd.xlane.f32.xlu0 %v5084
      %v5103 = vpop.xlane.xlu0 %5102
      %5104 = vadd.xlane.f32.xlu0 %v5085
      %v5105 = vpop.xlane.xlu0 %5104
      %5106 = vadd.xlane.f32.xlu0 %v5086
      %v5107 = vpop.xlane.xlu0 %5106
      %5108 = vadd.xlane.f32.xlu0 %v5087
      %v5109 = vpop.xlane.xlu0 %5108
      %5110 = vadd.xlane.f32.xlu0 %v5088
      %v5111 = vpop.xlane.xlu0 %5110
      %5112 = vadd.xlane.f32.xlu0 %v5089
      %v5113 = vpop.xlane.xlu0 %5112
      %5114 = vadd.xlane.f32.xlu0 %v5090
      %v5115 = vpop.xlane.xlu0 %5114
      %5116 = vadd.xlane.f32.xlu0 %v5091
      %v5117 = vpop.xlane.xlu0 %5116
      %5118 = vadd.xlane.f32.xlu0 %v5092
      %v5119 = vpop.xlane.xlu0 %5118
      %5120 = vadd.xlane.f32.xlu0 %v5093
      %v5121 = vpop.xlane.xlu0 %5120
      %5122 = vadd.xlane.f32.xlu0 %v5094
      %v5123 = vpop.xlane.xlu0 %5122
      %5124 = vadd.xlane.f32.xlu0 %v5095
      %v5125 = vpop.xlane.xlu0 %5124
      %5126 = vadd.xlane.f32.xlu0 %v5096
      %v5127 = vpop.xlane.xlu0 %5126
      %5128 = vadd.xlane.f32.xlu0 %v5097
      %v5129 = vpop.xlane.xlu0 %5128
      %v5130 = vpack.c.bf16 %v4927, %v4924
      %v5131 = vpack.c.bf16 %v4935, %v4932
      %v5132 = vpack.c.bf16 %v4943, %v4940
      %v5133 = vpack.c.bf16 %v4951, %v4948
      %v5134 = vpack.c.bf16 %v4959, %v4956
      %v5135 = vpack.c.bf16 %v4967, %v4964
      %v5136 = vpack.c.bf16 %v4975, %v4972
      %v5137 = vpack.c.bf16 %v4983, %v4980
      %5138 = vst [vmem:[#allocation2 + $0x80] sm:$0xff] %v5130
      %5139 = vst [vmem:[#allocation2 + $0x88] sm:$0xff] %v5131
      %5140 = vst [vmem:[#allocation2 + $0x90] sm:$0xff] %v5132
      %5141 = vst [vmem:[#allocation2 + $0x98] sm:$0xff] %v5133
      %5142 = vst [vmem:[#allocation2 + $0xa0] sm:$0xff] %v5134
      %5143 = vst [vmem:[#allocation2 + $0xa8] sm:$0xff] %v5135
      %5144 = vst [vmem:[#allocation2 + $0xb0] sm:$0xff] %v5136
      %5145 = vst [vmem:[#allocation2 + $0xb8] sm:$0xff] %v5137
      %s5146 = scalar_lea.vmem %s460, 8
      %v5147 = vld [vmem:[%s5146] sm:$0x1]
      %v5149 = vlaneseq
      %v5150 = vshrl.u32 %v5149, 7
      %v5151 = vsub.s32 0, %v5150
      %v5152 = vrot.slane %v5147, %v5151
      %v5154 = vmul.f32 %v4924, %v5152
      %v5155 = vmul.f32 %v4927, %v5152
      %v5156 = vmul.f32 %v4932, %v5152
      %v5157 = vmul.f32 %v4935, %v5152
      %v5158 = vmul.f32 %v4940, %v5152
      %v5159 = vmul.f32 %v4943, %v5152
      %v5160 = vmul.f32 %v4948, %v5152
      %v5161 = vmul.f32 %v4951, %v5152
      %v5162 = vmul.f32 %v4956, %v5152
      %v5163 = vmul.f32 %v4959, %v5152
      %v5164 = vmul.f32 %v4964, %v5152
      %v5165 = vmul.f32 %v4967, %v5152
      %v5166 = vmul.f32 %v4972, %v5152
      %v5167 = vmul.f32 %v4975, %v5152
      %v5168 = vmul.f32 %v4980, %v5152
      %v5169 = vmul.f32 %v4983, %v5152
      %5170 = vadd.xlane.f32.xlu0 %v5154
      %v5171 = vpop.xlane.xlu0 %5170
      %5172 = vadd.xlane.f32.xlu0 %v5155
      %v5173 = vpop.xlane.xlu0 %5172
      %5174 = vadd.xlane.f32.xlu0 %v5156
      %v5175 = vpop.xlane.xlu0 %5174
      %5176 = vadd.xlane.f32.xlu0 %v5157
      %v5177 = vpop.xlane.xlu0 %5176
      %5178 = vadd.xlane.f32.xlu0 %v5158
      %v5179 = vpop.xlane.xlu0 %5178
      %5180 = vadd.xlane.f32.xlu0 %v5159
      %v5181 = vpop.xlane.xlu0 %5180
      %5182 = vadd.xlane.f32.xlu0 %v5160
      %v5183 = vpop.xlane.xlu0 %5182
      %5184 = vadd.xlane.f32.xlu0 %v5161
      %v5185 = vpop.xlane.xlu0 %5184
      %5186 = vadd.xlane.f32.xlu0 %v5162
      %v5187 = vpop.xlane.xlu0 %5186
      %5188 = vadd.xlane.f32.xlu0 %v5163
      %v5189 = vpop.xlane.xlu0 %5188
      %5190 = vadd.xlane.f32.xlu0 %v5164
      %v5191 = vpop.xlane.xlu0 %5190
      %5192 = vadd.xlane.f32.xlu0 %v5165
      %v5193 = vpop.xlane.xlu0 %5192
      %5194 = vadd.xlane.f32.xlu0 %v5166
      %v5195 = vpop.xlane.xlu0 %5194
      %5196 = vadd.xlane.f32.xlu0 %v5167
      %v5197 = vpop.xlane.xlu0 %5196
      %5198 = vadd.xlane.f32.xlu0 %v5168
      %v5199 = vpop.xlane.xlu0 %5198
      %5200 = vadd.xlane.f32.xlu0 %v5169
      %v5201 = vpop.xlane.xlu0 %5200
      %s5202 = scalar_lea.vmem %s456, 48
      %v5203 = vld [vmem:[%s5202] sm:$0xff]
      %v5204 = vld [vmem:[%s5202 + $0x8] sm:$0xff]
      %v5205 = vld [vmem:[%s5202 + $0x10] sm:$0xff]
      %5206 = vmatprep.subr.mxu0 %v4813
      %5207 = vmatpush1.xpose.msra.mxu0 %v4811
      %5208 = vmatprep.subr.mxu0 %v4817
      %5209 = vmatpush1.xpose.msra.mxu0 %v4815
      %5210 = vmatprep.subr.mxu0 %v4823
      %5211 = vmatpush1.xpose.msra.mxu0 %v4821
      %5212 = vmatprep.subr.mxu0 %v4827
      %5213 = vmatpush1.xpose.msra.mxu0 %v4825
      %5214 = vmatprep.subr.mxu0 %v4833
      %5215 = vmatpush1.xpose.msra.mxu0 %v4831
      %5216 = vmatprep.subr.mxu0 %v4837
      %5217 = vmatpush1.xpose.msra.mxu0 %v4835
      %5218 = vmatprep.subr.mxu0 %v4843
      %5219 = vmatpush1.xpose.msra.mxu0 %v4841
      %5220 = vmatprep.subr.mxu0 %v4847
      %5221 = vmatpush1.xpose.msra.mxu0 %v4845
      %5222 = vmatprep.subr.mxu0 %v4853
      %5223 = vmatpush1.xpose.msra.mxu0 %v4851
      %5224 = vmatprep.subr.mxu0 %v4857
      %5225 = vmatpush1.xpose.msra.mxu0 %v4855
      %5226 = vmatprep.subr.mxu0 %v4863
      %5227 = vmatpush1.xpose.msra.mxu0 %v4861
      %5228 = vmatprep.subr.mxu0 %v4867
      %5229 = vmatpush1.xpose.msra.mxu0 %v4865
      %5230 = vmatprep.subr.mxu0 %v4873
      %5231 = vmatpush1.xpose.msra.mxu0 %v4871
      %5232 = vmatprep.subr.mxu0 %v4877
      %5233 = vmatpush1.xpose.msra.mxu0 %v4875
      %5234 = vmatprep.subr.mxu0 %v4883
      %5235 = vmatpush1.xpose.msra.mxu0 %v4881
      %5236 = vmatprep.subr.mxu0 %v4887
      %5237 = vmatpush1.xpose.msra.mxu0 %v4885
      %5238 = vmatprep.subr.mxu0 0.0
      %5239 = vmatpush1.xpose.msra.mxu0 0.0
      %5240 = vmatprep.subr.mxu0 0.0
      %5241 = vmatpush1.xpose.msra.mxu0 0.0
      %5242 = vmatprep.subr.mxu0 0.0
      %5243 = vmatpush1.xpose.msra.mxu0 0.0
      %5244 = vmatprep.subr.mxu0 0.0
      %5245 = vmatpush1.xpose.msra.mxu0 0.0
      %5246 = vmatprep.subr.mxu0 0.0
      %5247 = vmatpush1.xpose.msra.mxu0 0.0
      %5248 = vmatprep.subr.mxu0 0.0
      %5249 = vmatpush1.xpose.msra.mxu0 0.0
      %5250 = vmatprep.subr.mxu0 0.0
      %5251 = vmatpush1.xpose.msra.mxu0 0.0
      %5252 = vmatprep.subr.mxu0 0.0
      %5253 = vmatpush1.xpose.msra.mxu0 0.0
      %5254 = vmatprep.subr.mxu0 0.0
      %5255 = vmatpush1.xpose.msra.mxu0 0.0
      %5256 = vmatprep.subr.mxu0 0.0
      %5257 = vmatpush1.xpose.msra.mxu0 0.0
      %5258 = vmatprep.subr.mxu0 0.0
      %5259 = vmatpush1.xpose.msra.mxu0 0.0
      %5260 = vmatprep.subr.mxu0 0.0
      %5261 = vmatpush1.xpose.msra.mxu0 0.0
      %5262 = vmatprep.subr.mxu0 0.0
      %5263 = vmatpush1.xpose.msra.mxu0 0.0
      %5264 = vmatprep.subr.mxu0 0.0
      %5265 = vmatpush1.xpose.msra.mxu0 0.0
      %5266 = vmatprep.subr.mxu0 0.0
      %5267 = vmatpush1.xpose.msra.mxu0 0.0
      %5268 = vmatprep.subr.mxu0 0.0
      %5269 = vmatpush1.xpose.msra.mxu0 0.0
      %5270 = vmatprep.mubr.f32.mxu0 %v5204
      %5271 = vmatmul.mubr.f32.gmra.mrb[0].mxu0 %v5203
      %v5272 = vpop.f32.mrb[0].mxu0
      %v5273 = vadd.f32 0.0, %v5272
      %v5274 = vpop.f32.mrb[0].mxu0
      %5275 = vdwg.mxu0
      %5276 = vmatprep.subr.mxu0 0.0
      %5277 = vmatpush1.xpose.msra.mxu0 %v4924
      %5278 = vmatprep.subr.mxu0 0.0
      %5279 = vmatpush1.xpose.msra.mxu0 %v4927
      %5280 = vmatprep.subr.mxu0 0.0
      %5281 = vmatpush1.xpose.msra.mxu0 %v4932
      %5282 = vmatprep.subr.mxu0 0.0
      %5283 = vmatpush1.xpose.msra.mxu0 %v4935
      %5284 = vmatprep.subr.mxu0 0.0
      %5285 = vmatpush1.xpose.msra.mxu0 %v4940
      %5286 = vmatprep.subr.mxu0 0.0
      %5287 = vmatpush1.xpose.msra.mxu0 %v4943
      %5288 = vmatprep.subr.mxu0 0.0
      %5289 = vmatpush1.xpose.msra.mxu0 %v4948
      %5290 = vmatprep.subr.mxu0 0.0
      %5291 = vmatpush1.xpose.msra.mxu0 %v4951
      %5292 = vmatprep.subr.mxu0 0.0
      %5293 = vmatpush1.xpose.msra.mxu0 %v4956
      %5294 = vmatprep.subr.mxu0 0.0
      %5295 = vmatpush1.xpose.msra.mxu0 %v4959
      %5296 = vmatprep.subr.mxu0 0.0
      %5297 = vmatpush1.xpose.msra.mxu0 %v4964
      %5298 = vmatprep.subr.mxu0 0.0
      %5299 = vmatpush1.xpose.msra.mxu0 %v4967
      %5300 = vmatprep.subr.mxu0 0.0
      %5301 = vmatpush1.xpose.msra.mxu0 %v4972
      %5302 = vmatprep.subr.mxu0 0.0
      %5303 = vmatpush1.xpose.msra.mxu0 %v4975
      %5304 = vmatprep.subr.mxu0 0.0
      %5305 = vmatpush1.xpose.msra.mxu0 %v4980
      %5306 = vmatprep.subr.mxu0 0.0
      %5307 = vmatpush1.xpose.msra.mxu0 %v4983
      %5308 = vmatprep.subr.mxu0 0.0
      %5309 = vmatpush1.xpose.msra.mxu0 0.0
      %5310 = vmatprep.subr.mxu0 0.0
      %5311 = vmatpush1.xpose.msra.mxu0 0.0
      %5312 = vmatprep.subr.mxu0 0.0
      %5313 = vmatpush1.xpose.msra.mxu0 0.0
      %5314 = vmatprep.subr.mxu0 0.0
      %5315 = vmatpush1.xpose.msra.mxu0 0.0
      %5316 = vmatprep.subr.mxu0 0.0
      %5317 = vmatpush1.xpose.msra.mxu0 0.0
      %5318 = vmatprep.subr.mxu0 0.0
      %5319 = vmatpush1.xpose.msra.mxu0 0.0
      %5320 = vmatprep.subr.mxu0 0.0
      %5321 = vmatpush1.xpose.msra.mxu0 0.0
      %5322 = vmatprep.subr.mxu0 0.0
      %5323 = vmatpush1.xpose.msra.mxu0 0.0
      %5324 = vmatprep.subr.mxu0 0.0
      %5325 = vmatpush1.xpose.msra.mxu0 0.0
      %5326 = vmatprep.subr.mxu0 0.0
      %5327 = vmatpush1.xpose.msra.mxu0 0.0
      %5328 = vmatprep.subr.mxu0 0.0
      %5329 = vmatpush1.xpose.msra.mxu0 0.0
      %5330 = vmatprep.subr.mxu0 0.0
      %5331 = vmatpush1.xpose.msra.mxu0 0.0
      %5332 = vmatprep.subr.mxu0 0.0
      %5333 = vmatpush1.xpose.msra.mxu0 0.0
      %5334 = vmatprep.subr.mxu0 0.0
      %5335 = vmatpush1.xpose.msra.mxu0 0.0
      %5336 = vmatprep.subr.mxu0 0.0
      %5337 = vmatpush1.xpose.msra.mxu0 0.0
      %5338 = vmatprep.subr.mxu0 0.0
      %5339 = vmatpush1.xpose.msra.mxu0 0.0
      %5340 = vmatprep.mubr.f32.mxu0 0.0
      %5341 = vmatmul.mubr.f32.gmra.mrb[0].mxu0 %v5205
      %v5342 = vpop.f32.mrb[0].mxu0
      %v5343 = vadd.f32 %v5273, %v5342
      %v5344 = vpop.f32.mrb[0].mxu0
      %5345 = vdwg.mxu0
      %v5346 = vlaneseq
      %v5347 = vshrl.u32 %v5346, 7
      %v5348 = vsub.s32 0, %v5347
      %v5349 = vrot.slane %v5343, %v5348
      %v5350 = vadd.f32 %v5027, %v5349
      %v5351 = vadd.f32 %v5029, %v5349
      %v5352 = vadd.f32 %v5031, %v5349
      %v5353 = vadd.f32 %v5033, %v5349
      %v5354 = vadd.f32 %v5035, %v5349
      %v5355 = vadd.f32 %v5037, %v5349
      %v5356 = vadd.f32 %v5039, %v5349
      %v5357 = vadd.f32 %v5041, %v5349
      %v5358 = vadd.f32 %v5043, %v5349
      %v5359 = vadd.f32 %v5045, %v5349
      %v5360 = vadd.f32 %v5047, %v5349
      %v5361 = vadd.f32 %v5049, %v5349
      %v5362 = vadd.f32 %v5051, %v5349
      %v5363 = vadd.f32 %v5053, %v5349
      %v5364 = vadd.f32 %v5055, %v5349
      %v5365 = vadd.f32 %v5057, %v5349
      %v5366 = vmul.f32 %v5350, 0.2
      %v5367 = vmul.f32 %v5351, 0.2
      %v5368 = vmul.f32 %v5352, 0.2
      %v5369 = vmul.f32 %v5353, 0.2
      %v5370 = vmul.f32 %v5354, 0.2
      %v5371 = vmul.f32 %v5355, 0.2
      %v5372 = vmul.f32 %v5356, 0.2
      %v5373 = vmul.f32 %v5357, 0.2
      %v5374 = vmul.f32 %v5358, 0.2
      %v5375 = vmul.f32 %v5359, 0.2
      %v5376 = vmul.f32 %v5360, 0.2
      %v5377 = vmul.f32 %v5361, 0.2
      %v5378 = vmul.f32 %v5362, 0.2
      %v5379 = vmul.f32 %v5363, 0.2
      %v5380 = vmul.f32 %v5364, 0.2
      %v5381 = vmul.f32 %v5365, 0.2
      %v5382 = vmax.f32 %v5350, %v5366
      %v5383 = vmax.f32 %v5351, %v5367
      %v5384 = vmax.f32 %v5352, %v5368
      %v5385 = vmax.f32 %v5353, %v5369
      %v5386 = vmax.f32 %v5354, %v5370
      %v5387 = vmax.f32 %v5355, %v5371
      %v5388 = vmax.f32 %v5356, %v5372
      %v5389 = vmax.f32 %v5357, %v5373
      %v5390 = vmax.f32 %v5358, %v5374
      %v5391 = vmax.f32 %v5359, %v5375
      %v5392 = vmax.f32 %v5360, %v5376
      %v5393 = vmax.f32 %v5361, %v5377
      %v5394 = vmax.f32 %v5362, %v5378
      %v5395 = vmax.f32 %v5363, %v5379
      %v5396 = vmax.f32 %v5364, %v5380
      %v5397 = vmax.f32 %v5365, %v5381
      %v5398 = vadd.f32 %v5382, %v495
      %v5399 = vadd.f32 %v5383, %v496
      %v5400 = vadd.f32 %v5384, %v497
      %v5401 = vadd.f32 %v5385, %v498
      %v5402 = vadd.f32 %v5386, %v499
      %v5403 = vadd.f32 %v5387, %v500
      %v5404 = vadd.f32 %v5388, %v501
      %v5405 = vadd.f32 %v5389, %v502
      %v5406 = vadd.f32 %v5390, %v503
      %v5407 = vadd.f32 %v5391, %v504
      %v5408 = vadd.f32 %v5392, %v505
      %v5409 = vadd.f32 %v5393, %v506
      %v5410 = vadd.f32 %v5394, %v507
      %v5411 = vadd.f32 %v5395, %v508
      %v5412 = vadd.f32 %v5396, %v509
      %v5413 = vadd.f32 %v5397, %v510
      %5414 = vmax.xlane.f32.xlu0 %v5398
      %v5415 = vpop.xlane.xlu0 %5414
      %5416 = vmax.xlane.f32.xlu0 %v5399
      %v5417 = vpop.xlane.xlu0 %5416
      %5418 = vmax.xlane.f32.xlu0 %v5400
      %v5419 = vpop.xlane.xlu0 %5418
      %5420 = vmax.xlane.f32.xlu0 %v5401
      %v5421 = vpop.xlane.xlu0 %5420
      %5422 = vmax.xlane.f32.xlu0 %v5402
      %v5423 = vpop.xlane.xlu0 %5422
      %5424 = vmax.xlane.f32.xlu0 %v5403
      %v5425 = vpop.xlane.xlu0 %5424
      %5426 = vmax.xlane.f32.xlu0 %v5404
      %v5427 = vpop.xlane.xlu0 %5426
      %5428 = vmax.xlane.f32.xlu0 %v5405
      %v5429 = vpop.xlane.xlu0 %5428
      %5430 = vmax.xlane.f32.xlu0 %v5406
      %v5431 = vpop.xlane.xlu0 %5430
      %5432 = vmax.xlane.f32.xlu0 %v5407
      %v5433 = vpop.xlane.xlu0 %5432
      %5434 = vmax.xlane.f32.xlu0 %v5408
      %v5435 = vpop.xlane.xlu0 %5434
      %5436 = vmax.xlane.f32.xlu0 %v5409
      %v5437 = vpop.xlane.xlu0 %5436
      %5438 = vmax.xlane.f32.xlu0 %v5410
      %v5439 = vpop.xlane.xlu0 %5438
      %5440 = vmax.xlane.f32.xlu0 %v5411
      %v5441 = vpop.xlane.xlu0 %5440
      %5442 = vmax.xlane.f32.xlu0 %v5412
      %v5443 = vpop.xlane.xlu0 %5442
      %5444 = vmax.xlane.f32.xlu0 %v5413
      %v5445 = vpop.xlane.xlu0 %5444
      %v5446 = vsub.f32 %v5398, %v5415
      %v5447 = vsub.f32 %v5399, %v5417
      %v5448 = vsub.f32 %v5400, %v5419
      %v5449 = vsub.f32 %v5401, %v5421
      %v5450 = vsub.f32 %v5402, %v5423
      %v5451 = vsub.f32 %v5403, %v5425
      %v5452 = vsub.f32 %v5404, %v5427
      %v5453 = vsub.f32 %v5405, %v5429
      %v5454 = vsub.f32 %v5406, %v5431
      %v5455 = vsub.f32 %v5407, %v5433
      %v5456 = vsub.f32 %v5408, %v5435
      %v5457 = vsub.f32 %v5409, %v5437
      %v5458 = vsub.f32 %v5410, %v5439
      %v5459 = vsub.f32 %v5411, %v5441
      %v5460 = vsub.f32 %v5412, %v5443
      %v5461 = vsub.f32 %v5413, %v5445
      %v5462 = vmul.f32 %v5446, 1.442695
      %v5463 = vpow.pop %v5462
      %v5464 = vmul.f32 %v5447, 1.442695
      %v5465 = vpow.pop %v5464
      %v5466 = vmul.f32 %v5448, 1.442695
      %v5467 = vpow.pop %v5466
      %v5468 = vmul.f32 %v5449, 1.442695
      %v5469 = vpow.pop %v5468
      %v5470 = vmul.f32 %v5450, 1.442695
      %v5471 = vpow.pop %v5470
      %v5472 = vmul.f32 %v5451, 1.442695
      %v5473 = vpow.pop %v5472
      %v5474 = vmul.f32 %v5452, 1.442695
      %v5475 = vpow.pop %v5474
      %v5476 = vmul.f32 %v5453, 1.442695
      %v5477 = vpow.pop %v5476
      %v5478 = vmul.f32 %v5454, 1.442695
      %v5479 = vpow.pop %v5478
      %v5480 = vmul.f32 %v5455, 1.442695
      %v5481 = vpow.pop %v5480
      %v5482 = vmul.f32 %v5456, 1.442695
      %v5483 = vpow.pop %v5482
      %v5484 = vmul.f32 %v5457, 1.442695
      %v5485 = vpow.pop %v5484
      %v5486 = vmul.f32 %v5458, 1.442695
      %v5487 = vpow.pop %v5486
      %v5488 = vmul.f32 %v5459, 1.442695
      %v5489 = vpow.pop %v5488
      %v5490 = vmul.f32 %v5460, 1.442695
      %v5491 = vpow.pop %v5490
      %v5492 = vmul.f32 %v5461, 1.442695
      %v5493 = vpow.pop %v5492
      %5494 = vadd.xlane.f32.xlu0 %v5463
      %v5495 = vpop.xlane.xlu0 %5494
      %5496 = vadd.xlane.f32.xlu0 %v5465
      %v5497 = vpop.xlane.xlu0 %5496
      %5498 = vadd.xlane.f32.xlu0 %v5467
      %v5499 = vpop.xlane.xlu0 %5498
      %5500 = vadd.xlane.f32.xlu0 %v5469
      %v5501 = vpop.xlane.xlu0 %5500
      %5502 = vadd.xlane.f32.xlu0 %v5471
      %v5503 = vpop.xlane.xlu0 %5502
      %5504 = vadd.xlane.f32.xlu0 %v5473
      %v5505 = vpop.xlane.xlu0 %5504
      %5506 = vadd.xlane.f32.xlu0 %v5475
      %v5507 = vpop.xlane.xlu0 %5506
      %5508 = vadd.xlane.f32.xlu0 %v5477
      %v5509 = vpop.xlane.xlu0 %5508
      %5510 = vadd.xlane.f32.xlu0 %v5479
      %v5511 = vpop.xlane.xlu0 %5510
      %5512 = vadd.xlane.f32.xlu0 %v5481
      %v5513 = vpop.xlane.xlu0 %5512
      %5514 = vadd.xlane.f32.xlu0 %v5483
      %v5515 = vpop.xlane.xlu0 %5514
      %5516 = vadd.xlane.f32.xlu0 %v5485
      %v5517 = vpop.xlane.xlu0 %5516
      %5518 = vadd.xlane.f32.xlu0 %v5487
      %v5519 = vpop.xlane.xlu0 %5518
      %5520 = vadd.xlane.f32.xlu0 %v5489
      %v5521 = vpop.xlane.xlu0 %5520
      %5522 = vadd.xlane.f32.xlu0 %v5491
      %v5523 = vpop.xlane.xlu0 %5522
      %5524 = vadd.xlane.f32.xlu0 %v5493
      %v5525 = vpop.xlane.xlu0 %5524
      %v5526 = vrcp.pop %v5495
      %v5527 = vrcp.pop %v5497
      %v5528 = vrcp.pop %v5499
      %v5529 = vrcp.pop %v5501
      %v5530 = vrcp.pop %v5503
      %v5531 = vrcp.pop %v5505
      %v5532 = vrcp.pop %v5507
      %v5533 = vrcp.pop %v5509
      %v5534 = vrcp.pop %v5511
      %v5535 = vrcp.pop %v5513
      %v5536 = vrcp.pop %v5515
      %v5537 = vrcp.pop %v5517
      %v5538 = vrcp.pop %v5519
      %v5539 = vrcp.pop %v5521
      %v5540 = vrcp.pop %v5523
      %v5541 = vrcp.pop %v5525
      %v5542 = vmul.f32 %v5526, 0.33333334
      %v5543 = vmul.f32 %v5527, 0.33333334
      %v5544 = vmul.f32 %v5528, 0.33333334
      %v5545 = vmul.f32 %v5529, 0.33333334
      %v5546 = vmul.f32 %v5530, 0.33333334
      %v5547 = vmul.f32 %v5531, 0.33333334
      %v5548 = vmul.f32 %v5532, 0.33333334
      %v5549 = vmul.f32 %v5533, 0.33333334
      %v5550 = vmul.f32 %v5534, 0.33333334
      %v5551 = vmul.f32 %v5535, 0.33333334
      %v5552 = vmul.f32 %v5536, 0.33333334
      %v5553 = vmul.f32 %v5537, 0.33333334
      %v5554 = vmul.f32 %v5538, 0.33333334
      %v5555 = vmul.f32 %v5539, 0.33333334
      %v5556 = vmul.f32 %v5540, 0.33333334
      %v5557 = vmul.f32 %v5541, 0.33333334
      %v5558 = vmul.f32 %v5463, %v5542
      %v5559 = vmul.f32 %v5465, %v5543
      %v5560 = vmul.f32 %v5467, %v5544
      %v5561 = vmul.f32 %v5469, %v5545
      %v5562 = vmul.f32 %v5471, %v5546
      %v5563 = vmul.f32 %v5473, %v5547
      %v5564 = vmul.f32 %v5475, %v5548
      %v5565 = vmul.f32 %v5477, %v5549
      %v5566 = vmul.f32 %v5479, %v5550
      %v5567 = vmul.f32 %v5481, %v5551
      %v5568 = vmul.f32 %v5483, %v5552
      %v5569 = vmul.f32 %v5485, %v5553
      %v5570 = vmul.f32 %v5487, %v5554
      %v5571 = vmul.f32 %v5489, %v5555
      %v5572 = vmul.f32 %v5491, %v5556
      %v5573 = vmul.f32 %v5493, %v5557
      %v5574 = vpack.c.bf16 %v5559, %v5558
      %v5575 = vpack.c.bf16 %v5561, %v5560
      %v5576 = vpack.c.bf16 %v5563, %v5562
      %v5577 = vpack.c.bf16 %v5565, %v5564
      %v5578 = vpack.c.bf16 %v5567, %v5566
      %v5579 = vpack.c.bf16 %v5569, %v5568
      %v5580 = vpack.c.bf16 %v5571, %v5570
      %v5581 = vpack.c.bf16 %v5573, %v5572
      %5582 = vst [vmem:[#allocation3] sm:$0xff] %v5574
      %5583 = vst [vmem:[#allocation3 + $0x18] sm:$0xff] %v5575
      %5584 = vst [vmem:[#allocation3 + $0x30] sm:$0xff] %v5576
      %5585 = vst [vmem:[#allocation3 + $0x48] sm:$0xff] %v5577
      %5586 = vst [vmem:[#allocation3 + $0x60] sm:$0xff] %v5578
      %5587 = vst [vmem:[#allocation3 + $0x78] sm:$0xff] %v5579
      %5588 = vst [vmem:[#allocation3 + $0x90] sm:$0xff] %v5580
      %5589 = vst [vmem:[#allocation3 + $0xa8] sm:$0xff] %v5581
      %v5590 = vlaneseq
      %v5591 = vshrl.u32 %v5590, 7
      %v5592 = vsub.s32 1, %v5591
      %v5593 = vrot.slane %v5343, %v5592
      %v5594 = vadd.f32 %v5099, %v5593
      %v5595 = vadd.f32 %v5101, %v5593
      %v5596 = vadd.f32 %v5103, %v5593
      %v5597 = vadd.f32 %v5105, %v5593
      %v5598 = vadd.f32 %v5107, %v5593
      %v5599 = vadd.f32 %v5109, %v5593
      %v5600 = vadd.f32 %v5111, %v5593
      %v5601 = vadd.f32 %v5113, %v5593
      %v5602 = vadd.f32 %v5115, %v5593
      %v5603 = vadd.f32 %v5117, %v5593
      %v5604 = vadd.f32 %v5119, %v5593
      %v5605 = vadd.f32 %v5121, %v5593
      %v5606 = vadd.f32 %v5123, %v5593
      %v5607 = vadd.f32 %v5125, %v5593
      %v5608 = vadd.f32 %v5127, %v5593
      %v5609 = vadd.f32 %v5129, %v5593
      %v5610 = vmul.f32 %v5594, 0.2
      %v5611 = vmul.f32 %v5595, 0.2
      %v5612 = vmul.f32 %v5596, 0.2
      %v5613 = vmul.f32 %v5597, 0.2
      %v5614 = vmul.f32 %v5598, 0.2
      %v5615 = vmul.f32 %v5599, 0.2
      %v5616 = vmul.f32 %v5600, 0.2
      %v5617 = vmul.f32 %v5601, 0.2
      %v5618 = vmul.f32 %v5602, 0.2
      %v5619 = vmul.f32 %v5603, 0.2
      %v5620 = vmul.f32 %v5604, 0.2
      %v5621 = vmul.f32 %v5605, 0.2
      %v5622 = vmul.f32 %v5606, 0.2
      %v5623 = vmul.f32 %v5607, 0.2
      %v5624 = vmul.f32 %v5608, 0.2
      %v5625 = vmul.f32 %v5609, 0.2
      %v5626 = vmax.f32 %v5594, %v5610
      %v5627 = vmax.f32 %v5595, %v5611
      %v5628 = vmax.f32 %v5596, %v5612
      %v5629 = vmax.f32 %v5597, %v5613
      %v5630 = vmax.f32 %v5598, %v5614
      %v5631 = vmax.f32 %v5599, %v5615
      %v5632 = vmax.f32 %v5600, %v5616
      %v5633 = vmax.f32 %v5601, %v5617
      %v5634 = vmax.f32 %v5602, %v5618
      %v5635 = vmax.f32 %v5603, %v5619
      %v5636 = vmax.f32 %v5604, %v5620
      %v5637 = vmax.f32 %v5605, %v5621
      %v5638 = vmax.f32 %v5606, %v5622
      %v5639 = vmax.f32 %v5607, %v5623
      %v5640 = vmax.f32 %v5608, %v5624
      %v5641 = vmax.f32 %v5609, %v5625
      %v5642 = vadd.f32 %v5626, %v495
      %v5643 = vadd.f32 %v5627, %v496
      %v5644 = vadd.f32 %v5628, %v497
      %v5645 = vadd.f32 %v5629, %v498
      %v5646 = vadd.f32 %v5630, %v499
      %v5647 = vadd.f32 %v5631, %v500
      %v5648 = vadd.f32 %v5632, %v501
      %v5649 = vadd.f32 %v5633, %v502
      %v5650 = vadd.f32 %v5634, %v503
      %v5651 = vadd.f32 %v5635, %v504
      %v5652 = vadd.f32 %v5636, %v505
      %v5653 = vadd.f32 %v5637, %v506
      %v5654 = vadd.f32 %v5638, %v507
      %v5655 = vadd.f32 %v5639, %v508
      %v5656 = vadd.f32 %v5640, %v509
      %v5657 = vadd.f32 %v5641, %v510
      %5658 = vmax.xlane.f32.xlu0 %v5642
      %v5659 = vpop.xlane.xlu0 %5658
      %5660 = vmax.xlane.f32.xlu0 %v5643
      %v5661 = vpop.xlane.xlu0 %5660
      %5662 = vmax.xlane.f32.xlu0 %v5644
      %v5663 = vpop.xlane.xlu0 %5662
      %5664 = vmax.xlane.f32.xlu0 %v5645
      %v5665 = vpop.xlane.xlu0 %5664
      %5666 = vmax.xlane.f32.xlu0 %v5646
      %v5667 = vpop.xlane.xlu0 %5666
      %5668 = vmax.xlane.f32.xlu0 %v5647
      %v5669 = vpop.xlane.xlu0 %5668
      %5670 = vmax.xlane.f32.xlu0 %v5648
      %v5671 = vpop.xlane.xlu0 %5670
      %5672 = vmax.xlane.f32.xlu0 %v5649
      %v5673 = vpop.xlane.xlu0 %5672
      %5674 = vmax.xlane.f32.xlu0 %v5650
      %v5675 = vpop.xlane.xlu0 %5674
      %5676 = vmax.xlane.f32.xlu0 %v5651
      %v5677 = vpop.xlane.xlu0 %5676
      %5678 = vmax.xlane.f32.xlu0 %v5652
      %v5679 = vpop.xlane.xlu0 %5678
      %5680 = vmax.xlane.f32.xlu0 %v5653
      %v5681 = vpop.xlane.xlu0 %5680
      %5682 = vmax.xlane.f32.xlu0 %v5654
      %v5683 = vpop.xlane.xlu0 %5682
      %5684 = vmax.xlane.f32.xlu0 %v5655
      %v5685 = vpop.xlane.xlu0 %5684
      %5686 = vmax.xlane.f32.xlu0 %v5656
      %v5687 = vpop.xlane.xlu0 %5686
      %5688 = vmax.xlane.f32.xlu0 %v5657
      %v5689 = vpop.xlane.xlu0 %5688
      %v5690 = vsub.f32 %v5642, %v5659
      %v5691 = vsub.f32 %v5643, %v5661
      %v5692 = vsub.f32 %v5644, %v5663
      %v5693 = vsub.f32 %v5645, %v5665
      %v5694 = vsub.f32 %v5646, %v5667
      %v5695 = vsub.f32 %v5647, %v5669
      %v5696 = vsub.f32 %v5648, %v5671
      %v5697 = vsub.f32 %v5649, %v5673
      %v5698 = vsub.f32 %v5650, %v5675
      %v5699 = vsub.f32 %v5651, %v5677
      %v5700 = vsub.f32 %v5652, %v5679
      %v5701 = vsub.f32 %v5653, %v5681
      %v5702 = vsub.f32 %v5654, %v5683
      %v5703 = vsub.f32 %v5655, %v5685
      %v5704 = vsub.f32 %v5656, %v5687
      %v5705 = vsub.f32 %v5657, %v5689
      %v5706 = vmul.f32 %v5690, 1.442695
      %v5707 = vpow.pop %v5706
      %v5708 = vmul.f32 %v5691, 1.442695
      %v5709 = vpow.pop %v5708
      %v5710 = vmul.f32 %v5692, 1.442695
      %v5711 = vpow.pop %v5710
      %v5712 = vmul.f32 %v5693, 1.442695
      %v5713 = vpow.pop %v5712
      %v5714 = vmul.f32 %v5694, 1.442695
      %v5715 = vpow.pop %v5714
      %v5716 = vmul.f32 %v5695, 1.442695
      %v5717 = vpow.pop %v5716
      %v5718 = vmul.f32 %v5696, 1.442695
      %v5719 = vpow.pop %v5718
      %v5720 = vmul.f32 %v5697, 1.442695
      %v5721 = vpow.pop %v5720
      %v5722 = vmul.f32 %v5698, 1.442695
      %v5723 = vpow.pop %v5722
      %v5724 = vmul.f32 %v5699, 1.442695
      %v5725 = vpow.pop %v5724
      %v5726 = vmul.f32 %v5700, 1.442695
      %v5727 = vpow.pop %v5726
      %v5728 = vmul.f32 %v5701, 1.442695
      %v5729 = vpow.pop %v5728
      %v5730 = vmul.f32 %v5702, 1.442695
      %v5731 = vpow.pop %v5730
      %v5732 = vmul.f32 %v5703, 1.442695
      %v5733 = vpow.pop %v5732
      %v5734 = vmul.f32 %v5704, 1.442695
      %v5735 = vpow.pop %v5734
      %v5736 = vmul.f32 %v5705, 1.442695
      %v5737 = vpow.pop %v5736
      %5738 = vadd.xlane.f32.xlu0 %v5707
      %v5739 = vpop.xlane.xlu0 %5738
      %5740 = vadd.xlane.f32.xlu0 %v5709
      %v5741 = vpop.xlane.xlu0 %5740
      %5742 = vadd.xlane.f32.xlu0 %v5711
      %v5743 = vpop.xlane.xlu0 %5742
      %5744 = vadd.xlane.f32.xlu0 %v5713
      %v5745 = vpop.xlane.xlu0 %5744
      %5746 = vadd.xlane.f32.xlu0 %v5715
      %v5747 = vpop.xlane.xlu0 %5746
      %5748 = vadd.xlane.f32.xlu0 %v5717
      %v5749 = vpop.xlane.xlu0 %5748
      %5750 = vadd.xlane.f32.xlu0 %v5719
      %v5751 = vpop.xlane.xlu0 %5750
      %5752 = vadd.xlane.f32.xlu0 %v5721
      %v5753 = vpop.xlane.xlu0 %5752
      %5754 = vadd.xlane.f32.xlu0 %v5723
      %v5755 = vpop.xlane.xlu0 %5754
      %5756 = vadd.xlane.f32.xlu0 %v5725
      %v5757 = vpop.xlane.xlu0 %5756
      %5758 = vadd.xlane.f32.xlu0 %v5727
      %v5759 = vpop.xlane.xlu0 %5758
      %5760 = vadd.xlane.f32.xlu0 %v5729
      %v5761 = vpop.xlane.xlu0 %5760
      %5762 = vadd.xlane.f32.xlu0 %v5731
      %v5763 = vpop.xlane.xlu0 %5762
      %5764 = vadd.xlane.f32.xlu0 %v5733
      %v5765 = vpop.xlane.xlu0 %5764
      %5766 = vadd.xlane.f32.xlu0 %v5735
      %v5767 = vpop.xlane.xlu0 %5766
      %5768 = vadd.xlane.f32.xlu0 %v5737
      %v5769 = vpop.xlane.xlu0 %5768
      %v5770 = vrcp.pop %v5739
      %v5771 = vrcp.pop %v5741
      %v5772 = vrcp.pop %v5743
      %v5773 = vrcp.pop %v5745
      %v5774 = vrcp.pop %v5747
      %v5775 = vrcp.pop %v5749
      %v5776 = vrcp.pop %v5751
      %v5777 = vrcp.pop %v5753
      %v5778 = vrcp.pop %v5755
      %v5779 = vrcp.pop %v5757
      %v5780 = vrcp.pop %v5759
      %v5781 = vrcp.pop %v5761
      %v5782 = vrcp.pop %v5763
      %v5783 = vrcp.pop %v5765
      %v5784 = vrcp.pop %v5767
      %v5785 = vrcp.pop %v5769
      %v5786 = vmul.f32 %v5770, 0.33333334
      %v5787 = vmul.f32 %v5771, 0.33333334
      %v5788 = vmul.f32 %v5772, 0.33333334
      %v5789 = vmul.f32 %v5773, 0.33333334
      %v5790 = vmul.f32 %v5774, 0.33333334
      %v5791 = vmul.f32 %v5775, 0.33333334
      %v5792 = vmul.f32 %v5776, 0.33333334
      %v5793 = vmul.f32 %v5777, 0.33333334
      %v5794 = vmul.f32 %v5778, 0.33333334
      %v5795 = vmul.f32 %v5779, 0.33333334
      %v5796 = vmul.f32 %v5780, 0.33333334
      %v5797 = vmul.f32 %v5781, 0.33333334
      %v5798 = vmul.f32 %v5782, 0.33333334
      %v5799 = vmul.f32 %v5783, 0.33333334
      %v5800 = vmul.f32 %v5784, 0.33333334
      %v5801 = vmul.f32 %v5785, 0.33333334
      %v5802 = vmul.f32 %v5707, %v5786
      %v5803 = vmul.f32 %v5709, %v5787
      %v5804 = vmul.f32 %v5711, %v5788
      %v5805 = vmul.f32 %v5713, %v5789
      %v5806 = vmul.f32 %v5715, %v5790
      %v5807 = vmul.f32 %v5717, %v5791
      %v5808 = vmul.f32 %v5719, %v5792
      %v5809 = vmul.f32 %v5721, %v5793
      %v5810 = vmul.f32 %v5723, %v5794
      %v5811 = vmul.f32 %v5725, %v5795
      %v5812 = vmul.f32 %v5727, %v5796
      %v5813 = vmul.f32 %v5729, %v5797
      %v5814 = vmul.f32 %v5731, %v5798
      %v5815 = vmul.f32 %v5733, %v5799
      %v5816 = vmul.f32 %v5735, %v5800
      %v5817 = vmul.f32 %v5737, %v5801
      %v5818 = vpack.c.bf16 %v5803, %v5802
      %v5819 = vpack.c.bf16 %v5805, %v5804
      %v5820 = vpack.c.bf16 %v5807, %v5806
      %v5821 = vpack.c.bf16 %v5809, %v5808
      %v5822 = vpack.c.bf16 %v5811, %v5810
      %v5823 = vpack.c.bf16 %v5813, %v5812
      %v5824 = vpack.c.bf16 %v5815, %v5814
      %v5825 = vpack.c.bf16 %v5817, %v5816
      %5826 = vst [vmem:[#allocation3 + $0x8] sm:$0xff] %v5818
      %5827 = vst [vmem:[#allocation3 + $0x20] sm:$0xff] %v5819
      %5828 = vst [vmem:[#allocation3 + $0x38] sm:$0xff] %v5820
      %5829 = vst [vmem:[#allocation3 + $0x50] sm:$0xff] %v5821
      %5830 = vst [vmem:[#allocation3 + $0x68] sm:$0xff] %v5822
      %5831 = vst [vmem:[#allocation3 + $0x80] sm:$0xff] %v5823
      %5832 = vst [vmem:[#allocation3 + $0x98] sm:$0xff] %v5824
      %5833 = vst [vmem:[#allocation3 + $0xb0] sm:$0xff] %v5825
      %v5834 = vlaneseq
      %v5835 = vshrl.u32 %v5834, 7
      %v5836 = vsub.s32 2, %v5835
      %v5837 = vrot.slane %v5343, %v5836
      %v5838 = vadd.f32 %v5171, %v5837
      %v5839 = vadd.f32 %v5173, %v5837
      %v5840 = vadd.f32 %v5175, %v5837
      %v5841 = vadd.f32 %v5177, %v5837
      %v5842 = vadd.f32 %v5179, %v5837
      %v5843 = vadd.f32 %v5181, %v5837
      %v5844 = vadd.f32 %v5183, %v5837
      %v5845 = vadd.f32 %v5185, %v5837
      %v5846 = vadd.f32 %v5187, %v5837
      %v5847 = vadd.f32 %v5189, %v5837
      %v5848 = vadd.f32 %v5191, %v5837
      %v5849 = vadd.f32 %v5193, %v5837
      %v5850 = vadd.f32 %v5195, %v5837
      %v5851 = vadd.f32 %v5197, %v5837
      %v5852 = vadd.f32 %v5199, %v5837
      %v5853 = vadd.f32 %v5201, %v5837
      %v5854 = vmul.f32 %v5838, 0.2
      %v5855 = vmul.f32 %v5839, 0.2
      %v5856 = vmul.f32 %v5840, 0.2
      %v5857 = vmul.f32 %v5841, 0.2
      %v5858 = vmul.f32 %v5842, 0.2
      %v5859 = vmul.f32 %v5843, 0.2
      %v5860 = vmul.f32 %v5844, 0.2
      %v5861 = vmul.f32 %v5845, 0.2
      %v5862 = vmul.f32 %v5846, 0.2
      %v5863 = vmul.f32 %v5847, 0.2
      %v5864 = vmul.f32 %v5848, 0.2
      %v5865 = vmul.f32 %v5849, 0.2
      %v5866 = vmul.f32 %v5850, 0.2
      %v5867 = vmul.f32 %v5851, 0.2
      %v5868 = vmul.f32 %v5852, 0.2
      %v5869 = vmul.f32 %v5853, 0.2
      %v5870 = vmax.f32 %v5838, %v5854
      %v5871 = vmax.f32 %v5839, %v5855
      %v5872 = vmax.f32 %v5840, %v5856
      %v5873 = vmax.f32 %v5841, %v5857
      %v5874 = vmax.f32 %v5842, %v5858
      %v5875 = vmax.f32 %v5843, %v5859
      %v5876 = vmax.f32 %v5844, %v5860
      %v5877 = vmax.f32 %v5845, %v5861
      %v5878 = vmax.f32 %v5846, %v5862
      %v5879 = vmax.f32 %v5847, %v5863
      %v5880 = vmax.f32 %v5848, %v5864
      %v5881 = vmax.f32 %v5849, %v5865
      %v5882 = vmax.f32 %v5850, %v5866
      %v5883 = vmax.f32 %v5851, %v5867
      %v5884 = vmax.f32 %v5852, %v5868
      %v5885 = vmax.f32 %v5853, %v5869
      %v5886 = vadd.f32 %v5870, %v495
      %v5887 = vadd.f32 %v5871, %v496
      %v5888 = vadd.f32 %v5872, %v497
      %v5889 = vadd.f32 %v5873, %v498
      %v5890 = vadd.f32 %v5874, %v499
      %v5891 = vadd.f32 %v5875, %v500
      %v5892 = vadd.f32 %v5876, %v501
      %v5893 = vadd.f32 %v5877, %v502
      %v5894 = vadd.f32 %v5878, %v503
      %v5895 = vadd.f32 %v5879, %v504
      %v5896 = vadd.f32 %v5880, %v505
      %v5897 = vadd.f32 %v5881, %v506
      %v5898 = vadd.f32 %v5882, %v507
      %v5899 = vadd.f32 %v5883, %v508
      %v5900 = vadd.f32 %v5884, %v509
      %v5901 = vadd.f32 %v5885, %v510
      %5902 = vmax.xlane.f32.xlu0 %v5886
      %v5903 = vpop.xlane.xlu0 %5902
      %5904 = vmax.xlane.f32.xlu0 %v5887
      %v5905 = vpop.xlane.xlu0 %5904
      %5906 = vmax.xlane.f32.xlu0 %v5888
      %v5907 = vpop.xlane.xlu0 %5906
      %5908 = vmax.xlane.f32.xlu0 %v5889
      %v5909 = vpop.xlane.xlu0 %5908
      %5910 = vmax.xlane.f32.xlu0 %v5890
      %v5911 = vpop.xlane.xlu0 %5910
      %5912 = vmax.xlane.f32.xlu0 %v5891
      %v5913 = vpop.xlane.xlu0 %5912
      %5914 = vmax.xlane.f32.xlu0 %v5892
      %v5915 = vpop.xlane.xlu0 %5914
      %5916 = vmax.xlane.f32.xlu0 %v5893
      %v5917 = vpop.xlane.xlu0 %5916
      %5918 = vmax.xlane.f32.xlu0 %v5894
      %v5919 = vpop.xlane.xlu0 %5918
      %5920 = vmax.xlane.f32.xlu0 %v5895
      %v5921 = vpop.xlane.xlu0 %5920
      %5922 = vmax.xlane.f32.xlu0 %v5896
      %v5923 = vpop.xlane.xlu0 %5922
      %5924 = vmax.xlane.f32.xlu0 %v5897
      %v5925 = vpop.xlane.xlu0 %5924
      %5926 = vmax.xlane.f32.xlu0 %v5898
      %v5927 = vpop.xlane.xlu0 %5926
      %5928 = vmax.xlane.f32.xlu0 %v5899
      %v5929 = vpop.xlane.xlu0 %5928
      %5930 = vmax.xlane.f32.xlu0 %v5900
      %v5931 = vpop.xlane.xlu0 %5930
      %5932 = vmax.xlane.f32.xlu0 %v5901
      %v5933 = vpop.xlane.xlu0 %5932
      %v5934 = vsub.f32 %v5886, %v5903
      %v5935 = vsub.f32 %v5887, %v5905
      %v5936 = vsub.f32 %v5888, %v5907
      %v5937 = vsub.f32 %v5889, %v5909
      %v5938 = vsub.f32 %v5890, %v5911
      %v5939 = vsub.f32 %v5891, %v5913
      %v5940 = vsub.f32 %v5892, %v5915
      %v5941 = vsub.f32 %v5893, %v5917
      %v5942 = vsub.f32 %v5894, %v5919
      %v5943 = vsub.f32 %v5895, %v5921
      %v5944 = vsub.f32 %v5896, %v5923
      %v5945 = vsub.f32 %v5897, %v5925
      %v5946 = vsub.f32 %v5898, %v5927
      %v5947 = vsub.f32 %v5899, %v5929
      %v5948 = vsub.f32 %v5900, %v5931
      %v5949 = vsub.f32 %v5901, %v5933
      %v5950 = vmul.f32 %v5934, 1.442695
      %v5951 = vpow.pop %v5950
      %v5952 = vmul.f32 %v5935, 1.442695
      %v5953 = vpow.pop %v5952
      %v5954 = vmul.f32 %v5936, 1.442695
      %v5955 = vpow.pop %v5954
      %v5956 = vmul.f32 %v5937, 1.442695
      %v5957 = vpow.pop %v5956
      %v5958 = vmul.f32 %v5938, 1.442695
      %v5959 = vpow.pop %v5958
      %v5960 = vmul.f32 %v5939, 1.442695
      %v5961 = vpow.pop %v5960
      %v5962 = vmul.f32 %v5940, 1.442695
      %v5963 = vpow.pop %v5962
      %v5964 = vmul.f32 %v5941, 1.442695
      %v5965 = vpow.pop %v5964
      %v5966 = vmul.f32 %v5942, 1.442695
      %v5967 = vpow.pop %v5966
      %v5968 = vmul.f32 %v5943, 1.442695
      %v5969 = vpow.pop %v5968
      %v5970 = vmul.f32 %v5944, 1.442695
      %v5971 = vpow.pop %v5970
      %v5972 = vmul.f32 %v5945, 1.442695
      %v5973 = vpow.pop %v5972
      %v5974 = vmul.f32 %v5946, 1.442695
      %v5975 = vpow.pop %v5974
      %v5976 = vmul.f32 %v5947, 1.442695
      %v5977 = vpow.pop %v5976
      %v5978 = vmul.f32 %v5948, 1.442695
      %v5979 = vpow.pop %v5978
      %v5980 = vmul.f32 %v5949, 1.442695
      %v5981 = vpow.pop %v5980
      %5982 = vadd.xlane.f32.xlu0 %v5951
      %v5983 = vpop.xlane.xlu0 %5982
      %5984 = vadd.xlane.f32.xlu0 %v5953
      %v5985 = vpop.xlane.xlu0 %5984
      %5986 = vadd.xlane.f32.xlu0 %v5955
      %v5987 = vpop.xlane.xlu0 %5986
      %5988 = vadd.xlane.f32.xlu0 %v5957
      %v5989 = vpop.xlane.xlu0 %5988
      %5990 = vadd.xlane.f32.xlu0 %v5959
      %v5991 = vpop.xlane.xlu0 %5990
      %5992 = vadd.xlane.f32.xlu0 %v5961
      %v5993 = vpop.xlane.xlu0 %5992
      %5994 = vadd.xlane.f32.xlu0 %v5963
      %v5995 = vpop.xlane.xlu0 %5994
      %5996 = vadd.xlane.f32.xlu0 %v5965
      %v5997 = vpop.xlane.xlu0 %5996
      %5998 = vadd.xlane.f32.xlu0 %v5967
      %v5999 = vpop.xlane.xlu0 %5998
      %6000 = vadd.xlane.f32.xlu0 %v5969
      %v6001 = vpop.xlane.xlu0 %6000
      %6002 = vadd.xlane.f32.xlu0 %v5971
      %v6003 = vpop.xlane.xlu0 %6002
      %6004 = vadd.xlane.f32.xlu0 %v5973
      %v6005 = vpop.xlane.xlu0 %6004
      %6006 = vadd.xlane.f32.xlu0 %v5975
      %v6007 = vpop.xlane.xlu0 %6006
      %6008 = vadd.xlane.f32.xlu0 %v5977
      %v6009 = vpop.xlane.xlu0 %6008
      %6010 = vadd.xlane.f32.xlu0 %v5979
      %v6011 = vpop.xlane.xlu0 %6010
      %6012 = vadd.xlane.f32.xlu0 %v5981
      %v6013 = vpop.xlane.xlu0 %6012
      %v6014 = vrcp.pop %v5983
      %v6015 = vrcp.pop %v5985
      %v6016 = vrcp.pop %v5987
      %v6017 = vrcp.pop %v5989
      %v6018 = vrcp.pop %v5991
      %v6019 = vrcp.pop %v5993
      %v6020 = vrcp.pop %v5995
      %v6021 = vrcp.pop %v5997
      %v6022 = vrcp.pop %v5999
      %v6023 = vrcp.pop %v6001
      %v6024 = vrcp.pop %v6003
      %v6025 = vrcp.pop %v6005
      %v6026 = vrcp.pop %v6007
      %v6027 = vrcp.pop %v6009
      %v6028 = vrcp.pop %v6011
      %v6029 = vrcp.pop %v6013
      %v6030 = vmul.f32 %v6014, 0.33333334
      %v6031 = vmul.f32 %v6015, 0.33333334
      %v6032 = vmul.f32 %v6016, 0.33333334
      %v6033 = vmul.f32 %v6017, 0.33333334
      %v6034 = vmul.f32 %v6018, 0.33333334
      %v6035 = vmul.f32 %v6019, 0.33333334
      %v6036 = vmul.f32 %v6020, 0.33333334
      %v6037 = vmul.f32 %v6021, 0.33333334
      %v6038 = vmul.f32 %v6022, 0.33333334
      %v6039 = vmul.f32 %v6023, 0.33333334
      %v6040 = vmul.f32 %v6024, 0.33333334
      %v6041 = vmul.f32 %v6025, 0.33333334
      %v6042 = vmul.f32 %v6026, 0.33333334
      %v6043 = vmul.f32 %v6027, 0.33333334
      %v6044 = vmul.f32 %v6028, 0.33333334
      %v6045 = vmul.f32 %v6029, 0.33333334
      %v6046 = vmul.f32 %v5951, %v6030
      %v6047 = vmul.f32 %v5953, %v6031
      %v6048 = vmul.f32 %v5955, %v6032
      %v6049 = vmul.f32 %v5957, %v6033
      %v6050 = vmul.f32 %v5959, %v6034
      %v6051 = vmul.f32 %v5961, %v6035
      %v6052 = vmul.f32 %v5963, %v6036
      %v6053 = vmul.f32 %v5965, %v6037
      %v6054 = vmul.f32 %v5967, %v6038
      %v6055 = vmul.f32 %v5969, %v6039
      %v6056 = vmul.f32 %v5971, %v6040
      %v6057 = vmul.f32 %v5973, %v6041
      %v6058 = vmul.f32 %v5975, %v6042
      %v6059 = vmul.f32 %v5977, %v6043
      %v6060 = vmul.f32 %v5979, %v6044
      %v6061 = vmul.f32 %v5981, %v6045
      %v6062 = vpack.c.bf16 %v6047, %v6046
      %v6063 = vpack.c.bf16 %v6049, %v6048
      %v6064 = vpack.c.bf16 %v6051, %v6050
      %v6065 = vpack.c.bf16 %v6053, %v6052
      %v6066 = vpack.c.bf16 %v6055, %v6054
      %v6067 = vpack.c.bf16 %v6057, %v6056
      %v6068 = vpack.c.bf16 %v6059, %v6058
      %v6069 = vpack.c.bf16 %v6061, %v6060
      %6070 = vst [vmem:[#allocation3 + $0x10] sm:$0xff] %v6062
      %6071 = vst [vmem:[#allocation3 + $0x28] sm:$0xff] %v6063
      %6072 = vst [vmem:[#allocation3 + $0x40] sm:$0xff] %v6064
      %6073 = vst [vmem:[#allocation3 + $0x58] sm:$0xff] %v6065
      %6074 = vst [vmem:[#allocation3 + $0x70] sm:$0xff] %v6066
      %6075 = vst [vmem:[#allocation3 + $0x88] sm:$0xff] %v6067
      %6076 = vst [vmem:[#allocation3 + $0xa0] sm:$0xff] %v6068
      %6077 = vst [vmem:[#allocation3 + $0xb8] sm:$0xff] %v6069
      %v6078 = vld [vmem:[#allocation3] sm:$0xff]
      %v6079 = vld [vmem:[#allocation3 + $0x8] sm:$0xff]
      %v6080 = vld [vmem:[#allocation3 + $0x10] sm:$0xff]
      %v6081 = vld [vmem:[#allocation3 + $0x18] sm:$0xff]
      %v6082 = vld [vmem:[#allocation3 + $0x20] sm:$0xff]
      %v6083 = vld [vmem:[#allocation3 + $0x28] sm:$0xff]
      %v6084 = vld [vmem:[#allocation3 + $0x30] sm:$0xff]
      %v6085 = vld [vmem:[#allocation3 + $0x38] sm:$0xff]
      %v6086 = vld [vmem:[#allocation3 + $0x40] sm:$0xff]
      %v6087 = vld [vmem:[#allocation3 + $0x48] sm:$0xff]
      %v6088 = vld [vmem:[#allocation3 + $0x50] sm:$0xff]
      %v6089 = vld [vmem:[#allocation3 + $0x58] sm:$0xff]
      %v6090 = vld [vmem:[#allocation3 + $0x60] sm:$0xff]
      %v6091 = vld [vmem:[#allocation3 + $0x68] sm:$0xff]
      %v6092 = vld [vmem:[#allocation3 + $0x70] sm:$0xff]
      %v6093 = vld [vmem:[#allocation3 + $0x78] sm:$0xff]
      %v6094 = vld [vmem:[#allocation3 + $0x80] sm:$0xff]
      %v6095 = vld [vmem:[#allocation3 + $0x88] sm:$0xff]
      %v6096 = vld [vmem:[#allocation3 + $0x90] sm:$0xff]
      %v6097 = vld [vmem:[#allocation3 + $0x98] sm:$0xff]
      %v6098 = vld [vmem:[#allocation3 + $0xa0] sm:$0xff]
      %v6099 = vld [vmem:[#allocation3 + $0xa8] sm:$0xff]
      %v6100 = vld [vmem:[#allocation3 + $0xb0] sm:$0xff]
      %v6101 = vld [vmem:[#allocation3 + $0xb8] sm:$0xff]
      %v6102 = vld [vmem:[#allocation2] sm:$0xff]
      %v6103 = vld [vmem:[#allocation2 + $0x8] sm:$0xff]
      %v6104 = vld [vmem:[#allocation2 + $0x10] sm:$0xff]
      %v6105 = vld [vmem:[#allocation2 + $0x18] sm:$0xff]
      %v6106 = vld [vmem:[#allocation2 + $0x20] sm:$0xff]
      %v6107 = vld [vmem:[#allocation2 + $0x28] sm:$0xff]
      %v6108 = vld [vmem:[#allocation2 + $0x30] sm:$0xff]
      %v6109 = vld [vmem:[#allocation2 + $0x38] sm:$0xff]
      %v6110 = vld [vmem:[#allocation2 + $0x40] sm:$0xff]
      %v6111 = vld [vmem:[#allocation2 + $0x48] sm:$0xff]
      %v6112 = vld [vmem:[#allocation2 + $0x50] sm:$0xff]
      %v6113 = vld [vmem:[#allocation2 + $0x58] sm:$0xff]
      %v6114 = vld [vmem:[#allocation2 + $0x60] sm:$0xff]
      %v6115 = vld [vmem:[#allocation2 + $0x68] sm:$0xff]
      %v6116 = vld [vmem:[#allocation2 + $0x70] sm:$0xff]
      %v6117 = vld [vmem:[#allocation2 + $0x78] sm:$0xff]
      %v6118 = vld [vmem:[#allocation2 + $0x80] sm:$0xff]
      %v6119 = vld [vmem:[#allocation2 + $0x88] sm:$0xff]
      %v6120 = vld [vmem:[#allocation2 + $0x90] sm:$0xff]
      %v6121 = vld [vmem:[#allocation2 + $0x98] sm:$0xff]
      %v6122 = vld [vmem:[#allocation2 + $0xa0] sm:$0xff]
      %v6123 = vld [vmem:[#allocation2 + $0xa8] sm:$0xff]
      %v6124 = vld [vmem:[#allocation2 + $0xb0] sm:$0xff]
      %v6125 = vld [vmem:[#allocation2 + $0xb8] sm:$0xff]
      %s6126 = scalar_lea.vmem %s464, 2
      %v6127 = vld [vmem:[%s6126] sm:$0x1]
      %v6129 = vlaneseq
      %v6130 = vshrl.u32 %v6129, 7
      %v6131 = vsub.s32 0, %v6130
      %v6132 = vrot.slane %v6127, %v6131
      %6134 = vmatprep.subr.bf16.mxu0 0
      %6135 = vmatpush1.bf16.msra.mxu0 %v6102
      %6136 = vmatprep.subr.bf16.mxu0 0
      %6137 = vmatpush1.bf16.msra.mxu0 %v6103
      %6138 = vmatprep.subr.bf16.mxu0 0
      %6139 = vmatpush1.bf16.msra.mxu0 %v6104
      %6140 = vmatprep.subr.bf16.mxu0 0
      %6141 = vmatpush1.bf16.msra.mxu0 %v6105
      %6142 = vmatprep.subr.bf16.mxu0 0
      %6143 = vmatpush1.bf16.msra.mxu0 %v6106
      %6144 = vmatprep.subr.bf16.mxu0 0
      %6145 = vmatpush1.bf16.msra.mxu0 %v6107
      %6146 = vmatprep.subr.bf16.mxu0 0
      %6147 = vmatpush1.bf16.msra.mxu0 %v6108
      %6148 = vmatprep.subr.bf16.mxu0 0
      %6149 = vmatpush1.bf16.msra.mxu0 %v6109
      %6150 = vmatprep.subr.bf16.mxu0 0
      %6151 = vmatpush1.bf16.msra.mxu0 %v6110
      %6152 = vmatprep.subr.bf16.mxu0 0
      %6153 = vmatpush1.bf16.msra.mxu0 %v6111
      %6154 = vmatprep.subr.bf16.mxu0 0
      %6155 = vmatpush1.bf16.msra.mxu0 %v6112
      %6156 = vmatprep.subr.bf16.mxu0 0
      %6157 = vmatpush1.bf16.msra.mxu0 %v6113
      %6158 = vmatprep.subr.bf16.mxu0 0
      %6159 = vmatpush1.bf16.msra.mxu0 %v6114
      %6160 = vmatprep.subr.bf16.mxu0 0
      %6161 = vmatpush1.bf16.msra.mxu0 %v6115
      %6162 = vmatprep.subr.bf16.mxu0 0
      %6163 = vmatpush1.bf16.msra.mxu0 %v6116
      %6164 = vmatprep.subr.bf16.mxu0 0
      %6165 = vmatpush1.bf16.msra.mxu0 %v6117
      %6166 = vmatprep.mubr.bf16.mxu0 %v6079
      %6167 = vmatmul.mubr.bf16.gmra.mrb[0].mxu0 %v6078
      %v6168 = vpop.f32.mrb[0].mxu0
      %v6169 = vadd.f32 %v6132, %v6168
      %v6170 = vpop.f32.mrb[0].mxu0
      %v6171 = vpop.f32.mrb[0].mxu0
      %v6172 = vadd.f32 %v6132, %v6171
      %v6173 = vpop.f32.mrb[0].mxu0
      %6174 = vmatprep.mubr.bf16.mxu0 %v6082
      %6175 = vmatmul.mubr.bf16.gmra.mrb[0].mxu0 %v6081
      %v6176 = vpop.f32.mrb[0].mxu0
      %v6177 = vadd.f32 %v6132, %v6176
      %v6178 = vpop.f32.mrb[0].mxu0
      %v6179 = vpop.f32.mrb[0].mxu0
      %v6180 = vadd.f32 %v6132, %v6179
      %v6181 = vpop.f32.mrb[0].mxu0
      %6182 = vmatprep.mubr.bf16.mxu0 %v6085
      %6183 = vmatmul.mubr.bf16.gmra.mrb[0].mxu0 %v6084
      %v6184 = vpop.f32.mrb[0].mxu0
      %v6185 = vadd.f32 %v6132, %v6184
      %v6186 = vpop.f32.mrb[0].mxu0
      %v6187 = vpop.f32.mrb[0].mxu0
      %v6188 = vadd.f32 %v6132, %v6187
      %v6189 = vpop.f32.mrb[0].mxu0
      %6190 = vmatprep.mubr.bf16.mxu0 %v6088
      %6191 = vmatmul.mubr.bf16.gmra.mrb[0].mxu0 %v6087
      %v6192 = vpop.f32.mrb[0].mxu0
      %v6193 = vadd.f32 %v6132, %v6192
      %v6194 = vpop.f32.mrb[0].mxu0
      %v6195 = vpop.f32.mrb[0].mxu0
      %v6196 = vadd.f32 %v6132, %v6195
      %v6197 = vpop.f32.mrb[0].mxu0
      %6198 = vmatprep.mubr.bf16.mxu0 %v6091
      %6199 = vmatmul.mubr.bf16.gmra.mrb[0].mxu0 %v6090
      %v6200 = vpop.f32.mrb[0].mxu0
      %v6201 = vadd.f32 %v6132, %v6200
      %v6202 = vpop.f32.mrb[0].mxu0
      %v6203 = vpop.f32.mrb[0].mxu0
      %v6204 = vadd.f32 %v6132, %v6203
      %v6205 = vpop.f32.mrb[0].mxu0
      %6206 = vmatprep.mubr.bf16.mxu0 %v6094
      %6207 = vmatmul.mubr.bf16.gmra.mrb[0].mxu0 %v6093
      %v6208 = vpop.f32.mrb[0].mxu0
      %v6209 = vadd.f32 %v6132, %v6208
      %v6210 = vpop.f32.mrb[0].mxu0
      %v6211 = vpop.f32.mrb[0].mxu0
      %v6212 = vadd.f32 %v6132, %v6211
      %v6213 = vpop.f32.mrb[0].mxu0
      %6214 = vmatprep.mubr.bf16.mxu0 %v6097
      %6215 = vmatmul.mubr.bf16.gmra.mrb[0].mxu0 %v6096
      %v6216 = vpop.f32.mrb[0].mxu0
      %v6217 = vadd.f32 %v6132, %v6216
      %v6218 = vpop.f32.mrb[0].mxu0
      %v6219 = vpop.f32.mrb[0].mxu0
      %v6220 = vadd.f32 %v6132, %v6219
      %v6221 = vpop.f32.mrb[0].mxu0
      %6222 = vmatprep.mubr.bf16.mxu0 %v6100
      %6223 = vmatmul.mubr.bf16.gmra.mrb[0].mxu0 %v6099
      %v6224 = vpop.f32.mrb[0].mxu0
      %v6225 = vadd.f32 %v6132, %v6224
      %v6226 = vpop.f32.mrb[0].mxu0
      %v6227 = vpop.f32.mrb[0].mxu0
      %v6228 = vadd.f32 %v6132, %v6227
      %v6229 = vpop.f32.mrb[0].mxu0
      %6230 = vdwg.mxu0
      %6231 = vmatprep.subr.bf16.mxu0 0
      %6232 = vmatpush1.bf16.msra.mxu0 %v6118
      %6233 = vmatprep.subr.bf16.mxu0 0
      %6234 = vmatpush1.bf16.msra.mxu0 %v6119
      %6235 = vmatprep.subr.bf16.mxu0 0
      %6236 = vmatpush1.bf16.msra.mxu0 %v6120
      %6237 = vmatprep.subr.bf16.mxu0 0
      %6238 = vmatpush1.bf16.msra.mxu0 %v6121
      %6239 = vmatprep.subr.bf16.mxu0 0
      %6240 = vmatpush1.bf16.msra.mxu0 %v6122
      %6241 = vmatprep.subr.bf16.mxu0 0
      %6242 = vmatpush1.bf16.msra.mxu0 %v6123
      %6243 = vmatprep.subr.bf16.mxu0 0
      %6244 = vmatpush1.bf16.msra.mxu0 %v6124
      %6245 = vmatprep.subr.bf16.mxu0 0
      %6246 = vmatpush1.bf16.msra.mxu0 %v6125
      %6247 = vmatprep.subr.bf16.mxu0 0
      %6248 = vmatpush1.bf16.msra.mxu0 0
      %6249 = vmatprep.subr.bf16.mxu0 0
      %6250 = vmatpush1.bf16.msra.mxu0 0
      %6251 = vmatprep.subr.bf16.mxu0 0
      %6252 = vmatpush1.bf16.msra.mxu0 0
      %6253 = vmatprep.subr.bf16.mxu0 0
      %6254 = vmatpush1.bf16.msra.mxu0 0
      %6255 = vmatprep.subr.bf16.mxu0 0
      %6256 = vmatpush1.bf16.msra.mxu0 0
      %6257 = vmatprep.subr.bf16.mxu0 0
      %6258 = vmatpush1.bf16.msra.mxu0 0
      %6259 = vmatprep.subr.bf16.mxu0 0
      %6260 = vmatpush1.bf16.msra.mxu0 0
      %6261 = vmatprep.subr.bf16.mxu0 0
      %6262 = vmatpush1.bf16.msra.mxu0 0
      %6263 = vmatprep.mubr.bf16.mxu0 0
      %6264 = vmatmul.mubr.bf16.gmra.mrb[0].mxu0 %v6080
      %v6265 = vpop.f32.mrb[0].mxu0
      %v6266 = vadd.f32 %v6169, %v6265
      %v6267 = vpop.f32.mrb[0].mxu0
      %v6268 = vpop.f32.mrb[0].mxu0
      %v6269 = vadd.f32 %v6172, %v6268
      %v6270 = vpop.f32.mrb[0].mxu0
      %6271 = vmatprep.mubr.bf16.mxu0 0
      %6272 = vmatmul.mubr.bf16.gmra.mrb[0].mxu0 %v6083
      %v6273 = vpop.f32.mrb[0].mxu0
      %v6274 = vadd.f32 %v6177, %v6273
      %v6275 = vpop.f32.mrb[0].mxu0
      %v6276 = vpop.f32.mrb[0].mxu0
      %v6277 = vadd.f32 %v6180, %v6276
      %v6278 = vpop.f32.mrb[0].mxu0
      %6279 = vmatprep.mubr.bf16.mxu0 0
      %6280 = vmatmul.mubr.bf16.gmra.mrb[0].mxu0 %v6086
      %v6281 = vpop.f32.mrb[0].mxu0
      %v6282 = vadd.f32 %v6185, %v6281
      %v6283 = vpop.f32.mrb[0].mxu0
      %v6284 = vpop.f32.mrb[0].mxu0
      %v6285 = vadd.f32 %v6188, %v6284
      %v6286 = vpop.f32.mrb[0].mxu0
      %6287 = vmatprep.mubr.bf16.mxu0 0
      %6288 = vmatmul.mubr.bf16.gmra.mrb[0].mxu0 %v6089
      %v6289 = vpop.f32.mrb[0].mxu0
      %v6290 = vadd.f32 %v6193, %v6289
      %v6291 = vpop.f32.mrb[0].mxu0
      %v6292 = vpop.f32.mrb[0].mxu0
      %v6293 = vadd.f32 %v6196, %v6292
      %v6294 = vpop.f32.mrb[0].mxu0
      %6295 = vmatprep.mubr.bf16.mxu0 0
      %6296 = vmatmul.mubr.bf16.gmra.mrb[0].mxu0 %v6092
      %v6297 = vpop.f32.mrb[0].mxu0
      %v6298 = vadd.f32 %v6201, %v6297
      %v6299 = vpop.f32.mrb[0].mxu0
      %v6300 = vpop.f32.mrb[0].mxu0
      %v6301 = vadd.f32 %v6204, %v6300
      %v6302 = vpop.f32.mrb[0].mxu0
      %6303 = vmatprep.mubr.bf16.mxu0 0
      %6304 = vmatmul.mubr.bf16.gmra.mrb[0].mxu0 %v6095
      %v6305 = vpop.f32.mrb[0].mxu0
      %v6306 = vadd.f32 %v6209, %v6305
      %v6307 = vpop.f32.mrb[0].mxu0
      %v6308 = vpop.f32.mrb[0].mxu0
      %v6309 = vadd.f32 %v6212, %v6308
      %v6310 = vpop.f32.mrb[0].mxu0
      %6311 = vmatprep.mubr.bf16.mxu0 0
      %6312 = vmatmul.mubr.bf16.gmra.mrb[0].mxu0 %v6098
      %v6313 = vpop.f32.mrb[0].mxu0
      %v6314 = vadd.f32 %v6217, %v6313
      %v6315 = vpop.f32.mrb[0].mxu0
      %v6316 = vpop.f32.mrb[0].mxu0
      %v6317 = vadd.f32 %v6220, %v6316
      %v6318 = vpop.f32.mrb[0].mxu0
      %6319 = vmatprep.mubr.bf16.mxu0 0
      %6320 = vmatmul.mubr.bf16.gmra.mrb[0].mxu0 %v6101
      %v6321 = vpop.f32.mrb[0].mxu0
      %v6322 = vadd.f32 %v6225, %v6321
      %v6323 = vpop.f32.mrb[0].mxu0
      %v6324 = vpop.f32.mrb[0].mxu0
      %v6325 = vadd.f32 %v6228, %v6324
      %v6326 = vpop.f32.mrb[0].mxu0
      %6327 = vdwg.mxu0
      %6328 = vadd.xlane.f32.xlu0 %v6266
      %v6329 = vpop.xlane.xlu0 %6328
      %6330 = vadd.xlane.f32.xlu0 %v6269
      %v6331 = vpop.xlane.xlu0 %6330
      %6332 = vadd.xlane.f32.xlu0 %v6274
      %v6333 = vpop.xlane.xlu0 %6332
      %6334 = vadd.xlane.f32.xlu0 %v6277
      %v6335 = vpop.xlane.xlu0 %6334
      %6336 = vadd.xlane.f32.xlu0 %v6282
      %v6337 = vpop.xlane.xlu0 %6336
      %6338 = vadd.xlane.f32.xlu0 %v6285
      %v6339 = vpop.xlane.xlu0 %6338
      %6340 = vadd.xlane.f32.xlu0 %v6290
      %v6341 = vpop.xlane.xlu0 %6340
      %6342 = vadd.xlane.f32.xlu0 %v6293
      %v6343 = vpop.xlane.xlu0 %6342
      %6344 = vadd.xlane.f32.xlu0 %v6298
      %v6345 = vpop.xlane.xlu0 %6344
      %6346 = vadd.xlane.f32.xlu0 %v6301
      %v6347 = vpop.xlane.xlu0 %6346
      %6348 = vadd.xlane.f32.xlu0 %v6306
      %v6349 = vpop.xlane.xlu0 %6348
      %6350 = vadd.xlane.f32.xlu0 %v6309
      %v6351 = vpop.xlane.xlu0 %6350
      %6352 = vadd.xlane.f32.xlu0 %v6314
      %v6353 = vpop.xlane.xlu0 %6352
      %6354 = vadd.xlane.f32.xlu0 %v6317
      %v6355 = vpop.xlane.xlu0 %6354
      %6356 = vadd.xlane.f32.xlu0 %v6322
      %v6357 = vpop.xlane.xlu0 %6356
      %6358 = vadd.xlane.f32.xlu0 %v6325
      %v6359 = vpop.xlane.xlu0 %6358
      %v6360 = vmul.f32 %v6329, %v2331
      %v6361 = vmul.f32 %v6331, %v2331
      %v6362 = vmul.f32 %v6333, %v2331
      %v6363 = vmul.f32 %v6335, %v2331
      %v6364 = vmul.f32 %v6337, %v2331
      %v6365 = vmul.f32 %v6339, %v2331
      %v6366 = vmul.f32 %v6341, %v2331
      %v6367 = vmul.f32 %v6343, %v2331
      %v6368 = vmul.f32 %v6345, %v2331
      %v6369 = vmul.f32 %v6347, %v2331
      %v6370 = vmul.f32 %v6349, %v2331
      %v6371 = vmul.f32 %v6351, %v2331
      %v6372 = vmul.f32 %v6353, %v2331
      %v6373 = vmul.f32 %v6355, %v2331
      %v6374 = vmul.f32 %v6357, %v2331
      %v6375 = vmul.f32 %v6359, %v2331
      %v6376 = vsub.f32 %v6266, %v6360
      %v6377 = vsub.f32 %v6269, %v6361
      %v6378 = vsub.f32 %v6274, %v6362
      %v6379 = vsub.f32 %v6277, %v6363
      %v6380 = vsub.f32 %v6282, %v6364
      %v6381 = vsub.f32 %v6285, %v6365
      %v6382 = vsub.f32 %v6290, %v6366
      %v6383 = vsub.f32 %v6293, %v6367
      %v6384 = vsub.f32 %v6298, %v6368
      %v6385 = vsub.f32 %v6301, %v6369
      %v6386 = vsub.f32 %v6306, %v6370
      %v6387 = vsub.f32 %v6309, %v6371
      %v6388 = vsub.f32 %v6314, %v6372
      %v6389 = vsub.f32 %v6317, %v6373
      %v6390 = vsub.f32 %v6322, %v6374
      %v6391 = vsub.f32 %v6325, %v6375
      %v6392 = vmul.f32 %v6376, %v6376
      %v6393 = vmul.f32 %v6377, %v6377
      %v6394 = vmul.f32 %v6378, %v6378
      %v6395 = vmul.f32 %v6379, %v6379
      %v6396 = vmul.f32 %v6380, %v6380
      %v6397 = vmul.f32 %v6381, %v6381
      %v6398 = vmul.f32 %v6382, %v6382
      %v6399 = vmul.f32 %v6383, %v6383
      %v6400 = vmul.f32 %v6384, %v6384
      %v6401 = vmul.f32 %v6385, %v6385
      %v6402 = vmul.f32 %v6386, %v6386
      %v6403 = vmul.f32 %v6387, %v6387
      %v6404 = vmul.f32 %v6388, %v6388
      %v6405 = vmul.f32 %v6389, %v6389
      %v6406 = vmul.f32 %v6390, %v6390
      %v6407 = vmul.f32 %v6391, %v6391
      %6408 = vadd.xlane.f32.xlu0 %v6392
      %v6409 = vpop.xlane.xlu0 %6408
      %6410 = vadd.xlane.f32.xlu0 %v6393
      %v6411 = vpop.xlane.xlu0 %6410
      %6412 = vadd.xlane.f32.xlu0 %v6394
      %v6413 = vpop.xlane.xlu0 %6412
      %6414 = vadd.xlane.f32.xlu0 %v6395
      %v6415 = vpop.xlane.xlu0 %6414
      %6416 = vadd.xlane.f32.xlu0 %v6396
      %v6417 = vpop.xlane.xlu0 %6416
      %6418 = vadd.xlane.f32.xlu0 %v6397
      %v6419 = vpop.xlane.xlu0 %6418
      %6420 = vadd.xlane.f32.xlu0 %v6398
      %v6421 = vpop.xlane.xlu0 %6420
      %6422 = vadd.xlane.f32.xlu0 %v6399
      %v6423 = vpop.xlane.xlu0 %6422
      %6424 = vadd.xlane.f32.xlu0 %v6400
      %v6425 = vpop.xlane.xlu0 %6424
      %6426 = vadd.xlane.f32.xlu0 %v6401
      %v6427 = vpop.xlane.xlu0 %6426
      %6428 = vadd.xlane.f32.xlu0 %v6402
      %v6429 = vpop.xlane.xlu0 %6428
      %6430 = vadd.xlane.f32.xlu0 %v6403
      %v6431 = vpop.xlane.xlu0 %6430
      %6432 = vadd.xlane.f32.xlu0 %v6404
      %v6433 = vpop.xlane.xlu0 %6432
      %6434 = vadd.xlane.f32.xlu0 %v6405
      %v6435 = vpop.xlane.xlu0 %6434
      %6436 = vadd.xlane.f32.xlu0 %v6406
      %v6437 = vpop.xlane.xlu0 %6436
      %6438 = vadd.xlane.f32.xlu0 %v6407
      %v6439 = vpop.xlane.xlu0 %6438
      %v6440 = vmul.f32 %v6409, %v2331
      %v6441 = vmul.f32 %v6411, %v2331
      %v6442 = vmul.f32 %v6413, %v2331
      %v6443 = vmul.f32 %v6415, %v2331
      %v6444 = vmul.f32 %v6417, %v2331
      %v6445 = vmul.f32 %v6419, %v2331
      %v6446 = vmul.f32 %v6421, %v2331
      %v6447 = vmul.f32 %v6423, %v2331
      %v6448 = vmul.f32 %v6425, %v2331
      %v6449 = vmul.f32 %v6427, %v2331
      %v6450 = vmul.f32 %v6429, %v2331
      %v6451 = vmul.f32 %v6431, %v2331
      %v6452 = vmul.f32 %v6433, %v2331
      %v6453 = vmul.f32 %v6435, %v2331
      %v6454 = vmul.f32 %v6437, %v2331
      %v6455 = vmul.f32 %v6439, %v2331
      %v6456 = vadd.f32 %v6440, 1e-05
      %v6457 = vadd.f32 %v6441, 1e-05
      %v6458 = vadd.f32 %v6442, 1e-05
      %v6459 = vadd.f32 %v6443, 1e-05
      %v6460 = vadd.f32 %v6444, 1e-05
      %v6461 = vadd.f32 %v6445, 1e-05
      %v6462 = vadd.f32 %v6446, 1e-05
      %v6463 = vadd.f32 %v6447, 1e-05
      %v6464 = vadd.f32 %v6448, 1e-05
      %v6465 = vadd.f32 %v6449, 1e-05
      %v6466 = vadd.f32 %v6450, 1e-05
      %v6467 = vadd.f32 %v6451, 1e-05
      %v6468 = vadd.f32 %v6452, 1e-05
      %v6469 = vadd.f32 %v6453, 1e-05
      %v6470 = vadd.f32 %v6454, 1e-05
      %v6471 = vadd.f32 %v6455, 1e-05
      %v6472 = vrsqrt.pop %v6456
      %v6473 = vrsqrt.pop %v6457
      %v6474 = vrsqrt.pop %v6458
      %v6475 = vrsqrt.pop %v6459
      %v6476 = vrsqrt.pop %v6460
      %v6477 = vrsqrt.pop %v6461
      %v6478 = vrsqrt.pop %v6462
      %v6479 = vrsqrt.pop %v6463
      %v6480 = vrsqrt.pop %v6464
      %v6481 = vrsqrt.pop %v6465
      %v6482 = vrsqrt.pop %v6466
      %v6483 = vrsqrt.pop %v6467
      %v6484 = vrsqrt.pop %v6468
      %v6485 = vrsqrt.pop %v6469
      %v6486 = vrsqrt.pop %v6470
      %v6487 = vrsqrt.pop %v6471
      %v6488 = vmul.f32 %v6376, %v6472
      %v6489 = vmul.f32 %v6377, %v6473
      %v6490 = vmul.f32 %v6378, %v6474
      %v6491 = vmul.f32 %v6379, %v6475
      %v6492 = vmul.f32 %v6380, %v6476
      %v6493 = vmul.f32 %v6381, %v6477
      %v6494 = vmul.f32 %v6382, %v6478
      %v6495 = vmul.f32 %v6383, %v6479
      %v6496 = vmul.f32 %v6384, %v6480
      %v6497 = vmul.f32 %v6385, %v6481
      %v6498 = vmul.f32 %v6386, %v6482
      %v6499 = vmul.f32 %v6387, %v6483
      %v6500 = vmul.f32 %v6388, %v6484
      %v6501 = vmul.f32 %v6389, %v6485
      %v6502 = vmul.f32 %v6390, %v6486
      %v6503 = vmul.f32 %v6391, %v6487
      %s6504 = scalar_lea.vmem %s468, 2
      %v6505 = vld [vmem:[%s6504] sm:$0x1]
      %v6507 = vlaneseq
      %v6508 = vshrl.u32 %v6507, 7
      %v6509 = vsub.s32 0, %v6508
      %v6510 = vrot.slane %v6505, %v6509
      %v6512 = vmul.f32 %v6488, %v6510
      %v6513 = vmul.f32 %v6489, %v6510
      %v6514 = vmul.f32 %v6490, %v6510
      %v6515 = vmul.f32 %v6491, %v6510
      %v6516 = vmul.f32 %v6492, %v6510
      %v6517 = vmul.f32 %v6493, %v6510
      %v6518 = vmul.f32 %v6494, %v6510
      %v6519 = vmul.f32 %v6495, %v6510
      %v6520 = vmul.f32 %v6496, %v6510
      %v6521 = vmul.f32 %v6497, %v6510
      %v6522 = vmul.f32 %v6498, %v6510
      %v6523 = vmul.f32 %v6499, %v6510
      %v6524 = vmul.f32 %v6500, %v6510
      %v6525 = vmul.f32 %v6501, %v6510
      %v6526 = vmul.f32 %v6502, %v6510
      %v6527 = vmul.f32 %v6503, %v6510
      %s6528 = scalar_lea.vmem %s472, 2
      %v6529 = vld [vmem:[%s6528] sm:$0x1]
      %v6531 = vlaneseq
      %v6532 = vshrl.u32 %v6531, 7
      %v6533 = vsub.s32 0, %v6532
      %v6534 = vrot.slane %v6529, %v6533
      %v6536 = vadd.f32 %v6512, %v6534
      %v6537 = vadd.f32 %v6513, %v6534
      %v6538 = vadd.f32 %v6514, %v6534
      %v6539 = vadd.f32 %v6515, %v6534
      %v6540 = vadd.f32 %v6516, %v6534
      %v6541 = vadd.f32 %v6517, %v6534
      %v6542 = vadd.f32 %v6518, %v6534
      %v6543 = vadd.f32 %v6519, %v6534
      %v6544 = vadd.f32 %v6520, %v6534
      %v6545 = vadd.f32 %v6521, %v6534
      %v6546 = vadd.f32 %v6522, %v6534
      %v6547 = vadd.f32 %v6523, %v6534
      %v6548 = vadd.f32 %v6524, %v6534
      %v6549 = vadd.f32 %v6525, %v6534
      %v6550 = vadd.f32 %v6526, %v6534
      %v6551 = vadd.f32 %v6527, %v6534
      %6552 = vmatprep.subr.mxu0 0.0
      %6553 = vmatpush1.msra.mxu0 %v6536
      %6554 = vmatprep.subr.mxu0 0.0
      %6555 = vmatpush1.msra.mxu0 %v6537
      %6556 = vmatprep.subr.mxu0 0.0
      %6557 = vmatpush1.msra.mxu0 %v6538
      %6558 = vmatprep.subr.mxu0 0.0
      %6559 = vmatpush1.msra.mxu0 %v6539
      %6560 = vmatprep.subr.mxu0 0.0
      %6561 = vmatpush1.msra.mxu0 %v6540
      %6562 = vmatprep.subr.mxu0 0.0
      %6563 = vmatpush1.msra.mxu0 %v6541
      %6564 = vmatprep.subr.mxu0 0.0
      %6565 = vmatpush1.msra.mxu0 %v6542
      %6566 = vmatprep.subr.mxu0 0.0
      %6567 = vmatpush1.msra.mxu0 %v6543
      %6568 = vmatprep.subr.mxu0 0.0
      %6569 = vmatpush1.msra.mxu0 %v6544
      %6570 = vmatprep.subr.mxu0 0.0
      %6571 = vmatpush1.msra.mxu0 %v6545
      %6572 = vmatprep.subr.mxu0 0.0
      %6573 = vmatpush1.msra.mxu0 %v6546
      %6574 = vmatprep.subr.mxu0 0.0
      %6575 = vmatpush1.msra.mxu0 %v6547
      %6576 = vmatprep.subr.mxu0 0.0
      %6577 = vmatpush1.msra.mxu0 %v6548
      %6578 = vmatprep.subr.mxu0 0.0
      %6579 = vmatpush1.msra.mxu0 %v6549
      %6580 = vmatprep.subr.mxu0 0.0
      %6581 = vmatpush1.msra.mxu0 %v6550
      %6582 = vmatprep.subr.mxu0 0.0
      %6583 = vmatpush1.msra.mxu0 %v6551
      %6584 = vmatprep.subr.mxu0 0.0
      %6585 = vmatpush1.msra.mxu0 0.0
      %6586 = vmatprep.subr.mxu0 0.0
      %6587 = vmatpush1.msra.mxu0 0.0
      %6588 = vmatprep.subr.mxu0 0.0
      %6589 = vmatpush1.msra.mxu0 0.0
      %6590 = vmatprep.subr.mxu0 0.0
      %6591 = vmatpush1.msra.mxu0 0.0
      %6592 = vmatprep.subr.mxu0 0.0
      %6593 = vmatpush1.msra.mxu0 0.0
      %6594 = vmatprep.subr.mxu0 0.0
      %6595 = vmatpush1.msra.mxu0 0.0
      %6596 = vmatprep.subr.mxu0 0.0
      %6597 = vmatpush1.msra.mxu0 0.0
      %6598 = vmatprep.subr.mxu0 0.0
      %6599 = vmatpush1.msra.mxu0 0.0
      %6600 = vmatprep.subr.mxu0 0.0
      %6601 = vmatpush1.msra.mxu0 0.0
      %6602 = vmatprep.subr.mxu0 0.0
      %6603 = vmatpush1.msra.mxu0 0.0
      %6604 = vmatprep.subr.mxu0 0.0
      %6605 = vmatpush1.msra.mxu0 0.0
      %6606 = vmatprep.subr.mxu0 0.0
      %6607 = vmatpush1.msra.mxu0 0.0
      %6608 = vmatprep.subr.mxu0 0.0
      %6609 = vmatpush1.msra.mxu0 0.0
      %6610 = vmatprep.subr.mxu0 0.0
      %6611 = vmatpush1.msra.mxu0 0.0
      %6612 = vmatprep.subr.mxu0 0.0
      %6613 = vmatpush1.msra.mxu0 0.0
      %6614 = vmatprep.subr.mxu0 0.0
      %6615 = vmatpush1.msra.mxu0 0.0
      %6616 = vmatprep.mubr.f32.mxu0 0.0
      %6617 = vmatmul.mubr.f32.gmra.mrb[0].mxu0 %v511
      %v6618 = vpop.f32.mrb[0].mxu0
      %v6619 = vadd.f32 0.0, %v6618
      %v6620 = vpop.f32.mrb[0].mxu0
      %6621 = vdwg.mxu0
      %v6622 = vpack.c.bf16 %v6537, %v6536
      %v6623 = vpack.c.bf16 %v6539, %v6538
      %v6624 = vpack.c.bf16 %v6541, %v6540
      %v6625 = vpack.c.bf16 %v6543, %v6542
      %v6626 = vpack.c.bf16 %v6545, %v6544
      %v6627 = vpack.c.bf16 %v6547, %v6546
      %v6628 = vpack.c.bf16 %v6549, %v6548
      %v6629 = vpack.c.bf16 %v6551, %v6550
      %s6630 = scalar_lea.vmem %s451, 576
      %v6631 = vld [vmem:[%s6630] sm:$0xff]
      %v6632 = vld [vmem:[%s6630 + $0x8] sm:$0xf]
      %v6633 = vld [vmem:[%s6630 + $0xc] sm:$0xff]
      %v6634 = vld [vmem:[%s6630 + $0x14] sm:$0xf]
      %v6635 = vld [vmem:[%s6630 + $0x18] sm:$0xff]
      %v6636 = vld [vmem:[%s6630 + $0x20] sm:$0xf]
      %v6637 = vld [vmem:[%s6630 + $0x24] sm:$0xff]
      %v6638 = vld [vmem:[%s6630 + $0x2c] sm:$0xf]
      %v6639 = vld [vmem:[%s6630 + $0x30] sm:$0xff]
      %v6640 = vld [vmem:[%s6630 + $0x38] sm:$0xf]
      %v6641 = vld [vmem:[%s6630 + $0x3c] sm:$0xff]
      %v6642 = vld [vmem:[%s6630 + $0x44] sm:$0xf]
      %v6643 = vld [vmem:[%s6630 + $0x48] sm:$0xff]
      %v6644 = vld [vmem:[%s6630 + $0x50] sm:$0xf]
      %v6645 = vld [vmem:[%s6630 + $0x54] sm:$0xff]
      %v6646 = vld [vmem:[%s6630 + $0x5c] sm:$0xf]
      %v6647 = vld [vmem:[%s6630 + $0x60] sm:$0xff]
      %v6648 = vld [vmem:[%s6630 + $0x68] sm:$0xf]
      %v6649 = vld [vmem:[%s6630 + $0x6c] sm:$0xff]
      %v6650 = vld [vmem:[%s6630 + $0x74] sm:$0xf]
      %v6651 = vld [vmem:[%s6630 + $0x78] sm:$0xff]
      %v6652 = vld [vmem:[%s6630 + $0x80] sm:$0xf]
      %v6653 = vld [vmem:[%s6630 + $0x84] sm:$0xff]
      %v6654 = vld [vmem:[%s6630 + $0x8c] sm:$0xf]
      %v6655 = vld [vmem:[%s6630 + $0x90] sm:$0xff]
      %v6656 = vld [vmem:[%s6630 + $0x98] sm:$0xf]
      %v6657 = vld [vmem:[%s6630 + $0x9c] sm:$0xff]
      %v6658 = vld [vmem:[%s6630 + $0xa4] sm:$0xf]
      %v6659 = vld [vmem:[%s6630 + $0xa8] sm:$0xff]
      %v6660 = vld [vmem:[%s6630 + $0xb0] sm:$0xf]
      %v6661 = vld [vmem:[%s6630 + $0xb4] sm:$0xff]
      %v6662 = vld [vmem:[%s6630 + $0xbc] sm:$0xf]
      %v6695 = vunpack.c.l.b16 %v6631
      %v6696 = vunpack.c.h.b16 %v6631
      %v6697 = vunpack.c.l.b16 %v6632
      %v6698 = vunpack.c.l.b16 %v6633
      %v6699 = vunpack.c.h.b16 %v6633
      %v6700 = vunpack.c.l.b16 %v6634
      %v6701 = vunpack.c.l.b16 %v6635
      %v6702 = vunpack.c.h.b16 %v6635
      %v6703 = vunpack.c.l.b16 %v6636
      %v6704 = vunpack.c.l.b16 %v6637
      %v6705 = vunpack.c.h.b16 %v6637
      %v6706 = vunpack.c.l.b16 %v6638
      %v6707 = vunpack.c.l.b16 %v6639
      %v6708 = vunpack.c.h.b16 %v6639
      %v6709 = vunpack.c.l.b16 %v6640
      %v6710 = vunpack.c.l.b16 %v6641
      %v6711 = vunpack.c.h.b16 %v6641
      %v6712 = vunpack.c.l.b16 %v6642
      %v6713 = vunpack.c.l.b16 %v6643
      %v6714 = vunpack.c.h.b16 %v6643
      %v6715 = vunpack.c.l.b16 %v6644
      %v6716 = vunpack.c.l.b16 %v6645
      %v6717 = vunpack.c.h.b16 %v6645
      %v6718 = vunpack.c.l.b16 %v6646
      %v6719 = vunpack.c.l.b16 %v6647
      %v6720 = vunpack.c.h.b16 %v6647
      %v6721 = vunpack.c.l.b16 %v6648
      %v6722 = vunpack.c.l.b16 %v6649
      %v6723 = vunpack.c.h.b16 %v6649
      %v6724 = vunpack.c.l.b16 %v6650
      %v6725 = vunpack.c.l.b16 %v6651
      %v6726 = vunpack.c.h.b16 %v6651
      %v6727 = vunpack.c.l.b16 %v6652
      %v6728 = vunpack.c.l.b16 %v6653
      %v6729 = vunpack.c.h.b16 %v6653
      %v6730 = vunpack.c.l.b16 %v6654
      %v6731 = vunpack.c.l.b16 %v6655
      %v6732 = vunpack.c.h.b16 %v6655
      %v6733 = vunpack.c.l.b16 %v6656
      %v6734 = vunpack.c.l.b16 %v6657
      %v6735 = vunpack.c.h.b16 %v6657
      %v6736 = vunpack.c.l.b16 %v6658
      %v6737 = vunpack.c.l.b16 %v6659
      %v6738 = vunpack.c.h.b16 %v6659
      %v6739 = vunpack.c.l.b16 %v6660
      %v6740 = vunpack.c.l.b16 %v6661
      %v6741 = vunpack.c.h.b16 %v6661
      %v6742 = vunpack.c.l.b16 %v6662
      %v6743 = vpack.c.b16 %v6698, %v6695
      %v6744 = vpack.c.b16 %v6699, %v6696
      %v6745 = vpack.c.b16 %v6700, %v6697
      %v6746 = vpack.c.b16 %v6704, %v6701
      %v6747 = vpack.c.b16 %v6705, %v6702
      %v6748 = vpack.c.b16 %v6706, %v6703
      %v6749 = vpack.c.b16 %v6710, %v6707
      %v6750 = vpack.c.b16 %v6711, %v6708
      %v6751 = vpack.c.b16 %v6712, %v6709
      %v6752 = vpack.c.b16 %v6716, %v6713
      %v6753 = vpack.c.b16 %v6717, %v6714
      %v6754 = vpack.c.b16 %v6718, %v6715
      %v6755 = vpack.c.b16 %v6722, %v6719
      %v6756 = vpack.c.b16 %v6723, %v6720
      %v6757 = vpack.c.b16 %v6724, %v6721
      %v6758 = vpack.c.b16 %v6728, %v6725
      %v6759 = vpack.c.b16 %v6729, %v6726
      %v6760 = vpack.c.b16 %v6730, %v6727
      %v6761 = vpack.c.b16 %v6734, %v6731
      %v6762 = vpack.c.b16 %v6735, %v6732
      %v6763 = vpack.c.b16 %v6736, %v6733
      %v6764 = vpack.c.b16 %v6740, %v6737
      %v6765 = vpack.c.b16 %v6741, %v6738
      %v6766 = vpack.c.b16 %v6742, %v6739
      %6791 = vmatprep.subr.bf16.mxu0 %v6744
      %6792 = vmatpush1.bf16.msra.mxu0 %v6743
      %6793 = vmatprep.subr.bf16.mxu0 %v6747
      %6794 = vmatpush1.bf16.msra.mxu0 %v6746
      %6795 = vmatprep.subr.bf16.mxu0 %v6750
      %6796 = vmatpush1.bf16.msra.mxu0 %v6749
      %6797 = vmatprep.subr.bf16.mxu0 %v6753
      %6798 = vmatpush1.bf16.msra.mxu0 %v6752
      %6799 = vmatprep.subr.bf16.mxu0 %v6756
      %6800 = vmatpush1.bf16.msra.mxu0 %v6755
      %6801 = vmatprep.subr.bf16.mxu0 %v6759
      %6802 = vmatpush1.bf16.msra.mxu0 %v6758
      %6803 = vmatprep.subr.bf16.mxu0 %v6762
      %6804 = vmatpush1.bf16.msra.mxu0 %v6761
      %6805 = vmatprep.subr.bf16.mxu0 %v6765
      %6806 = vmatpush1.bf16.msra.mxu0 %v6764
      %6807 = vmatprep.subr.bf16.mxu0 0
      %6808 = vmatpush1.bf16.msra.mxu0 0
      %6809 = vmatprep.subr.bf16.mxu0 0
      %6810 = vmatpush1.bf16.msra.mxu0 0
      %6811 = vmatprep.subr.bf16.mxu0 0
      %6812 = vmatpush1.bf16.msra.mxu0 0
      %6813 = vmatprep.subr.bf16.mxu0 0
      %6814 = vmatpush1.bf16.msra.mxu0 0
      %6815 = vmatprep.subr.bf16.mxu0 0
      %6816 = vmatpush1.bf16.msra.mxu0 0
      %6817 = vmatprep.subr.bf16.mxu0 0
      %6818 = vmatpush1.bf16.msra.mxu0 0
      %6819 = vmatprep.subr.bf16.mxu0 0
      %6820 = vmatpush1.bf16.msra.mxu0 0
      %6821 = vmatprep.subr.bf16.mxu0 0
      %6822 = vmatpush1.bf16.msra.mxu0 0
      %6823 = vmatprep.mubr.bf16.mxu0 0
      %6824 = vmatmul.mubr.bf16.gmra.mrb[0].mxu0 %v6622
      %v6825 = vpop.f32.mrb[0].mxu0
      %v6826 = vadd.f32 0.0, %v6825
      %v6827 = vpop.f32.mrb[0].mxu0
      %v6828 = vadd.f32 0.0, %v6827
      %v6829 = vpop.f32.mrb[0].mxu0
      %v6830 = vadd.f32 0.0, %v6829
      %v6831 = vpop.f32.mrb[0].mxu0
      %v6832 = vadd.f32 0.0, %v6831
      %6833 = vmatprep.mubr.bf16.mxu0 0
      %6834 = vmatmul.mubr.bf16.gmra.mrb[0].mxu0 %v6623
      %v6835 = vpop.f32.mrb[0].mxu0
      %v6836 = vadd.f32 0.0, %v6835
      %v6837 = vpop.f32.mrb[0].mxu0
      %v6838 = vadd.f32 0.0, %v6837
      %v6839 = vpop.f32.mrb[0].mxu0
      %v6840 = vadd.f32 0.0, %v6839
      %v6841 = vpop.f32.mrb[0].mxu0
      %v6842 = vadd.f32 0.0, %v6841
      %6843 = vmatprep.mubr.bf16.mxu0 0
      %6844 = vmatmul.mubr.bf16.gmra.mrb[0].mxu0 %v6624
      %v6845 = vpop.f32.mrb[0].mxu0
      %v6846 = vadd.f32 0.0, %v6845
      %v6847 = vpop.f32.mrb[0].mxu0
      %v6848 = vadd.f32 0.0, %v6847
      %v6849 = vpop.f32.mrb[0].mxu0
      %v6850 = vadd.f32 0.0, %v6849
      %v6851 = vpop.f32.mrb[0].mxu0
      %v6852 = vadd.f32 0.0, %v6851
      %6853 = vmatprep.mubr.bf16.mxu0 0
      %6854 = vmatmul.mubr.bf16.gmra.mrb[0].mxu0 %v6625
      %v6855 = vpop.f32.mrb[0].mxu0
      %v6856 = vadd.f32 0.0, %v6855
      %v6857 = vpop.f32.mrb[0].mxu0
      %v6858 = vadd.f32 0.0, %v6857
      %v6859 = vpop.f32.mrb[0].mxu0
      %v6860 = vadd.f32 0.0, %v6859
      %v6861 = vpop.f32.mrb[0].mxu0
      %v6862 = vadd.f32 0.0, %v6861
      %6863 = vmatprep.mubr.bf16.mxu0 0
      %6864 = vmatmul.mubr.bf16.gmra.mrb[0].mxu0 %v6626
      %v6865 = vpop.f32.mrb[0].mxu0
      %v6866 = vadd.f32 0.0, %v6865
      %v6867 = vpop.f32.mrb[0].mxu0
      %v6868 = vadd.f32 0.0, %v6867
      %v6869 = vpop.f32.mrb[0].mxu0
      %v6870 = vadd.f32 0.0, %v6869
      %v6871 = vpop.f32.mrb[0].mxu0
      %v6872 = vadd.f32 0.0, %v6871
      %6873 = vmatprep.mubr.bf16.mxu0 0
      %6874 = vmatmul.mubr.bf16.gmra.mrb[0].mxu0 %v6627
      %v6875 = vpop.f32.mrb[0].mxu0
      %v6876 = vadd.f32 0.0, %v6875
      %v6877 = vpop.f32.mrb[0].mxu0
      %v6878 = vadd.f32 0.0, %v6877
      %v6879 = vpop.f32.mrb[0].mxu0
      %v6880 = vadd.f32 0.0, %v6879
      %v6881 = vpop.f32.mrb[0].mxu0
      %v6882 = vadd.f32 0.0, %v6881
      %6883 = vmatprep.mubr.bf16.mxu0 0
      %6884 = vmatmul.mubr.bf16.gmra.mrb[0].mxu0 %v6628
      %v6885 = vpop.f32.mrb[0].mxu0
      %v6886 = vadd.f32 0.0, %v6885
      %v6887 = vpop.f32.mrb[0].mxu0
      %v6888 = vadd.f32 0.0, %v6887
      %v6889 = vpop.f32.mrb[0].mxu0
      %v6890 = vadd.f32 0.0, %v6889
      %v6891 = vpop.f32.mrb[0].mxu0
      %v6892 = vadd.f32 0.0, %v6891
      %6893 = vmatprep.mubr.bf16.mxu0 0
      %6894 = vmatmul.mubr.bf16.gmra.mrb[0].mxu0 %v6629
      %v6895 = vpop.f32.mrb[0].mxu0
      %v6896 = vadd.f32 0.0, %v6895
      %v6897 = vpop.f32.mrb[0].mxu0
      %v6898 = vadd.f32 0.0, %v6897
      %v6899 = vpop.f32.mrb[0].mxu0
      %v6900 = vadd.f32 0.0, %v6899
      %v6901 = vpop.f32.mrb[0].mxu0
      %v6902 = vadd.f32 0.0, %v6901
      %6903 = vdwg.mxu0
      %6904 = vmatprep.subr.bf16.mxu0 0
      %6905 = vmatpush1.bf16.msra.mxu0 %v6745
      %6906 = vmatprep.subr.bf16.mxu0 0
      %6907 = vmatpush1.bf16.msra.mxu0 %v6748
      %6908 = vmatprep.subr.bf16.mxu0 0
      %6909 = vmatpush1.bf16.msra.mxu0 %v6751
      %6910 = vmatprep.subr.bf16.mxu0 0
      %6911 = vmatpush1.bf16.msra.mxu0 %v6754
      %6912 = vmatprep.subr.bf16.mxu0 0
      %6913 = vmatpush1.bf16.msra.mxu0 %v6757
      %6914 = vmatprep.subr.bf16.mxu0 0
      %6915 = vmatpush1.bf16.msra.mxu0 %v6760
      %6916 = vmatprep.subr.bf16.mxu0 0
      %6917 = vmatpush1.bf16.msra.mxu0 %v6763
      %6918 = vmatprep.subr.bf16.mxu0 0
      %6919 = vmatpush1.bf16.msra.mxu0 %v6766
      %6920 = vmatprep.subr.bf16.mxu0 0
      %6921 = vmatpush1.bf16.msra.mxu0 0
      %6922 = vmatprep.subr.bf16.mxu0 0
      %6923 = vmatpush1.bf16.msra.mxu0 0
      %6924 = vmatprep.subr.bf16.mxu0 0
      %6925 = vmatpush1.bf16.msra.mxu0 0
      %6926 = vmatprep.subr.bf16.mxu0 0
      %6927 = vmatpush1.bf16.msra.mxu0 0
      %6928 = vmatprep.subr.bf16.mxu0 0
      %6929 = vmatpush1.bf16.msra.mxu0 0
      %6930 = vmatprep.subr.bf16.mxu0 0
      %6931 = vmatpush1.bf16.msra.mxu0 0
      %6932 = vmatprep.subr.bf16.mxu0 0
      %6933 = vmatpush1.bf16.msra.mxu0 0
      %6934 = vmatprep.subr.bf16.mxu0 0
      %6935 = vmatpush1.bf16.msra.mxu0 0
      %6936 = vmatprep.mubr.bf16.mxu0 0
      %6937 = vmatmul.mubr.bf16.gmra.mrb[0].mxu0 %v6622
      %v6938 = vpop.f32.mrb[0].mxu0
      %v6939 = vadd.f32 0.0, %v6938
      %v6940 = vpop.f32.mrb[0].mxu0
      %v6941 = vpop.f32.mrb[0].mxu0
      %v6942 = vadd.f32 0.0, %v6941
      %v6943 = vpop.f32.mrb[0].mxu0
      %6944 = vmatprep.mubr.bf16.mxu0 0
      %6945 = vmatmul.mubr.bf16.gmra.mrb[0].mxu0 %v6623
      %v6946 = vpop.f32.mrb[0].mxu0
      %v6947 = vadd.f32 0.0, %v6946
      %v6948 = vpop.f32.mrb[0].mxu0
      %v6949 = vpop.f32.mrb[0].mxu0
      %v6950 = vadd.f32 0.0, %v6949
      %v6951 = vpop.f32.mrb[0].mxu0
      %6952 = vmatprep.mubr.bf16.mxu0 0
      %6953 = vmatmul.mubr.bf16.gmra.mrb[0].mxu0 %v6624
      %v6954 = vpop.f32.mrb[0].mxu0
      %v6955 = vadd.f32 0.0, %v6954
      %v6956 = vpop.f32.mrb[0].mxu0
      %v6957 = vpop.f32.mrb[0].mxu0
      %v6958 = vadd.f32 0.0, %v6957
      %v6959 = vpop.f32.mrb[0].mxu0
      %6960 = vmatprep.mubr.bf16.mxu0 0
      %6961 = vmatmul.mubr.bf16.gmra.mrb[0].mxu0 %v6625
      %v6962 = vpop.f32.mrb[0].mxu0
      %v6963 = vadd.f32 0.0, %v6962
      %v6964 = vpop.f32.mrb[0].mxu0
      %v6965 = vpop.f32.mrb[0].mxu0
      %v6966 = vadd.f32 0.0, %v6965
      %v6967 = vpop.f32.mrb[0].mxu0
      %6968 = vmatprep.mubr.bf16.mxu0 0
      %6969 = vmatmul.mubr.bf16.gmra.mrb[0].mxu0 %v6626
      %v6970 = vpop.f32.mrb[0].mxu0
      %v6971 = vadd.f32 0.0, %v6970
      %v6972 = vpop.f32.mrb[0].mxu0
      %v6973 = vpop.f32.mrb[0].mxu0
      %v6974 = vadd.f32 0.0, %v6973
      %v6975 = vpop.f32.mrb[0].mxu0
      %6976 = vmatprep.mubr.bf16.mxu0 0
      %6977 = vmatmul.mubr.bf16.gmra.mrb[0].mxu0 %v6627
      %v6978 = vpop.f32.mrb[0].mxu0
      %v6979 = vadd.f32 0.0, %v6978
      %v6980 = vpop.f32.mrb[0].mxu0
      %v6981 = vpop.f32.mrb[0].mxu0
      %v6982 = vadd.f32 0.0, %v6981
      %v6983 = vpop.f32.mrb[0].mxu0
      %6984 = vmatprep.mubr.bf16.mxu0 0
      %6985 = vmatmul.mubr.bf16.gmra.mrb[0].mxu0 %v6628
      %v6986 = vpop.f32.mrb[0].mxu0
      %v6987 = vadd.f32 0.0, %v6986
      %v6988 = vpop.f32.mrb[0].mxu0
      %v6989 = vpop.f32.mrb[0].mxu0
      %v6990 = vadd.f32 0.0, %v6989
      %v6991 = vpop.f32.mrb[0].mxu0
      %6992 = vmatprep.mubr.bf16.mxu0 0
      %6993 = vmatmul.mubr.bf16.gmra.mrb[0].mxu0 %v6629
      %v6994 = vpop.f32.mrb[0].mxu0
      %v6995 = vadd.f32 0.0, %v6994
      %v6996 = vpop.f32.mrb[0].mxu0
      %v6997 = vpop.f32.mrb[0].mxu0
      %v6998 = vadd.f32 0.0, %v6997
      %v6999 = vpop.f32.mrb[0].mxu0
      %7000 = vdwg.mxu0
      %v7001 = vpack.c.bf16 %v6830, %v6826
      %v7002 = vpack.c.bf16 %v6840, %v6836
      %v7003 = vpack.c.bf16 %v6850, %v6846
      %v7004 = vpack.c.bf16 %v6860, %v6856
      %v7005 = vpack.c.bf16 %v6870, %v6866
      %v7006 = vpack.c.bf16 %v6880, %v6876
      %v7007 = vpack.c.bf16 %v6890, %v6886
      %v7008 = vpack.c.bf16 %v6900, %v6896
      %7009 = vst [vmem:[#allocation2] sm:$0xff] %v7001
      %7010 = vst [vmem:[#allocation2 + $0x8] sm:$0xff] %v7002
      %7011 = vst [vmem:[#allocation2 + $0x10] sm:$0xff] %v7003
      %7012 = vst [vmem:[#allocation2 + $0x18] sm:$0xff] %v7004
      %7013 = vst [vmem:[#allocation2 + $0x20] sm:$0xff] %v7005
      %7014 = vst [vmem:[#allocation2 + $0x28] sm:$0xff] %v7006
      %7015 = vst [vmem:[#allocation2 + $0x30] sm:$0xff] %v7007
      %7016 = vst [vmem:[#allocation2 + $0x38] sm:$0xff] %v7008
      %s7017 = scalar_lea.vmem %s460, 9
      %v7018 = vld [vmem:[%s7017] sm:$0x1]
      %v7020 = vlaneseq
      %v7021 = vshrl.u32 %v7020, 7
      %v7022 = vsub.s32 0, %v7021
      %v7023 = vrot.slane %v7018, %v7022
      %v7025 = vmul.f32 %v6826, %v7023
      %v7026 = vmul.f32 %v6830, %v7023
      %v7027 = vmul.f32 %v6836, %v7023
      %v7028 = vmul.f32 %v6840, %v7023
      %v7029 = vmul.f32 %v6846, %v7023
      %v7030 = vmul.f32 %v6850, %v7023
      %v7031 = vmul.f32 %v6856, %v7023
      %v7032 = vmul.f32 %v6860, %v7023
      %v7033 = vmul.f32 %v6866, %v7023
      %v7034 = vmul.f32 %v6870, %v7023
      %v7035 = vmul.f32 %v6876, %v7023
      %v7036 = vmul.f32 %v6880, %v7023
      %v7037 = vmul.f32 %v6886, %v7023
      %v7038 = vmul.f32 %v6890, %v7023
      %v7039 = vmul.f32 %v6896, %v7023
      %v7040 = vmul.f32 %v6900, %v7023
      %7041 = vadd.xlane.f32.xlu0 %v7025
      %v7042 = vpop.xlane.xlu0 %7041
      %7043 = vadd.xlane.f32.xlu0 %v7026
      %v7044 = vpop.xlane.xlu0 %7043
      %7045 = vadd.xlane.f32.xlu0 %v7027
      %v7046 = vpop.xlane.xlu0 %7045
      %7047 = vadd.xlane.f32.xlu0 %v7028
      %v7048 = vpop.xlane.xlu0 %7047
      %7049 = vadd.xlane.f32.xlu0 %v7029
      %v7050 = vpop.xlane.xlu0 %7049
      %7051 = vadd.xlane.f32.xlu0 %v7030
      %v7052 = vpop.xlane.xlu0 %7051
      %7053 = vadd.xlane.f32.xlu0 %v7031
      %v7054 = vpop.xlane.xlu0 %7053
      %7055 = vadd.xlane.f32.xlu0 %v7032
      %v7056 = vpop.xlane.xlu0 %7055
      %7057 = vadd.xlane.f32.xlu0 %v7033
      %v7058 = vpop.xlane.xlu0 %7057
      %7059 = vadd.xlane.f32.xlu0 %v7034
      %v7060 = vpop.xlane.xlu0 %7059
      %7061 = vadd.xlane.f32.xlu0 %v7035
      %v7062 = vpop.xlane.xlu0 %7061
      %7063 = vadd.xlane.f32.xlu0 %v7036
      %v7064 = vpop.xlane.xlu0 %7063
      %7065 = vadd.xlane.f32.xlu0 %v7037
      %v7066 = vpop.xlane.xlu0 %7065
      %7067 = vadd.xlane.f32.xlu0 %v7038
      %v7068 = vpop.xlane.xlu0 %7067
      %7069 = vadd.xlane.f32.xlu0 %v7039
      %v7070 = vpop.xlane.xlu0 %7069
      %7071 = vadd.xlane.f32.xlu0 %v7040
      %v7072 = vpop.xlane.xlu0 %7071
      %v7073 = vpack.c.bf16 %v6832, %v6828
      %v7074 = vpack.c.bf16 %v6842, %v6838
      %v7075 = vpack.c.bf16 %v6852, %v6848
      %v7076 = vpack.c.bf16 %v6862, %v6858
      %v7077 = vpack.c.bf16 %v6872, %v6868
      %v7078 = vpack.c.bf16 %v6882, %v6878
      %v7079 = vpack.c.bf16 %v6892, %v6888
      %v7080 = vpack.c.bf16 %v6902, %v6898
      %7081 = vst [vmem:[#allocation2 + $0x40] sm:$0xff] %v7073
      %7082 = vst [vmem:[#allocation2 + $0x48] sm:$0xff] %v7074
      %7083 = vst [vmem:[#allocation2 + $0x50] sm:$0xff] %v7075
      %7084 = vst [vmem:[#allocation2 + $0x58] sm:$0xff] %v7076
      %7085 = vst [vmem:[#allocation2 + $0x60] sm:$0xff] %v7077
      %7086 = vst [vmem:[#allocation2 + $0x68] sm:$0xff] %v7078
      %7087 = vst [vmem:[#allocation2 + $0x70] sm:$0xff] %v7079
      %7088 = vst [vmem:[#allocation2 + $0x78] sm:$0xff] %v7080
      %s7089 = scalar_lea.vmem %s460, 10
      %v7090 = vld [vmem:[%s7089] sm:$0x1]
      %v7092 = vlaneseq
      %v7093 = vshrl.u32 %v7092, 7
      %v7094 = vsub.s32 0, %v7093
      %v7095 = vrot.slane %v7090, %v7094
      %v7097 = vmul.f32 %v6828, %v7095
      %v7098 = vmul.f32 %v6832, %v7095
      %v7099 = vmul.f32 %v6838, %v7095
      %v7100 = vmul.f32 %v6842, %v7095
      %v7101 = vmul.f32 %v6848, %v7095
      %v7102 = vmul.f32 %v6852, %v7095
      %v7103 = vmul.f32 %v6858, %v7095
      %v7104 = vmul.f32 %v6862, %v7095
      %v7105 = vmul.f32 %v6868, %v7095
      %v7106 = vmul.f32 %v6872, %v7095
      %v7107 = vmul.f32 %v6878, %v7095
      %v7108 = vmul.f32 %v6882, %v7095
      %v7109 = vmul.f32 %v6888, %v7095
      %v7110 = vmul.f32 %v6892, %v7095
      %v7111 = vmul.f32 %v6898, %v7095
      %v7112 = vmul.f32 %v6902, %v7095
      %7113 = vadd.xlane.f32.xlu0 %v7097
      %v7114 = vpop.xlane.xlu0 %7113
      %7115 = vadd.xlane.f32.xlu0 %v7098
      %v7116 = vpop.xlane.xlu0 %7115
      %7117 = vadd.xlane.f32.xlu0 %v7099
      %v7118 = vpop.xlane.xlu0 %7117
      %7119 = vadd.xlane.f32.xlu0 %v7100
      %v7120 = vpop.xlane.xlu0 %7119
      %7121 = vadd.xlane.f32.xlu0 %v7101
      %v7122 = vpop.xlane.xlu0 %7121
      %7123 = vadd.xlane.f32.xlu0 %v7102
      %v7124 = vpop.xlane.xlu0 %7123
      %7125 = vadd.xlane.f32.xlu0 %v7103
      %v7126 = vpop.xlane.xlu0 %7125
      %7127 = vadd.xlane.f32.xlu0 %v7104
      %v7128 = vpop.xlane.xlu0 %7127
      %7129 = vadd.xlane.f32.xlu0 %v7105
      %v7130 = vpop.xlane.xlu0 %7129
      %7131 = vadd.xlane.f32.xlu0 %v7106
      %v7132 = vpop.xlane.xlu0 %7131
      %7133 = vadd.xlane.f32.xlu0 %v7107
      %v7134 = vpop.xlane.xlu0 %7133
      %7135 = vadd.xlane.f32.xlu0 %v7108
      %v7136 = vpop.xlane.xlu0 %7135
      %7137 = vadd.xlane.f32.xlu0 %v7109
      %v7138 = vpop.xlane.xlu0 %7137
      %7139 = vadd.xlane.f32.xlu0 %v7110
      %v7140 = vpop.xlane.xlu0 %7139
      %7141 = vadd.xlane.f32.xlu0 %v7111
      %v7142 = vpop.xlane.xlu0 %7141
      %7143 = vadd.xlane.f32.xlu0 %v7112
      %v7144 = vpop.xlane.xlu0 %7143
      %v7145 = vpack.c.bf16 %v6942, %v6939
      %v7146 = vpack.c.bf16 %v6950, %v6947
      %v7147 = vpack.c.bf16 %v6958, %v6955
      %v7148 = vpack.c.bf16 %v6966, %v6963
      %v7149 = vpack.c.bf16 %v6974, %v6971
      %v7150 = vpack.c.bf16 %v6982, %v6979
      %v7151 = vpack.c.bf16 %v6990, %v6987
      %v7152 = vpack.c.bf16 %v6998, %v6995
      %7153 = vst [vmem:[#allocation2 + $0x80] sm:$0xff] %v7145
      %7154 = vst [vmem:[#allocation2 + $0x88] sm:$0xff] %v7146
      %7155 = vst [vmem:[#allocation2 + $0x90] sm:$0xff] %v7147
      %7156 = vst [vmem:[#allocation2 + $0x98] sm:$0xff] %v7148
      %7157 = vst [vmem:[#allocation2 + $0xa0] sm:$0xff] %v7149
      %7158 = vst [vmem:[#allocation2 + $0xa8] sm:$0xff] %v7150
      %7159 = vst [vmem:[#allocation2 + $0xb0] sm:$0xff] %v7151
      %7160 = vst [vmem:[#allocation2 + $0xb8] sm:$0xff] %v7152
      %s7161 = scalar_lea.vmem %s460, 11
      %v7162 = vld [vmem:[%s7161] sm:$0x1]
      %v7164 = vlaneseq
      %v7165 = vshrl.u32 %v7164, 7
      %v7166 = vsub.s32 0, %v7165
      %v7167 = vrot.slane %v7162, %v7166
      %v7169 = vmul.f32 %v6939, %v7167
      %v7170 = vmul.f32 %v6942, %v7167
      %v7171 = vmul.f32 %v6947, %v7167
      %v7172 = vmul.f32 %v6950, %v7167
      %v7173 = vmul.f32 %v6955, %v7167
      %v7174 = vmul.f32 %v6958, %v7167
      %v7175 = vmul.f32 %v6963, %v7167
      %v7176 = vmul.f32 %v6966, %v7167
      %v7177 = vmul.f32 %v6971, %v7167
      %v7178 = vmul.f32 %v6974, %v7167
      %v7179 = vmul.f32 %v6979, %v7167
      %v7180 = vmul.f32 %v6982, %v7167
      %v7181 = vmul.f32 %v6987, %v7167
      %v7182 = vmul.f32 %v6990, %v7167
      %v7183 = vmul.f32 %v6995, %v7167
      %v7184 = vmul.f32 %v6998, %v7167
      %7185 = vadd.xlane.f32.xlu0 %v7169
      %v7186 = vpop.xlane.xlu0 %7185
      %7187 = vadd.xlane.f32.xlu0 %v7170
      %v7188 = vpop.xlane.xlu0 %7187
      %7189 = vadd.xlane.f32.xlu0 %v7171
      %v7190 = vpop.xlane.xlu0 %7189
      %7191 = vadd.xlane.f32.xlu0 %v7172
      %v7192 = vpop.xlane.xlu0 %7191
      %7193 = vadd.xlane.f32.xlu0 %v7173
      %v7194 = vpop.xlane.xlu0 %7193
      %7195 = vadd.xlane.f32.xlu0 %v7174
      %v7196 = vpop.xlane.xlu0 %7195
      %7197 = vadd.xlane.f32.xlu0 %v7175
      %v7198 = vpop.xlane.xlu0 %7197
      %7199 = vadd.xlane.f32.xlu0 %v7176
      %v7200 = vpop.xlane.xlu0 %7199
      %7201 = vadd.xlane.f32.xlu0 %v7177
      %v7202 = vpop.xlane.xlu0 %7201
      %7203 = vadd.xlane.f32.xlu0 %v7178
      %v7204 = vpop.xlane.xlu0 %7203
      %7205 = vadd.xlane.f32.xlu0 %v7179
      %v7206 = vpop.xlane.xlu0 %7205
      %7207 = vadd.xlane.f32.xlu0 %v7180
      %v7208 = vpop.xlane.xlu0 %7207
      %7209 = vadd.xlane.f32.xlu0 %v7181
      %v7210 = vpop.xlane.xlu0 %7209
      %7211 = vadd.xlane.f32.xlu0 %v7182
      %v7212 = vpop.xlane.xlu0 %7211
      %7213 = vadd.xlane.f32.xlu0 %v7183
      %v7214 = vpop.xlane.xlu0 %7213
      %7215 = vadd.xlane.f32.xlu0 %v7184
      %v7216 = vpop.xlane.xlu0 %7215
      %s7217 = scalar_lea.vmem %s456, 72
      %v7218 = vld [vmem:[%s7217] sm:$0xff]
      %v7219 = vld [vmem:[%s7217 + $0x8] sm:$0xff]
      %v7220 = vld [vmem:[%s7217 + $0x10] sm:$0xff]
      %7221 = vmatprep.subr.mxu0 %v6828
      %7222 = vmatpush1.xpose.msra.mxu0 %v6826
      %7223 = vmatprep.subr.mxu0 %v6832
      %7224 = vmatpush1.xpose.msra.mxu0 %v6830
      %7225 = vmatprep.subr.mxu0 %v6838
      %7226 = vmatpush1.xpose.msra.mxu0 %v6836
      %7227 = vmatprep.subr.mxu0 %v6842
      %7228 = vmatpush1.xpose.msra.mxu0 %v6840
      %7229 = vmatprep.subr.mxu0 %v6848
      %7230 = vmatpush1.xpose.msra.mxu0 %v6846
      %7231 = vmatprep.subr.mxu0 %v6852
      %7232 = vmatpush1.xpose.msra.mxu0 %v6850
      %7233 = vmatprep.subr.mxu0 %v6858
      %7234 = vmatpush1.xpose.msra.mxu0 %v6856
      %7235 = vmatprep.subr.mxu0 %v6862
      %7236 = vmatpush1.xpose.msra.mxu0 %v6860
      %7237 = vmatprep.subr.mxu0 %v6868
      %7238 = vmatpush1.xpose.msra.mxu0 %v6866
      %7239 = vmatprep.subr.mxu0 %v6872
      %7240 = vmatpush1.xpose.msra.mxu0 %v6870
      %7241 = vmatprep.subr.mxu0 %v6878
      %7242 = vmatpush1.xpose.msra.mxu0 %v6876
      %7243 = vmatprep.subr.mxu0 %v6882
      %7244 = vmatpush1.xpose.msra.mxu0 %v6880
      %7245 = vmatprep.subr.mxu0 %v6888
      %7246 = vmatpush1.xpose.msra.mxu0 %v6886
      %7247 = vmatprep.subr.mxu0 %v6892
      %7248 = vmatpush1.xpose.msra.mxu0 %v6890
      %7249 = vmatprep.subr.mxu0 %v6898
      %7250 = vmatpush1.xpose.msra.mxu0 %v6896
      %7251 = vmatprep.subr.mxu0 %v6902
      %7252 = vmatpush1.xpose.msra.mxu0 %v6900
      %7253 = vmatprep.subr.mxu0 0.0
      %7254 = vmatpush1.xpose.msra.mxu0 0.0
      %7255 = vmatprep.subr.mxu0 0.0
      %7256 = vmatpush1.xpose.msra.mxu0 0.0
      %7257 = vmatprep.subr.mxu0 0.0
      %7258 = vmatpush1.xpose.msra.mxu0 0.0
      %7259 = vmatprep.subr.mxu0 0.0
      %7260 = vmatpush1.xpose.msra.mxu0 0.0
      %7261 = vmatprep.subr.mxu0 0.0
      %7262 = vmatpush1.xpose.msra.mxu0 0.0
      %7263 = vmatprep.subr.mxu0 0.0
      %7264 = vmatpush1.xpose.msra.mxu0 0.0
      %7265 = vmatprep.subr.mxu0 0.0
      %7266 = vmatpush1.xpose.msra.mxu0 0.0
      %7267 = vmatprep.subr.mxu0 0.0
      %7268 = vmatpush1.xpose.msra.mxu0 0.0
      %7269 = vmatprep.subr.mxu0 0.0
      %7270 = vmatpush1.xpose.msra.mxu0 0.0
      %7271 = vmatprep.subr.mxu0 0.0
      %7272 = vmatpush1.xpose.msra.mxu0 0.0
      %7273 = vmatprep.subr.mxu0 0.0
      %7274 = vmatpush1.xpose.msra.mxu0 0.0
      %7275 = vmatprep.subr.mxu0 0.0
      %7276 = vmatpush1.xpose.msra.mxu0 0.0
      %7277 = vmatprep.subr.mxu0 0.0
      %7278 = vmatpush1.xpose.msra.mxu0 0.0
      %7279 = vmatprep.subr.mxu0 0.0
      %7280 = vmatpush1.xpose.msra.mxu0 0.0
      %7281 = vmatprep.subr.mxu0 0.0
      %7282 = vmatpush1.xpose.msra.mxu0 0.0
      %7283 = vmatprep.subr.mxu0 0.0
      %7284 = vmatpush1.xpose.msra.mxu0 0.0
      %7285 = vmatprep.mubr.f32.mxu0 %v7219
      %7286 = vmatmul.mubr.f32.gmra.mrb[0].mxu0 %v7218
      %v7287 = vpop.f32.mrb[0].mxu0
      %v7288 = vadd.f32 0.0, %v7287
      %v7289 = vpop.f32.mrb[0].mxu0
      %7290 = vdwg.mxu0
      %7291 = vmatprep.subr.mxu0 0.0
      %7292 = vmatpush1.xpose.msra.mxu0 %v6939
      %7293 = vmatprep.subr.mxu0 0.0
      %7294 = vmatpush1.xpose.msra.mxu0 %v6942
      %7295 = vmatprep.subr.mxu0 0.0
      %7296 = vmatpush1.xpose.msra.mxu0 %v6947
      %7297 = vmatprep.subr.mxu0 0.0
      %7298 = vmatpush1.xpose.msra.mxu0 %v6950
      %7299 = vmatprep.subr.mxu0 0.0
      %7300 = vmatpush1.xpose.msra.mxu0 %v6955
      %7301 = vmatprep.subr.mxu0 0.0
      %7302 = vmatpush1.xpose.msra.mxu0 %v6958
      %7303 = vmatprep.subr.mxu0 0.0
      %7304 = vmatpush1.xpose.msra.mxu0 %v6963
      %7305 = vmatprep.subr.mxu0 0.0
      %7306 = vmatpush1.xpose.msra.mxu0 %v6966
      %7307 = vmatprep.subr.mxu0 0.0
      %7308 = vmatpush1.xpose.msra.mxu0 %v6971
      %7309 = vmatprep.subr.mxu0 0.0
      %7310 = vmatpush1.xpose.msra.mxu0 %v6974
      %7311 = vmatprep.subr.mxu0 0.0
      %7312 = vmatpush1.xpose.msra.mxu0 %v6979
      %7313 = vmatprep.subr.mxu0 0.0
      %7314 = vmatpush1.xpose.msra.mxu0 %v6982
      %7315 = vmatprep.subr.mxu0 0.0
      %7316 = vmatpush1.xpose.msra.mxu0 %v6987
      %7317 = vmatprep.subr.mxu0 0.0
      %7318 = vmatpush1.xpose.msra.mxu0 %v6990
      %7319 = vmatprep.subr.mxu0 0.0
      %7320 = vmatpush1.xpose.msra.mxu0 %v6995
      %7321 = vmatprep.subr.mxu0 0.0
      %7322 = vmatpush1.xpose.msra.mxu0 %v6998
      %7323 = vmatprep.subr.mxu0 0.0
      %7324 = vmatpush1.xpose.msra.mxu0 0.0
      %7325 = vmatprep.subr.mxu0 0.0
      %7326 = vmatpush1.xpose.msra.mxu0 0.0
      %7327 = vmatprep.subr.mxu0 0.0
      %7328 = vmatpush1.xpose.msra.mxu0 0.0
      %7329 = vmatprep.subr.mxu0 0.0
      %7330 = vmatpush1.xpose.msra.mxu0 0.0
      %7331 = vmatprep.subr.mxu0 0.0
      %7332 = vmatpush1.xpose.msra.mxu0 0.0
      %7333 = vmatprep.subr.mxu0 0.0
      %7334 = vmatpush1.xpose.msra.mxu0 0.0
      %7335 = vmatprep.subr.mxu0 0.0
      %7336 = vmatpush1.xpose.msra.mxu0 0.0
      %7337 = vmatprep.subr.mxu0 0.0
      %7338 = vmatpush1.xpose.msra.mxu0 0.0
      %7339 = vmatprep.subr.mxu0 0.0
      %7340 = vmatpush1.xpose.msra.mxu0 0.0
      %7341 = vmatprep.subr.mxu0 0.0
      %7342 = vmatpush1.xpose.msra.mxu0 0.0
      %7343 = vmatprep.subr.mxu0 0.0
      %7344 = vmatpush1.xpose.msra.mxu0 0.0
      %7345 = vmatprep.subr.mxu0 0.0
      %7346 = vmatpush1.xpose.msra.mxu0 0.0
      %7347 = vmatprep.subr.mxu0 0.0
      %7348 = vmatpush1.xpose.msra.mxu0 0.0
      %7349 = vmatprep.subr.mxu0 0.0
      %7350 = vmatpush1.xpose.msra.mxu0 0.0
      %7351 = vmatprep.subr.mxu0 0.0
      %7352 = vmatpush1.xpose.msra.mxu0 0.0
      %7353 = vmatprep.subr.mxu0 0.0
      %7354 = vmatpush1.xpose.msra.mxu0 0.0
      %7355 = vmatprep.mubr.f32.mxu0 0.0
      %7356 = vmatmul.mubr.f32.gmra.mrb[0].mxu0 %v7220
      %v7357 = vpop.f32.mrb[0].mxu0
      %v7358 = vadd.f32 %v7288, %v7357
      %v7359 = vpop.f32.mrb[0].mxu0
      %7360 = vdwg.mxu0
      %v7361 = vlaneseq
      %v7362 = vshrl.u32 %v7361, 7
      %v7363 = vsub.s32 0, %v7362
      %v7364 = vrot.slane %v7358, %v7363
      %v7365 = vadd.f32 %v7042, %v7364
      %v7366 = vadd.f32 %v7044, %v7364
      %v7367 = vadd.f32 %v7046, %v7364
      %v7368 = vadd.f32 %v7048, %v7364
      %v7369 = vadd.f32 %v7050, %v7364
      %v7370 = vadd.f32 %v7052, %v7364
      %v7371 = vadd.f32 %v7054, %v7364
      %v7372 = vadd.f32 %v7056, %v7364
      %v7373 = vadd.f32 %v7058, %v7364
      %v7374 = vadd.f32 %v7060, %v7364
      %v7375 = vadd.f32 %v7062, %v7364
      %v7376 = vadd.f32 %v7064, %v7364
      %v7377 = vadd.f32 %v7066, %v7364
      %v7378 = vadd.f32 %v7068, %v7364
      %v7379 = vadd.f32 %v7070, %v7364
      %v7380 = vadd.f32 %v7072, %v7364
      %v7381 = vmul.f32 %v7365, 0.2
      %v7382 = vmul.f32 %v7366, 0.2
      %v7383 = vmul.f32 %v7367, 0.2
      %v7384 = vmul.f32 %v7368, 0.2
      %v7385 = vmul.f32 %v7369, 0.2
      %v7386 = vmul.f32 %v7370, 0.2
      %v7387 = vmul.f32 %v7371, 0.2
      %v7388 = vmul.f32 %v7372, 0.2
      %v7389 = vmul.f32 %v7373, 0.2
      %v7390 = vmul.f32 %v7374, 0.2
      %v7391 = vmul.f32 %v7375, 0.2
      %v7392 = vmul.f32 %v7376, 0.2
      %v7393 = vmul.f32 %v7377, 0.2
      %v7394 = vmul.f32 %v7378, 0.2
      %v7395 = vmul.f32 %v7379, 0.2
      %v7396 = vmul.f32 %v7380, 0.2
      %v7397 = vmax.f32 %v7365, %v7381
      %v7398 = vmax.f32 %v7366, %v7382
      %v7399 = vmax.f32 %v7367, %v7383
      %v7400 = vmax.f32 %v7368, %v7384
      %v7401 = vmax.f32 %v7369, %v7385
      %v7402 = vmax.f32 %v7370, %v7386
      %v7403 = vmax.f32 %v7371, %v7387
      %v7404 = vmax.f32 %v7372, %v7388
      %v7405 = vmax.f32 %v7373, %v7389
      %v7406 = vmax.f32 %v7374, %v7390
      %v7407 = vmax.f32 %v7375, %v7391
      %v7408 = vmax.f32 %v7376, %v7392
      %v7409 = vmax.f32 %v7377, %v7393
      %v7410 = vmax.f32 %v7378, %v7394
      %v7411 = vmax.f32 %v7379, %v7395
      %v7412 = vmax.f32 %v7380, %v7396
      %v7413 = vadd.f32 %v7397, %v495
      %v7414 = vadd.f32 %v7398, %v496
      %v7415 = vadd.f32 %v7399, %v497
      %v7416 = vadd.f32 %v7400, %v498
      %v7417 = vadd.f32 %v7401, %v499
      %v7418 = vadd.f32 %v7402, %v500
      %v7419 = vadd.f32 %v7403, %v501
      %v7420 = vadd.f32 %v7404, %v502
      %v7421 = vadd.f32 %v7405, %v503
      %v7422 = vadd.f32 %v7406, %v504
      %v7423 = vadd.f32 %v7407, %v505
      %v7424 = vadd.f32 %v7408, %v506
      %v7425 = vadd.f32 %v7409, %v507
      %v7426 = vadd.f32 %v7410, %v508
      %v7427 = vadd.f32 %v7411, %v509
      %v7428 = vadd.f32 %v7412, %v510
      %7429 = vmax.xlane.f32.xlu0 %v7413
      %v7430 = vpop.xlane.xlu0 %7429
      %7431 = vmax.xlane.f32.xlu0 %v7414
      %v7432 = vpop.xlane.xlu0 %7431
      %7433 = vmax.xlane.f32.xlu0 %v7415
      %v7434 = vpop.xlane.xlu0 %7433
      %7435 = vmax.xlane.f32.xlu0 %v7416
      %v7436 = vpop.xlane.xlu0 %7435
      %7437 = vmax.xlane.f32.xlu0 %v7417
      %v7438 = vpop.xlane.xlu0 %7437
      %7439 = vmax.xlane.f32.xlu0 %v7418
      %v7440 = vpop.xlane.xlu0 %7439
      %7441 = vmax.xlane.f32.xlu0 %v7419
      %v7442 = vpop.xlane.xlu0 %7441
      %7443 = vmax.xlane.f32.xlu0 %v7420
      %v7444 = vpop.xlane.xlu0 %7443
      %7445 = vmax.xlane.f32.xlu0 %v7421
      %v7446 = vpop.xlane.xlu0 %7445
      %7447 = vmax.xlane.f32.xlu0 %v7422
      %v7448 = vpop.xlane.xlu0 %7447
      %7449 = vmax.xlane.f32.xlu0 %v7423
      %v7450 = vpop.xlane.xlu0 %7449
      %7451 = vmax.xlane.f32.xlu0 %v7424
      %v7452 = vpop.xlane.xlu0 %7451
      %7453 = vmax.xlane.f32.xlu0 %v7425
      %v7454 = vpop.xlane.xlu0 %7453
      %7455 = vmax.xlane.f32.xlu0 %v7426
      %v7456 = vpop.xlane.xlu0 %7455
      %7457 = vmax.xlane.f32.xlu0 %v7427
      %v7458 = vpop.xlane.xlu0 %7457
      %7459 = vmax.xlane.f32.xlu0 %v7428
      %v7460 = vpop.xlane.xlu0 %7459
      %v7461 = vsub.f32 %v7413, %v7430
      %v7462 = vsub.f32 %v7414, %v7432
      %v7463 = vsub.f32 %v7415, %v7434
      %v7464 = vsub.f32 %v7416, %v7436
      %v7465 = vsub.f32 %v7417, %v7438
      %v7466 = vsub.f32 %v7418, %v7440
      %v7467 = vsub.f32 %v7419, %v7442
      %v7468 = vsub.f32 %v7420, %v7444
      %v7469 = vsub.f32 %v7421, %v7446
      %v7470 = vsub.f32 %v7422, %v7448
      %v7471 = vsub.f32 %v7423, %v7450
      %v7472 = vsub.f32 %v7424, %v7452
      %v7473 = vsub.f32 %v7425, %v7454
      %v7474 = vsub.f32 %v7426, %v7456
      %v7475 = vsub.f32 %v7427, %v7458
      %v7476 = vsub.f32 %v7428, %v7460
      %v7477 = vmul.f32 %v7461, 1.442695
      %v7478 = vpow.pop %v7477
      %v7479 = vmul.f32 %v7462, 1.442695
      %v7480 = vpow.pop %v7479
      %v7481 = vmul.f32 %v7463, 1.442695
      %v7482 = vpow.pop %v7481
      %v7483 = vmul.f32 %v7464, 1.442695
      %v7484 = vpow.pop %v7483
      %v7485 = vmul.f32 %v7465, 1.442695
      %v7486 = vpow.pop %v7485
      %v7487 = vmul.f32 %v7466, 1.442695
      %v7488 = vpow.pop %v7487
      %v7489 = vmul.f32 %v7467, 1.442695
      %v7490 = vpow.pop %v7489
      %v7491 = vmul.f32 %v7468, 1.442695
      %v7492 = vpow.pop %v7491
      %v7493 = vmul.f32 %v7469, 1.442695
      %v7494 = vpow.pop %v7493
      %v7495 = vmul.f32 %v7470, 1.442695
      %v7496 = vpow.pop %v7495
      %v7497 = vmul.f32 %v7471, 1.442695
      %v7498 = vpow.pop %v7497
      %v7499 = vmul.f32 %v7472, 1.442695
      %v7500 = vpow.pop %v7499
      %v7501 = vmul.f32 %v7473, 1.442695
      %v7502 = vpow.pop %v7501
      %v7503 = vmul.f32 %v7474, 1.442695
      %v7504 = vpow.pop %v7503
      %v7505 = vmul.f32 %v7475, 1.442695
      %v7506 = vpow.pop %v7505
      %v7507 = vmul.f32 %v7476, 1.442695
      %v7508 = vpow.pop %v7507
      %7509 = vadd.xlane.f32.xlu0 %v7478
      %v7510 = vpop.xlane.xlu0 %7509
      %7511 = vadd.xlane.f32.xlu0 %v7480
      %v7512 = vpop.xlane.xlu0 %7511
      %7513 = vadd.xlane.f32.xlu0 %v7482
      %v7514 = vpop.xlane.xlu0 %7513
      %7515 = vadd.xlane.f32.xlu0 %v7484
      %v7516 = vpop.xlane.xlu0 %7515
      %7517 = vadd.xlane.f32.xlu0 %v7486
      %v7518 = vpop.xlane.xlu0 %7517
      %7519 = vadd.xlane.f32.xlu0 %v7488
      %v7520 = vpop.xlane.xlu0 %7519
      %7521 = vadd.xlane.f32.xlu0 %v7490
      %v7522 = vpop.xlane.xlu0 %7521
      %7523 = vadd.xlane.f32.xlu0 %v7492
      %v7524 = vpop.xlane.xlu0 %7523
      %7525 = vadd.xlane.f32.xlu0 %v7494
      %v7526 = vpop.xlane.xlu0 %7525
      %7527 = vadd.xlane.f32.xlu0 %v7496
      %v7528 = vpop.xlane.xlu0 %7527
      %7529 = vadd.xlane.f32.xlu0 %v7498
      %v7530 = vpop.xlane.xlu0 %7529
      %7531 = vadd.xlane.f32.xlu0 %v7500
      %v7532 = vpop.xlane.xlu0 %7531
      %7533 = vadd.xlane.f32.xlu0 %v7502
      %v7534 = vpop.xlane.xlu0 %7533
      %7535 = vadd.xlane.f32.xlu0 %v7504
      %v7536 = vpop.xlane.xlu0 %7535
      %7537 = vadd.xlane.f32.xlu0 %v7506
      %v7538 = vpop.xlane.xlu0 %7537
      %7539 = vadd.xlane.f32.xlu0 %v7508
      %v7540 = vpop.xlane.xlu0 %7539
      %v7541 = vrcp.pop %v7510
      %v7542 = vrcp.pop %v7512
      %v7543 = vrcp.pop %v7514
      %v7544 = vrcp.pop %v7516
      %v7545 = vrcp.pop %v7518
      %v7546 = vrcp.pop %v7520
      %v7547 = vrcp.pop %v7522
      %v7548 = vrcp.pop %v7524
      %v7549 = vrcp.pop %v7526
      %v7550 = vrcp.pop %v7528
      %v7551 = vrcp.pop %v7530
      %v7552 = vrcp.pop %v7532
      %v7553 = vrcp.pop %v7534
      %v7554 = vrcp.pop %v7536
      %v7555 = vrcp.pop %v7538
      %v7556 = vrcp.pop %v7540
      %v7557 = vmul.f32 %v7541, 0.33333334
      %v7558 = vmul.f32 %v7542, 0.33333334
      %v7559 = vmul.f32 %v7543, 0.33333334
      %v7560 = vmul.f32 %v7544, 0.33333334
      %v7561 = vmul.f32 %v7545, 0.33333334
      %v7562 = vmul.f32 %v7546, 0.33333334
      %v7563 = vmul.f32 %v7547, 0.33333334
      %v7564 = vmul.f32 %v7548, 0.33333334
      %v7565 = vmul.f32 %v7549, 0.33333334
      %v7566 = vmul.f32 %v7550, 0.33333334
      %v7567 = vmul.f32 %v7551, 0.33333334
      %v7568 = vmul.f32 %v7552, 0.33333334
      %v7569 = vmul.f32 %v7553, 0.33333334
      %v7570 = vmul.f32 %v7554, 0.33333334
      %v7571 = vmul.f32 %v7555, 0.33333334
      %v7572 = vmul.f32 %v7556, 0.33333334
      %v7573 = vmul.f32 %v7478, %v7557
      %v7574 = vmul.f32 %v7480, %v7558
      %v7575 = vmul.f32 %v7482, %v7559
      %v7576 = vmul.f32 %v7484, %v7560
      %v7577 = vmul.f32 %v7486, %v7561
      %v7578 = vmul.f32 %v7488, %v7562
      %v7579 = vmul.f32 %v7490, %v7563
      %v7580 = vmul.f32 %v7492, %v7564
      %v7581 = vmul.f32 %v7494, %v7565
      %v7582 = vmul.f32 %v7496, %v7566
      %v7583 = vmul.f32 %v7498, %v7567
      %v7584 = vmul.f32 %v7500, %v7568
      %v7585 = vmul.f32 %v7502, %v7569
      %v7586 = vmul.f32 %v7504, %v7570
      %v7587 = vmul.f32 %v7506, %v7571
      %v7588 = vmul.f32 %v7508, %v7572
      %v7589 = vpack.c.bf16 %v7574, %v7573
      %v7590 = vpack.c.bf16 %v7576, %v7575
      %v7591 = vpack.c.bf16 %v7578, %v7577
      %v7592 = vpack.c.bf16 %v7580, %v7579
      %v7593 = vpack.c.bf16 %v7582, %v7581
      %v7594 = vpack.c.bf16 %v7584, %v7583
      %v7595 = vpack.c.bf16 %v7586, %v7585
      %v7596 = vpack.c.bf16 %v7588, %v7587
      %7597 = vst [vmem:[#allocation3] sm:$0xff] %v7589
      %7598 = vst [vmem:[#allocation3 + $0x18] sm:$0xff] %v7590
      %7599 = vst [vmem:[#allocation3 + $0x30] sm:$0xff] %v7591
      %7600 = vst [vmem:[#allocation3 + $0x48] sm:$0xff] %v7592
      %7601 = vst [vmem:[#allocation3 + $0x60] sm:$0xff] %v7593
      %7602 = vst [vmem:[#allocation3 + $0x78] sm:$0xff] %v7594
      %7603 = vst [vmem:[#allocation3 + $0x90] sm:$0xff] %v7595
      %7604 = vst [vmem:[#allocation3 + $0xa8] sm:$0xff] %v7596
      %v7605 = vlaneseq
      %v7606 = vshrl.u32 %v7605, 7
      %v7607 = vsub.s32 1, %v7606
      %v7608 = vrot.slane %v7358, %v7607
      %v7609 = vadd.f32 %v7114, %v7608
      %v7610 = vadd.f32 %v7116, %v7608
      %v7611 = vadd.f32 %v7118, %v7608
      %v7612 = vadd.f32 %v7120, %v7608
      %v7613 = vadd.f32 %v7122, %v7608
      %v7614 = vadd.f32 %v7124, %v7608
      %v7615 = vadd.f32 %v7126, %v7608
      %v7616 = vadd.f32 %v7128, %v7608
      %v7617 = vadd.f32 %v7130, %v7608
      %v7618 = vadd.f32 %v7132, %v7608
      %v7619 = vadd.f32 %v7134, %v7608
      %v7620 = vadd.f32 %v7136, %v7608
      %v7621 = vadd.f32 %v7138, %v7608
      %v7622 = vadd.f32 %v7140, %v7608
      %v7623 = vadd.f32 %v7142, %v7608
      %v7624 = vadd.f32 %v7144, %v7608
      %v7625 = vmul.f32 %v7609, 0.2
      %v7626 = vmul.f32 %v7610, 0.2
      %v7627 = vmul.f32 %v7611, 0.2
      %v7628 = vmul.f32 %v7612, 0.2
      %v7629 = vmul.f32 %v7613, 0.2
      %v7630 = vmul.f32 %v7614, 0.2
      %v7631 = vmul.f32 %v7615, 0.2
      %v7632 = vmul.f32 %v7616, 0.2
      %v7633 = vmul.f32 %v7617, 0.2
      %v7634 = vmul.f32 %v7618, 0.2
      %v7635 = vmul.f32 %v7619, 0.2
      %v7636 = vmul.f32 %v7620, 0.2
      %v7637 = vmul.f32 %v7621, 0.2
      %v7638 = vmul.f32 %v7622, 0.2
      %v7639 = vmul.f32 %v7623, 0.2
      %v7640 = vmul.f32 %v7624, 0.2
      %v7641 = vmax.f32 %v7609, %v7625
      %v7642 = vmax.f32 %v7610, %v7626
      %v7643 = vmax.f32 %v7611, %v7627
      %v7644 = vmax.f32 %v7612, %v7628
      %v7645 = vmax.f32 %v7613, %v7629
      %v7646 = vmax.f32 %v7614, %v7630
      %v7647 = vmax.f32 %v7615, %v7631
      %v7648 = vmax.f32 %v7616, %v7632
      %v7649 = vmax.f32 %v7617, %v7633
      %v7650 = vmax.f32 %v7618, %v7634
      %v7651 = vmax.f32 %v7619, %v7635
      %v7652 = vmax.f32 %v7620, %v7636
      %v7653 = vmax.f32 %v7621, %v7637
      %v7654 = vmax.f32 %v7622, %v7638
      %v7655 = vmax.f32 %v7623, %v7639
      %v7656 = vmax.f32 %v7624, %v7640
      %v7657 = vadd.f32 %v7641, %v495
      %v7658 = vadd.f32 %v7642, %v496
      %v7659 = vadd.f32 %v7643, %v497
      %v7660 = vadd.f32 %v7644, %v498
      %v7661 = vadd.f32 %v7645, %v499
      %v7662 = vadd.f32 %v7646, %v500
      %v7663 = vadd.f32 %v7647, %v501
      %v7664 = vadd.f32 %v7648, %v502
      %v7665 = vadd.f32 %v7649, %v503
      %v7666 = vadd.f32 %v7650, %v504
      %v7667 = vadd.f32 %v7651, %v505
      %v7668 = vadd.f32 %v7652, %v506
      %v7669 = vadd.f32 %v7653, %v507
      %v7670 = vadd.f32 %v7654, %v508
      %v7671 = vadd.f32 %v7655, %v509
      %v7672 = vadd.f32 %v7656, %v510
      %7673 = vmax.xlane.f32.xlu0 %v7657
      %v7674 = vpop.xlane.xlu0 %7673
      %7675 = vmax.xlane.f32.xlu0 %v7658
      %v7676 = vpop.xlane.xlu0 %7675
      %7677 = vmax.xlane.f32.xlu0 %v7659
      %v7678 = vpop.xlane.xlu0 %7677
      %7679 = vmax.xlane.f32.xlu0 %v7660
      %v7680 = vpop.xlane.xlu0 %7679
      %7681 = vmax.xlane.f32.xlu0 %v7661
      %v7682 = vpop.xlane.xlu0 %7681
      %7683 = vmax.xlane.f32.xlu0 %v7662
      %v7684 = vpop.xlane.xlu0 %7683
      %7685 = vmax.xlane.f32.xlu0 %v7663
      %v7686 = vpop.xlane.xlu0 %7685
      %7687 = vmax.xlane.f32.xlu0 %v7664
      %v7688 = vpop.xlane.xlu0 %7687
      %7689 = vmax.xlane.f32.xlu0 %v7665
      %v7690 = vpop.xlane.xlu0 %7689
      %7691 = vmax.xlane.f32.xlu0 %v7666
      %v7692 = vpop.xlane.xlu0 %7691
      %7693 = vmax.xlane.f32.xlu0 %v7667
      %v7694 = vpop.xlane.xlu0 %7693
      %7695 = vmax.xlane.f32.xlu0 %v7668
      %v7696 = vpop.xlane.xlu0 %7695
      %7697 = vmax.xlane.f32.xlu0 %v7669
      %v7698 = vpop.xlane.xlu0 %7697
      %7699 = vmax.xlane.f32.xlu0 %v7670
      %v7700 = vpop.xlane.xlu0 %7699
      %7701 = vmax.xlane.f32.xlu0 %v7671
      %v7702 = vpop.xlane.xlu0 %7701
      %7703 = vmax.xlane.f32.xlu0 %v7672
      %v7704 = vpop.xlane.xlu0 %7703
      %v7705 = vsub.f32 %v7657, %v7674
      %v7706 = vsub.f32 %v7658, %v7676
      %v7707 = vsub.f32 %v7659, %v7678
      %v7708 = vsub.f32 %v7660, %v7680
      %v7709 = vsub.f32 %v7661, %v7682
      %v7710 = vsub.f32 %v7662, %v7684
      %v7711 = vsub.f32 %v7663, %v7686
      %v7712 = vsub.f32 %v7664, %v7688
      %v7713 = vsub.f32 %v7665, %v7690
      %v7714 = vsub.f32 %v7666, %v7692
      %v7715 = vsub.f32 %v7667, %v7694
      %v7716 = vsub.f32 %v7668, %v7696
      %v7717 = vsub.f32 %v7669, %v7698
      %v7718 = vsub.f32 %v7670, %v7700
      %v7719 = vsub.f32 %v7671, %v7702
      %v7720 = vsub.f32 %v7672, %v7704
      %v7721 = vmul.f32 %v7705, 1.442695
      %v7722 = vpow.pop %v7721
      %v7723 = vmul.f32 %v7706, 1.442695
      %v7724 = vpow.pop %v7723
      %v7725 = vmul.f32 %v7707, 1.442695
      %v7726 = vpow.pop %v7725
      %v7727 = vmul.f32 %v7708, 1.442695
      %v7728 = vpow.pop %v7727
      %v7729 = vmul.f32 %v7709, 1.442695
      %v7730 = vpow.pop %v7729
      %v7731 = vmul.f32 %v7710, 1.442695
      %v7732 = vpow.pop %v7731
      %v7733 = vmul.f32 %v7711, 1.442695
      %v7734 = vpow.pop %v7733
      %v7735 = vmul.f32 %v7712, 1.442695
      %v7736 = vpow.pop %v7735
      %v7737 = vmul.f32 %v7713, 1.442695
      %v7738 = vpow.pop %v7737
      %v7739 = vmul.f32 %v7714, 1.442695
      %v7740 = vpow.pop %v7739
      %v7741 = vmul.f32 %v7715, 1.442695
      %v7742 = vpow.pop %v7741
      %v7743 = vmul.f32 %v7716, 1.442695
      %v7744 = vpow.pop %v7743
      %v7745 = vmul.f32 %v7717, 1.442695
      %v7746 = vpow.pop %v7745
      %v7747 = vmul.f32 %v7718, 1.442695
      %v7748 = vpow.pop %v7747
      %v7749 = vmul.f32 %v7719, 1.442695
      %v7750 = vpow.pop %v7749
      %v7751 = vmul.f32 %v7720, 1.442695
      %v7752 = vpow.pop %v7751
      %7753 = vadd.xlane.f32.xlu0 %v7722
      %v7754 = vpop.xlane.xlu0 %7753
      %7755 = vadd.xlane.f32.xlu0 %v7724
      %v7756 = vpop.xlane.xlu0 %7755
      %7757 = vadd.xlane.f32.xlu0 %v7726
      %v7758 = vpop.xlane.xlu0 %7757
      %7759 = vadd.xlane.f32.xlu0 %v7728
      %v7760 = vpop.xlane.xlu0 %7759
      %7761 = vadd.xlane.f32.xlu0 %v7730
      %v7762 = vpop.xlane.xlu0 %7761
      %7763 = vadd.xlane.f32.xlu0 %v7732
      %v7764 = vpop.xlane.xlu0 %7763
      %7765 = vadd.xlane.f32.xlu0 %v7734
      %v7766 = vpop.xlane.xlu0 %7765
      %7767 = vadd.xlane.f32.xlu0 %v7736
      %v7768 = vpop.xlane.xlu0 %7767
      %7769 = vadd.xlane.f32.xlu0 %v7738
      %v7770 = vpop.xlane.xlu0 %7769
      %7771 = vadd.xlane.f32.xlu0 %v7740
      %v7772 = vpop.xlane.xlu0 %7771
      %7773 = vadd.xlane.f32.xlu0 %v7742
      %v7774 = vpop.xlane.xlu0 %7773
      %7775 = vadd.xlane.f32.xlu0 %v7744
      %v7776 = vpop.xlane.xlu0 %7775
      %7777 = vadd.xlane.f32.xlu0 %v7746
      %v7778 = vpop.xlane.xlu0 %7777
      %7779 = vadd.xlane.f32.xlu0 %v7748
      %v7780 = vpop.xlane.xlu0 %7779
      %7781 = vadd.xlane.f32.xlu0 %v7750
      %v7782 = vpop.xlane.xlu0 %7781
      %7783 = vadd.xlane.f32.xlu0 %v7752
      %v7784 = vpop.xlane.xlu0 %7783
      %v7785 = vrcp.pop %v7754
      %v7786 = vrcp.pop %v7756
      %v7787 = vrcp.pop %v7758
      %v7788 = vrcp.pop %v7760
      %v7789 = vrcp.pop %v7762
      %v7790 = vrcp.pop %v7764
      %v7791 = vrcp.pop %v7766
      %v7792 = vrcp.pop %v7768
      %v7793 = vrcp.pop %v7770
      %v7794 = vrcp.pop %v7772
      %v7795 = vrcp.pop %v7774
      %v7796 = vrcp.pop %v7776
      %v7797 = vrcp.pop %v7778
      %v7798 = vrcp.pop %v7780
      %v7799 = vrcp.pop %v7782
      %v7800 = vrcp.pop %v7784
      %v7801 = vmul.f32 %v7785, 0.33333334
      %v7802 = vmul.f32 %v7786, 0.33333334
      %v7803 = vmul.f32 %v7787, 0.33333334
      %v7804 = vmul.f32 %v7788, 0.33333334
      %v7805 = vmul.f32 %v7789, 0.33333334
      %v7806 = vmul.f32 %v7790, 0.33333334
      %v7807 = vmul.f32 %v7791, 0.33333334
      %v7808 = vmul.f32 %v7792, 0.33333334
      %v7809 = vmul.f32 %v7793, 0.33333334
      %v7810 = vmul.f32 %v7794, 0.33333334
      %v7811 = vmul.f32 %v7795, 0.33333334
      %v7812 = vmul.f32 %v7796, 0.33333334
      %v7813 = vmul.f32 %v7797, 0.33333334
      %v7814 = vmul.f32 %v7798, 0.33333334
      %v7815 = vmul.f32 %v7799, 0.33333334
      %v7816 = vmul.f32 %v7800, 0.33333334
      %v7817 = vmul.f32 %v7722, %v7801
      %v7818 = vmul.f32 %v7724, %v7802
      %v7819 = vmul.f32 %v7726, %v7803
      %v7820 = vmul.f32 %v7728, %v7804
      %v7821 = vmul.f32 %v7730, %v7805
      %v7822 = vmul.f32 %v7732, %v7806
      %v7823 = vmul.f32 %v7734, %v7807
      %v7824 = vmul.f32 %v7736, %v7808
      %v7825 = vmul.f32 %v7738, %v7809
      %v7826 = vmul.f32 %v7740, %v7810
      %v7827 = vmul.f32 %v7742, %v7811
      %v7828 = vmul.f32 %v7744, %v7812
      %v7829 = vmul.f32 %v7746, %v7813
      %v7830 = vmul.f32 %v7748, %v7814
      %v7831 = vmul.f32 %v7750, %v7815
      %v7832 = vmul.f32 %v7752, %v7816
      %v7833 = vpack.c.bf16 %v7818, %v7817
      %v7834 = vpack.c.bf16 %v7820, %v7819
      %v7835 = vpack.c.bf16 %v7822, %v7821
      %v7836 = vpack.c.bf16 %v7824, %v7823
      %v7837 = vpack.c.bf16 %v7826, %v7825
      %v7838 = vpack.c.bf16 %v7828, %v7827
      %v7839 = vpack.c.bf16 %v7830, %v7829
      %v7840 = vpack.c.bf16 %v7832, %v7831
      %7841 = vst [vmem:[#allocation3 + $0x8] sm:$0xff] %v7833
      %7842 = vst [vmem:[#allocation3 + $0x20] sm:$0xff] %v7834
      %7843 = vst [vmem:[#allocation3 + $0x38] sm:$0xff] %v7835
      %7844 = vst [vmem:[#allocation3 + $0x50] sm:$0xff] %v7836
      %7845 = vst [vmem:[#allocation3 + $0x68] sm:$0xff] %v7837
      %7846 = vst [vmem:[#allocation3 + $0x80] sm:$0xff] %v7838
      %7847 = vst [vmem:[#allocation3 + $0x98] sm:$0xff] %v7839
      %7848 = vst [vmem:[#allocation3 + $0xb0] sm:$0xff] %v7840
      %v7849 = vlaneseq
      %v7850 = vshrl.u32 %v7849, 7
      %v7851 = vsub.s32 2, %v7850
      %v7852 = vrot.slane %v7358, %v7851
      %v7853 = vadd.f32 %v7186, %v7852
      %v7854 = vadd.f32 %v7188, %v7852
      %v7855 = vadd.f32 %v7190, %v7852
      %v7856 = vadd.f32 %v7192, %v7852
      %v7857 = vadd.f32 %v7194, %v7852
      %v7858 = vadd.f32 %v7196, %v7852
      %v7859 = vadd.f32 %v7198, %v7852
      %v7860 = vadd.f32 %v7200, %v7852
      %v7861 = vadd.f32 %v7202, %v7852
      %v7862 = vadd.f32 %v7204, %v7852
      %v7863 = vadd.f32 %v7206, %v7852
      %v7864 = vadd.f32 %v7208, %v7852
      %v7865 = vadd.f32 %v7210, %v7852
      %v7866 = vadd.f32 %v7212, %v7852
      %v7867 = vadd.f32 %v7214, %v7852
      %v7868 = vadd.f32 %v7216, %v7852
      %v7869 = vmul.f32 %v7853, 0.2
      %v7870 = vmul.f32 %v7854, 0.2
      %v7871 = vmul.f32 %v7855, 0.2
      %v7872 = vmul.f32 %v7856, 0.2
      %v7873 = vmul.f32 %v7857, 0.2
      %v7874 = vmul.f32 %v7858, 0.2
      %v7875 = vmul.f32 %v7859, 0.2
      %v7876 = vmul.f32 %v7860, 0.2
      %v7877 = vmul.f32 %v7861, 0.2
      %v7878 = vmul.f32 %v7862, 0.2
      %v7879 = vmul.f32 %v7863, 0.2
      %v7880 = vmul.f32 %v7864, 0.2
      %v7881 = vmul.f32 %v7865, 0.2
      %v7882 = vmul.f32 %v7866, 0.2
      %v7883 = vmul.f32 %v7867, 0.2
      %v7884 = vmul.f32 %v7868, 0.2
      %v7885 = vmax.f32 %v7853, %v7869
      %v7886 = vmax.f32 %v7854, %v7870
      %v7887 = vmax.f32 %v7855, %v7871
      %v7888 = vmax.f32 %v7856, %v7872
      %v7889 = vmax.f32 %v7857, %v7873
      %v7890 = vmax.f32 %v7858, %v7874
      %v7891 = vmax.f32 %v7859, %v7875
      %v7892 = vmax.f32 %v7860, %v7876
      %v7893 = vmax.f32 %v7861, %v7877
      %v7894 = vmax.f32 %v7862, %v7878
      %v7895 = vmax.f32 %v7863, %v7879
      %v7896 = vmax.f32 %v7864, %v7880
      %v7897 = vmax.f32 %v7865, %v7881
      %v7898 = vmax.f32 %v7866, %v7882
      %v7899 = vmax.f32 %v7867, %v7883
      %v7900 = vmax.f32 %v7868, %v7884
      %v7901 = vadd.f32 %v7885, %v495
      %v7902 = vadd.f32 %v7886, %v496
      %v7903 = vadd.f32 %v7887, %v497
      %v7904 = vadd.f32 %v7888, %v498
      %v7905 = vadd.f32 %v7889, %v499
      %v7906 = vadd.f32 %v7890, %v500
      %v7907 = vadd.f32 %v7891, %v501
      %v7908 = vadd.f32 %v7892, %v502
      %v7909 = vadd.f32 %v7893, %v503
      %v7910 = vadd.f32 %v7894, %v504
      %v7911 = vadd.f32 %v7895, %v505
      %v7912 = vadd.f32 %v7896, %v506
      %v7913 = vadd.f32 %v7897, %v507
      %v7914 = vadd.f32 %v7898, %v508
      %v7915 = vadd.f32 %v7899, %v509
      %v7916 = vadd.f32 %v7900, %v510
      %7917 = vmax.xlane.f32.xlu0 %v7901
      %v7918 = vpop.xlane.xlu0 %7917
      %7919 = vmax.xlane.f32.xlu0 %v7902
      %v7920 = vpop.xlane.xlu0 %7919
      %7921 = vmax.xlane.f32.xlu0 %v7903
      %v7922 = vpop.xlane.xlu0 %7921
      %7923 = vmax.xlane.f32.xlu0 %v7904
      %v7924 = vpop.xlane.xlu0 %7923
      %7925 = vmax.xlane.f32.xlu0 %v7905
      %v7926 = vpop.xlane.xlu0 %7925
      %7927 = vmax.xlane.f32.xlu0 %v7906
      %v7928 = vpop.xlane.xlu0 %7927
      %7929 = vmax.xlane.f32.xlu0 %v7907
      %v7930 = vpop.xlane.xlu0 %7929
      %7931 = vmax.xlane.f32.xlu0 %v7908
      %v7932 = vpop.xlane.xlu0 %7931
      %7933 = vmax.xlane.f32.xlu0 %v7909
      %v7934 = vpop.xlane.xlu0 %7933
      %7935 = vmax.xlane.f32.xlu0 %v7910
      %v7936 = vpop.xlane.xlu0 %7935
      %7937 = vmax.xlane.f32.xlu0 %v7911
      %v7938 = vpop.xlane.xlu0 %7937
      %7939 = vmax.xlane.f32.xlu0 %v7912
      %v7940 = vpop.xlane.xlu0 %7939
      %7941 = vmax.xlane.f32.xlu0 %v7913
      %v7942 = vpop.xlane.xlu0 %7941
      %7943 = vmax.xlane.f32.xlu0 %v7914
      %v7944 = vpop.xlane.xlu0 %7943
      %7945 = vmax.xlane.f32.xlu0 %v7915
      %v7946 = vpop.xlane.xlu0 %7945
      %7947 = vmax.xlane.f32.xlu0 %v7916
      %v7948 = vpop.xlane.xlu0 %7947
      %v7949 = vsub.f32 %v7901, %v7918
      %v7950 = vsub.f32 %v7902, %v7920
      %v7951 = vsub.f32 %v7903, %v7922
      %v7952 = vsub.f32 %v7904, %v7924
      %v7953 = vsub.f32 %v7905, %v7926
      %v7954 = vsub.f32 %v7906, %v7928
      %v7955 = vsub.f32 %v7907, %v7930
      %v7956 = vsub.f32 %v7908, %v7932
      %v7957 = vsub.f32 %v7909, %v7934
      %v7958 = vsub.f32 %v7910, %v7936
      %v7959 = vsub.f32 %v7911, %v7938
      %v7960 = vsub.f32 %v7912, %v7940
      %v7961 = vsub.f32 %v7913, %v7942
      %v7962 = vsub.f32 %v7914, %v7944
      %v7963 = vsub.f32 %v7915, %v7946
      %v7964 = vsub.f32 %v7916, %v7948
      %v7965 = vmul.f32 %v7949, 1.442695
      %v7966 = vpow.pop %v7965
      %v7967 = vmul.f32 %v7950, 1.442695
      %v7968 = vpow.pop %v7967
      %v7969 = vmul.f32 %v7951, 1.442695
      %v7970 = vpow.pop %v7969
      %v7971 = vmul.f32 %v7952, 1.442695
      %v7972 = vpow.pop %v7971
      %v7973 = vmul.f32 %v7953, 1.442695
      %v7974 = vpow.pop %v7973
      %v7975 = vmul.f32 %v7954, 1.442695
      %v7976 = vpow.pop %v7975
      %v7977 = vmul.f32 %v7955, 1.442695
      %v7978 = vpow.pop %v7977
      %v7979 = vmul.f32 %v7956, 1.442695
      %v7980 = vpow.pop %v7979
      %v7981 = vmul.f32 %v7957, 1.442695
      %v7982 = vpow.pop %v7981
      %v7983 = vmul.f32 %v7958, 1.442695
      %v7984 = vpow.pop %v7983
      %v7985 = vmul.f32 %v7959, 1.442695
      %v7986 = vpow.pop %v7985
      %v7987 = vmul.f32 %v7960, 1.442695
      %v7988 = vpow.pop %v7987
      %v7989 = vmul.f32 %v7961, 1.442695
      %v7990 = vpow.pop %v7989
      %v7991 = vmul.f32 %v7962, 1.442695
      %v7992 = vpow.pop %v7991
      %v7993 = vmul.f32 %v7963, 1.442695
      %v7994 = vpow.pop %v7993
      %v7995 = vmul.f32 %v7964, 1.442695
      %v7996 = vpow.pop %v7995
      %7997 = vadd.xlane.f32.xlu0 %v7966
      %v7998 = vpop.xlane.xlu0 %7997
      %7999 = vadd.xlane.f32.xlu0 %v7968
      %v8000 = vpop.xlane.xlu0 %7999
      %8001 = vadd.xlane.f32.xlu0 %v7970
      %v8002 = vpop.xlane.xlu0 %8001
      %8003 = vadd.xlane.f32.xlu0 %v7972
      %v8004 = vpop.xlane.xlu0 %8003
      %8005 = vadd.xlane.f32.xlu0 %v7974
      %v8006 = vpop.xlane.xlu0 %8005
      %8007 = vadd.xlane.f32.xlu0 %v7976
      %v8008 = vpop.xlane.xlu0 %8007
      %8009 = vadd.xlane.f32.xlu0 %v7978
      %v8010 = vpop.xlane.xlu0 %8009
      %8011 = vadd.xlane.f32.xlu0 %v7980
      %v8012 = vpop.xlane.xlu0 %8011
      %8013 = vadd.xlane.f32.xlu0 %v7982
      %v8014 = vpop.xlane.xlu0 %8013
      %8015 = vadd.xlane.f32.xlu0 %v7984
      %v8016 = vpop.xlane.xlu0 %8015
      %8017 = vadd.xlane.f32.xlu0 %v7986
      %v8018 = vpop.xlane.xlu0 %8017
      %8019 = vadd.xlane.f32.xlu0 %v7988
      %v8020 = vpop.xlane.xlu0 %8019
      %8021 = vadd.xlane.f32.xlu0 %v7990
      %v8022 = vpop.xlane.xlu0 %8021
      %8023 = vadd.xlane.f32.xlu0 %v7992
      %v8024 = vpop.xlane.xlu0 %8023
      %8025 = vadd.xlane.f32.xlu0 %v7994
      %v8026 = vpop.xlane.xlu0 %8025
      %8027 = vadd.xlane.f32.xlu0 %v7996
      %v8028 = vpop.xlane.xlu0 %8027
      %v8029 = vrcp.pop %v7998
      %v8030 = vrcp.pop %v8000
      %v8031 = vrcp.pop %v8002
      %v8032 = vrcp.pop %v8004
      %v8033 = vrcp.pop %v8006
      %v8034 = vrcp.pop %v8008
      %v8035 = vrcp.pop %v8010
      %v8036 = vrcp.pop %v8012
      %v8037 = vrcp.pop %v8014
      %v8038 = vrcp.pop %v8016
      %v8039 = vrcp.pop %v8018
      %v8040 = vrcp.pop %v8020
      %v8041 = vrcp.pop %v8022
      %v8042 = vrcp.pop %v8024
      %v8043 = vrcp.pop %v8026
      %v8044 = vrcp.pop %v8028
      %v8045 = vmul.f32 %v8029, 0.33333334
      %v8046 = vmul.f32 %v8030, 0.33333334
      %v8047 = vmul.f32 %v8031, 0.33333334
      %v8048 = vmul.f32 %v8032, 0.33333334
      %v8049 = vmul.f32 %v8033, 0.33333334
      %v8050 = vmul.f32 %v8034, 0.33333334
      %v8051 = vmul.f32 %v8035, 0.33333334
      %v8052 = vmul.f32 %v8036, 0.33333334
      %v8053 = vmul.f32 %v8037, 0.33333334
      %v8054 = vmul.f32 %v8038, 0.33333334
      %v8055 = vmul.f32 %v8039, 0.33333334
      %v8056 = vmul.f32 %v8040, 0.33333334
      %v8057 = vmul.f32 %v8041, 0.33333334
      %v8058 = vmul.f32 %v8042, 0.33333334
      %v8059 = vmul.f32 %v8043, 0.33333334
      %v8060 = vmul.f32 %v8044, 0.33333334
      %v8061 = vmul.f32 %v7966, %v8045
      %v8062 = vmul.f32 %v7968, %v8046
      %v8063 = vmul.f32 %v7970, %v8047
      %v8064 = vmul.f32 %v7972, %v8048
      %v8065 = vmul.f32 %v7974, %v8049
      %v8066 = vmul.f32 %v7976, %v8050
      %v8067 = vmul.f32 %v7978, %v8051
      %v8068 = vmul.f32 %v7980, %v8052
      %v8069 = vmul.f32 %v7982, %v8053
      %v8070 = vmul.f32 %v7984, %v8054
      %v8071 = vmul.f32 %v7986, %v8055
      %v8072 = vmul.f32 %v7988, %v8056
      %v8073 = vmul.f32 %v7990, %v8057
      %v8074 = vmul.f32 %v7992, %v8058
      %v8075 = vmul.f32 %v7994, %v8059
      %v8076 = vmul.f32 %v7996, %v8060
      %v8077 = vpack.c.bf16 %v8062, %v8061
      %v8078 = vpack.c.bf16 %v8064, %v8063
      %v8079 = vpack.c.bf16 %v8066, %v8065
      %v8080 = vpack.c.bf16 %v8068, %v8067
      %v8081 = vpack.c.bf16 %v8070, %v8069
      %v8082 = vpack.c.bf16 %v8072, %v8071
      %v8083 = vpack.c.bf16 %v8074, %v8073
      %v8084 = vpack.c.bf16 %v8076, %v8075
      %8085 = vst [vmem:[#allocation3 + $0x10] sm:$0xff] %v8077
      %8086 = vst [vmem:[#allocation3 + $0x28] sm:$0xff] %v8078
      %8087 = vst [vmem:[#allocation3 + $0x40] sm:$0xff] %v8079
      %8088 = vst [vmem:[#allocation3 + $0x58] sm:$0xff] %v8080
      %8089 = vst [vmem:[#allocation3 + $0x70] sm:$0xff] %v8081
      %8090 = vst [vmem:[#allocation3 + $0x88] sm:$0xff] %v8082
      %8091 = vst [vmem:[#allocation3 + $0xa0] sm:$0xff] %v8083
      %8092 = vst [vmem:[#allocation3 + $0xb8] sm:$0xff] %v8084
      %v8093 = vld [vmem:[#allocation3] sm:$0xff]
      %v8094 = vld [vmem:[#allocation3 + $0x8] sm:$0xff]
      %v8095 = vld [vmem:[#allocation3 + $0x10] sm:$0xff]
      %v8096 = vld [vmem:[#allocation3 + $0x18] sm:$0xff]
      %v8097 = vld [vmem:[#allocation3 + $0x20] sm:$0xff]
      %v8098 = vld [vmem:[#allocation3 + $0x28] sm:$0xff]
      %v8099 = vld [vmem:[#allocation3 + $0x30] sm:$0xff]
      %v8100 = vld [vmem:[#allocation3 + $0x38] sm:$0xff]
      %v8101 = vld [vmem:[#allocation3 + $0x40] sm:$0xff]
      %v8102 = vld [vmem:[#allocation3 + $0x48] sm:$0xff]
      %v8103 = vld [vmem:[#allocation3 + $0x50] sm:$0xff]
      %v8104 = vld [vmem:[#allocation3 + $0x58] sm:$0xff]
      %v8105 = vld [vmem:[#allocation3 + $0x60] sm:$0xff]
      %v8106 = vld [vmem:[#allocation3 + $0x68] sm:$0xff]
      %v8107 = vld [vmem:[#allocation3 + $0x70] sm:$0xff]
      %v8108 = vld [vmem:[#allocation3 + $0x78] sm:$0xff]
      %v8109 = vld [vmem:[#allocation3 + $0x80] sm:$0xff]
      %v8110 = vld [vmem:[#allocation3 + $0x88] sm:$0xff]
      %v8111 = vld [vmem:[#allocation3 + $0x90] sm:$0xff]
      %v8112 = vld [vmem:[#allocation3 + $0x98] sm:$0xff]
      %v8113 = vld [vmem:[#allocation3 + $0xa0] sm:$0xff]
      %v8114 = vld [vmem:[#allocation3 + $0xa8] sm:$0xff]
      %v8115 = vld [vmem:[#allocation3 + $0xb0] sm:$0xff]
      %v8116 = vld [vmem:[#allocation3 + $0xb8] sm:$0xff]
      %v8117 = vld [vmem:[#allocation2] sm:$0xff]
      %v8118 = vld [vmem:[#allocation2 + $0x8] sm:$0xff]
      %v8119 = vld [vmem:[#allocation2 + $0x10] sm:$0xff]
      %v8120 = vld [vmem:[#allocation2 + $0x18] sm:$0xff]
      %v8121 = vld [vmem:[#allocation2 + $0x20] sm:$0xff]
      %v8122 = vld [vmem:[#allocation2 + $0x28] sm:$0xff]
      %v8123 = vld [vmem:[#allocation2 + $0x30] sm:$0xff]
      %v8124 = vld [vmem:[#allocation2 + $0x38] sm:$0xff]
      %v8125 = vld [vmem:[#allocation2 + $0x40] sm:$0xff]
      %v8126 = vld [vmem:[#allocation2 + $0x48] sm:$0xff]
      %v8127 = vld [vmem:[#allocation2 + $0x50] sm:$0xff]
      %v8128 = vld [vmem:[#allocation2 + $0x58] sm:$0xff]
      %v8129 = vld [vmem:[#allocation2 + $0x60] sm:$0xff]
      %v8130 = vld [vmem:[#allocation2 + $0x68] sm:$0xff]
      %v8131 = vld [vmem:[#allocation2 + $0x70] sm:$0xff]
      %v8132 = vld [vmem:[#allocation2 + $0x78] sm:$0xff]
      %v8133 = vld [vmem:[#allocation2 + $0x80] sm:$0xff]
      %v8134 = vld [vmem:[#allocation2 + $0x88] sm:$0xff]
      %v8135 = vld [vmem:[#allocation2 + $0x90] sm:$0xff]
      %v8136 = vld [vmem:[#allocation2 + $0x98] sm:$0xff]
      %v8137 = vld [vmem:[#allocation2 + $0xa0] sm:$0xff]
      %v8138 = vld [vmem:[#allocation2 + $0xa8] sm:$0xff]
      %v8139 = vld [vmem:[#allocation2 + $0xb0] sm:$0xff]
      %v8140 = vld [vmem:[#allocation2 + $0xb8] sm:$0xff]
      %s8141 = scalar_lea.vmem %s464, 3
      %v8142 = vld [vmem:[%s8141] sm:$0x1]
      %v8144 = vlaneseq
      %v8145 = vshrl.u32 %v8144, 7
      %v8146 = vsub.s32 0, %v8145
      %v8147 = vrot.slane %v8142, %v8146
      %8149 = vmatprep.subr.bf16.mxu0 0
      %8150 = vmatpush1.bf16.msra.mxu0 %v8117
      %8151 = vmatprep.subr.bf16.mxu0 0
      %8152 = vmatpush1.bf16.msra.mxu0 %v8118
      %8153 = vmatprep.subr.bf16.mxu0 0
      %8154 = vmatpush1.bf16.msra.mxu0 %v8119
      %8155 = vmatprep.subr.bf16.mxu0 0
      %8156 = vmatpush1.bf16.msra.mxu0 %v8120
      %8157 = vmatprep.subr.bf16.mxu0 0
      %8158 = vmatpush1.bf16.msra.mxu0 %v8121
      %8159 = vmatprep.subr.bf16.mxu0 0
      %8160 = vmatpush1.bf16.msra.mxu0 %v8122
      %8161 = vmatprep.subr.bf16.mxu0 0
      %8162 = vmatpush1.bf16.msra.mxu0 %v8123
      %8163 = vmatprep.subr.bf16.mxu0 0
      %8164 = vmatpush1.bf16.msra.mxu0 %v8124
      %8165 = vmatprep.subr.bf16.mxu0 0
      %8166 = vmatpush1.bf16.msra.mxu0 %v8125
      %8167 = vmatprep.subr.bf16.mxu0 0
      %8168 = vmatpush1.bf16.msra.mxu0 %v8126
      %8169 = vmatprep.subr.bf16.mxu0 0
      %8170 = vmatpush1.bf16.msra.mxu0 %v8127
      %8171 = vmatprep.subr.bf16.mxu0 0
      %8172 = vmatpush1.bf16.msra.mxu0 %v8128
      %8173 = vmatprep.subr.bf16.mxu0 0
      %8174 = vmatpush1.bf16.msra.mxu0 %v8129
      %8175 = vmatprep.subr.bf16.mxu0 0
      %8176 = vmatpush1.bf16.msra.mxu0 %v8130
      %8177 = vmatprep.subr.bf16.mxu0 0
      %8178 = vmatpush1.bf16.msra.mxu0 %v8131
      %8179 = vmatprep.subr.bf16.mxu0 0
      %8180 = vmatpush1.bf16.msra.mxu0 %v8132
      %8181 = vmatprep.mubr.bf16.mxu0 %v8094
      %8182 = vmatmul.mubr.bf16.gmra.mrb[0].mxu0 %v8093
      %v8183 = vpop.f32.mrb[0].mxu0
      %v8184 = vadd.f32 %v8147, %v8183
      %v8185 = vpop.f32.mrb[0].mxu0
      %v8186 = vpop.f32.mrb[0].mxu0
      %v8187 = vadd.f32 %v8147, %v8186
      %v8188 = vpop.f32.mrb[0].mxu0
      %8189 = vmatprep.mubr.bf16.mxu0 %v8097
      %8190 = vmatmul.mubr.bf16.gmra.mrb[0].mxu0 %v8096
      %v8191 = vpop.f32.mrb[0].mxu0
      %v8192 = vadd.f32 %v8147, %v8191
      %v8193 = vpop.f32.mrb[0].mxu0
      %v8194 = vpop.f32.mrb[0].mxu0
      %v8195 = vadd.f32 %v8147, %v8194
      %v8196 = vpop.f32.mrb[0].mxu0
      %8197 = vmatprep.mubr.bf16.mxu0 %v8100
      %8198 = vmatmul.mubr.bf16.gmra.mrb[0].mxu0 %v8099
      %v8199 = vpop.f32.mrb[0].mxu0
      %v8200 = vadd.f32 %v8147, %v8199
      %v8201 = vpop.f32.mrb[0].mxu0
      %v8202 = vpop.f32.mrb[0].mxu0
      %v8203 = vadd.f32 %v8147, %v8202
      %v8204 = vpop.f32.mrb[0].mxu0
      %8205 = vmatprep.mubr.bf16.mxu0 %v8103
      %8206 = vmatmul.mubr.bf16.gmra.mrb[0].mxu0 %v8102
      %v8207 = vpop.f32.mrb[0].mxu0
      %v8208 = vadd.f32 %v8147, %v8207
      %v8209 = vpop.f32.mrb[0].mxu0
      %v8210 = vpop.f32.mrb[0].mxu0
      %v8211 = vadd.f32 %v8147, %v8210
      %v8212 = vpop.f32.mrb[0].mxu0
      %8213 = vmatprep.mubr.bf16.mxu0 %v8106
      %8214 = vmatmul.mubr.bf16.gmra.mrb[0].mxu0 %v8105
      %v8215 = vpop.f32.mrb[0].mxu0
      %v8216 = vadd.f32 %v8147, %v8215
      %v8217 = vpop.f32.mrb[0].mxu0
      %v8218 = vpop.f32.mrb[0].mxu0
      %v8219 = vadd.f32 %v8147, %v8218
      %v8220 = vpop.f32.mrb[0].mxu0
      %8221 = vmatprep.mubr.bf16.mxu0 %v8109
      %8222 = vmatmul.mubr.bf16.gmra.mrb[0].mxu0 %v8108
      %v8223 = vpop.f32.mrb[0].mxu0
      %v8224 = vadd.f32 %v8147, %v8223
      %v8225 = vpop.f32.mrb[0].mxu0
      %v8226 = vpop.f32.mrb[0].mxu0
      %v8227 = vadd.f32 %v8147, %v8226
      %v8228 = vpop.f32.mrb[0].mxu0
      %8229 = vmatprep.mubr.bf16.mxu0 %v8112
      %8230 = vmatmul.mubr.bf16.gmra.mrb[0].mxu0 %v8111
      %v8231 = vpop.f32.mrb[0].mxu0
      %v8232 = vadd.f32 %v8147, %v8231
      %v8233 = vpop.f32.mrb[0].mxu0
      %v8234 = vpop.f32.mrb[0].mxu0
      %v8235 = vadd.f32 %v8147, %v8234
      %v8236 = vpop.f32.mrb[0].mxu0
      %8237 = vmatprep.mubr.bf16.mxu0 %v8115
      %8238 = vmatmul.mubr.bf16.gmra.mrb[0].mxu0 %v8114
      %v8239 = vpop.f32.mrb[0].mxu0
      %v8240 = vadd.f32 %v8147, %v8239
      %v8241 = vpop.f32.mrb[0].mxu0
      %v8242 = vpop.f32.mrb[0].mxu0
      %v8243 = vadd.f32 %v8147, %v8242
      %v8244 = vpop.f32.mrb[0].mxu0
      %8245 = vdwg.mxu0
      %8246 = vmatprep.subr.bf16.mxu0 0
      %8247 = vmatpush1.bf16.msra.mxu0 %v8133
      %8248 = vmatprep.subr.bf16.mxu0 0
      %8249 = vmatpush1.bf16.msra.mxu0 %v8134
      %8250 = vmatprep.subr.bf16.mxu0 0
      %8251 = vmatpush1.bf16.msra.mxu0 %v8135
      %8252 = vmatprep.subr.bf16.mxu0 0
      %8253 = vmatpush1.bf16.msra.mxu0 %v8136
      %8254 = vmatprep.subr.bf16.mxu0 0
      %8255 = vmatpush1.bf16.msra.mxu0 %v8137
      %8256 = vmatprep.subr.bf16.mxu0 0
      %8257 = vmatpush1.bf16.msra.mxu0 %v8138
      %8258 = vmatprep.subr.bf16.mxu0 0
      %8259 = vmatpush1.bf16.msra.mxu0 %v8139
      %8260 = vmatprep.subr.bf16.mxu0 0
      %8261 = vmatpush1.bf16.msra.mxu0 %v8140
      %8262 = vmatprep.subr.bf16.mxu0 0
      %8263 = vmatpush1.bf16.msra.mxu0 0
      %8264 = vmatprep.subr.bf16.mxu0 0
      %8265 = vmatpush1.bf16.msra.mxu0 0
      %8266 = vmatprep.subr.bf16.mxu0 0
      %8267 = vmatpush1.bf16.msra.mxu0 0
      %8268 = vmatprep.subr.bf16.mxu0 0
      %8269 = vmatpush1.bf16.msra.mxu0 0
      %8270 = vmatprep.subr.bf16.mxu0 0
      %8271 = vmatpush1.bf16.msra.mxu0 0
      %8272 = vmatprep.subr.bf16.mxu0 0
      %8273 = vmatpush1.bf16.msra.mxu0 0
      %8274 = vmatprep.subr.bf16.mxu0 0
      %8275 = vmatpush1.bf16.msra.mxu0 0
      %8276 = vmatprep.subr.bf16.mxu0 0
      %8277 = vmatpush1.bf16.msra.mxu0 0
      %8278 = vmatprep.mubr.bf16.mxu0 0
      %8279 = vmatmul.mubr.bf16.gmra.mrb[0].mxu0 %v8095
      %v8280 = vpop.f32.mrb[0].mxu0
      %v8281 = vadd.f32 %v8184, %v8280
      %v8282 = vpop.f32.mrb[0].mxu0
      %v8283 = vpop.f32.mrb[0].mxu0
      %v8284 = vadd.f32 %v8187, %v8283
      %v8285 = vpop.f32.mrb[0].mxu0
      %8286 = vmatprep.mubr.bf16.mxu0 0
      %8287 = vmatmul.mubr.bf16.gmra.mrb[0].mxu0 %v8098
      %v8288 = vpop.f32.mrb[0].mxu0
      %v8289 = vadd.f32 %v8192, %v8288
      %v8290 = vpop.f32.mrb[0].mxu0
      %v8291 = vpop.f32.mrb[0].mxu0
      %v8292 = vadd.f32 %v8195, %v8291
      %v8293 = vpop.f32.mrb[0].mxu0
      %8294 = vmatprep.mubr.bf16.mxu0 0
      %8295 = vmatmul.mubr.bf16.gmra.mrb[0].mxu0 %v8101
      %v8296 = vpop.f32.mrb[0].mxu0
      %v8297 = vadd.f32 %v8200, %v8296
      %v8298 = vpop.f32.mrb[0].mxu0
      %v8299 = vpop.f32.mrb[0].mxu0
      %v8300 = vadd.f32 %v8203, %v8299
      %v8301 = vpop.f32.mrb[0].mxu0
      %8302 = vmatprep.mubr.bf16.mxu0 0
      %8303 = vmatmul.mubr.bf16.gmra.mrb[0].mxu0 %v8104
      %v8304 = vpop.f32.mrb[0].mxu0
      %v8305 = vadd.f32 %v8208, %v8304
      %v8306 = vpop.f32.mrb[0].mxu0
      %v8307 = vpop.f32.mrb[0].mxu0
      %v8308 = vadd.f32 %v8211, %v8307
      %v8309 = vpop.f32.mrb[0].mxu0
      %8310 = vmatprep.mubr.bf16.mxu0 0
      %8311 = vmatmul.mubr.bf16.gmra.mrb[0].mxu0 %v8107
      %v8312 = vpop.f32.mrb[0].mxu0
      %v8313 = vadd.f32 %v8216, %v8312
      %v8314 = vpop.f32.mrb[0].mxu0
      %v8315 = vpop.f32.mrb[0].mxu0
      %v8316 = vadd.f32 %v8219, %v8315
      %v8317 = vpop.f32.mrb[0].mxu0
      %8318 = vmatprep.mubr.bf16.mxu0 0
      %8319 = vmatmul.mubr.bf16.gmra.mrb[0].mxu0 %v8110
      %v8320 = vpop.f32.mrb[0].mxu0
      %v8321 = vadd.f32 %v8224, %v8320
      %v8322 = vpop.f32.mrb[0].mxu0
      %v8323 = vpop.f32.mrb[0].mxu0
      %v8324 = vadd.f32 %v8227, %v8323
      %v8325 = vpop.f32.mrb[0].mxu0
      %8326 = vmatprep.mubr.bf16.mxu0 0
      %8327 = vmatmul.mubr.bf16.gmra.mrb[0].mxu0 %v8113
      %v8328 = vpop.f32.mrb[0].mxu0
      %v8329 = vadd.f32 %v8232, %v8328
      %v8330 = vpop.f32.mrb[0].mxu0
      %v8331 = vpop.f32.mrb[0].mxu0
      %v8332 = vadd.f32 %v8235, %v8331
      %v8333 = vpop.f32.mrb[0].mxu0
      %8334 = vmatprep.mubr.bf16.mxu0 0
      %8335 = vmatmul.mubr.bf16.gmra.mrb[0].mxu0 %v8116
      %v8336 = vpop.f32.mrb[0].mxu0
      %v8337 = vadd.f32 %v8240, %v8336
      %v8338 = vpop.f32.mrb[0].mxu0
      %v8339 = vpop.f32.mrb[0].mxu0
      %v8340 = vadd.f32 %v8243, %v8339
      %v8341 = vpop.f32.mrb[0].mxu0
      %8342 = vdwg.mxu0
      %8343 = vadd.xlane.f32.xlu0 %v8281
      %v8344 = vpop.xlane.xlu0 %8343
      %8345 = vadd.xlane.f32.xlu0 %v8284
      %v8346 = vpop.xlane.xlu0 %8345
      %8347 = vadd.xlane.f32.xlu0 %v8289
      %v8348 = vpop.xlane.xlu0 %8347
      %8349 = vadd.xlane.f32.xlu0 %v8292
      %v8350 = vpop.xlane.xlu0 %8349
      %8351 = vadd.xlane.f32.xlu0 %v8297
      %v8352 = vpop.xlane.xlu0 %8351
      %8353 = vadd.xlane.f32.xlu0 %v8300
      %v8354 = vpop.xlane.xlu0 %8353
      %8355 = vadd.xlane.f32.xlu0 %v8305
      %v8356 = vpop.xlane.xlu0 %8355
      %8357 = vadd.xlane.f32.xlu0 %v8308
      %v8358 = vpop.xlane.xlu0 %8357
      %8359 = vadd.xlane.f32.xlu0 %v8313
      %v8360 = vpop.xlane.xlu0 %8359
      %8361 = vadd.xlane.f32.xlu0 %v8316
      %v8362 = vpop.xlane.xlu0 %8361
      %8363 = vadd.xlane.f32.xlu0 %v8321
      %v8364 = vpop.xlane.xlu0 %8363
      %8365 = vadd.xlane.f32.xlu0 %v8324
      %v8366 = vpop.xlane.xlu0 %8365
      %8367 = vadd.xlane.f32.xlu0 %v8329
      %v8368 = vpop.xlane.xlu0 %8367
      %8369 = vadd.xlane.f32.xlu0 %v8332
      %v8370 = vpop.xlane.xlu0 %8369
      %8371 = vadd.xlane.f32.xlu0 %v8337
      %v8372 = vpop.xlane.xlu0 %8371
      %8373 = vadd.xlane.f32.xlu0 %v8340
      %v8374 = vpop.xlane.xlu0 %8373
      %v8375 = vmul.f32 %v8344, %v2331
      %v8376 = vmul.f32 %v8346, %v2331
      %v8377 = vmul.f32 %v8348, %v2331
      %v8378 = vmul.f32 %v8350, %v2331
      %v8379 = vmul.f32 %v8352, %v2331
      %v8380 = vmul.f32 %v8354, %v2331
      %v8381 = vmul.f32 %v8356, %v2331
      %v8382 = vmul.f32 %v8358, %v2331
      %v8383 = vmul.f32 %v8360, %v2331
      %v8384 = vmul.f32 %v8362, %v2331
      %v8385 = vmul.f32 %v8364, %v2331
      %v8386 = vmul.f32 %v8366, %v2331
      %v8387 = vmul.f32 %v8368, %v2331
      %v8388 = vmul.f32 %v8370, %v2331
      %v8389 = vmul.f32 %v8372, %v2331
      %v8390 = vmul.f32 %v8374, %v2331
      %v8391 = vsub.f32 %v8281, %v8375
      %v8392 = vsub.f32 %v8284, %v8376
      %v8393 = vsub.f32 %v8289, %v8377
      %v8394 = vsub.f32 %v8292, %v8378
      %v8395 = vsub.f32 %v8297, %v8379
      %v8396 = vsub.f32 %v8300, %v8380
      %v8397 = vsub.f32 %v8305, %v8381
      %v8398 = vsub.f32 %v8308, %v8382
      %v8399 = vsub.f32 %v8313, %v8383
      %v8400 = vsub.f32 %v8316, %v8384
      %v8401 = vsub.f32 %v8321, %v8385
      %v8402 = vsub.f32 %v8324, %v8386
      %v8403 = vsub.f32 %v8329, %v8387
      %v8404 = vsub.f32 %v8332, %v8388
      %v8405 = vsub.f32 %v8337, %v8389
      %v8406 = vsub.f32 %v8340, %v8390
      %v8407 = vmul.f32 %v8391, %v8391
      %v8408 = vmul.f32 %v8392, %v8392
      %v8409 = vmul.f32 %v8393, %v8393
      %v8410 = vmul.f32 %v8394, %v8394
      %v8411 = vmul.f32 %v8395, %v8395
      %v8412 = vmul.f32 %v8396, %v8396
      %v8413 = vmul.f32 %v8397, %v8397
      %v8414 = vmul.f32 %v8398, %v8398
      %v8415 = vmul.f32 %v8399, %v8399
      %v8416 = vmul.f32 %v8400, %v8400
      %v8417 = vmul.f32 %v8401, %v8401
      %v8418 = vmul.f32 %v8402, %v8402
      %v8419 = vmul.f32 %v8403, %v8403
      %v8420 = vmul.f32 %v8404, %v8404
      %v8421 = vmul.f32 %v8405, %v8405
      %v8422 = vmul.f32 %v8406, %v8406
      %8423 = vadd.xlane.f32.xlu0 %v8407
      %v8424 = vpop.xlane.xlu0 %8423
      %8425 = vadd.xlane.f32.xlu0 %v8408
      %v8426 = vpop.xlane.xlu0 %8425
      %8427 = vadd.xlane.f32.xlu0 %v8409
      %v8428 = vpop.xlane.xlu0 %8427
      %8429 = vadd.xlane.f32.xlu0 %v8410
      %v8430 = vpop.xlane.xlu0 %8429
      %8431 = vadd.xlane.f32.xlu0 %v8411
      %v8432 = vpop.xlane.xlu0 %8431
      %8433 = vadd.xlane.f32.xlu0 %v8412
      %v8434 = vpop.xlane.xlu0 %8433
      %8435 = vadd.xlane.f32.xlu0 %v8413
      %v8436 = vpop.xlane.xlu0 %8435
      %8437 = vadd.xlane.f32.xlu0 %v8414
      %v8438 = vpop.xlane.xlu0 %8437
      %8439 = vadd.xlane.f32.xlu0 %v8415
      %v8440 = vpop.xlane.xlu0 %8439
      %8441 = vadd.xlane.f32.xlu0 %v8416
      %v8442 = vpop.xlane.xlu0 %8441
      %8443 = vadd.xlane.f32.xlu0 %v8417
      %v8444 = vpop.xlane.xlu0 %8443
      %8445 = vadd.xlane.f32.xlu0 %v8418
      %v8446 = vpop.xlane.xlu0 %8445
      %8447 = vadd.xlane.f32.xlu0 %v8419
      %v8448 = vpop.xlane.xlu0 %8447
      %8449 = vadd.xlane.f32.xlu0 %v8420
      %v8450 = vpop.xlane.xlu0 %8449
      %8451 = vadd.xlane.f32.xlu0 %v8421
      %v8452 = vpop.xlane.xlu0 %8451
      %8453 = vadd.xlane.f32.xlu0 %v8422
      %v8454 = vpop.xlane.xlu0 %8453
      %v8455 = vmul.f32 %v8424, %v2331
      %v8456 = vmul.f32 %v8426, %v2331
      %v8457 = vmul.f32 %v8428, %v2331
      %v8458 = vmul.f32 %v8430, %v2331
      %v8459 = vmul.f32 %v8432, %v2331
      %v8460 = vmul.f32 %v8434, %v2331
      %v8461 = vmul.f32 %v8436, %v2331
      %v8462 = vmul.f32 %v8438, %v2331
      %v8463 = vmul.f32 %v8440, %v2331
      %v8464 = vmul.f32 %v8442, %v2331
      %v8465 = vmul.f32 %v8444, %v2331
      %v8466 = vmul.f32 %v8446, %v2331
      %v8467 = vmul.f32 %v8448, %v2331
      %v8468 = vmul.f32 %v8450, %v2331
      %v8469 = vmul.f32 %v8452, %v2331
      %v8470 = vmul.f32 %v8454, %v2331
      %v8471 = vadd.f32 %v8455, 1e-05
      %v8472 = vadd.f32 %v8456, 1e-05
      %v8473 = vadd.f32 %v8457, 1e-05
      %v8474 = vadd.f32 %v8458, 1e-05
      %v8475 = vadd.f32 %v8459, 1e-05
      %v8476 = vadd.f32 %v8460, 1e-05
      %v8477 = vadd.f32 %v8461, 1e-05
      %v8478 = vadd.f32 %v8462, 1e-05
      %v8479 = vadd.f32 %v8463, 1e-05
      %v8480 = vadd.f32 %v8464, 1e-05
      %v8481 = vadd.f32 %v8465, 1e-05
      %v8482 = vadd.f32 %v8466, 1e-05
      %v8483 = vadd.f32 %v8467, 1e-05
      %v8484 = vadd.f32 %v8468, 1e-05
      %v8485 = vadd.f32 %v8469, 1e-05
      %v8486 = vadd.f32 %v8470, 1e-05
      %v8487 = vrsqrt.pop %v8471
      %v8488 = vrsqrt.pop %v8472
      %v8489 = vrsqrt.pop %v8473
      %v8490 = vrsqrt.pop %v8474
      %v8491 = vrsqrt.pop %v8475
      %v8492 = vrsqrt.pop %v8476
      %v8493 = vrsqrt.pop %v8477
      %v8494 = vrsqrt.pop %v8478
      %v8495 = vrsqrt.pop %v8479
      %v8496 = vrsqrt.pop %v8480
      %v8497 = vrsqrt.pop %v8481
      %v8498 = vrsqrt.pop %v8482
      %v8499 = vrsqrt.pop %v8483
      %v8500 = vrsqrt.pop %v8484
      %v8501 = vrsqrt.pop %v8485
      %v8502 = vrsqrt.pop %v8486
      %v8503 = vmul.f32 %v8391, %v8487
      %v8504 = vmul.f32 %v8392, %v8488
      %v8505 = vmul.f32 %v8393, %v8489
      %v8506 = vmul.f32 %v8394, %v8490
      %v8507 = vmul.f32 %v8395, %v8491
      %v8508 = vmul.f32 %v8396, %v8492
      %v8509 = vmul.f32 %v8397, %v8493
      %v8510 = vmul.f32 %v8398, %v8494
      %v8511 = vmul.f32 %v8399, %v8495
      %v8512 = vmul.f32 %v8400, %v8496
      %v8513 = vmul.f32 %v8401, %v8497
      %v8514 = vmul.f32 %v8402, %v8498
      %v8515 = vmul.f32 %v8403, %v8499
      %v8516 = vmul.f32 %v8404, %v8500
      %v8517 = vmul.f32 %v8405, %v8501
      %v8518 = vmul.f32 %v8406, %v8502
      %s8519 = scalar_lea.vmem %s468, 3
      %v8520 = vld [vmem:[%s8519] sm:$0x1]
      %v8522 = vlaneseq
      %v8523 = vshrl.u32 %v8522, 7
      %v8524 = vsub.s32 0, %v8523
      %v8525 = vrot.slane %v8520, %v8524
      %v8527 = vmul.f32 %v8503, %v8525
      %v8528 = vmul.f32 %v8504, %v8525
      %v8529 = vmul.f32 %v8505, %v8525
      %v8530 = vmul.f32 %v8506, %v8525
      %v8531 = vmul.f32 %v8507, %v8525
      %v8532 = vmul.f32 %v8508, %v8525
      %v8533 = vmul.f32 %v8509, %v8525
      %v8534 = vmul.f32 %v8510, %v8525
      %v8535 = vmul.f32 %v8511, %v8525
      %v8536 = vmul.f32 %v8512, %v8525
      %v8537 = vmul.f32 %v8513, %v8525
      %v8538 = vmul.f32 %v8514, %v8525
      %v8539 = vmul.f32 %v8515, %v8525
      %v8540 = vmul.f32 %v8516, %v8525
      %v8541 = vmul.f32 %v8517, %v8525
      %v8542 = vmul.f32 %v8518, %v8525
      %s8543 = scalar_lea.vmem %s472, 3
      %v8544 = vld [vmem:[%s8543] sm:$0x1]
      %v8546 = vlaneseq
      %v8547 = vshrl.u32 %v8546, 7
      %v8548 = vsub.s32 0, %v8547
      %v8549 = vrot.slane %v8544, %v8548
      %v8551 = vadd.f32 %v8527, %v8549
      %v8552 = vadd.f32 %v8528, %v8549
      %v8553 = vadd.f32 %v8529, %v8549
      %v8554 = vadd.f32 %v8530, %v8549
      %v8555 = vadd.f32 %v8531, %v8549
      %v8556 = vadd.f32 %v8532, %v8549
      %v8557 = vadd.f32 %v8533, %v8549
      %v8558 = vadd.f32 %v8534, %v8549
      %v8559 = vadd.f32 %v8535, %v8549
      %v8560 = vadd.f32 %v8536, %v8549
      %v8561 = vadd.f32 %v8537, %v8549
      %v8562 = vadd.f32 %v8538, %v8549
      %v8563 = vadd.f32 %v8539, %v8549
      %v8564 = vadd.f32 %v8540, %v8549
      %v8565 = vadd.f32 %v8541, %v8549
      %v8566 = vadd.f32 %v8542, %v8549
      %8567 = vmatprep.subr.mxu0 0.0
      %8568 = vmatpush1.msra.mxu0 %v8551
      %8569 = vmatprep.subr.mxu0 0.0
      %8570 = vmatpush1.msra.mxu0 %v8552
      %8571 = vmatprep.subr.mxu0 0.0
      %8572 = vmatpush1.msra.mxu0 %v8553
      %8573 = vmatprep.subr.mxu0 0.0
      %8574 = vmatpush1.msra.mxu0 %v8554
      %8575 = vmatprep.subr.mxu0 0.0
      %8576 = vmatpush1.msra.mxu0 %v8555
      %8577 = vmatprep.subr.mxu0 0.0
      %8578 = vmatpush1.msra.mxu0 %v8556
      %8579 = vmatprep.subr.mxu0 0.0
      %8580 = vmatpush1.msra.mxu0 %v8557
      %8581 = vmatprep.subr.mxu0 0.0
      %8582 = vmatpush1.msra.mxu0 %v8558
      %8583 = vmatprep.subr.mxu0 0.0
      %8584 = vmatpush1.msra.mxu0 %v8559
      %8585 = vmatprep.subr.mxu0 0.0
      %8586 = vmatpush1.msra.mxu0 %v8560
      %8587 = vmatprep.subr.mxu0 0.0
      %8588 = vmatpush1.msra.mxu0 %v8561
      %8589 = vmatprep.subr.mxu0 0.0
      %8590 = vmatpush1.msra.mxu0 %v8562
      %8591 = vmatprep.subr.mxu0 0.0
      %8592 = vmatpush1.msra.mxu0 %v8563
      %8593 = vmatprep.subr.mxu0 0.0
      %8594 = vmatpush1.msra.mxu0 %v8564
      %8595 = vmatprep.subr.mxu0 0.0
      %8596 = vmatpush1.msra.mxu0 %v8565
      %8597 = vmatprep.subr.mxu0 0.0
      %8598 = vmatpush1.msra.mxu0 %v8566
      %8599 = vmatprep.subr.mxu0 0.0
      %8600 = vmatpush1.msra.mxu0 0.0
      %8601 = vmatprep.subr.mxu0 0.0
      %8602 = vmatpush1.msra.mxu0 0.0
      %8603 = vmatprep.subr.mxu0 0.0
      %8604 = vmatpush1.msra.mxu0 0.0
      %8605 = vmatprep.subr.mxu0 0.0
      %8606 = vmatpush1.msra.mxu0 0.0
      %8607 = vmatprep.subr.mxu0 0.0
      %8608 = vmatpush1.msra.mxu0 0.0
      %8609 = vmatprep.subr.mxu0 0.0
      %8610 = vmatpush1.msra.mxu0 0.0
      %8611 = vmatprep.subr.mxu0 0.0
      %8612 = vmatpush1.msra.mxu0 0.0
      %8613 = vmatprep.subr.mxu0 0.0
      %8614 = vmatpush1.msra.mxu0 0.0
      %8615 = vmatprep.subr.mxu0 0.0
      %8616 = vmatpush1.msra.mxu0 0.0
      %8617 = vmatprep.subr.mxu0 0.0
      %8618 = vmatpush1.msra.mxu0 0.0
      %8619 = vmatprep.subr.mxu0 0.0
      %8620 = vmatpush1.msra.mxu0 0.0
      %8621 = vmatprep.subr.mxu0 0.0
      %8622 = vmatpush1.msra.mxu0 0.0
      %8623 = vmatprep.subr.mxu0 0.0
      %8624 = vmatpush1.msra.mxu0 0.0
      %8625 = vmatprep.subr.mxu0 0.0
      %8626 = vmatpush1.msra.mxu0 0.0
      %8627 = vmatprep.subr.mxu0 0.0
      %8628 = vmatpush1.msra.mxu0 0.0
      %8629 = vmatprep.subr.mxu0 0.0
      %8630 = vmatpush1.msra.mxu0 0.0
      %8631 = vmatprep.mubr.f32.mxu0 0.0
      %8632 = vmatmul.mubr.f32.gmra.mrb[0].mxu0 %v511
      %v8633 = vpop.f32.mrb[0].mxu0
      %v8634 = vadd.f32 0.0, %v8633
      %v8635 = vpop.f32.mrb[0].mxu0
      %8636 = vdwg.mxu0
      %v8642 = vcombine.low %v579, %v2589
      %v8643 = vcombine.low %v4604, %v6619
      %v8645 = vunpack.c.l.s4 1983009808
      %v8646 = vunpack.c.0.s8 %v8645
      %v8647 = vlaneseq
      %v8648 = vshrl.u32 %v8647, 7
      %v8649 = vsub.s32 %v8646, %v8648
      %v8650 = vrot.slane %v8642, %v8649
      %v8652 = vunpack.c.l.s4 1983009808
      %v8653 = vunpack.c.0.s8 %v8652
      %v8654 = vlaneseq
      %v8655 = vshrl.u32 %v8654, 7
      %v8656 = vsub.s32 %v8653, %v8655
      %v8657 = vrot.slane %v8643, %v8656
      %v8658 = vcombine.low %v8650, %v8657
      %v8660 = vunpack.c.l.s4 1983009808
      %v8661 = vunpack.c.0.s8 %v8660
      %v8662 = vlaneseq
      %v8663 = vshrl.u32 %v8662, 7
      %v8664 = vsub.s32 %v8661, %v8663
      %v8665 = vrot.slane %v8634, %v8664
      %8668 = vst [vmem:[%s477] sm:$0xff] %v8658
      %8669 = vst [vmem:[%s477 + $0x8] sm:$0x3] %v8665
      %p8670 = scmp.lt.s32.totalorder %s20, 1
      %s8671 = scalar_select %p8670, %s20, 1
      %s8672 = smul.addr %s8671, 5
      %s8673 = smul.addr %s8672, 2
      %s8674 = scalar_lea.vmem %s9, %s8673
      // Predicated region
      $region57: #{gat_forward.1} parent=55 // pred_check
        %p8675 = pneg %p272
      $region58: #{gat_forward.1} parent=55 // pred_check_branch
        %8677 = sbr.rel (%p8675) target = $region60
      $region59: #{gat_forward.1} parent=55 // pred_region
        _
      $region60: #{gat_forward.1} parent=55 // pred_fallthru
        _
    $region56: #{gat_forward.1} parent=5 // pred_fallthru
      _
    %p8678 = scmp.le.s32.totalorder 2, %s15
    // Predicated region
    $region61: #{gat_forward.1} parent=5 // pred_check
      %p8679 = pneg %p8678
    $region62: #{gat_forward.1} parent=5 // pred_check_branch
      %8681 = sbr.rel (%p8679) target = $region64
    $region63: #{gat_forward.1} parent=5 // pred_region
      %s8682 = ssub.s32 %s15, 2
      // Predicated region
      $region65: #{gat_forward.1} parent=63 // pred_check
        %p8683 = pneg %p278
      $region66: #{gat_forward.1} parent=63 // pred_check_branch
        %8685 = sbr.rel (%p8683) target = $region68
      $region67: #{gat_forward.1} parent=63 // pred_region
        %p8686 = scmp.lt.s32.totalorder %s21, 1
        %s8687 = scalar_select %p8686, %s21, 1
        %s8688 = smul.addr %s8687, 5
        %s8689 = smul.addr %s8688, 2
        %s8690 = scalar_lea.vmem %s9, %s8689
      $region68: #{gat_forward.1} parent=63 // pred_fallthru
        _
    $region64: #{gat_forward.1} parent=5 // pred_fallthru
      _
  $region6: #{gat_forward.1} parent=0 // loop_footer
    %s19 = sadd.s32 1, %s15
  $region7: #{gat_forward.1} parent=0 // loop_footer_branch
    %14 = sbr.rel target = $region3
  $region8: #{gat_forward.1} parent=0 // loop_exit
    _

</llo_original>
